<compile_context>
chip_gen: v7x
topology: tpu7x:2x2x1
jax: 0.10.0
libtpu: 0.0.40
codegen_flags: <defaults>
</compile_context>

<pallas_src>
import math
import functools

import jax
import jax.numpy as jnp
from jax.experimental import pallas as pl
from jax.experimental.pallas import tpu as pltpu


# ------------------------------ Pallas kernel ------------------------------

def _mha_kernel(*refs, num_heads, causal, has_pe, has_ffn):
    """One (batch, q-tile) grid cell of:
         LayerNorm(MHA(q, kv, mask) + q)            [+ optional fused FFN]
    with the KV projection hoisted to the first q-tile of each batch and cached
    in a bf16 VMEM scratch. The residual is always the (optionally PE-shifted)
    query input, matching the PyTorch forward.
    """
    i = 0
    q_ref = refs[i]; i += 1          # (1, tq, E)
    kv_ref = refs[i]; i += 1         # (1, Skv, E)
    mask_ref = refs[i]; i += 1       # (tq, Skv) additive, bf16
    pe_ref = None
    if has_pe:
        pe_ref = refs[i]; i += 1     # (tq, E) f32
    (wq_ref, bq_ref, wkv_ref, bkv_ref, wo_ref, bo_ref,
     g_ref, beta_ref) = refs[i:i + 8]; i += 8
    if has_ffn:
        w1_ref, b1_ref, w2_ref, b2_ref = refs[i:i + 4]; i += 4
    out_ref = refs[i]; i += 1        # (1, tq, E)
    kvs_ref = refs[i]                # VMEM scratch (Skv, 2E) bf16

    tq = q_ref.shape[1]
    E = q_ref.shape[2]
    Skv = kv_ref.shape[1]
    dh = E // num_heads
    scale = 1.0 / math.sqrt(dh)

    # ---- KV projection: once per batch (q axis is "arbitrary"/serial), cached.
    @pl.when(pl.program_id(1) == 0)
    def _():
        xkv = kv_ref[0].astype(jnp.bfloat16)                       # (Skv, E)
        kv = jnp.dot(xkv, wkv_ref[...],
                     preferred_element_type=jnp.float32) + bkv_ref[...]
        kvs_ref[...] = kv.astype(jnp.bfloat16)                     # (Skv, 2E)

    # ---- Query path (residual kept in f32; PE add fused in-kernel).
    xq = q_ref[0].astype(jnp.float32)                              # (tq, E)
    if has_pe:
        xq = xq + pe_ref[...].astype(jnp.float32)
    # Fold 1/sqrt(dh) into q (one (tq, E) multiply, not (H, tq, Skv)).
    q = (jnp.dot(xq.astype(jnp.bfloat16), wq_ref[...],
                 preferred_element_type=jnp.float32) + bq_ref[...]) * scale

    # ---- Additive mask: user mask + in-kernel causal (no (S,S) causal HBM read).
    add_mask = mask_ref[...].astype(jnp.float32)                   # (tq, Skv)
    if causal:
        q0 = pl.program_id(1) * tq
        qi = q0 + jax.lax.broadcasted_iota(jnp.int32, (tq, Skv), 0)
        ki = jax.lax.broadcasted_iota(jnp.int32, (tq, Skv), 1)
        add_mask = add_mask + jnp.where(ki > qi,
                                        jnp.float32(-1e9), jnp.float32(0.0))

    # ---- Per-head attention with lane-aligned head slices (no transposes).
    # TODO(synk): for long KV sequences, tile the KV axis with an online
    # (flash-style) softmax so the (tq, Skv) score tile stays bounded.
    ctx_parts = []
    for h in range(num_heads):
        ksl = slice(h * dh, (h + 1) * dh)
        vsl = slice(E + h * dh, E + (h + 1) * dh)
        q_h = q[:, ksl].astype(jnp.bfloat16)                       # (tq, dh)
        k_h = kvs_ref[:, ksl]                                      # (Skv, dh) bf16
        v_h = kvs_ref[:, vsl]                                      # (Skv, dh) bf16
        s_h = jnp.dot(q_h, k_h.T,
                      preferred_element_type=jnp.float32) + add_mask
        m_h = jnp.max(s_h, axis=-1, keepdims=True)
        p_h = jnp.exp(s_h - m_h)
        denom = jnp.sum(p_h, axis=-1, keepdims=True)
        p_h = p_h * pl.reciprocal(denom, approx=True)              # EUP slot
        ctx_parts.append(jnp.dot(p_h.astype(jnp.bfloat16), v_h,
                                 preferred_element_type=jnp.float32))
    ctx = jnp.concatenate(ctx_parts, axis=-1)                      # (tq, E)

    attn = jnp.dot(ctx.astype(jnp.bfloat16), wo_ref[...],
                   preferred_element_type=jnp.float32) + bo_ref[...]

    # ---- Fused epilogue: residual add + LayerNorm (f32 statistics).
    x = attn + xq
    mu = jnp.mean(x, axis=-1, keepdims=True)
    var = jnp.mean((x - mu) ** 2, axis=-1, keepdims=True)
    y = (x - mu) * jax.lax.rsqrt(var + 1e-5) * g_ref[...] + beta_ref[...]

    # ---- Optional fused FFN (x4 never leaves VMEM).
    if has_ffn:
        h1 = jnp.dot(y.astype(jnp.bfloat16), w1_ref[...],
                     preferred_element_type=jnp.float32) + b1_ref[...]
        h1 = jnp.maximum(h1, 0.0)
        y = jnp.dot(h1.astype(jnp.bfloat16), w2_ref[...],
                    preferred_element_type=jnp.float32) + b2_ref[...]

    out_ref[0] = y.astype(out_ref.dtype)


# ------------------------------ pallas_call wrapper ------------------------------

def _seq_tile(S, max_tile=256):
    """q-tile: biggest divisor of S up to max_tile, keeping sublanes % 8 == 0."""
    if S <= max_tile:
        return S
    for t in (256, 128, 64, 32, 16, 8):
        if t <= max_tile and S % t == 0:
            return t
    return S


def mha_block(x_q, x_kv, mask, mp, lnp, num_heads, *,
              causal=False, pe=None, ffn_p=None, out_dtype=jnp.bfloat16):
    """LayerNorm(MHA(q=x_q[+pe], kv=x_kv, mask) + (x_q[+pe]))  [+ fused FFN]."""
    B, S, E = x_q.shape
    Skv = x_kv.shape[1]
    tq = _seq_tile(S)
    grid = (B, S // tq)

    q_spec = pl.BlockSpec((1, tq, E), lambda b, q: (b, q, 0))
    kv_spec = pl.BlockSpec((1, Skv, E), lambda b, q: (b, 0, 0))
    mask_spec = pl.BlockSpec((tq, Skv), lambda b, q: (q, 0))

    def wspec(shape):
        # Constant-index weights/biases: single pipeline buffer (VMEM saving).
        n = len(shape)
        return pl.BlockSpec(shape, lambda b, q, n=n: (0,) * n,
                            pipeline_mode=pl.Buffered(1))

    in_specs = [q_spec, kv_spec, mask_spec]
    inputs = [x_q, x_kv, mask]
    if pe is not None:
        in_specs.append(pl.BlockSpec((tq, E), lambda b, q: (q, 0)))
        inputs.append(pe)
    weights = [mp["wq"], mp["bq"], mp["wkv"], mp["bkv"], mp["wo"], mp["bo"],
               lnp["gamma"], lnp["beta"]]
    if ffn_p is not None:
        weights += [ffn_p["w1"], ffn_p["b1"], ffn_p["w2"], ffn_p["b2"]]
    in_specs += [wspec(w.shape) for w in weights]
    inputs += weights

    kernel = functools.partial(_mha_kernel, num_heads=num_heads, causal=causal,
                               has_pe=pe is not None, has_ffn=ffn_p is not None)

    return pl.pallas_call(
        kernel,
        out_shape=jax.ShapeDtypeStruct((B, S, E), out_dtype),
        grid_spec=pltpu.PrefetchScalarGridSpec(
            num_scalar_prefetch=0,
            grid=grid,
            in_specs=in_specs,
            out_specs=q_spec,
            scratch_shapes=[pltpu.VMEM((Skv, 2 * E), jnp.bfloat16)]),
        # q axis is "arbitrary": the cached KV scratch is (re)built at q-tile 0
        # of each batch. Batch stays "parallel" so v7x's 2 TCs both get work.
        compiler_params=pltpu.CompilerParams(
            dimension_semantics=("parallel", "arbitrary"),
            vmem_limit_bytes=64 * 1024 * 1024),
    )(*inputs)


# ------------------------------ glue (plain JAX) ------------------------------

def sinusoidal_pos_encoding(seq_len, embed_size):
    position = jnp.arange(seq_len, dtype=jnp.float32)[:, None]
    div_term = jnp.exp(jnp.arange(0, embed_size, 2, dtype=jnp.float32)
                       * -(math.log(10000.0) / embed_size))
    ang = position * div_term                                  # (S, E/2)
    pe = jnp.zeros((seq_len, embed_size), jnp.float32)
    pe = pe.at[:, 0::2].set(jnp.sin(ang))
    pe = pe.at[:, 1::2].set(jnp.cos(ang))
    return pe


def init_params(key, embed_size, dim_feedforward):
    E, F = embed_size, dim_feedforward
    keys = iter(jax.random.split(key, 16))

    def lin(k, din, dout):
        w = (0.02 * jax.random.normal(k, (din, dout), jnp.float32)).astype(jnp.bfloat16)
        b = jnp.zeros((1, dout), jnp.float32)
        return w, b

    def mha_params():
        wq, bq = lin(next(keys), E, E)
        wkv, bkv = lin(next(keys), E, 2 * E)      # fused K||V projection
        wo, bo = lin(next(keys), E, E)
        return dict(wq=wq, bq=bq, wkv=wkv, bkv=bkv, wo=wo, bo=bo)

    def ln_params():
        return dict(gamma=jnp.ones((1, E), jnp.float32),
                    beta=jnp.zeros((1, E), jnp.float32))

    w1, b1 = lin(next(keys), E, F)
    w2, b2 = lin(next(keys), F, E)
    return dict(
        masked_mha=mha_params(), cross_mha_1=mha_params(),
        cross_mha_2=mha_params(), cross_mha_3=mha_params(),
        norm1=ln_params(), norm2=ln_params(), norm3=ln_params(),
        ffn=dict(w1=w1, b1=b1, w2=w2, b2=b2),
    )


def decoder_layer_c_forward(params, shifted_right_outputs, ae_outputs, attn_mask,
                            num_heads):
    """Mirrors DecoderLayerC.forward (dropout == identity). 4 pallas_calls."""
    B, S, E = shifted_right_outputs.shape
    mask = attn_mask.astype(jnp.bfloat16)   # additive mask; bf16 in HBM

    # 1) masked (causal) self-attention + add & norm1 (fused epilogue)
    x1 = mha_block(shifted_right_outputs, shifted_right_outputs, mask,
                   params["masked_mha"], params["norm1"], num_heads, causal=True)

    # 2) cross attention 1 + add & norm2
    x2 = mha_block(x1, ae_outputs, mask,
                   params["cross_mha_1"], params["norm2"], num_heads)

    # 3) cross attention 2 + add & norm3 (PE add fused into the kernel:
    #    query = residual = ae_outputs + pos_encoding, key/value = ae_outputs)
    pe = sinusoidal_pos_encoding(ae_outputs.shape[1], E)
    x3 = mha_block(ae_outputs, ae_outputs, mask,
                   params["cross_mha_2"], params["norm3"], num_heads, pe=pe)

    # 4) cross attention 3 + add & norm2 (re-used, as in PyTorch) + fused FFN
    return mha_block(x2, x3, mask,
                     params["cross_mha_3"], params["norm2"], num_heads,
                     ffn_p=params["ffn"], out_dtype=jnp.float32)


# ------------------------------ demo ------------------------------

if __name__ == "__main__":
    # Small, layout-friendly shapes: E multiple of 128 (full-width vst) and
    # head_dim = E/heads = 128 so every per-head slice is lane-aligned.
    B, S, E, HEADS, FF = 2, 16, 256, 2, 512

    key = jax.random.PRNGKey(0)
    k_p, k_x, k_ae = jax.random.split(key, 3)

    params = init_params(k_p, E, FF)
    shifted_right_outputs = jax.random.normal(k_x, (B, S, E), jnp.float32)
    ae_outputs = jax.random.normal(k_ae, (B, S, E), jnp.float32)
    attn_mask = jnp.zeros((S, S), jnp.float32)   # additive padding mask (none)

    fwd = jax.jit(functools.partial(decoder_layer_c_forward, num_heads=HEADS))
    out = fwd(params, shifted_right_outputs, ae_outputs, attn_mask)
    jax.block_until_ready(out)

    assert out.shape == (B, S, E) and out.dtype == jnp.float32
    print("KERNEL_OK")
</pallas_src>

<mosaic_0001>
module attributes {stable_mosaic.version = 11 : i64} {
  func.func @_mha_kernel(%arg0: i32, %arg1: i32, %arg2: memref<1x16x256xf32, #tpu.memory_space<vmem>>, %arg3: memref<1x16x256xf32, #tpu.memory_space<vmem>>, %arg4: memref<16x16xbf16, #tpu.memory_space<vmem>>, %arg5: memref<256x256xbf16, #tpu.memory_space<vmem>>, %arg6: memref<1x256xf32, #tpu.memory_space<vmem>>, %arg7: memref<256x512xbf16, #tpu.memory_space<vmem>>, %arg8: memref<1x512xf32, #tpu.memory_space<vmem>>, %arg9: memref<256x256xbf16, #tpu.memory_space<vmem>>, %arg10: memref<1x256xf32, #tpu.memory_space<vmem>>, %arg11: memref<1x256xf32, #tpu.memory_space<vmem>>, %arg12: memref<1x256xf32, #tpu.memory_space<vmem>>, %arg13: memref<1x16x256xbf16, #tpu.memory_space<vmem>>, %arg14: memref<16x512xbf16, #tpu.memory_space<vmem>>) attributes {dimension_semantics = [#tpu.dimension_semantics<parallel>, #tpu.dimension_semantics<arbitrary>], iteration_bounds = array<i64: 2, 1>, scalar_prefetch = 0 : i64, scratch_operands = 1 : i64, tpu.core_type = #tpu.core_type<tc>, window_params = [{transform_indices = @transform_0, window_bounds = array<i64: 1, 16, 256>}, {transform_indices = @transform_1, window_bounds = array<i64: 1, 16, 256>}, {transform_indices = @transform_2, window_bounds = array<i64: 16, 16>}, {pipeline_mode = #tpu.pipeline_mode<synchronous>, transform_indices = @transform_3, window_bounds = array<i64: 256, 256>}, {pipeline_mode = #tpu.pipeline_mode<synchronous>, transform_indices = @transform_4, window_bounds = array<i64: 1, 256>}, {pipeline_mode = #tpu.pipeline_mode<synchronous>, transform_indices = @transform_5, window_bounds = array<i64: 256, 512>}, {pipeline_mode = #tpu.pipeline_mode<synchronous>, transform_indices = @transform_6, window_bounds = array<i64: 1, 512>}, {pipeline_mode = #tpu.pipeline_mode<synchronous>, transform_indices = @transform_7, window_bounds = array<i64: 256, 256>}, {pipeline_mode = #tpu.pipeline_mode<synchronous>, transform_indices = @transform_8, window_bounds = array<i64: 1, 256>}, {pipeline_mode = #tpu.pipeline_mode<synchronous>, transform_indices = @transform_9, window_bounds = array<i64: 1, 256>}, {pipeline_mode = #tpu.pipeline_mode<synchronous>, transform_indices = @transform_10, window_bounds = array<i64: 1, 256>}, {transform_indices = @transform_11, window_bounds = array<i64: 1, 16, 256>}]} {
    %c0_i32 = arith.constant 0 : i32
    %0 = arith.cmpi eq, %arg1, %c0_i32 : i32
    %1 = arith.extui %0 : i1 to i32
    %c0_i32_0 = arith.constant 0 : i32
    %2 = arith.cmpi ne, %1, %c0_i32_0 : i32
    scf.if %2 {
      %c0_42 = arith.constant 0 : index
      %c0_43 = arith.constant 0 : index
      %c0_44 = arith.constant 0 : index
      %99 = vector.load %arg3[%c0_42, %c0_43, %c0_44] : memref<1x16x256xf32, #tpu.memory_space<vmem>>, vector<1x16x256xf32>
      %100 = vector.shape_cast %99 : vector<1x16x256xf32> to vector<16x256xf32>
      %101 = arith.truncf %100 : vector<16x256xf32> to vector<16x256xbf16>
      %c0_45 = arith.constant 0 : index
      %c0_46 = arith.constant 0 : index
      %102 = vector.load %arg7[%c0_45, %c0_46] : memref<256x512xbf16, #tpu.memory_space<vmem>>, vector<256x512xbf16>
      %cst_47 = arith.constant dense<0.000000e+00> : vector<16x512xf32>
      %103 = tpu.matmul %101, %102, %cst_47 {dimension_numbers = #tpu.dot_dimension_numbers<[1], [0], [0], [1], [0, 0, 1, 1], [], []>} : vector<16x256xbf16>, vector<256x512xbf16>, vector<16x512xf32> -> vector<16x512xf32>
      %c0_48 = arith.constant 0 : index
      %c0_49 = arith.constant 0 : index
      %104 = vector.load %arg8[%c0_48, %c0_49] : memref<1x512xf32, #tpu.memory_space<vmem>>, vector<1x512xf32>
      %105 = vector.broadcast %104 : vector<1x512xf32> to vector<16x512xf32>
      %106 = arith.addf %103, %105 : vector<16x512xf32>
      %107 = arith.truncf %106 : vector<16x512xf32> to vector<16x512xbf16>
      %c0_50 = arith.constant 0 : index
      %c0_51 = arith.constant 0 : index
      %108 = vector.load %arg14[%c0_50, %c0_51] : memref<16x512xbf16, #tpu.memory_space<vmem>>, vector<16x512xbf16>
      tpu.vector_store %arg14[%c0_50, %c0_51], %107 {strides = array<i32>} : memref<16x512xbf16, #tpu.memory_space<vmem>>, vector<16x512xbf16>,
    } else {
    }
    %c0 = arith.constant 0 : index
    %c0_1 = arith.constant 0 : index
    %c0_2 = arith.constant 0 : index
    %3 = vector.load %arg2[%c0, %c0_1, %c0_2] : memref<1x16x256xf32, #tpu.memory_space<vmem>>, vector<1x16x256xf32>
    %4 = vector.shape_cast %3 : vector<1x16x256xf32> to vector<16x256xf32>
    %5 = arith.truncf %4 : vector<16x256xf32> to vector<16x256xbf16>
    %c0_3 = arith.constant 0 : index
    %c0_4 = arith.constant 0 : index
    %6 = vector.load %arg5[%c0_3, %c0_4] : memref<256x256xbf16, #tpu.memory_space<vmem>>, vector<256x256xbf16>
    %cst = arith.constant dense<0.000000e+00> : vector<16x256xf32>
    %7 = tpu.matmul %5, %6, %cst {dimension_numbers = #tpu.dot_dimension_numbers<[1], [0], [0], [1], [0, 0, 1, 1], [], []>} : vector<16x256xbf16>, vector<256x256xbf16>, vector<16x256xf32> -> vector<16x256xf32>
    %c0_5 = arith.constant 0 : index
    %c0_6 = arith.constant 0 : index
    %8 = vector.load %arg6[%c0_5, %c0_6] : memref<1x256xf32, #tpu.memory_space<vmem>>, vector<1x256xf32>
    %9 = vector.broadcast %8 : vector<1x256xf32> to vector<16x256xf32>
    %10 = arith.addf %7, %9 : vector<16x256xf32>
    %cst_7 = arith.constant 0.0883883461 : f32
    %11 = vector.broadcast %cst_7 : f32 to vector<16x256xf32>
    %12 = arith.mulf %10, %11 : vector<16x256xf32>
    %c0_8 = arith.constant 0 : index
    %c0_9 = arith.constant 0 : index
    %13 = vector.load %arg4[%c0_8, %c0_9] : memref<16x16xbf16, #tpu.memory_space<vmem>>, vector<16x16xbf16>
    %14 = arith.extf %13 : vector<16x16xbf16> to vector<16x16xf32>
    %c16_i32 = arith.constant 16 : i32
    %15 = arith.muli %arg1, %c16_i32 : i32
    %16 = tpu.iota {dimensions = array<i32: 0>} : vector<16x16xi32>
    %17 = vector.broadcast %15 : i32 to vector<16x16xi32>
    %18 = arith.addi %17, %16 : vector<16x16xi32>
    %19 = tpu.iota {dimensions = array<i32: 1>} : vector<16x16xi32>
    %20 = arith.cmpi sgt, %19, %18 : vector<16x16xi32>
    %cst_10 = arith.constant -1.000000e+09 : f32
    %cst_11 = arith.constant 0.000000e+00 : f32
    %21 = vector.broadcast %cst_10 : f32 to vector<16x16xf32>
    %22 = vector.broadcast %cst_11 : f32 to vector<16x16xf32>
    %23 = arith.select %20, %21, %22 : vector<16x16xi1>, vector<16x16xf32>
    %24 = arith.addf %14, %23 : vector<16x16xf32>
    %25 = vector.extract_strided_slice %12 {offsets = [0, 0], sizes = [16, 128], strides = [1, 1]} : vector<16x256xf32> to vector<16x128xf32>
    %26 = arith.truncf %25 : vector<16x128xf32> to vector<16x128xbf16>
    %c0_12 = arith.constant 0 : index
    %c0_13 = arith.constant 0 : index
    %27 = vector.load %arg14[%c0_12, %c0_13] : memref<16x512xbf16, #tpu.memory_space<vmem>>, vector<16x128xbf16>
    %c0_14 = arith.constant 0 : index
    %c256 = arith.constant 256 : index
    %28 = vector.load %arg14[%c0_14, %c256] : memref<16x512xbf16, #tpu.memory_space<vmem>>, vector<16x128xbf16>
    %29 = tpu.transpose %27, [1, 0] : vector<16x128xbf16> -> vector<128x16xbf16>
    %cst_15 = arith.constant dense<0.000000e+00> : vector<16x16xf32>
    %30 = tpu.matmul %26, %29, %cst_15 {dimension_numbers = #tpu.dot_dimension_numbers<[1], [0], [0], [1], [0, 0, 1, 1], [], []>} : vector<16x128xbf16>, vector<128x16xbf16>, vector<16x16xf32> -> vector<16x16xf32>
    %31 = arith.addf %30, %24 : vector<16x16xf32>
    %cst_16 = arith.constant dense<0xFF800000> : vector<16xf32>
    %32 = vector.multi_reduction <maximumf>, %31, %cst_16 [1] : vector<16x16xf32> to vector<16xf32>
    %33 = vector.shape_cast %32 : vector<16xf32> to vector<16x1xf32>
    %34 = vector.broadcast %33 : vector<16x1xf32> to vector<16x16xf32>
    %35 = arith.subf %31, %34 : vector<16x16xf32>
    %36 = math.exp %35 : vector<16x16xf32>
    %cst_17 = arith.constant dense<0.000000e+00> : vector<16xf32>
    %37 = vector.multi_reduction <add>, %36, %cst_17 [1] : vector<16x16xf32> to vector<16xf32>
    %38 = vector.shape_cast %37 : vector<16xf32> to vector<16x1xf32>
    %39 = tpu.reciprocal %38 {approx = true} : vector<16x1xf32> -> vector<16x1xf32>
    %40 = vector.broadcast %39 : vector<16x1xf32> to vector<16x16xf32>
    %41 = arith.mulf %36, %40 : vector<16x16xf32>
    %42 = arith.truncf %41 : vector<16x16xf32> to vector<16x16xbf16>
    %cst_18 = arith.constant dense<0.000000e+00> : vector<16x128xf32>
    %43 = tpu.matmul %42, %28, %cst_18 {dimension_numbers = #tpu.dot_dimension_numbers<[1], [0], [0], [1], [0, 0, 1, 1], [], []>} : vector<16x16xbf16>, vector<16x128xbf16>, vector<16x128xf32> -> vector<16x128xf32>
    %44 = vector.extract_strided_slice %12 {offsets = [0, 128], sizes = [16, 128], strides = [1, 1]} : vector<16x256xf32> to vector<16x128xf32>
    %45 = arith.truncf %44 : vector<16x128xf32> to vector<16x128xbf16>
    %c0_19 = arith.constant 0 : index
    %c128 = arith.constant 128 : index
    %46 = vector.load %arg14[%c0_19, %c128] : memref<16x512xbf16, #tpu.memory_space<vmem>>, vector<16x128xbf16>
    %c0_20 = arith.constant 0 : index
    %c384 = arith.constant 384 : index
    %47 = vector.load %arg14[%c0_20, %c384] : memref<16x512xbf16, #tpu.memory_space<vmem>>, vector<16x128xbf16>
    %48 = tpu.transpose %46, [1, 0] : vector<16x128xbf16> -> vector<128x16xbf16>
    %cst_21 = arith.constant dense<0.000000e+00> : vector<16x16xf32>
    %49 = tpu.matmul %45, %48, %cst_21 {dimension_numbers = #tpu.dot_dimension_numbers<[1], [0], [0], [1], [0, 0, 1, 1], [], []>} : vector<16x128xbf16>, vector<128x16xbf16>, vector<16x16xf32> -> vector<16x16xf32>
    %50 = arith.addf %49, %24 : vector<16x16xf32>
    %cst_22 = arith.constant dense<0xFF800000> : vector<16xf32>
    %51 = vector.multi_reduction <maximumf>, %50, %cst_22 [1] : vector<16x16xf32> to vector<16xf32>
    %52 = vector.shape_cast %51 : vector<16xf32> to vector<16x1xf32>
    %53 = vector.broadcast %52 : vector<16x1xf32> to vector<16x16xf32>
    %54 = arith.subf %50, %53 : vector<16x16xf32>
    %55 = math.exp %54 : vector<16x16xf32>
    %cst_23 = arith.constant dense<0.000000e+00> : vector<16xf32>
    %56 = vector.multi_reduction <add>, %55, %cst_23 [1] : vector<16x16xf32> to vector<16xf32>
    %57 = vector.shape_cast %56 : vector<16xf32> to vector<16x1xf32>
    %58 = tpu.reciprocal %57 {approx = true} : vector<16x1xf32> -> vector<16x1xf32>
    %59 = vector.broadcast %58 : vector<16x1xf32> to vector<16x16xf32>
    %60 = arith.mulf %55, %59 : vector<16x16xf32>
    %61 = arith.truncf %60 : vector<16x16xf32> to vector<16x16xbf16>
    %cst_24 = arith.constant dense<0.000000e+00> : vector<16x128xf32>
    %62 = tpu.matmul %61, %47, %cst_24 {dimension_numbers = #tpu.dot_dimension_numbers<[1], [0], [0], [1], [0, 0, 1, 1], [], []>} : vector<16x16xbf16>, vector<16x128xbf16>, vector<16x128xf32> -> vector<16x128xf32>
    %63 = tpu.concatenate %43, %62 in 1 : vector<16x128xf32>, vector<16x128xf32> -> vector<16x256xf32>
    %64 = arith.truncf %63 : vector<16x256xf32> to vector<16x256xbf16>
    %c0_25 = arith.constant 0 : index
    %c0_26 = arith.constant 0 : index
    %65 = vector.load %arg9[%c0_25, %c0_26] : memref<256x256xbf16, #tpu.memory_space<vmem>>, vector<256x256xbf16>
    %cst_27 = arith.constant dense<0.000000e+00> : vector<16x256xf32>
    %66 = tpu.matmul %64, %65, %cst_27 {dimension_numbers = #tpu.dot_dimension_numbers<[1], [0], [0], [1], [0, 0, 1, 1], [], []>} : vector<16x256xbf16>, vector<256x256xbf16>, vector<16x256xf32> -> vector<16x256xf32>
    %c0_28 = arith.constant 0 : index
    %c0_29 = arith.constant 0 : index
    %67 = vector.load %arg10[%c0_28, %c0_29] : memref<1x256xf32, #tpu.memory_space<vmem>>, vector<1x256xf32>
    %68 = vector.broadcast %67 : vector<1x256xf32> to vector<16x256xf32>
    %69 = arith.addf %66, %68 : vector<16x256xf32>
    %70 = arith.addf %69, %4 : vector<16x256xf32>
    %cst_30 = arith.constant dense<0.000000e+00> : vector<16xf32>
    %71 = vector.multi_reduction <add>, %70, %cst_30 [1] : vector<16x256xf32> to vector<16xf32>
    %72 = vector.shape_cast %71 : vector<16xf32> to vector<16x1xf32>
    %cst_31 = arith.constant 2.560000e+02 : f32
    %73 = vector.broadcast %cst_31 : f32 to vector<16x1xf32>
    %74 = arith.divf %72, %73 : vector<16x1xf32>
    %75 = vector.broadcast %74 : vector<16x1xf32> to vector<16x256xf32>
    %76 = arith.subf %70, %75 : vector<16x256xf32>
    %77 = arith.mulf %76, %76 : vector<16x256xf32>
    %cst_32 = arith.constant dense<0.000000e+00> : vector<16xf32>
    %78 = vector.multi_reduction <add>, %77, %cst_32 [1] : vector<16x256xf32> to vector<16xf32>
    %79 = vector.shape_cast %78 : vector<16xf32> to vector<16x1xf32>
    %cst_33 = arith.constant 2.560000e+02 : f32
    %80 = vector.broadcast %cst_33 : f32 to vector<16x1xf32>
    %81 = arith.divf %79, %80 : vector<16x1xf32>
    %82 = vector.broadcast %74 : vector<16x1xf32> to vector<16x256xf32>
    %83 = arith.subf %70, %82 : vector<16x256xf32>
    %cst_34 = arith.constant 9.99999974E-6 : f32
    %84 = vector.broadcast %cst_34 : f32 to vector<16x1xf32>
    %85 = arith.addf %81, %84 : vector<16x1xf32>
    %86 = math.rsqrt %85 : vector<16x1xf32>
    %87 = vector.broadcast %86 : vector<16x1xf32> to vector<16x256xf32>
    %88 = arith.mulf %83, %87 : vector<16x256xf32>
    %c0_35 = arith.constant 0 : index
    %c0_36 = arith.constant 0 : index
    %89 = vector.load %arg11[%c0_35, %c0_36] : memref<1x256xf32, #tpu.memory_space<vmem>>, vector<1x256xf32>
    %90 = vector.broadcast %89 : vector<1x256xf32> to vector<16x256xf32>
    %91 = arith.mulf %88, %90 : vector<16x256xf32>
    %c0_37 = arith.constant 0 : index
    %c0_38 = arith.constant 0 : index
    %92 = vector.load %arg12[%c0_37, %c0_38] : memref<1x256xf32, #tpu.memory_space<vmem>>, vector<1x256xf32>
    %93 = vector.broadcast %92 : vector<1x256xf32> to vector<16x256xf32>
    %94 = arith.addf %91, %93 : vector<16x256xf32>
    %95 = arith.truncf %94 : vector<16x256xf32> to vector<16x256xbf16>
    %c0_39 = arith.constant 0 : index
    %c0_40 = arith.constant 0 : index
    %c0_41 = arith.constant 0 : index
    %96 = vector.load %arg13[%c0_39, %c0_40, %c0_41] : memref<1x16x256xbf16, #tpu.memory_space<vmem>>, vector<1x16x256xbf16>
    %97 = vector.shape_cast %96 : vector<1x16x256xbf16> to vector<16x256xbf16>
    %98 = vector.shape_cast %95 : vector<16x256xbf16> to vector<1x16x256xbf16>
    tpu.vector_store %arg13[%c0_39, %c0_40, %c0_41], %98 {strides = array<i32>} : memref<1x16x256xbf16, #tpu.memory_space<vmem>>, vector<1x16x256xbf16>,
    return
  }
  func.func @transform_0(%arg0: i32, %arg1: i32) -> (i32, i32, i32) {
    %c0_i32 = arith.constant 0 : i32
    %c0_i32_0 = arith.constant 0 : i32
    return %arg0, %arg1, %c0_i32 : i32, i32, i32
  }
  func.func @transform_1(%arg0: i32, %arg1: i32) -> (i32, i32, i32) {
    %c0_i32 = arith.constant 0 : i32
    %c0_i32_0 = arith.constant 0 : i32
    %c0_i32_1 = arith.constant 0 : i32
    return %arg0, %c0_i32, %c0_i32_0 : i32, i32, i32
  }
  func.func @transform_2(%arg0: i32, %arg1: i32) -> (i32, i32) {
    %c0_i32 = arith.constant 0 : i32
    %c0_i32_0 = arith.constant 0 : i32
    return %arg1, %c0_i32 : i32, i32
  }
  func.func @transform_3(%arg0: i32, %arg1: i32) -> (i32, i32) {
    %c0_i32 = arith.constant 0 : i32
    %c0_i32_0 = arith.constant 0 : i32
    %c0_i32_1 = arith.constant 0 : i32
    return %c0_i32, %c0_i32_0 : i32, i32
  }
  func.func @transform_4(%arg0: i32, %arg1: i32) -> (i32, i32) {
    %c0_i32 = arith.constant 0 : i32
    %c0_i32_0 = arith.constant 0 : i32
    %c0_i32_1 = arith.constant 0 : i32
    return %c0_i32, %c0_i32_0 : i32, i32
  }
  func.func @transform_5(%arg0: i32, %arg1: i32) -> (i32, i32) {
    %c0_i32 = arith.constant 0 : i32
    %c0_i32_0 = arith.constant 0 : i32
    %c0_i32_1 = arith.constant 0 : i32
    return %c0_i32, %c0_i32_0 : i32, i32
  }
  func.func @transform_6(%arg0: i32, %arg1: i32) -> (i32, i32) {
    %c0_i32 = arith.constant 0 : i32
    %c0_i32_0 = arith.constant 0 : i32
    %c0_i32_1 = arith.constant 0 : i32
    return %c0_i32, %c0_i32_0 : i32, i32
  }
  func.func @transform_7(%arg0: i32, %arg1: i32) -> (i32, i32) {
    %c0_i32 = arith.constant 0 : i32
    %c0_i32_0 = arith.constant 0 : i32
    %c0_i32_1 = arith.constant 0 : i32
    return %c0_i32, %c0_i32_0 : i32, i32
  }
  func.func @transform_8(%arg0: i32, %arg1: i32) -> (i32, i32) {
    %c0_i32 = arith.constant 0 : i32
    %c0_i32_0 = arith.constant 0 : i32
    %c0_i32_1 = arith.constant 0 : i32
    return %c0_i32, %c0_i32_0 : i32, i32
  }
  func.func @transform_9(%arg0: i32, %arg1: i32) -> (i32, i32) {
    %c0_i32 = arith.constant 0 : i32
    %c0_i32_0 = arith.constant 0 : i32
    %c0_i32_1 = arith.constant 0 : i32
    return %c0_i32, %c0_i32_0 : i32, i32
  }
  func.func @transform_10(%arg0: i32, %arg1: i32) -> (i32, i32) {
    %c0_i32 = arith.constant 0 : i32
    %c0_i32_0 = arith.constant 0 : i32
    %c0_i32_1 = arith.constant 0 : i32
    return %c0_i32, %c0_i32_0 : i32, i32
  }
  func.func @transform_11(%arg0: i32, %arg1: i32) -> (i32, i32, i32) {
    %c0_i32 = arith.constant 0 : i32
    %c0_i32_0 = arith.constant 0 : i32
    return %arg0, %arg1, %c0_i32 : i32, i32, i32
  }
}

module attributes {stable_mosaic.version = 11 : i64} {
  func.func @_mha_kernel(%arg0: i32, %arg1: i32, %arg2: memref<1x16x256xbf16, #tpu.memory_space<vmem>>, %arg3: memref<1x16x256xf32, #tpu.memory_space<vmem>>, %arg4: memref<16x16xbf16, #tpu.memory_space<vmem>>, %arg5: memref<256x256xbf16, #tpu.memory_space<vmem>>, %arg6: memref<1x256xf32, #tpu.memory_space<vmem>>, %arg7: memref<256x512xbf16, #tpu.memory_space<vmem>>, %arg8: memref<1x512xf32, #tpu.memory_space<vmem>>, %arg9: memref<256x256xbf16, #tpu.memory_space<vmem>>, %arg10: memref<1x256xf32, #tpu.memory_space<vmem>>, %arg11: memref<1x256xf32, #tpu.memory_space<vmem>>, %arg12: memref<1x256xf32, #tpu.memory_space<vmem>>, %arg13: memref<1x16x256xbf16, #tpu.memory_space<vmem>>, %arg14: memref<16x512xbf16, #tpu.memory_space<vmem>>) attributes {dimension_semantics = [#tpu.dimension_semantics<parallel>, #tpu.dimension_semantics<arbitrary>], iteration_bounds = array<i64: 2, 1>, scalar_prefetch = 0 : i64, scratch_operands = 1 : i64, tpu.core_type = #tpu.core_type<tc>, window_params = [{transform_indices = @transform_0, window_bounds = array<i64: 1, 16, 256>}, {transform_indices = @transform_1, window_bounds = array<i64: 1, 16, 256>}, {transform_indices = @transform_2, window_bounds = array<i64: 16, 16>}, {pipeline_mode = #tpu.pipeline_mode<synchronous>, transform_indices = @transform_3, window_bounds = array<i64: 256, 256>}, {pipeline_mode = #tpu.pipeline_mode<synchronous>, transform_indices = @transform_4, window_bounds = array<i64: 1, 256>}, {pipeline_mode = #tpu.pipeline_mode<synchronous>, transform_indices = @transform_5, window_bounds = array<i64: 256, 512>}, {pipeline_mode = #tpu.pipeline_mode<synchronous>, transform_indices = @transform_6, window_bounds = array<i64: 1, 512>}, {pipeline_mode = #tpu.pipeline_mode<synchronous>, transform_indices = @transform_7, window_bounds = array<i64: 256, 256>}, {pipeline_mode = #tpu.pipeline_mode<synchronous>, transform_indices = @transform_8, window_bounds = array<i64: 1, 256>}, {pipeline_mode = #tpu.pipeline_mode<synchronous>, transform_indices = @transform_9, window_bounds = array<i64: 1, 256>}, {pipeline_mode = #tpu.pipeline_mode<synchronous>, transform_indices = @transform_10, window_bounds = array<i64: 1, 256>}, {transform_indices = @transform_11, window_bounds = array<i64: 1, 16, 256>}]} {
    %c0_i32 = arith.constant 0 : i32
    %0 = arith.cmpi eq, %arg1, %c0_i32 : i32
    %1 = arith.extui %0 : i1 to i32
    %c0_i32_0 = arith.constant 0 : i32
    %2 = arith.cmpi ne, %1, %c0_i32_0 : i32
    scf.if %2 {
      %c0_40 = arith.constant 0 : index
      %c0_41 = arith.constant 0 : index
      %c0_42 = arith.constant 0 : index
      %90 = vector.load %arg3[%c0_40, %c0_41, %c0_42] : memref<1x16x256xf32, #tpu.memory_space<vmem>>, vector<1x16x256xf32>
      %91 = vector.shape_cast %90 : vector<1x16x256xf32> to vector<16x256xf32>
      %92 = arith.truncf %91 : vector<16x256xf32> to vector<16x256xbf16>
      %c0_43 = arith.constant 0 : index
      %c0_44 = arith.constant 0 : index
      %93 = vector.load %arg7[%c0_43, %c0_44] : memref<256x512xbf16, #tpu.memory_space<vmem>>, vector<256x512xbf16>
      %cst_45 = arith.constant dense<0.000000e+00> : vector<16x512xf32>
      %94 = tpu.matmul %92, %93, %cst_45 {dimension_numbers = #tpu.dot_dimension_numbers<[1], [0], [0], [1], [0, 0, 1, 1], [], []>} : vector<16x256xbf16>, vector<256x512xbf16>, vector<16x512xf32> -> vector<16x512xf32>
      %c0_46 = arith.constant 0 : index
      %c0_47 = arith.constant 0 : index
      %95 = vector.load %arg8[%c0_46, %c0_47] : memref<1x512xf32, #tpu.memory_space<vmem>>, vector<1x512xf32>
      %96 = vector.broadcast %95 : vector<1x512xf32> to vector<16x512xf32>
      %97 = arith.addf %94, %96 : vector<16x512xf32>
      %98 = arith.truncf %97 : vector<16x512xf32> to vector<16x512xbf16>
      %c0_48 = arith.constant 0 : index
      %c0_49 = arith.constant 0 : index
      %99 = vector.load %arg14[%c0_48, %c0_49] : memref<16x512xbf16, #tpu.memory_space<vmem>>, vector<16x512xbf16>
      tpu.vector_store %arg14[%c0_48, %c0_49], %98 {strides = array<i32>} : memref<16x512xbf16, #tpu.memory_space<vmem>>, vector<16x512xbf16>,
    } else {
    }
    %c0 = arith.constant 0 : index
    %c0_1 = arith.constant 0 : index
    %c0_2 = arith.constant 0 : index
    %3 = vector.load %arg2[%c0, %c0_1, %c0_2] : memref<1x16x256xbf16, #tpu.memory_space<vmem>>, vector<1x16x256xbf16>
    %4 = vector.shape_cast %3 : vector<1x16x256xbf16> to vector<16x256xbf16>
    %5 = arith.extf %4 : vector<16x256xbf16> to vector<16x256xf32>
    %6 = arith.truncf %5 : vector<16x256xf32> to vector<16x256xbf16>
    %c0_3 = arith.constant 0 : index
    %c0_4 = arith.constant 0 : index
    %7 = vector.load %arg5[%c0_3, %c0_4] : memref<256x256xbf16, #tpu.memory_space<vmem>>, vector<256x256xbf16>
    %cst = arith.constant dense<0.000000e+00> : vector<16x256xf32>
    %8 = tpu.matmul %6, %7, %cst {dimension_numbers = #tpu.dot_dimension_numbers<[1], [0], [0], [1], [0, 0, 1, 1], [], []>} : vector<16x256xbf16>, vector<256x256xbf16>, vector<16x256xf32> -> vector<16x256xf32>
    %c0_5 = arith.constant 0 : index
    %c0_6 = arith.constant 0 : index
    %9 = vector.load %arg6[%c0_5, %c0_6] : memref<1x256xf32, #tpu.memory_space<vmem>>, vector<1x256xf32>
    %10 = vector.broadcast %9 : vector<1x256xf32> to vector<16x256xf32>
    %11 = arith.addf %8, %10 : vector<16x256xf32>
    %cst_7 = arith.constant 0.0883883461 : f32
    %12 = vector.broadcast %cst_7 : f32 to vector<16x256xf32>
    %13 = arith.mulf %11, %12 : vector<16x256xf32>
    %c0_8 = arith.constant 0 : index
    %c0_9 = arith.constant 0 : index
    %14 = vector.load %arg4[%c0_8, %c0_9] : memref<16x16xbf16, #tpu.memory_space<vmem>>, vector<16x16xbf16>
    %15 = arith.extf %14 : vector<16x16xbf16> to vector<16x16xf32>
    %16 = vector.extract_strided_slice %13 {offsets = [0, 0], sizes = [16, 128], strides = [1, 1]} : vector<16x256xf32> to vector<16x128xf32>
    %17 = arith.truncf %16 : vector<16x128xf32> to vector<16x128xbf16>
    %c0_10 = arith.constant 0 : index
    %c0_11 = arith.constant 0 : index
    %18 = vector.load %arg14[%c0_10, %c0_11] : memref<16x512xbf16, #tpu.memory_space<vmem>>, vector<16x128xbf16>
    %c0_12 = arith.constant 0 : index
    %c256 = arith.constant 256 : index
    %19 = vector.load %arg14[%c0_12, %c256] : memref<16x512xbf16, #tpu.memory_space<vmem>>, vector<16x128xbf16>
    %20 = tpu.transpose %18, [1, 0] : vector<16x128xbf16> -> vector<128x16xbf16>
    %cst_13 = arith.constant dense<0.000000e+00> : vector<16x16xf32>
    %21 = tpu.matmul %17, %20, %cst_13 {dimension_numbers = #tpu.dot_dimension_numbers<[1], [0], [0], [1], [0, 0, 1, 1], [], []>} : vector<16x128xbf16>, vector<128x16xbf16>, vector<16x16xf32> -> vector<16x16xf32>
    %22 = arith.addf %21, %15 : vector<16x16xf32>
    %cst_14 = arith.constant dense<0xFF800000> : vector<16xf32>
    %23 = vector.multi_reduction <maximumf>, %22, %cst_14 [1] : vector<16x16xf32> to vector<16xf32>
    %24 = vector.shape_cast %23 : vector<16xf32> to vector<16x1xf32>
    %25 = vector.broadcast %24 : vector<16x1xf32> to vector<16x16xf32>
    %26 = arith.subf %22, %25 : vector<16x16xf32>
    %27 = math.exp %26 : vector<16x16xf32>
    %cst_15 = arith.constant dense<0.000000e+00> : vector<16xf32>
    %28 = vector.multi_reduction <add>, %27, %cst_15 [1] : vector<16x16xf32> to vector<16xf32>
    %29 = vector.shape_cast %28 : vector<16xf32> to vector<16x1xf32>
    %30 = tpu.reciprocal %29 {approx = true} : vector<16x1xf32> -> vector<16x1xf32>
    %31 = vector.broadcast %30 : vector<16x1xf32> to vector<16x16xf32>
    %32 = arith.mulf %27, %31 : vector<16x16xf32>
    %33 = arith.truncf %32 : vector<16x16xf32> to vector<16x16xbf16>
    %cst_16 = arith.constant dense<0.000000e+00> : vector<16x128xf32>
    %34 = tpu.matmul %33, %19, %cst_16 {dimension_numbers = #tpu.dot_dimension_numbers<[1], [0], [0], [1], [0, 0, 1, 1], [], []>} : vector<16x16xbf16>, vector<16x128xbf16>, vector<16x128xf32> -> vector<16x128xf32>
    %35 = vector.extract_strided_slice %13 {offsets = [0, 128], sizes = [16, 128], strides = [1, 1]} : vector<16x256xf32> to vector<16x128xf32>
    %36 = arith.truncf %35 : vector<16x128xf32> to vector<16x128xbf16>
    %c0_17 = arith.constant 0 : index
    %c128 = arith.constant 128 : index
    %37 = vector.load %arg14[%c0_17, %c128] : memref<16x512xbf16, #tpu.memory_space<vmem>>, vector<16x128xbf16>
    %c0_18 = arith.constant 0 : index
    %c384 = arith.constant 384 : index
    %38 = vector.load %arg14[%c0_18, %c384] : memref<16x512xbf16, #tpu.memory_space<vmem>>, vector<16x128xbf16>
    %39 = tpu.transpose %37, [1, 0] : vector<16x128xbf16> -> vector<128x16xbf16>
    %cst_19 = arith.constant dense<0.000000e+00> : vector<16x16xf32>
    %40 = tpu.matmul %36, %39, %cst_19 {dimension_numbers = #tpu.dot_dimension_numbers<[1], [0], [0], [1], [0, 0, 1, 1], [], []>} : vector<16x128xbf16>, vector<128x16xbf16>, vector<16x16xf32> -> vector<16x16xf32>
    %41 = arith.addf %40, %15 : vector<16x16xf32>
    %cst_20 = arith.constant dense<0xFF800000> : vector<16xf32>
    %42 = vector.multi_reduction <maximumf>, %41, %cst_20 [1] : vector<16x16xf32> to vector<16xf32>
    %43 = vector.shape_cast %42 : vector<16xf32> to vector<16x1xf32>
    %44 = vector.broadcast %43 : vector<16x1xf32> to vector<16x16xf32>
    %45 = arith.subf %41, %44 : vector<16x16xf32>
    %46 = math.exp %45 : vector<16x16xf32>
    %cst_21 = arith.constant dense<0.000000e+00> : vector<16xf32>
    %47 = vector.multi_reduction <add>, %46, %cst_21 [1] : vector<16x16xf32> to vector<16xf32>
    %48 = vector.shape_cast %47 : vector<16xf32> to vector<16x1xf32>
    %49 = tpu.reciprocal %48 {approx = true} : vector<16x1xf32> -> vector<16x1xf32>
    %50 = vector.broadcast %49 : vector<16x1xf32> to vector<16x16xf32>
    %51 = arith.mulf %46, %50 : vector<16x16xf32>
    %52 = arith.truncf %51 : vector<16x16xf32> to vector<16x16xbf16>
    %cst_22 = arith.constant dense<0.000000e+00> : vector<16x128xf32>
    %53 = tpu.matmul %52, %38, %cst_22 {dimension_numbers = #tpu.dot_dimension_numbers<[1], [0], [0], [1], [0, 0, 1, 1], [], []>} : vector<16x16xbf16>, vector<16x128xbf16>, vector<16x128xf32> -> vector<16x128xf32>
    %54 = tpu.concatenate %34, %53 in 1 : vector<16x128xf32>, vector<16x128xf32> -> vector<16x256xf32>
    %55 = arith.truncf %54 : vector<16x256xf32> to vector<16x256xbf16>
    %c0_23 = arith.constant 0 : index
    %c0_24 = arith.constant 0 : index
    %56 = vector.load %arg9[%c0_23, %c0_24] : memref<256x256xbf16, #tpu.memory_space<vmem>>, vector<256x256xbf16>
    %cst_25 = arith.constant dense<0.000000e+00> : vector<16x256xf32>
    %57 = tpu.matmul %55, %56, %cst_25 {dimension_numbers = #tpu.dot_dimension_numbers<[1], [0], [0], [1], [0, 0, 1, 1], [], []>} : vector<16x256xbf16>, vector<256x256xbf16>, vector<16x256xf32> -> vector<16x256xf32>
    %c0_26 = arith.constant 0 : index
    %c0_27 = arith.constant 0 : index
    %58 = vector.load %arg10[%c0_26, %c0_27] : memref<1x256xf32, #tpu.memory_space<vmem>>, vector<1x256xf32>
    %59 = vector.broadcast %58 : vector<1x256xf32> to vector<16x256xf32>
    %60 = arith.addf %57, %59 : vector<16x256xf32>
    %61 = arith.addf %60, %5 : vector<16x256xf32>
    %cst_28 = arith.constant dense<0.000000e+00> : vector<16xf32>
    %62 = vector.multi_reduction <add>, %61, %cst_28 [1] : vector<16x256xf32> to vector<16xf32>
    %63 = vector.shape_cast %62 : vector<16xf32> to vector<16x1xf32>
    %cst_29 = arith.constant 2.560000e+02 : f32
    %64 = vector.broadcast %cst_29 : f32 to vector<16x1xf32>
    %65 = arith.divf %63, %64 : vector<16x1xf32>
    %66 = vector.broadcast %65 : vector<16x1xf32> to vector<16x256xf32>
    %67 = arith.subf %61, %66 : vector<16x256xf32>
    %68 = arith.mulf %67, %67 : vector<16x256xf32>
    %cst_30 = arith.constant dense<0.000000e+00> : vector<16xf32>
    %69 = vector.multi_reduction <add>, %68, %cst_30 [1] : vector<16x256xf32> to vector<16xf32>
    %70 = vector.shape_cast %69 : vector<16xf32> to vector<16x1xf32>
    %cst_31 = arith.constant 2.560000e+02 : f32
    %71 = vector.broadcast %cst_31 : f32 to vector<16x1xf32>
    %72 = arith.divf %70, %71 : vector<16x1xf32>
    %73 = vector.broadcast %65 : vector<16x1xf32> to vector<16x256xf32>
    %74 = arith.subf %61, %73 : vector<16x256xf32>
    %cst_32 = arith.constant 9.99999974E-6 : f32
    %75 = vector.broadcast %cst_32 : f32 to vector<16x1xf32>
    %76 = arith.addf %72, %75 : vector<16x1xf32>
    %77 = math.rsqrt %76 : vector<16x1xf32>
    %78 = vector.broadcast %77 : vector<16x1xf32> to vector<16x256xf32>
    %79 = arith.mulf %74, %78 : vector<16x256xf32>
    %c0_33 = arith.constant 0 : index
    %c0_34 = arith.constant 0 : index
    %80 = vector.load %arg11[%c0_33, %c0_34] : memref<1x256xf32, #tpu.memory_space<vmem>>, vector<1x256xf32>
    %81 = vector.broadcast %80 : vector<1x256xf32> to vector<16x256xf32>
    %82 = arith.mulf %79, %81 : vector<16x256xf32>
    %c0_35 = arith.constant 0 : index
    %c0_36 = arith.constant 0 : index
    %83 = vector.load %arg12[%c0_35, %c0_36] : memref<1x256xf32, #tpu.memory_space<vmem>>, vector<1x256xf32>
    %84 = vector.broadcast %83 : vector<1x256xf32> to vector<16x256xf32>
    %85 = arith.addf %82, %84 : vector<16x256xf32>
    %86 = arith.truncf %85 : vector<16x256xf32> to vector<16x256xbf16>
    %c0_37 = arith.constant 0 : index
    %c0_38 = arith.constant 0 : index
    %c0_39 = arith.constant 0 : index
    %87 = vector.load %arg13[%c0_37, %c0_38, %c0_39] : memref<1x16x256xbf16, #tpu.memory_space<vmem>>, vector<1x16x256xbf16>
    %88 = vector.shape_cast %87 : vector<1x16x256xbf16> to vector<16x256xbf16>
    %89 = vector.shape_cast %86 : vector<16x256xbf16> to vector<1x16x256xbf16>
    tpu.vector_store %arg13[%c0_37, %c0_38, %c0_39], %89 {strides = array<i32>} : memref<1x16x256xbf16, #tpu.memory_space<vmem>>, vector<1x16x256xbf16>,
    return
  }
  func.func @transform_0(%arg0: i32, %arg1: i32) -> (i32, i32, i32) {
    %c0_i32 = arith.constant 0 : i32
    %c0_i32_0 = arith.constant 0 : i32
    return %arg0, %arg1, %c0_i32 : i32, i32, i32
  }
  func.func @transform_1(%arg0: i32, %arg1: i32) -> (i32, i32, i32) {
    %c0_i32 = arith.constant 0 : i32
    %c0_i32_0 = arith.constant 0 : i32
    %c0_i32_1 = arith.constant 0 : i32
    return %arg0, %c0_i32, %c0_i32_0 : i32, i32, i32
  }
  func.func @transform_2(%arg0: i32, %arg1: i32) -> (i32, i32) {
    %c0_i32 = arith.constant 0 : i32
    %c0_i32_0 = arith.constant 0 : i32
    return %arg1, %c0_i32 : i32, i32
  }
  func.func @transform_3(%arg0: i32, %arg1: i32) -> (i32, i32) {
    %c0_i32 = arith.constant 0 : i32
    %c0_i32_0 = arith.constant 0 : i32
    %c0_i32_1 = arith.constant 0 : i32
    return %c0_i32, %c0_i32_0 : i32, i32
  }
  func.func @transform_4(%arg0: i32, %arg1: i32) -> (i32, i32) {
    %c0_i32 = arith.constant 0 : i32
    %c0_i32_0 = arith.constant 0 : i32
    %c0_i32_1 = arith.constant 0 : i32
    return %c0_i32, %c0_i32_0 : i32, i32
  }
  func.func @transform_5(%arg0: i32, %arg1: i32) -> (i32, i32) {
    %c0_i32 = arith.constant 0 : i32
    %c0_i32_0 = arith.constant 0 : i32
    %c0_i32_1 = arith.constant 0 : i32
    return %c0_i32, %c0_i32_0 : i32, i32
  }
  func.func @transform_6(%arg0: i32, %arg1: i32) -> (i32, i32) {
    %c0_i32 = arith.constant 0 : i32
    %c0_i32_0 = arith.constant 0 : i32
    %c0_i32_1 = arith.constant 0 : i32
    return %c0_i32, %c0_i32_0 : i32, i32
  }
  func.func @transform_7(%arg0: i32, %arg1: i32) -> (i32, i32) {
    %c0_i32 = arith.constant 0 : i32
    %c0_i32_0 = arith.constant 0 : i32
    %c0_i32_1 = arith.constant 0 : i32
    return %c0_i32, %c0_i32_0 : i32, i32
  }
  func.func @transform_8(%arg0: i32, %arg1: i32) -> (i32, i32) {
    %c0_i32 = arith.constant 0 : i32
    %c0_i32_0 = arith.constant 0 : i32
    %c0_i32_1 = arith.constant 0 : i32
    return %c0_i32, %c0_i32_0 : i32, i32
  }
  func.func @transform_9(%arg0: i32, %arg1: i32) -> (i32, i32) {
    %c0_i32 = arith.constant 0 : i32
    %c0_i32_0 = arith.constant 0 : i32
    %c0_i32_1 = arith.constant 0 : i32
    return %c0_i32, %c0_i32_0 : i32, i32
  }
  func.func @transform_10(%arg0: i32, %arg1: i32) -> (i32, i32) {
    %c0_i32 = arith.constant 0 : i32
    %c0_i32_0 = arith.constant 0 : i32
    %c0_i32_1 = arith.constant 0 : i32
    return %c0_i32, %c0_i32_0 : i32, i32
  }
  func.func @transform_11(%arg0: i32, %arg1: i32) -> (i32, i32, i32) {
    %c0_i32 = arith.constant 0 : i32
    %c0_i32_0 = arith.constant 0 : i32
    return %arg0, %arg1, %c0_i32 : i32, i32, i32
  }
}

module attributes {stable_mosaic.version = 11 : i64} {
  func.func @_mha_kernel(%arg0: i32, %arg1: i32, %arg2: memref<1x16x256xf32, #tpu.memory_space<vmem>>, %arg3: memref<1x16x256xf32, #tpu.memory_space<vmem>>, %arg4: memref<16x16xbf16, #tpu.memory_space<vmem>>, %arg5: memref<16x256xf32, #tpu.memory_space<vmem>>, %arg6: memref<256x256xbf16, #tpu.memory_space<vmem>>, %arg7: memref<1x256xf32, #tpu.memory_space<vmem>>, %arg8: memref<256x512xbf16, #tpu.memory_space<vmem>>, %arg9: memref<1x512xf32, #tpu.memory_space<vmem>>, %arg10: memref<256x256xbf16, #tpu.memory_space<vmem>>, %arg11: memref<1x256xf32, #tpu.memory_space<vmem>>, %arg12: memref<1x256xf32, #tpu.memory_space<vmem>>, %arg13: memref<1x256xf32, #tpu.memory_space<vmem>>, %arg14: memref<1x16x256xbf16, #tpu.memory_space<vmem>>, %arg15: memref<16x512xbf16, #tpu.memory_space<vmem>>) attributes {dimension_semantics = [#tpu.dimension_semantics<parallel>, #tpu.dimension_semantics<arbitrary>], iteration_bounds = array<i64: 2, 1>, scalar_prefetch = 0 : i64, scratch_operands = 1 : i64, tpu.core_type = #tpu.core_type<tc>, window_params = [{transform_indices = @transform_0, window_bounds = array<i64: 1, 16, 256>}, {transform_indices = @transform_1, window_bounds = array<i64: 1, 16, 256>}, {transform_indices = @transform_2, window_bounds = array<i64: 16, 16>}, {transform_indices = @transform_3, window_bounds = array<i64: 16, 256>}, {pipeline_mode = #tpu.pipeline_mode<synchronous>, transform_indices = @transform_4, window_bounds = array<i64: 256, 256>}, {pipeline_mode = #tpu.pipeline_mode<synchronous>, transform_indices = @transform_5, window_bounds = array<i64: 1, 256>}, {pipeline_mode = #tpu.pipeline_mode<synchronous>, transform_indices = @transform_6, window_bounds = array<i64: 256, 512>}, {pipeline_mode = #tpu.pipeline_mode<synchronous>, transform_indices = @transform_7, window_bounds = array<i64: 1, 512>}, {pipeline_mode = #tpu.pipeline_mode<synchronous>, transform_indices = @transform_8, window_bounds = array<i64: 256, 256>}, {pipeline_mode = #tpu.pipeline_mode<synchronous>, transform_indices = @transform_9, window_bounds = array<i64: 1, 256>}, {pipeline_mode = #tpu.pipeline_mode<synchronous>, transform_indices = @transform_10, window_bounds = array<i64: 1, 256>}, {pipeline_mode = #tpu.pipeline_mode<synchronous>, transform_indices = @transform_11, window_bounds = array<i64: 1, 256>}, {transform_indices = @transform_12, window_bounds = array<i64: 1, 16, 256>}]} {
    %c0_i32 = arith.constant 0 : i32
    %0 = arith.cmpi eq, %arg1, %c0_i32 : i32
    %1 = arith.extui %0 : i1 to i32
    %c0_i32_0 = arith.constant 0 : i32
    %2 = arith.cmpi ne, %1, %c0_i32_0 : i32
    scf.if %2 {
      %c0_42 = arith.constant 0 : index
      %c0_43 = arith.constant 0 : index
      %c0_44 = arith.constant 0 : index
      %91 = vector.load %arg3[%c0_42, %c0_43, %c0_44] : memref<1x16x256xf32, #tpu.memory_space<vmem>>, vector<1x16x256xf32>
      %92 = vector.shape_cast %91 : vector<1x16x256xf32> to vector<16x256xf32>
      %93 = arith.truncf %92 : vector<16x256xf32> to vector<16x256xbf16>
      %c0_45 = arith.constant 0 : index
      %c0_46 = arith.constant 0 : index
      %94 = vector.load %arg8[%c0_45, %c0_46] : memref<256x512xbf16, #tpu.memory_space<vmem>>, vector<256x512xbf16>
      %cst_47 = arith.constant dense<0.000000e+00> : vector<16x512xf32>
      %95 = tpu.matmul %93, %94, %cst_47 {dimension_numbers = #tpu.dot_dimension_numbers<[1], [0], [0], [1], [0, 0, 1, 1], [], []>} : vector<16x256xbf16>, vector<256x512xbf16>, vector<16x512xf32> -> vector<16x512xf32>
      %c0_48 = arith.constant 0 : index
      %c0_49 = arith.constant 0 : index
      %96 = vector.load %arg9[%c0_48, %c0_49] : memref<1x512xf32, #tpu.memory_space<vmem>>, vector<1x512xf32>
      %97 = vector.broadcast %96 : vector<1x512xf32> to vector<16x512xf32>
      %98 = arith.addf %95, %97 : vector<16x512xf32>
      %99 = arith.truncf %98 : vector<16x512xf32> to vector<16x512xbf16>
      %c0_50 = arith.constant 0 : index
      %c0_51 = arith.constant 0 : index
      %100 = vector.load %arg15[%c0_50, %c0_51] : memref<16x512xbf16, #tpu.memory_space<vmem>>, vector<16x512xbf16>
      tpu.vector_store %arg15[%c0_50, %c0_51], %99 {strides = array<i32>} : memref<16x512xbf16, #tpu.memory_space<vmem>>, vector<16x512xbf16>,
    } else {
    }
    %c0 = arith.constant 0 : index
    %c0_1 = arith.constant 0 : index
    %c0_2 = arith.constant 0 : index
    %3 = vector.load %arg2[%c0, %c0_1, %c0_2] : memref<1x16x256xf32, #tpu.memory_space<vmem>>, vector<1x16x256xf32>
    %4 = vector.shape_cast %3 : vector<1x16x256xf32> to vector<16x256xf32>
    %c0_3 = arith.constant 0 : index
    %c0_4 = arith.constant 0 : index
    %5 = vector.load %arg5[%c0_3, %c0_4] : memref<16x256xf32, #tpu.memory_space<vmem>>, vector<16x256xf32>
    %6 = arith.addf %4, %5 : vector<16x256xf32>
    %7 = arith.truncf %6 : vector<16x256xf32> to vector<16x256xbf16>
    %c0_5 = arith.constant 0 : index
    %c0_6 = arith.constant 0 : index
    %8 = vector.load %arg6[%c0_5, %c0_6] : memref<256x256xbf16, #tpu.memory_space<vmem>>, vector<256x256xbf16>
    %cst = arith.constant dense<0.000000e+00> : vector<16x256xf32>
    %9 = tpu.matmul %7, %8, %cst {dimension_numbers = #tpu.dot_dimension_numbers<[1], [0], [0], [1], [0, 0, 1, 1], [], []>} : vector<16x256xbf16>, vector<256x256xbf16>, vector<16x256xf32> -> vector<16x256xf32>
    %c0_7 = arith.constant 0 : index
    %c0_8 = arith.constant 0 : index
    %10 = vector.load %arg7[%c0_7, %c0_8] : memref<1x256xf32, #tpu.memory_space<vmem>>, vector<1x256xf32>
    %11 = vector.broadcast %10 : vector<1x256xf32> to vector<16x256xf32>
    %12 = arith.addf %9, %11 : vector<16x256xf32>
    %cst_9 = arith.constant 0.0883883461 : f32
    %13 = vector.broadcast %cst_9 : f32 to vector<16x256xf32>
    %14 = arith.mulf %12, %13 : vector<16x256xf32>
    %c0_10 = arith.constant 0 : index
    %c0_11 = arith.constant 0 : index
    %15 = vector.load %arg4[%c0_10, %c0_11] : memref<16x16xbf16, #tpu.memory_space<vmem>>, vector<16x16xbf16>
    %16 = arith.extf %15 : vector<16x16xbf16> to vector<16x16xf32>
    %17 = vector.extract_strided_slice %14 {offsets = [0, 0], sizes = [16, 128], strides = [1, 1]} : vector<16x256xf32> to vector<16x128xf32>
    %18 = arith.truncf %17 : vector<16x128xf32> to vector<16x128xbf16>
    %c0_12 = arith.constant 0 : index
    %c0_13 = arith.constant 0 : index
    %19 = vector.load %arg15[%c0_12, %c0_13] : memref<16x512xbf16, #tpu.memory_space<vmem>>, vector<16x128xbf16>
    %c0_14 = arith.constant 0 : index
    %c256 = arith.constant 256 : index
    %20 = vector.load %arg15[%c0_14, %c256] : memref<16x512xbf16, #tpu.memory_space<vmem>>, vector<16x128xbf16>
    %21 = tpu.transpose %19, [1, 0] : vector<16x128xbf16> -> vector<128x16xbf16>
    %cst_15 = arith.constant dense<0.000000e+00> : vector<16x16xf32>
    %22 = tpu.matmul %18, %21, %cst_15 {dimension_numbers = #tpu.dot_dimension_numbers<[1], [0], [0], [1], [0, 0, 1, 1], [], []>} : vector<16x128xbf16>, vector<128x16xbf16>, vector<16x16xf32> -> vector<16x16xf32>
    %23 = arith.addf %22, %16 : vector<16x16xf32>
    %cst_16 = arith.constant dense<0xFF800000> : vector<16xf32>
    %24 = vector.multi_reduction <maximumf>, %23, %cst_16 [1] : vector<16x16xf32> to vector<16xf32>
    %25 = vector.shape_cast %24 : vector<16xf32> to vector<16x1xf32>
    %26 = vector.broadcast %25 : vector<16x1xf32> to vector<16x16xf32>
    %27 = arith.subf %23, %26 : vector<16x16xf32>
    %28 = math.exp %27 : vector<16x16xf32>
    %cst_17 = arith.constant dense<0.000000e+00> : vector<16xf32>
    %29 = vector.multi_reduction <add>, %28, %cst_17 [1] : vector<16x16xf32> to vector<16xf32>
    %30 = vector.shape_cast %29 : vector<16xf32> to vector<16x1xf32>
    %31 = tpu.reciprocal %30 {approx = true} : vector<16x1xf32> -> vector<16x1xf32>
    %32 = vector.broadcast %31 : vector<16x1xf32> to vector<16x16xf32>
    %33 = arith.mulf %28, %32 : vector<16x16xf32>
    %34 = arith.truncf %33 : vector<16x16xf32> to vector<16x16xbf16>
    %cst_18 = arith.constant dense<0.000000e+00> : vector<16x128xf32>
    %35 = tpu.matmul %34, %20, %cst_18 {dimension_numbers = #tpu.dot_dimension_numbers<[1], [0], [0], [1], [0, 0, 1, 1], [], []>} : vector<16x16xbf16>, vector<16x128xbf16>, vector<16x128xf32> -> vector<16x128xf32>
    %36 = vector.extract_strided_slice %14 {offsets = [0, 128], sizes = [16, 128], strides = [1, 1]} : vector<16x256xf32> to vector<16x128xf32>
    %37 = arith.truncf %36 : vector<16x128xf32> to vector<16x128xbf16>
    %c0_19 = arith.constant 0 : index
    %c128 = arith.constant 128 : index
    %38 = vector.load %arg15[%c0_19, %c128] : memref<16x512xbf16, #tpu.memory_space<vmem>>, vector<16x128xbf16>
    %c0_20 = arith.constant 0 : index
    %c384 = arith.constant 384 : index
    %39 = vector.load %arg15[%c0_20, %c384] : memref<16x512xbf16, #tpu.memory_space<vmem>>, vector<16x128xbf16>
    %40 = tpu.transpose %38, [1, 0] : vector<16x128xbf16> -> vector<128x16xbf16>
    %cst_21 = arith.constant dense<0.000000e+00> : vector<16x16xf32>
    %41 = tpu.matmul %37, %40, %cst_21 {dimension_numbers = #tpu.dot_dimension_numbers<[1], [0], [0], [1], [0, 0, 1, 1], [], []>} : vector<16x128xbf16>, vector<128x16xbf16>, vector<16x16xf32> -> vector<16x16xf32>
    %42 = arith.addf %41, %16 : vector<16x16xf32>
    %cst_22 = arith.constant dense<0xFF800000> : vector<16xf32>
    %43 = vector.multi_reduction <maximumf>, %42, %cst_22 [1] : vector<16x16xf32> to vector<16xf32>
    %44 = vector.shape_cast %43 : vector<16xf32> to vector<16x1xf32>
    %45 = vector.broadcast %44 : vector<16x1xf32> to vector<16x16xf32>
    %46 = arith.subf %42, %45 : vector<16x16xf32>
    %47 = math.exp %46 : vector<16x16xf32>
    %cst_23 = arith.constant dense<0.000000e+00> : vector<16xf32>
    %48 = vector.multi_reduction <add>, %47, %cst_23 [1] : vector<16x16xf32> to vector<16xf32>
    %49 = vector.shape_cast %48 : vector<16xf32> to vector<16x1xf32>
    %50 = tpu.reciprocal %49 {approx = true} : vector<16x1xf32> -> vector<16x1xf32>
    %51 = vector.broadcast %50 : vector<16x1xf32> to vector<16x16xf32>
    %52 = arith.mulf %47, %51 : vector<16x16xf32>
    %53 = arith.truncf %52 : vector<16x16xf32> to vector<16x16xbf16>
    %cst_24 = arith.constant dense<0.000000e+00> : vector<16x128xf32>
    %54 = tpu.matmul %53, %39, %cst_24 {dimension_numbers = #tpu.dot_dimension_numbers<[1], [0], [0], [1], [0, 0, 1, 1], [], []>} : vector<16x16xbf16>, vector<16x128xbf16>, vector<16x128xf32> -> vector<16x128xf32>
    %55 = tpu.concatenate %35, %54 in 1 : vector<16x128xf32>, vector<16x128xf32> -> vector<16x256xf32>
    %56 = arith.truncf %55 : vector<16x256xf32> to vector<16x256xbf16>
    %c0_25 = arith.constant 0 : index
    %c0_26 = arith.constant 0 : index
    %57 = vector.load %arg10[%c0_25, %c0_26] : memref<256x256xbf16, #tpu.memory_space<vmem>>, vector<256x256xbf16>
    %cst_27 = arith.constant dense<0.000000e+00> : vector<16x256xf32>
    %58 = tpu.matmul %56, %57, %cst_27 {dimension_numbers = #tpu.dot_dimension_numbers<[1], [0], [0], [1], [0, 0, 1, 1], [], []>} : vector<16x256xbf16>, vector<256x256xbf16>, vector<16x256xf32> -> vector<16x256xf32>
    %c0_28 = arith.constant 0 : index
    %c0_29 = arith.constant 0 : index
    %59 = vector.load %arg11[%c0_28, %c0_29] : memref<1x256xf32, #tpu.memory_space<vmem>>, vector<1x256xf32>
    %60 = vector.broadcast %59 : vector<1x256xf32> to vector<16x256xf32>
    %61 = arith.addf %58, %60 : vector<16x256xf32>
    %62 = arith.addf %61, %6 : vector<16x256xf32>
    %cst_30 = arith.constant dense<0.000000e+00> : vector<16xf32>
    %63 = vector.multi_reduction <add>, %62, %cst_30 [1] : vector<16x256xf32> to vector<16xf32>
    %64 = vector.shape_cast %63 : vector<16xf32> to vector<16x1xf32>
    %cst_31 = arith.constant 2.560000e+02 : f32
    %65 = vector.broadcast %cst_31 : f32 to vector<16x1xf32>
    %66 = arith.divf %64, %65 : vector<16x1xf32>
    %67 = vector.broadcast %66 : vector<16x1xf32> to vector<16x256xf32>
    %68 = arith.subf %62, %67 : vector<16x256xf32>
    %69 = arith.mulf %68, %68 : vector<16x256xf32>
    %cst_32 = arith.constant dense<0.000000e+00> : vector<16xf32>
    %70 = vector.multi_reduction <add>, %69, %cst_32 [1] : vector<16x256xf32> to vector<16xf32>
    %71 = vector.shape_cast %70 : vector<16xf32> to vector<16x1xf32>
    %cst_33 = arith.constant 2.560000e+02 : f32
    %72 = vector.broadcast %cst_33 : f32 to vector<16x1xf32>
    %73 = arith.divf %71, %72 : vector<16x1xf32>
    %74 = vector.broadcast %66 : vector<16x1xf32> to vector<16x256xf32>
    %75 = arith.subf %62, %74 : vector<16x256xf32>
    %cst_34 = arith.constant 9.99999974E-6 : f32
    %76 = vector.broadcast %cst_34 : f32 to vector<16x1xf32>
    %77 = arith.addf %73, %76 : vector<16x1xf32>
    %78 = math.rsqrt %77 : vector<16x1xf32>
    %79 = vector.broadcast %78 : vector<16x1xf32> to vector<16x256xf32>
    %80 = arith.mulf %75, %79 : vector<16x256xf32>
    %c0_35 = arith.constant 0 : index
    %c0_36 = arith.constant 0 : index
    %81 = vector.load %arg12[%c0_35, %c0_36] : memref<1x256xf32, #tpu.memory_space<vmem>>, vector<1x256xf32>
    %82 = vector.broadcast %81 : vector<1x256xf32> to vector<16x256xf32>
    %83 = arith.mulf %80, %82 : vector<16x256xf32>
    %c0_37 = arith.constant 0 : index
    %c0_38 = arith.constant 0 : index
    %84 = vector.load %arg13[%c0_37, %c0_38] : memref<1x256xf32, #tpu.memory_space<vmem>>, vector<1x256xf32>
    %85 = vector.broadcast %84 : vector<1x256xf32> to vector<16x256xf32>
    %86 = arith.addf %83, %85 : vector<16x256xf32>
    %87 = arith.truncf %86 : vector<16x256xf32> to vector<16x256xbf16>
    %c0_39 = arith.constant 0 : index
    %c0_40 = arith.constant 0 : index
    %c0_41 = arith.constant 0 : index
    %88 = vector.load %arg14[%c0_39, %c0_40, %c0_41] : memref<1x16x256xbf16, #tpu.memory_space<vmem>>, vector<1x16x256xbf16>
    %89 = vector.shape_cast %88 : vector<1x16x256xbf16> to vector<16x256xbf16>
    %90 = vector.shape_cast %87 : vector<16x256xbf16> to vector<1x16x256xbf16>
    tpu.vector_store %arg14[%c0_39, %c0_40, %c0_41], %90 {strides = array<i32>} : memref<1x16x256xbf16, #tpu.memory_space<vmem>>, vector<1x16x256xbf16>,
    return
  }
  func.func @transform_0(%arg0: i32, %arg1: i32) -> (i32, i32, i32) {
    %c0_i32 = arith.constant 0 : i32
    %c0_i32_0 = arith.constant 0 : i32
    return %arg0, %arg1, %c0_i32 : i32, i32, i32
  }
  func.func @transform_1(%arg0: i32, %arg1: i32) -> (i32, i32, i32) {
    %c0_i32 = arith.constant 0 : i32
    %c0_i32_0 = arith.constant 0 : i32
    %c0_i32_1 = arith.constant 0 : i32
    return %arg0, %c0_i32, %c0_i32_0 : i32, i32, i32
  }
  func.func @transform_2(%arg0: i32, %arg1: i32) -> (i32, i32) {
    %c0_i32 = arith.constant 0 : i32
    %c0_i32_0 = arith.constant 0 : i32
    return %arg1, %c0_i32 : i32, i32
  }
  func.func @transform_3(%arg0: i32, %arg1: i32) -> (i32, i32) {
    %c0_i32 = arith.constant 0 : i32
    %c0_i32_0 = arith.constant 0 : i32
    return %arg1, %c0_i32 : i32, i32
  }
  func.func @transform_4(%arg0: i32, %arg1: i32) -> (i32, i32) {
    %c0_i32 = arith.constant 0 : i32
    %c0_i32_0 = arith.constant 0 : i32
    %c0_i32_1 = arith.constant 0 : i32
    return %c0_i32, %c0_i32_0 : i32, i32
  }
  func.func @transform_5(%arg0: i32, %arg1: i32) -> (i32, i32) {
    %c0_i32 = arith.constant 0 : i32
    %c0_i32_0 = arith.constant 0 : i32
    %c0_i32_1 = arith.constant 0 : i32
    return %c0_i32, %c0_i32_0 : i32, i32
  }
  func.func @transform_6(%arg0: i32, %arg1: i32) -> (i32, i32) {
    %c0_i32 = arith.constant 0 : i32
    %c0_i32_0 = arith.constant 0 : i32
    %c0_i32_1 = arith.constant 0 : i32
    return %c0_i32, %c0_i32_0 : i32, i32
  }
  func.func @transform_7(%arg0: i32, %arg1: i32) -> (i32, i32) {
    %c0_i32 = arith.constant 0 : i32
    %c0_i32_0 = arith.constant 0 : i32
    %c0_i32_1 = arith.constant 0 : i32
    return %c0_i32, %c0_i32_0 : i32, i32
  }
  func.func @transform_8(%arg0: i32, %arg1: i32) -> (i32, i32) {
    %c0_i32 = arith.constant 0 : i32
    %c0_i32_0 = arith.constant 0 : i32
    %c0_i32_1 = arith.constant 0 : i32
    return %c0_i32, %c0_i32_0 : i32, i32
  }
  func.func @transform_9(%arg0: i32, %arg1: i32) -> (i32, i32) {
    %c0_i32 = arith.constant 0 : i32
    %c0_i32_0 = arith.constant 0 : i32
    %c0_i32_1 = arith.constant 0 : i32
    return %c0_i32, %c0_i32_0 : i32, i32
  }
  func.func @transform_10(%arg0: i32, %arg1: i32) -> (i32, i32) {
    %c0_i32 = arith.constant 0 : i32
    %c0_i32_0 = arith.constant 0 : i32
    %c0_i32_1 = arith.constant 0 : i32
    return %c0_i32, %c0_i32_0 : i32, i32
  }
  func.func @transform_11(%arg0: i32, %arg1: i32) -> (i32, i32) {
    %c0_i32 = arith.constant 0 : i32
    %c0_i32_0 = arith.constant 0 : i32
    %c0_i32_1 = arith.constant 0 : i32
    return %c0_i32, %c0_i32_0 : i32, i32
  }
  func.func @transform_12(%arg0: i32, %arg1: i32) -> (i32, i32, i32) {
    %c0_i32 = arith.constant 0 : i32
    %c0_i32_0 = arith.constant 0 : i32
    return %arg0, %arg1, %c0_i32 : i32, i32, i32
  }
}

module attributes {stable_mosaic.version = 11 : i64} {
  func.func @_mha_kernel(%arg0: i32, %arg1: i32, %arg2: memref<1x16x256xbf16, #tpu.memory_space<vmem>>, %arg3: memref<1x16x256xbf16, #tpu.memory_space<vmem>>, %arg4: memref<16x16xbf16, #tpu.memory_space<vmem>>, %arg5: memref<256x256xbf16, #tpu.memory_space<vmem>>, %arg6: memref<1x256xf32, #tpu.memory_space<vmem>>, %arg7: memref<256x512xbf16, #tpu.memory_space<vmem>>, %arg8: memref<1x512xf32, #tpu.memory_space<vmem>>, %arg9: memref<256x256xbf16, #tpu.memory_space<vmem>>, %arg10: memref<1x256xf32, #tpu.memory_space<vmem>>, %arg11: memref<1x256xf32, #tpu.memory_space<vmem>>, %arg12: memref<1x256xf32, #tpu.memory_space<vmem>>, %arg13: memref<256x512xbf16, #tpu.memory_space<vmem>>, %arg14: memref<1x512xf32, #tpu.memory_space<vmem>>, %arg15: memref<512x256xbf16, #tpu.memory_space<vmem>>, %arg16: memref<1x256xf32, #tpu.memory_space<vmem>>, %arg17: memref<1x16x256xf32, #tpu.memory_space<vmem>>, %arg18: memref<16x512xbf16, #tpu.memory_space<vmem>>) attributes {dimension_semantics = [#tpu.dimension_semantics<parallel>, #tpu.dimension_semantics<arbitrary>], iteration_bounds = array<i64: 2, 1>, scalar_prefetch = 0 : i64, scratch_operands = 1 : i64, tpu.core_type = #tpu.core_type<tc>, window_params = [{transform_indices = @transform_0, window_bounds = array<i64: 1, 16, 256>}, {transform_indices = @transform_1, window_bounds = array<i64: 1, 16, 256>}, {transform_indices = @transform_2, window_bounds = array<i64: 16, 16>}, {pipeline_mode = #tpu.pipeline_mode<synchronous>, transform_indices = @transform_3, window_bounds = array<i64: 256, 256>}, {pipeline_mode = #tpu.pipeline_mode<synchronous>, transform_indices = @transform_4, window_bounds = array<i64: 1, 256>}, {pipeline_mode = #tpu.pipeline_mode<synchronous>, transform_indices = @transform_5, window_bounds = array<i64: 256, 512>}, {pipeline_mode = #tpu.pipeline_mode<synchronous>, transform_indices = @transform_6, window_bounds = array<i64: 1, 512>}, {pipeline_mode = #tpu.pipeline_mode<synchronous>, transform_indices = @transform_7, window_bounds = array<i64: 256, 256>}, {pipeline_mode = #tpu.pipeline_mode<synchronous>, transform_indices = @transform_8, window_bounds = array<i64: 1, 256>}, {pipeline_mode = #tpu.pipeline_mode<synchronous>, transform_indices = @transform_9, window_bounds = array<i64: 1, 256>}, {pipeline_mode = #tpu.pipeline_mode<synchronous>, transform_indices = @transform_10, window_bounds = array<i64: 1, 256>}, {pipeline_mode = #tpu.pipeline_mode<synchronous>, transform_indices = @transform_11, window_bounds = array<i64: 256, 512>}, {pipeline_mode = #tpu.pipeline_mode<synchronous>, transform_indices = @transform_12, window_bounds = array<i64: 1, 512>}, {pipeline_mode = #tpu.pipeline_mode<synchronous>, transform_indices = @transform_13, window_bounds = array<i64: 512, 256>}, {pipeline_mode = #tpu.pipeline_mode<synchronous>, transform_indices = @transform_14, window_bounds = array<i64: 1, 256>}, {transform_indices = @transform_15, window_bounds = array<i64: 1, 16, 256>}]} {
    %c0_i32 = arith.constant 0 : i32
    %0 = arith.cmpi eq, %arg1, %c0_i32 : i32
    %1 = arith.extui %0 : i1 to i32
    %c0_i32_0 = arith.constant 0 : i32
    %2 = arith.cmpi ne, %1, %c0_i32_0 : i32
    scf.if %2 {
      %c0_51 = arith.constant 0 : index
      %c0_52 = arith.constant 0 : index
      %c0_53 = arith.constant 0 : index
      %103 = vector.load %arg3[%c0_51, %c0_52, %c0_53] : memref<1x16x256xbf16, #tpu.memory_space<vmem>>, vector<1x16x256xbf16>
      %104 = vector.shape_cast %103 : vector<1x16x256xbf16> to vector<16x256xbf16>
      %c0_54 = arith.constant 0 : index
      %c0_55 = arith.constant 0 : index
      %105 = vector.load %arg7[%c0_54, %c0_55] : memref<256x512xbf16, #tpu.memory_space<vmem>>, vector<256x512xbf16>
      %cst_56 = arith.constant dense<0.000000e+00> : vector<16x512xf32>
      %106 = tpu.matmul %104, %105, %cst_56 {dimension_numbers = #tpu.dot_dimension_numbers<[1], [0], [0], [1], [0, 0, 1, 1], [], []>} : vector<16x256xbf16>, vector<256x512xbf16>, vector<16x512xf32> -> vector<16x512xf32>
      %c0_57 = arith.constant 0 : index
      %c0_58 = arith.constant 0 : index
      %107 = vector.load %arg8[%c0_57, %c0_58] : memref<1x512xf32, #tpu.memory_space<vmem>>, vector<1x512xf32>
      %108 = vector.broadcast %107 : vector<1x512xf32> to vector<16x512xf32>
      %109 = arith.addf %106, %108 : vector<16x512xf32>
      %110 = arith.truncf %109 : vector<16x512xf32> to vector<16x512xbf16>
      %c0_59 = arith.constant 0 : index
      %c0_60 = arith.constant 0 : index
      %111 = vector.load %arg18[%c0_59, %c0_60] : memref<16x512xbf16, #tpu.memory_space<vmem>>, vector<16x512xbf16>
      tpu.vector_store %arg18[%c0_59, %c0_60], %110 {strides = array<i32>} : memref<16x512xbf16, #tpu.memory_space<vmem>>, vector<16x512xbf16>,
    } else {
    }
    %c0 = arith.constant 0 : index
    %c0_1 = arith.constant 0 : index
    %c0_2 = arith.constant 0 : index
    %3 = vector.load %arg2[%c0, %c0_1, %c0_2] : memref<1x16x256xbf16, #tpu.memory_space<vmem>>, vector<1x16x256xbf16>
    %4 = vector.shape_cast %3 : vector<1x16x256xbf16> to vector<16x256xbf16>
    %5 = arith.extf %4 : vector<16x256xbf16> to vector<16x256xf32>
    %6 = arith.truncf %5 : vector<16x256xf32> to vector<16x256xbf16>
    %c0_3 = arith.constant 0 : index
    %c0_4 = arith.constant 0 : index
    %7 = vector.load %arg5[%c0_3, %c0_4] : memref<256x256xbf16, #tpu.memory_space<vmem>>, vector<256x256xbf16>
    %cst = arith.constant dense<0.000000e+00> : vector<16x256xf32>
    %8 = tpu.matmul %6, %7, %cst {dimension_numbers = #tpu.dot_dimension_numbers<[1], [0], [0], [1], [0, 0, 1, 1], [], []>} : vector<16x256xbf16>, vector<256x256xbf16>, vector<16x256xf32> -> vector<16x256xf32>
    %c0_5 = arith.constant 0 : index
    %c0_6 = arith.constant 0 : index
    %9 = vector.load %arg6[%c0_5, %c0_6] : memref<1x256xf32, #tpu.memory_space<vmem>>, vector<1x256xf32>
    %10 = vector.broadcast %9 : vector<1x256xf32> to vector<16x256xf32>
    %11 = arith.addf %8, %10 : vector<16x256xf32>
    %cst_7 = arith.constant 0.0883883461 : f32
    %12 = vector.broadcast %cst_7 : f32 to vector<16x256xf32>
    %13 = arith.mulf %11, %12 : vector<16x256xf32>
    %c0_8 = arith.constant 0 : index
    %c0_9 = arith.constant 0 : index
    %14 = vector.load %arg4[%c0_8, %c0_9] : memref<16x16xbf16, #tpu.memory_space<vmem>>, vector<16x16xbf16>
    %15 = arith.extf %14 : vector<16x16xbf16> to vector<16x16xf32>
    %16 = vector.extract_strided_slice %13 {offsets = [0, 0], sizes = [16, 128], strides = [1, 1]} : vector<16x256xf32> to vector<16x128xf32>
    %17 = arith.truncf %16 : vector<16x128xf32> to vector<16x128xbf16>
    %c0_10 = arith.constant 0 : index
    %c0_11 = arith.constant 0 : index
    %18 = vector.load %arg18[%c0_10, %c0_11] : memref<16x512xbf16, #tpu.memory_space<vmem>>, vector<16x128xbf16>
    %c0_12 = arith.constant 0 : index
    %c256 = arith.constant 256 : index
    %19 = vector.load %arg18[%c0_12, %c256] : memref<16x512xbf16, #tpu.memory_space<vmem>>, vector<16x128xbf16>
    %20 = tpu.transpose %18, [1, 0] : vector<16x128xbf16> -> vector<128x16xbf16>
    %cst_13 = arith.constant dense<0.000000e+00> : vector<16x16xf32>
    %21 = tpu.matmul %17, %20, %cst_13 {dimension_numbers = #tpu.dot_dimension_numbers<[1], [0], [0], [1], [0, 0, 1, 1], [], []>} : vector<16x128xbf16>, vector<128x16xbf16>, vector<16x16xf32> -> vector<16x16xf32>
    %22 = arith.addf %21, %15 : vector<16x16xf32>
    %cst_14 = arith.constant dense<0xFF800000> : vector<16xf32>
    %23 = vector.multi_reduction <maximumf>, %22, %cst_14 [1] : vector<16x16xf32> to vector<16xf32>
    %24 = vector.shape_cast %23 : vector<16xf32> to vector<16x1xf32>
    %25 = vector.broadcast %24 : vector<16x1xf32> to vector<16x16xf32>
    %26 = arith.subf %22, %25 : vector<16x16xf32>
    %27 = math.exp %26 : vector<16x16xf32>
    %cst_15 = arith.constant dense<0.000000e+00> : vector<16xf32>
    %28 = vector.multi_reduction <add>, %27, %cst_15 [1] : vector<16x16xf32> to vector<16xf32>
    %29 = vector.shape_cast %28 : vector<16xf32> to vector<16x1xf32>
    %30 = tpu.reciprocal %29 {approx = true} : vector<16x1xf32> -> vector<16x1xf32>
    %31 = vector.broadcast %30 : vector<16x1xf32> to vector<16x16xf32>
    %32 = arith.mulf %27, %31 : vector<16x16xf32>
    %33 = arith.truncf %32 : vector<16x16xf32> to vector<16x16xbf16>
    %cst_16 = arith.constant dense<0.000000e+00> : vector<16x128xf32>
    %34 = tpu.matmul %33, %19, %cst_16 {dimension_numbers = #tpu.dot_dimension_numbers<[1], [0], [0], [1], [0, 0, 1, 1], [], []>} : vector<16x16xbf16>, vector<16x128xbf16>, vector<16x128xf32> -> vector<16x128xf32>
    %35 = vector.extract_strided_slice %13 {offsets = [0, 128], sizes = [16, 128], strides = [1, 1]} : vector<16x256xf32> to vector<16x128xf32>
    %36 = arith.truncf %35 : vector<16x128xf32> to vector<16x128xbf16>
    %c0_17 = arith.constant 0 : index
    %c128 = arith.constant 128 : index
    %37 = vector.load %arg18[%c0_17, %c128] : memref<16x512xbf16, #tpu.memory_space<vmem>>, vector<16x128xbf16>
    %c0_18 = arith.constant 0 : index
    %c384 = arith.constant 384 : index
    %38 = vector.load %arg18[%c0_18, %c384] : memref<16x512xbf16, #tpu.memory_space<vmem>>, vector<16x128xbf16>
    %39 = tpu.transpose %37, [1, 0] : vector<16x128xbf16> -> vector<128x16xbf16>
    %cst_19 = arith.constant dense<0.000000e+00> : vector<16x16xf32>
    %40 = tpu.matmul %36, %39, %cst_19 {dimension_numbers = #tpu.dot_dimension_numbers<[1], [0], [0], [1], [0, 0, 1, 1], [], []>} : vector<16x128xbf16>, vector<128x16xbf16>, vector<16x16xf32> -> vector<16x16xf32>
    %41 = arith.addf %40, %15 : vector<16x16xf32>
    %cst_20 = arith.constant dense<0xFF800000> : vector<16xf32>
    %42 = vector.multi_reduction <maximumf>, %41, %cst_20 [1] : vector<16x16xf32> to vector<16xf32>
    %43 = vector.shape_cast %42 : vector<16xf32> to vector<16x1xf32>
    %44 = vector.broadcast %43 : vector<16x1xf32> to vector<16x16xf32>
    %45 = arith.subf %41, %44 : vector<16x16xf32>
    %46 = math.exp %45 : vector<16x16xf32>
    %cst_21 = arith.constant dense<0.000000e+00> : vector<16xf32>
    %47 = vector.multi_reduction <add>, %46, %cst_21 [1] : vector<16x16xf32> to vector<16xf32>
    %48 = vector.shape_cast %47 : vector<16xf32> to vector<16x1xf32>
    %49 = tpu.reciprocal %48 {approx = true} : vector<16x1xf32> -> vector<16x1xf32>
    %50 = vector.broadcast %49 : vector<16x1xf32> to vector<16x16xf32>
    %51 = arith.mulf %46, %50 : vector<16x16xf32>
    %52 = arith.truncf %51 : vector<16x16xf32> to vector<16x16xbf16>
    %cst_22 = arith.constant dense<0.000000e+00> : vector<16x128xf32>
    %53 = tpu.matmul %52, %38, %cst_22 {dimension_numbers = #tpu.dot_dimension_numbers<[1], [0], [0], [1], [0, 0, 1, 1], [], []>} : vector<16x16xbf16>, vector<16x128xbf16>, vector<16x128xf32> -> vector<16x128xf32>
    %54 = tpu.concatenate %34, %53 in 1 : vector<16x128xf32>, vector<16x128xf32> -> vector<16x256xf32>
    %55 = arith.truncf %54 : vector<16x256xf32> to vector<16x256xbf16>
    %c0_23 = arith.constant 0 : index
    %c0_24 = arith.constant 0 : index
    %56 = vector.load %arg9[%c0_23, %c0_24] : memref<256x256xbf16, #tpu.memory_space<vmem>>, vector<256x256xbf16>
    %cst_25 = arith.constant dense<0.000000e+00> : vector<16x256xf32>
    %57 = tpu.matmul %55, %56, %cst_25 {dimension_numbers = #tpu.dot_dimension_numbers<[1], [0], [0], [1], [0, 0, 1, 1], [], []>} : vector<16x256xbf16>, vector<256x256xbf16>, vector<16x256xf32> -> vector<16x256xf32>
    %c0_26 = arith.constant 0 : index
    %c0_27 = arith.constant 0 : index
    %58 = vector.load %arg10[%c0_26, %c0_27] : memref<1x256xf32, #tpu.memory_space<vmem>>, vector<1x256xf32>
    %59 = vector.broadcast %58 : vector<1x256xf32> to vector<16x256xf32>
    %60 = arith.addf %57, %59 : vector<16x256xf32>
    %61 = arith.addf %60, %5 : vector<16x256xf32>
    %cst_28 = arith.constant dense<0.000000e+00> : vector<16xf32>
    %62 = vector.multi_reduction <add>, %61, %cst_28 [1] : vector<16x256xf32> to vector<16xf32>
    %63 = vector.shape_cast %62 : vector<16xf32> to vector<16x1xf32>
    %cst_29 = arith.constant 2.560000e+02 : f32
    %64 = vector.broadcast %cst_29 : f32 to vector<16x1xf32>
    %65 = arith.divf %63, %64 : vector<16x1xf32>
    %66 = vector.broadcast %65 : vector<16x1xf32> to vector<16x256xf32>
    %67 = arith.subf %61, %66 : vector<16x256xf32>
    %68 = arith.mulf %67, %67 : vector<16x256xf32>
    %cst_30 = arith.constant dense<0.000000e+00> : vector<16xf32>
    %69 = vector.multi_reduction <add>, %68, %cst_30 [1] : vector<16x256xf32> to vector<16xf32>
    %70 = vector.shape_cast %69 : vector<16xf32> to vector<16x1xf32>
    %cst_31 = arith.constant 2.560000e+02 : f32
    %71 = vector.broadcast %cst_31 : f32 to vector<16x1xf32>
    %72 = arith.divf %70, %71 : vector<16x1xf32>
    %73 = vector.broadcast %65 : vector<16x1xf32> to vector<16x256xf32>
    %74 = arith.subf %61, %73 : vector<16x256xf32>
    %cst_32 = arith.constant 9.99999974E-6 : f32
    %75 = vector.broadcast %cst_32 : f32 to vector<16x1xf32>
    %76 = arith.addf %72, %75 : vector<16x1xf32>
    %77 = math.rsqrt %76 : vector<16x1xf32>
    %78 = vector.broadcast %77 : vector<16x1xf32> to vector<16x256xf32>
    %79 = arith.mulf %74, %78 : vector<16x256xf32>
    %c0_33 = arith.constant 0 : index
    %c0_34 = arith.constant 0 : index
    %80 = vector.load %arg11[%c0_33, %c0_34] : memref<1x256xf32, #tpu.memory_space<vmem>>, vector<1x256xf32>
    %81 = vector.broadcast %80 : vector<1x256xf32> to vector<16x256xf32>
    %82 = arith.mulf %79, %81 : vector<16x256xf32>
    %c0_35 = arith.constant 0 : index
    %c0_36 = arith.constant 0 : index
    %83 = vector.load %arg12[%c0_35, %c0_36] : memref<1x256xf32, #tpu.memory_space<vmem>>, vector<1x256xf32>
    %84 = vector.broadcast %83 : vector<1x256xf32> to vector<16x256xf32>
    %85 = arith.addf %82, %84 : vector<16x256xf32>
    %86 = arith.truncf %85 : vector<16x256xf32> to vector<16x256xbf16>
    %c0_37 = arith.constant 0 : index
    %c0_38 = arith.constant 0 : index
    %87 = vector.load %arg13[%c0_37, %c0_38] : memref<256x512xbf16, #tpu.memory_space<vmem>>, vector<256x512xbf16>
    %cst_39 = arith.constant dense<0.000000e+00> : vector<16x512xf32>
    %88 = tpu.matmul %86, %87, %cst_39 {dimension_numbers = #tpu.dot_dimension_numbers<[1], [0], [0], [1], [0, 0, 1, 1], [], []>} : vector<16x256xbf16>, vector<256x512xbf16>, vector<16x512xf32> -> vector<16x512xf32>
    %c0_40 = arith.constant 0 : index
    %c0_41 = arith.constant 0 : index
    %89 = vector.load %arg14[%c0_40, %c0_41] : memref<1x512xf32, #tpu.memory_space<vmem>>, vector<1x512xf32>
    %90 = vector.broadcast %89 : vector<1x512xf32> to vector<16x512xf32>
    %91 = arith.addf %88, %90 : vector<16x512xf32>
    %cst_42 = arith.constant 0.000000e+00 : f32
    %92 = vector.broadcast %cst_42 : f32 to vector<16x512xf32>
    %93 = arith.maximumf %91, %92 : vector<16x512xf32>
    %94 = arith.truncf %93 : vector<16x512xf32> to vector<16x512xbf16>
    %c0_43 = arith.constant 0 : index
    %c0_44 = arith.constant 0 : index
    %95 = vector.load %arg15[%c0_43, %c0_44] : memref<512x256xbf16, #tpu.memory_space<vmem>>, vector<512x256xbf16>
    %cst_45 = arith.constant dense<0.000000e+00> : vector<16x256xf32>
    %96 = tpu.matmul %94, %95, %cst_45 {dimension_numbers = #tpu.dot_dimension_numbers<[1], [0], [0], [1], [0, 0, 1, 1], [], []>} : vector<16x512xbf16>, vector<512x256xbf16>, vector<16x256xf32> -> vector<16x256xf32>
    %c0_46 = arith.constant 0 : index
    %c0_47 = arith.constant 0 : index
    %97 = vector.load %arg16[%c0_46, %c0_47] : memref<1x256xf32, #tpu.memory_space<vmem>>, vector<1x256xf32>
    %98 = vector.broadcast %97 : vector<1x256xf32> to vector<16x256xf32>
    %99 = arith.addf %96, %98 : vector<16x256xf32>
    %c0_48 = arith.constant 0 : index
    %c0_49 = arith.constant 0 : index
    %c0_50 = arith.constant 0 : index
    %100 = vector.load %arg17[%c0_48, %c0_49, %c0_50] : memref<1x16x256xf32, #tpu.memory_space<vmem>>, vector<1x16x256xf32>
    %101 = vector.shape_cast %100 : vector<1x16x256xf32> to vector<16x256xf32>
    %102 = vector.shape_cast %99 : vector<16x256xf32> to vector<1x16x256xf32>
    tpu.vector_store %arg17[%c0_48, %c0_49, %c0_50], %102 {strides = array<i32>} : memref<1x16x256xf32, #tpu.memory_space<vmem>>, vector<1x16x256xf32>,
    return
  }
  func.func @transform_0(%arg0: i32, %arg1: i32) -> (i32, i32, i32) {
    %c0_i32 = arith.constant 0 : i32
    %c0_i32_0 = arith.constant 0 : i32
    return %arg0, %arg1, %c0_i32 : i32, i32, i32
  }
  func.func @transform_1(%arg0: i32, %arg1: i32) -> (i32, i32, i32) {
    %c0_i32 = arith.constant 0 : i32
    %c0_i32_0 = arith.constant 0 : i32
    %c0_i32_1 = arith.constant 0 : i32
    return %arg0, %c0_i32, %c0_i32_0 : i32, i32, i32
  }
  func.func @transform_2(%arg0: i32, %arg1: i32) -> (i32, i32) {
    %c0_i32 = arith.constant 0 : i32
    %c0_i32_0 = arith.constant 0 : i32
    return %arg1, %c0_i32 : i32, i32
  }
  func.func @transform_3(%arg0: i32, %arg1: i32) -> (i32, i32) {
    %c0_i32 = arith.constant 0 : i32
    %c0_i32_0 = arith.constant 0 : i32
    %c0_i32_1 = arith.constant 0 : i32
    return %c0_i32, %c0_i32_0 : i32, i32
  }
  func.func @transform_4(%arg0: i32, %arg1: i32) -> (i32, i32) {
    %c0_i32 = arith.constant 0 : i32
    %c0_i32_0 = arith.constant 0 : i32
    %c0_i32_1 = arith.constant 0 : i32
    return %c0_i32, %c0_i32_0 : i32, i32
  }
  func.func @transform_5(%arg0: i32, %arg1: i32) -> (i32, i32) {
    %c0_i32 = arith.constant 0 : i32
    %c0_i32_0 = arith.constant 0 : i32
    %c0_i32_1 = arith.constant 0 : i32
    return %c0_i32, %c0_i32_0 : i32, i32
  }
  func.func @transform_6(%arg0: i32, %arg1: i32) -> (i32, i32) {
    %c0_i32 = arith.constant 0 : i32
    %c0_i32_0 = arith.constant 0 : i32
    %c0_i32_1 = arith.constant 0 : i32
    return %c0_i32, %c0_i32_0 : i32, i32
  }
  func.func @transform_7(%arg0: i32, %arg1: i32) -> (i32, i32) {
    %c0_i32 = arith.constant 0 : i32
    %c0_i32_0 = arith.constant 0 : i32
    %c0_i32_1 = arith.constant 0 : i32
    return %c0_i32, %c0_i32_0 : i32, i32
  }
  func.func @transform_8(%arg0: i32, %arg1: i32) -> (i32, i32) {
    %c0_i32 = arith.constant 0 : i32
    %c0_i32_0 = arith.constant 0 : i32
    %c0_i32_1 = arith.constant 0 : i32
    return %c0_i32, %c0_i32_0 : i32, i32
  }
  func.func @transform_9(%arg0: i32, %arg1: i32) -> (i32, i32) {
    %c0_i32 = arith.constant 0 : i32
    %c0_i32_0 = arith.constant 0 : i32
    %c0_i32_1 = arith.constant 0 : i32
    return %c0_i32, %c0_i32_0 : i32, i32
  }
  func.func @transform_10(%arg0: i32, %arg1: i32) -> (i32, i32) {
    %c0_i32 = arith.constant 0 : i32
    %c0_i32_0 = arith.constant 0 : i32
    %c0_i32_1 = arith.constant 0 : i32
    return %c0_i32, %c0_i32_0 : i32, i32
  }
  func.func @transform_11(%arg0: i32, %arg1: i32) -> (i32, i32) {
    %c0_i32 = arith.constant 0 : i32
    %c0_i32_0 = arith.constant 0 : i32
    %c0_i32_1 = arith.constant 0 : i32
    return %c0_i32, %c0_i32_0 : i32, i32
  }
  func.func @transform_12(%arg0: i32, %arg1: i32) -> (i32, i32) {
    %c0_i32 = arith.constant 0 : i32
    %c0_i32_0 = arith.constant 0 : i32
    %c0_i32_1 = arith.constant 0 : i32
    return %c0_i32, %c0_i32_0 : i32, i32
  }
  func.func @transform_13(%arg0: i32, %arg1: i32) -> (i32, i32) {
    %c0_i32 = arith.constant 0 : i32
    %c0_i32_0 = arith.constant 0 : i32
    %c0_i32_1 = arith.constant 0 : i32
    return %c0_i32, %c0_i32_0 : i32, i32
  }
  func.func @transform_14(%arg0: i32, %arg1: i32) -> (i32, i32) {
    %c0_i32 = arith.constant 0 : i32
    %c0_i32_0 = arith.constant 0 : i32
    %c0_i32_1 = arith.constant 0 : i32
    return %c0_i32, %c0_i32_0 : i32, i32
  }
  func.func @transform_15(%arg0: i32, %arg1: i32) -> (i32, i32, i32) {
    %c0_i32 = arith.constant 0 : i32
    %c0_i32_0 = arith.constant 0 : i32
    return %arg0, %arg1, %c0_i32 : i32, i32, i32
  }
}

</mosaic_0001>

<llo_original>
// kernel: decoder_layer_c_forward.5
$region0: #{decoder_layer_c_forward.5}
  #allocation0 [shape = 'u32[]', space=smem, size = 0x4, offset = 0x4, fixed_abs, tag = 'smem constant byte address 0x4 - core index']
  #allocation1 [shape = 'u32[144,128]{1,0:T(1,128)}', space=vmem, size = 0x12000, scoped, tag = 'internal scratch']
  #allocation2 [shape = 'bf16[16,512]{1,0:T(16,128)(2,1)}', space=vmem, size = 0x4000, scoped, tag = 'scratch operand']
  %s0 = inlined_call_operand.hbm [shape: bf16[2,16,256], index: 0, kind: input, shape index: {}]
  %s1 = inlined_call_operand.hbm [shape: f32[2,16,256], index: 1, kind: input, shape index: {}]
  %s2 = inlined_call_operand.hbm [shape: bf16[16,16], index: 2, kind: input, shape index: {}]
  %s3 = inlined_call_operand.hbm [shape: bf16[256,256], index: 3, kind: input, shape index: {}]
  %s4 = inlined_call_operand.hbm [shape: f32[1,256], index: 4, kind: input, shape index: {}]
  %s5 = inlined_call_operand.hbm [shape: bf16[256,512], index: 5, kind: input, shape index: {}]
  %s6 = inlined_call_operand.hbm [shape: f32[1,512], index: 6, kind: input, shape index: {}]
  %s7 = inlined_call_operand.hbm [shape: bf16[256,256], index: 7, kind: input, shape index: {}]
  %s8 = inlined_call_operand.hbm [shape: f32[1,256], index: 8, kind: input, shape index: {}]
  %s9 = inlined_call_operand.hbm [shape: f32[1,256], index: 9, kind: input, shape index: {}]
  %s10 = inlined_call_operand.hbm [shape: f32[1,256], index: 10, kind: input, shape index: {}]
  %s11 = inlined_call_operand.hbm [shape: bf16[2,16,256], index: 11, kind: output, shape index: {}]
  %s12 = sld [smem:[#allocation0]]
  $region125: #{decoder_layer_c_forward.5} parent=0
    _
  %s14 = ssub.s32 1, %s12
  %s15 = scalar_select 0, %s14, %s12
  $region1: #{decoder_layer_c_forward.5} parent=0
    #allocation3 [shape = 'u8[16384]{0}', space=vmem, size = 0x4000, scoped, tag = 'input window, operand 0']
    #allocation4 [shape = 's32[2]{0}', space=sflag, size = 0x8, scoped, tag = 'scoped memory for decoder_layer_c_forward.5']
    #allocation5 [shape = 's32[2]{0}', space=sflag, size = 0x8, scoped, tag = 'scoped memory for decoder_layer_c_forward.5']
    #allocation6 [shape = 'u8[32768]{0}', space=vmem, size = 0x8000, scoped, tag = 'input window, operand 1']
    #allocation7 [shape = 's32[2]{0}', space=sflag, size = 0x8, scoped, tag = 'scoped memory for decoder_layer_c_forward.5']
    #allocation8 [shape = 'u8[4096]{0}', space=vmem, size = 0x1000, scoped, tag = 'input window, operand 2, single buffered']
    #allocation9 [shape = 'u8[131072]{0}', space=vmem, size = 0x20000, scoped, tag = 'input window, operand 3, single buffered']
    #allocation10 [shape = 's32[1]{0}', space=sflag, size = 0x4, scoped, tag = 'scoped memory for decoder_layer_c_forward.5']
    #allocation11 [shape = 'u8[1024]{0}', space=vmem, size = 0x400, scoped, tag = 'input window, operand 4, single buffered']
    #allocation12 [shape = 'u8[262144]{0}', space=vmem, size = 0x40000, scoped, tag = 'input window, operand 5, single buffered']
    #allocation13 [shape = 's32[1]{0}', space=sflag, size = 0x4, scoped, tag = 'scoped memory for decoder_layer_c_forward.5']
    #allocation14 [shape = 'u8[2048]{0}', space=vmem, size = 0x800, scoped, tag = 'input window, operand 6, single buffered']
    #allocation15 [shape = 'u8[131072]{0}', space=vmem, size = 0x20000, scoped, tag = 'input window, operand 7, single buffered']
    #allocation16 [shape = 's32[1]{0}', space=sflag, size = 0x4, scoped, tag = 'scoped memory for decoder_layer_c_forward.5']
    #allocation17 [shape = 'u8[1024]{0}', space=vmem, size = 0x400, scoped, tag = 'input window, operand 8, single buffered']
    #allocation18 [shape = 'u8[1024]{0}', space=vmem, size = 0x400, scoped, tag = 'input window, operand 9, single buffered']
    #allocation19 [shape = 's32[1]{0}', space=sflag, size = 0x4, scoped, tag = 'scoped memory for decoder_layer_c_forward.5']
    #allocation20 [shape = 'u8[1024]{0}', space=vmem, size = 0x400, scoped, tag = 'input window, operand 10, single buffered']
    #allocation21 [shape = 'u8[16384]{0}', space=vmem, size = 0x4000, scoped, tag = 'output window, operand 0']
    %16 = vsyncpa [#allocation4], 0
    %s17 = scalar_lea.sflag [#allocation4], 1
    %18 = vsyncpa %s17, 0
    %19 = vsyncpa [#allocation7], 0
    %s20 = scalar_lea.sflag [#allocation7], 1
    %21 = vsyncpa %s20, 0
    %22 = vsyncpa [#allocation10], 0
    %23 = vsyncpa [#allocation13], 0
    %24 = vsyncpa [#allocation16], 0
    %25 = vsyncpa [#allocation19], 0
    %26 = vsyncpa [#allocation5], 0
    %s27 = scalar_lea.sflag [#allocation5], 1
    %28 = vsyncpa %s27, 0
    loop: start=0, step=1, limit=4
    $region2: #{decoder_layer_c_forward.5} parent=1 // loop_pre_header
      _
    $region3: #{decoder_layer_c_forward.5} parent=1 // loop_header
      %s30 = sphi 0, %s34
      %p31 = scmp.ge.s32.totalorder %s30, 4
      %s37 = sphi 0, %s49
      %s38 = sphi 0, %s45
      %s39 = sphi 0, %s37
      %s40 = sphi 0, %s38
      %s41 = sphi 0, %s39
      %s42 = sphi 0, %s40
      %s54 = sphi 0, %s56
      %s57 = sphi 0, %s54
      %s58 = sphi 0, %s57
      %s74 = sphi 0, %s58
      %s80 = sphi 0, %s82
      %s83 = sphi 0, %s80
      %s84 = sphi 0, %s83
      %s100 = sphi 0, %s84
      %s106 = sphi 0, %s108
      %s109 = sphi 0, %s106
      %s110 = sphi 0, %s109
      %s126 = sphi 0, %s110
      %s130 = sphi 0, %s130
      %s132 = sphi 0, %s130
      %s133 = sphi 0, %s132
      %s147 = sphi 0, %s133
      %s151 = sphi 0, %s151
      %s153 = sphi 0, %s151
      %s154 = sphi 0, %s153
      %s168 = sphi 0, %s154
      %s172 = sphi 0, %s172
      %s174 = sphi 0, %s172
      %s175 = sphi 0, %s174
      %s189 = sphi 0, %s175
      %s193 = sphi 0, %s193
      %s195 = sphi 0, %s193
      %s196 = sphi 0, %s195
      %s210 = sphi 0, %s196
      %s214 = sphi 0, %s214
      %s216 = sphi 0, %s214
      %s217 = sphi 0, %s216
      %s231 = sphi 0, %s217
      %s235 = sphi 0, %s235
      %s237 = sphi 0, %s235
      %s238 = sphi 0, %s237
      %s252 = sphi 0, %s238
      %s256 = sphi 0, %s256
      %s258 = sphi 0, %s256
      %s259 = sphi 0, %s258
      %s273 = sphi 0, %s259
      %s277 = sphi 0, %s277
      %s279 = sphi 0, %s277
      %s280 = sphi 0, %s279
      %s294 = sphi 0, %s280
      %s302 = sphi 0, %s304
      %s305 = sphi 0, %s302
      %s306 = sphi 0, %s305
      %s322 = sphi 0, %s306
    $region4: #{decoder_layer_c_forward.5} parent=1 // loop_header_branch
      %33 = sbr.rel (%p31) target = $region8
    $region5: #{decoder_layer_c_forward.5} parent=1 // loop_body
      %s35 = ssub.s32 %s30, 1
      %s36 = ssub.s32 %s30, 2
      %s43 = sadd.s32 1, %s38
      %p44 = scmp.ge.s32.totalorder %s43, 1
      %s45 = scalar_select %p44, 0, %s43
      %s46 = sadd.s32 1, %s37
      %s47 = scalar_select %p44, %s46, %s37
      %p48 = scmp.ge.s32.totalorder %s47, 2
      %s49 = scalar_select %p48, 0, %s47
      %s50 = ssub.s32 %s37, %s49
      %s51 = ssub.s32 %s38, %s45
      %s52 = sor.u32 %s50, %s51
      %p53 = scmp.eq.s32.totalorder %s52, 0
      %s55 = sadd.s32 %s54, 1
      %s56 = scalar_select %p53, %s54, %s55
      %p59 = pneg %p53
      %p60 = scmp.eq.s32.totalorder %s30, 1
      %p61 = por %p59, %p60
      %p62 = scmp.ne.s32.totalorder %s54, %s57
      %p63 = scmp.eq.s32.totalorder %s30, 0
      %p64 = por %p62, %p63
      %p65 = scmp.ne.s32.totalorder %s54, %s57
      %p66 = scmp.eq.s32.totalorder %s35, 1
      %p67 = por %p65, %p66
      %p68 = scmp.ne.s32.totalorder %s57, %s58
      %p69 = scmp.eq.s32.totalorder %s35, 0
      %p70 = por %p68, %p69
      %p71 = scmp.ne.s32.totalorder %s57, %s58
      %p72 = scmp.eq.s32.totalorder %s36, 1
      %p73 = por %p71, %p72
      %p75 = scmp.ne.s32.totalorder %s58, %s74
      %p76 = scmp.eq.s32.totalorder %s36, 0
      %p77 = por %p75, %p76
      %s78 = ssub.s32 %s37, %s49
      %p79 = scmp.eq.s32.totalorder %s78, 0
      %s81 = sadd.s32 %s80, 1
      %s82 = scalar_select %p79, %s80, %s81
      %p85 = pneg %p79
      %p86 = scmp.eq.s32.totalorder %s30, 1
      %p87 = por %p85, %p86
      %p88 = scmp.ne.s32.totalorder %s80, %s83
      %p89 = scmp.eq.s32.totalorder %s30, 0
      %p90 = por %p88, %p89
      %p91 = scmp.ne.s32.totalorder %s80, %s83
      %p92 = scmp.eq.s32.totalorder %s35, 1
      %p93 = por %p91, %p92
      %p94 = scmp.ne.s32.totalorder %s83, %s84
      %p95 = scmp.eq.s32.totalorder %s35, 0
      %p96 = por %p94, %p95
      %p97 = scmp.ne.s32.totalorder %s83, %s84
      %p98 = scmp.eq.s32.totalorder %s36, 1
      %p99 = por %p97, %p98
      %p101 = scmp.ne.s32.totalorder %s84, %s100
      %p102 = scmp.eq.s32.totalorder %s36, 0
      %p103 = por %p101, %p102
      %s104 = ssub.s32 %s38, %s45
      %p105 = scmp.eq.s32.totalorder %s104, 0
      %s107 = sadd.s32 %s106, 1
      %s108 = scalar_select %p105, %s106, %s107
      %p111 = pneg %p105
      %p112 = scmp.eq.s32.totalorder %s30, 1
      %p113 = por %p111, %p112
      %p114 = scmp.ne.s32.totalorder %s106, %s109
      %p115 = scmp.eq.s32.totalorder %s30, 0
      %p116 = por %p114, %p115
      %p117 = scmp.ne.s32.totalorder %s106, %s109
      %p118 = scmp.eq.s32.totalorder %s35, 1
      %p119 = por %p117, %p118
      %p120 = scmp.ne.s32.totalorder %s109, %s110
      %p121 = scmp.eq.s32.totalorder %s35, 0
      %p122 = por %p120, %p121
      %p123 = scmp.ne.s32.totalorder %s109, %s110
      %p124 = scmp.eq.s32.totalorder %s36, 1
      %p125 = por %p123, %p124
      %p127 = scmp.ne.s32.totalorder %s110, %s126
      %p128 = scmp.eq.s32.totalorder %s36, 0
      %p129 = por %p127, %p128
      %s131 = sadd.s32 %s130, 1
      %p134 = scmp.eq.s32.totalorder %s30, 1
      %p135 = scmp.ne.s32.totalorder %s130, %s132
      %p136 = scmp.eq.s32.totalorder %s30, 0
      %p137 = por %p135, %p136
      %p138 = scmp.ne.s32.totalorder %s130, %s132
      %p139 = scmp.eq.s32.totalorder %s35, 1
      %p140 = por %p138, %p139
      %p141 = scmp.ne.s32.totalorder %s132, %s133
      %p142 = scmp.eq.s32.totalorder %s35, 0
      %p143 = por %p141, %p142
      %p144 = scmp.ne.s32.totalorder %s132, %s133
      %p145 = scmp.eq.s32.totalorder %s36, 1
      %p146 = por %p144, %p145
      %p148 = scmp.ne.s32.totalorder %s133, %s147
      %p149 = scmp.eq.s32.totalorder %s36, 0
      %p150 = por %p148, %p149
      %s152 = sadd.s32 %s151, 1
      %p155 = scmp.eq.s32.totalorder %s30, 1
      %p156 = scmp.ne.s32.totalorder %s151, %s153
      %p157 = scmp.eq.s32.totalorder %s30, 0
      %p158 = por %p156, %p157
      %p159 = scmp.ne.s32.totalorder %s151, %s153
      %p160 = scmp.eq.s32.totalorder %s35, 1
      %p161 = por %p159, %p160
      %p162 = scmp.ne.s32.totalorder %s153, %s154
      %p163 = scmp.eq.s32.totalorder %s35, 0
      %p164 = por %p162, %p163
      %p165 = scmp.ne.s32.totalorder %s153, %s154
      %p166 = scmp.eq.s32.totalorder %s36, 1
      %p167 = por %p165, %p166
      %p169 = scmp.ne.s32.totalorder %s154, %s168
      %p170 = scmp.eq.s32.totalorder %s36, 0
      %p171 = por %p169, %p170
      %s173 = sadd.s32 %s172, 1
      %p176 = scmp.eq.s32.totalorder %s30, 1
      %p177 = scmp.ne.s32.totalorder %s172, %s174
      %p178 = scmp.eq.s32.totalorder %s30, 0
      %p179 = por %p177, %p178
      %p180 = scmp.ne.s32.totalorder %s172, %s174
      %p181 = scmp.eq.s32.totalorder %s35, 1
      %p182 = por %p180, %p181
      %p183 = scmp.ne.s32.totalorder %s174, %s175
      %p184 = scmp.eq.s32.totalorder %s35, 0
      %p185 = por %p183, %p184
      %p186 = scmp.ne.s32.totalorder %s174, %s175
      %p187 = scmp.eq.s32.totalorder %s36, 1
      %p188 = por %p186, %p187
      %p190 = scmp.ne.s32.totalorder %s175, %s189
      %p191 = scmp.eq.s32.totalorder %s36, 0
      %p192 = por %p190, %p191
      %s194 = sadd.s32 %s193, 1
      %p197 = scmp.eq.s32.totalorder %s30, 1
      %p198 = scmp.ne.s32.totalorder %s193, %s195
      %p199 = scmp.eq.s32.totalorder %s30, 0
      %p200 = por %p198, %p199
      %p201 = scmp.ne.s32.totalorder %s193, %s195
      %p202 = scmp.eq.s32.totalorder %s35, 1
      %p203 = por %p201, %p202
      %p204 = scmp.ne.s32.totalorder %s195, %s196
      %p205 = scmp.eq.s32.totalorder %s35, 0
      %p206 = por %p204, %p205
      %p207 = scmp.ne.s32.totalorder %s195, %s196
      %p208 = scmp.eq.s32.totalorder %s36, 1
      %p209 = por %p207, %p208
      %p211 = scmp.ne.s32.totalorder %s196, %s210
      %p212 = scmp.eq.s32.totalorder %s36, 0
      %p213 = por %p211, %p212
      %s215 = sadd.s32 %s214, 1
      %p218 = scmp.eq.s32.totalorder %s30, 1
      %p219 = scmp.ne.s32.totalorder %s214, %s216
      %p220 = scmp.eq.s32.totalorder %s30, 0
      %p221 = por %p219, %p220
      %p222 = scmp.ne.s32.totalorder %s214, %s216
      %p223 = scmp.eq.s32.totalorder %s35, 1
      %p224 = por %p222, %p223
      %p225 = scmp.ne.s32.totalorder %s216, %s217
      %p226 = scmp.eq.s32.totalorder %s35, 0
      %p227 = por %p225, %p226
      %p228 = scmp.ne.s32.totalorder %s216, %s217
      %p229 = scmp.eq.s32.totalorder %s36, 1
      %p230 = por %p228, %p229
      %p232 = scmp.ne.s32.totalorder %s217, %s231
      %p233 = scmp.eq.s32.totalorder %s36, 0
      %p234 = por %p232, %p233
      %s236 = sadd.s32 %s235, 1
      %p239 = scmp.eq.s32.totalorder %s30, 1
      %p240 = scmp.ne.s32.totalorder %s235, %s237
      %p241 = scmp.eq.s32.totalorder %s30, 0
      %p242 = por %p240, %p241
      %p243 = scmp.ne.s32.totalorder %s235, %s237
      %p244 = scmp.eq.s32.totalorder %s35, 1
      %p245 = por %p243, %p244
      %p246 = scmp.ne.s32.totalorder %s237, %s238
      %p247 = scmp.eq.s32.totalorder %s35, 0
      %p248 = por %p246, %p247
      %p249 = scmp.ne.s32.totalorder %s237, %s238
      %p250 = scmp.eq.s32.totalorder %s36, 1
      %p251 = por %p249, %p250
      %p253 = scmp.ne.s32.totalorder %s238, %s252
      %p254 = scmp.eq.s32.totalorder %s36, 0
      %p255 = por %p253, %p254
      %s257 = sadd.s32 %s256, 1
      %p260 = scmp.eq.s32.totalorder %s30, 1
      %p261 = scmp.ne.s32.totalorder %s256, %s258
      %p262 = scmp.eq.s32.totalorder %s30, 0
      %p263 = por %p261, %p262
      %p264 = scmp.ne.s32.totalorder %s256, %s258
      %p265 = scmp.eq.s32.totalorder %s35, 1
      %p266 = por %p264, %p265
      %p267 = scmp.ne.s32.totalorder %s258, %s259
      %p268 = scmp.eq.s32.totalorder %s35, 0
      %p269 = por %p267, %p268
      %p270 = scmp.ne.s32.totalorder %s258, %s259
      %p271 = scmp.eq.s32.totalorder %s36, 1
      %p272 = por %p270, %p271
      %p274 = scmp.ne.s32.totalorder %s259, %s273
      %p275 = scmp.eq.s32.totalorder %s36, 0
      %p276 = por %p274, %p275
      %s278 = sadd.s32 %s277, 1
      %p281 = scmp.eq.s32.totalorder %s30, 1
      %p282 = scmp.ne.s32.totalorder %s277, %s279
      %p283 = scmp.eq.s32.totalorder %s30, 0
      %p284 = por %p282, %p283
      %p285 = scmp.ne.s32.totalorder %s277, %s279
      %p286 = scmp.eq.s32.totalorder %s35, 1
      %p287 = por %p285, %p286
      %p288 = scmp.ne.s32.totalorder %s279, %s280
      %p289 = scmp.eq.s32.totalorder %s35, 0
      %p290 = por %p288, %p289
      %p291 = scmp.ne.s32.totalorder %s279, %s280
      %p292 = scmp.eq.s32.totalorder %s36, 1
      %p293 = por %p291, %p292
      %p295 = scmp.ne.s32.totalorder %s280, %s294
      %p296 = scmp.eq.s32.totalorder %s36, 0
      %p297 = por %p295, %p296
      %s298 = ssub.s32 %s37, %s49
      %s299 = ssub.s32 %s38, %s45
      %s300 = sor.u32 %s298, %s299
      %p301 = scmp.eq.s32.totalorder %s300, 0
      %s303 = sadd.s32 %s302, 1
      %s304 = scalar_select %p301, %s302, %s303
      %p307 = pneg %p301
      %p308 = scmp.eq.s32.totalorder %s30, 1
      %p309 = por %p307, %p308
      %p310 = scmp.ne.s32.totalorder %s302, %s305
      %p311 = scmp.eq.s32.totalorder %s30, 0
      %p312 = por %p310, %p311
      %p313 = scmp.ne.s32.totalorder %s302, %s305
      %p314 = scmp.eq.s32.totalorder %s35, 1
      %p315 = por %p313, %p314
      %p316 = scmp.ne.s32.totalorder %s305, %s306
      %p317 = scmp.eq.s32.totalorder %s35, 0
      %p318 = por %p316, %p317
      %p319 = scmp.ne.s32.totalorder %s305, %s306
      %p320 = scmp.eq.s32.totalorder %s36, 1
      %p321 = por %p319, %p320
      %p323 = scmp.ne.s32.totalorder %s306, %s322
      %p324 = scmp.eq.s32.totalorder %s36, 0
      %p325 = por %p323, %p324
      %p326 = scmp.le.s32.totalorder 1, %s30
      %p327 = scmp.lt.s32.totalorder %s30, 3
      %p328 = pnand %p326, %p327
      %p329 = pneg %p328
      // Predicated region
      $region9: #{decoder_layer_c_forward.5} parent=5 // pred_check
        _
      $region10: #{decoder_layer_c_forward.5} parent=5 // pred_check_branch
        %331 = sbr.rel (%p328) target = $region12
      $region11: #{decoder_layer_c_forward.5} parent=5 // pred_region
        %s332 = ssub.s32 %s30, 1
        // Predicated region
        $region13: #{decoder_layer_c_forward.5} parent=11 // pred_check
          %p333 = pneg %p122
        $region14: #{decoder_layer_c_forward.5} parent=11 // pred_check_branch
          %335 = sbr.rel (%p333) target = $region16
        $region15: #{decoder_layer_c_forward.5} parent=11 // pred_region
          %s336 = smul.u32 2, %s40
          %s338 = ssub.s32 128, 128
          %339 = vsyncadd [#allocation7], %s338
          %s340 = smul.addr %s336, 64
          %s341 = scalar_lea.hbm %s2, %s340
          %s342 = sshll.u32 [#allocation8], 4
          %s343 = int_to_ptr.vmem [resolvable:$true] %s342
          %348 = dma.hbm_to_vmem [thread:$0]  %s341, 128, %s343, [#allocation7], 64, 64, 4
        $region16: #{decoder_layer_c_forward.5} parent=11 // pred_fallthru
          _
        // Predicated region
        $region17: #{decoder_layer_c_forward.5} parent=11 // pred_check
          %p349 = pneg %p143
        $region18: #{decoder_layer_c_forward.5} parent=11 // pred_check_branch
          %351 = sbr.rel (%p349) target = $region20
        $region19: #{decoder_layer_c_forward.5} parent=11 // pred_region
          %s353 = ssub.s32 4096, 4096
          %354 = vsyncadd [#allocation10], %s353
          %s355 = sshll.u32 [#allocation9], 4
          %s356 = int_to_ptr.vmem [resolvable:$true] %s355
          %361 = dma.hbm_to_vmem [thread:$0]  %s3, 4096, %s356, [#allocation10], 128, 128, 8
        $region20: #{decoder_layer_c_forward.5} parent=11 // pred_fallthru
          _
        // Predicated region
        $region21: #{decoder_layer_c_forward.5} parent=11 // pred_check
          %p362 = pneg %p164
        $region22: #{decoder_layer_c_forward.5} parent=11 // pred_check_branch
          %364 = sbr.rel (%p362) target = $region24
        $region23: #{decoder_layer_c_forward.5} parent=11 // pred_region
          %s366 = ssub.s32 32, 32
          %367 = vsyncadd [#allocation10], %s366
          %s369 = sshll.u32 [#allocation11], 4
          %s370 = int_to_ptr.vmem [resolvable:$true] %s369
          %372 = dma.hbm_to_vmem [thread:$0]  %s4, 32, %s370, [#allocation10]
        $region24: #{decoder_layer_c_forward.5} parent=11 // pred_fallthru
          _
        // Predicated region
        $region25: #{decoder_layer_c_forward.5} parent=11 // pred_check
          %p373 = pneg %p185
        $region26: #{decoder_layer_c_forward.5} parent=11 // pred_check_branch
          %375 = sbr.rel (%p373) target = $region28
        $region27: #{decoder_layer_c_forward.5} parent=11 // pred_region
          %s377 = ssub.s32 8192, 8192
          %378 = vsyncadd [#allocation13], %s377
          %s379 = sshll.u32 [#allocation12], 4
          %s380 = int_to_ptr.vmem [resolvable:$true] %s379
          %385 = dma.hbm_to_vmem [thread:$0]  %s5, 8192, %s380, [#allocation13], 256, 256, 16
        $region28: #{decoder_layer_c_forward.5} parent=11 // pred_fallthru
          _
        // Predicated region
        $region29: #{decoder_layer_c_forward.5} parent=11 // pred_check
          %p386 = pneg %p206
        $region30: #{decoder_layer_c_forward.5} parent=11 // pred_check_branch
          %388 = sbr.rel (%p386) target = $region32
        $region31: #{decoder_layer_c_forward.5} parent=11 // pred_region
          %s390 = ssub.s32 64, 64
          %391 = vsyncadd [#allocation13], %s390
          %s393 = sshll.u32 [#allocation14], 4
          %s394 = int_to_ptr.vmem [resolvable:$true] %s393
          %396 = dma.hbm_to_vmem [thread:$0]  %s6, 64, %s394, [#allocation13]
        $region32: #{decoder_layer_c_forward.5} parent=11 // pred_fallthru
          _
        // Predicated region
        $region33: #{decoder_layer_c_forward.5} parent=11 // pred_check
          %p397 = pneg %p227
        $region34: #{decoder_layer_c_forward.5} parent=11 // pred_check_branch
          %399 = sbr.rel (%p397) target = $region36
        $region35: #{decoder_layer_c_forward.5} parent=11 // pred_region
          %s401 = ssub.s32 4096, 4096
          %402 = vsyncadd [#allocation16], %s401
          %s403 = sshll.u32 [#allocation15], 4
          %s404 = int_to_ptr.vmem [resolvable:$true] %s403
          %409 = dma.hbm_to_vmem [thread:$0]  %s7, 4096, %s404, [#allocation16], 128, 128, 8
        $region36: #{decoder_layer_c_forward.5} parent=11 // pred_fallthru
          _
        // Predicated region
        $region37: #{decoder_layer_c_forward.5} parent=11 // pred_check
          %p410 = pneg %p248
        $region38: #{decoder_layer_c_forward.5} parent=11 // pred_check_branch
          %412 = sbr.rel (%p410) target = $region40
        $region39: #{decoder_layer_c_forward.5} parent=11 // pred_region
          %s414 = ssub.s32 32, 32
          %415 = vsyncadd [#allocation16], %s414
          %s417 = sshll.u32 [#allocation17], 4
          %s418 = int_to_ptr.vmem [resolvable:$true] %s417
          %420 = dma.hbm_to_vmem [thread:$0]  %s8, 32, %s418, [#allocation16]
        $region40: #{decoder_layer_c_forward.5} parent=11 // pred_fallthru
          _
        // Predicated region
        $region41: #{decoder_layer_c_forward.5} parent=11 // pred_check
          %p421 = pneg %p269
        $region42: #{decoder_layer_c_forward.5} parent=11 // pred_check_branch
          %423 = sbr.rel (%p421) target = $region44
        $region43: #{decoder_layer_c_forward.5} parent=11 // pred_region
          %s425 = ssub.s32 32, 32
          %426 = vsyncadd [#allocation19], %s425
          %s428 = sshll.u32 [#allocation18], 4
          %s429 = int_to_ptr.vmem [resolvable:$true] %s428
          %431 = dma.hbm_to_vmem [thread:$0]  %s9, 32, %s429, [#allocation19]
        $region44: #{decoder_layer_c_forward.5} parent=11 // pred_fallthru
          _
        // Predicated region
        $region45: #{decoder_layer_c_forward.5} parent=11 // pred_check
          %p432 = pneg %p290
        $region46: #{decoder_layer_c_forward.5} parent=11 // pred_check_branch
          %434 = sbr.rel (%p432) target = $region48
        $region47: #{decoder_layer_c_forward.5} parent=11 // pred_region
          %s436 = ssub.s32 32, 32
          %437 = vsyncadd [#allocation19], %s436
          %s439 = sshll.u32 [#allocation20], 4
          %s440 = int_to_ptr.vmem [resolvable:$true] %s439
          %442 = dma.hbm_to_vmem [thread:$0]  %s10, 32, %s440, [#allocation19]
        $region48: #{decoder_layer_c_forward.5} parent=11 // pred_fallthru
          _
      $region12: #{decoder_layer_c_forward.5} parent=5 // pred_fallthru
        _
      %p443 = scmp.lt.s32.totalorder %s30, 2
      // Predicated region
      $region49: #{decoder_layer_c_forward.5} parent=5 // pred_check
        %p444 = pneg %p443
      $region50: #{decoder_layer_c_forward.5} parent=5 // pred_check_branch
        %446 = sbr.rel (%p444) target = $region52
      $region51: #{decoder_layer_c_forward.5} parent=5 // pred_region
        // Predicated region
        $region53: #{decoder_layer_c_forward.5} parent=51 // pred_check
          %p447 = pneg %p64
        $region54: #{decoder_layer_c_forward.5} parent=51 // pred_check_branch
          %449 = sbr.rel (%p447) target = $region56
        $region55: #{decoder_layer_c_forward.5} parent=51 // pred_region
          %s450 = sand.u32 %s54, 1
          %s451 = scalar_lea.sflag [#allocation4], %s450
          %s452 = sand.u32 %s54, 1
          %s453 = smul.addr %s452, 16
          %s454 = scalar_lea.vmem [#allocation3], %s453
          %s455 = smul.u32 2, %s38
          %s457 = ssub.s32 256, 256
          %458 = vsyncadd %s451, %s457
          %s459 = smul.addr %s455, 2
          %s460 = smul.addr %s37, 4
          %s461 = sadd.s32 %s459, %s460
          %s462 = smul.addr %s461, 64
          %s463 = scalar_lea.hbm %s0, %s462
          %s464 = sshll.u32 %s454, 4
          %s465 = int_to_ptr.vmem [resolvable:$true] %s464
          %470 = dma.hbm_to_vmem [thread:$0]  %s463, 256, %s465, %s451, 128, 128, 8
        $region56: #{decoder_layer_c_forward.5} parent=51 // pred_fallthru
          _
        // Predicated region
        $region57: #{decoder_layer_c_forward.5} parent=51 // pred_check
          %p471 = pneg %p90
        $region58: #{decoder_layer_c_forward.5} parent=51 // pred_check_branch
          %473 = sbr.rel (%p471) target = $region60
        $region59: #{decoder_layer_c_forward.5} parent=51 // pred_region
          %s474 = sand.u32 %s30, 1
          %s475 = scalar_lea.sflag [#allocation7], %s474
          %s476 = sand.u32 %s80, 1
          %s477 = smul.addr %s476, 32
          %s478 = scalar_lea.vmem [#allocation6], %s477
          %s480 = ssub.s32 512, 512
          %481 = vsyncadd %s475, %s480
          %s482 = smul.addr %s37, 4
          %s483 = smul.addr %s482, 128
          %s484 = scalar_lea.hbm %s1, %s483
          %s485 = sshll.u32 %s478, 4
          %s486 = int_to_ptr.vmem [resolvable:$true] %s485
          %491 = dma.hbm_to_vmem [thread:$0]  %s484, 512, %s486, %s475, 256, 256, 16
        $region60: #{decoder_layer_c_forward.5} parent=51 // pred_fallthru
          _
      $region52: #{decoder_layer_c_forward.5} parent=5 // pred_fallthru
        _
      %p492 = scmp.le.s32.totalorder 1, %s30
      %p493 = scmp.lt.s32.totalorder %s30, 3
      %p494 = pnand %p492, %p493
      %p495 = pneg %p494
      // Predicated region
      $region61: #{decoder_layer_c_forward.5} parent=5 // pred_check
        _
      $region62: #{decoder_layer_c_forward.5} parent=5 // pred_check_branch
        %497 = sbr.rel (%p494) target = $region64
      $region63: #{decoder_layer_c_forward.5} parent=5 // pred_region
        %s498 = ssub.s32 %s30, 1
        %s499 = sand.u32 %s57, 1
        %s500 = scalar_lea.sflag [#allocation4], %s499
        %s501 = sand.u32 %s57, 1
        %s502 = smul.addr %s501, 16
        %s503 = scalar_lea.vmem [#allocation3], %s502
        // Predicated region
        $region65: #{decoder_layer_c_forward.5} parent=63 // pred_check
          %p504 = pneg %p70
        $region66: #{decoder_layer_c_forward.5} parent=63 // pred_check_branch
          %506 = sbr.rel (%p504) target = $region68
        $region67: #{decoder_layer_c_forward.5} parent=63 // pred_region
          %507 = dma.done %s500, 256
        $region68: #{decoder_layer_c_forward.5} parent=63 // pred_fallthru
          _
        %s508 = sand.u32 %s35, 1
        %s509 = scalar_lea.sflag [#allocation7], %s508
        %s510 = sand.u32 %s83, 1
        %s511 = smul.addr %s510, 32
        %s512 = scalar_lea.vmem [#allocation6], %s511
        // Predicated region
        $region69: #{decoder_layer_c_forward.5} parent=63 // pred_check
          %p513 = pneg %p96
        $region70: #{decoder_layer_c_forward.5} parent=63 // pred_check_branch
          %515 = sbr.rel (%p513) target = $region72
        $region71: #{decoder_layer_c_forward.5} parent=63 // pred_region
          %516 = dma.done %s509, 512
        $region72: #{decoder_layer_c_forward.5} parent=63 // pred_fallthru
          _
        // Predicated region
        $region73: #{decoder_layer_c_forward.5} parent=63 // pred_check
          %p517 = pneg %p122
        $region74: #{decoder_layer_c_forward.5} parent=63 // pred_check_branch
          %519 = sbr.rel (%p517) target = $region76
        $region75: #{decoder_layer_c_forward.5} parent=63 // pred_region
          %520 = dma.done [#allocation7], 128
        $region76: #{decoder_layer_c_forward.5} parent=63 // pred_fallthru
          _
        // Predicated region
        $region77: #{decoder_layer_c_forward.5} parent=63 // pred_check
          %p521 = pneg %p143
        $region78: #{decoder_layer_c_forward.5} parent=63 // pred_check_branch
          %523 = sbr.rel (%p521) target = $region80
        $region79: #{decoder_layer_c_forward.5} parent=63 // pred_region
          %524 = dma.done [#allocation10], 4096
        $region80: #{decoder_layer_c_forward.5} parent=63 // pred_fallthru
          _
        // Predicated region
        $region81: #{decoder_layer_c_forward.5} parent=63 // pred_check
          %p525 = pneg %p164
        $region82: #{decoder_layer_c_forward.5} parent=63 // pred_check_branch
          %527 = sbr.rel (%p525) target = $region84
        $region83: #{decoder_layer_c_forward.5} parent=63 // pred_region
          %528 = dma.done [#allocation10], 32
        $region84: #{decoder_layer_c_forward.5} parent=63 // pred_fallthru
          _
        // Predicated region
        $region85: #{decoder_layer_c_forward.5} parent=63 // pred_check
          %p529 = pneg %p185
        $region86: #{decoder_layer_c_forward.5} parent=63 // pred_check_branch
          %531 = sbr.rel (%p529) target = $region88
        $region87: #{decoder_layer_c_forward.5} parent=63 // pred_region
          %532 = dma.done [#allocation13], 8192
        $region88: #{decoder_layer_c_forward.5} parent=63 // pred_fallthru
          _
        // Predicated region
        $region89: #{decoder_layer_c_forward.5} parent=63 // pred_check
          %p533 = pneg %p206
        $region90: #{decoder_layer_c_forward.5} parent=63 // pred_check_branch
          %535 = sbr.rel (%p533) target = $region92
        $region91: #{decoder_layer_c_forward.5} parent=63 // pred_region
          %536 = dma.done [#allocation13], 64
        $region92: #{decoder_layer_c_forward.5} parent=63 // pred_fallthru
          _
        // Predicated region
        $region93: #{decoder_layer_c_forward.5} parent=63 // pred_check
          %p537 = pneg %p227
        $region94: #{decoder_layer_c_forward.5} parent=63 // pred_check_branch
          %539 = sbr.rel (%p537) target = $region96
        $region95: #{decoder_layer_c_forward.5} parent=63 // pred_region
          %540 = dma.done [#allocation16], 4096
        $region96: #{decoder_layer_c_forward.5} parent=63 // pred_fallthru
          _
        // Predicated region
        $region97: #{decoder_layer_c_forward.5} parent=63 // pred_check
          %p541 = pneg %p248
        $region98: #{decoder_layer_c_forward.5} parent=63 // pred_check_branch
          %543 = sbr.rel (%p541) target = $region100
        $region99: #{decoder_layer_c_forward.5} parent=63 // pred_region
          %544 = dma.done [#allocation16], 32
        $region100: #{decoder_layer_c_forward.5} parent=63 // pred_fallthru
          _
        // Predicated region
        $region101: #{decoder_layer_c_forward.5} parent=63 // pred_check
          %p545 = pneg %p269
        $region102: #{decoder_layer_c_forward.5} parent=63 // pred_check_branch
          %547 = sbr.rel (%p545) target = $region104
        $region103: #{decoder_layer_c_forward.5} parent=63 // pred_region
          %548 = dma.done [#allocation19], 32
        $region104: #{decoder_layer_c_forward.5} parent=63 // pred_fallthru
          _
        // Predicated region
        $region105: #{decoder_layer_c_forward.5} parent=63 // pred_check
          %p549 = pneg %p290
        $region106: #{decoder_layer_c_forward.5} parent=63 // pred_check_branch
          %551 = sbr.rel (%p549) target = $region108
        $region107: #{decoder_layer_c_forward.5} parent=63 // pred_region
          %552 = dma.done [#allocation19], 32
        $region108: #{decoder_layer_c_forward.5} parent=63 // pred_fallthru
          _
        %s553 = sand.u32 %s57, 1
        %s554 = scalar_lea.sflag [#allocation4], %s553
        %s555 = sand.u32 %s57, 1
        %s556 = smul.addr %s555, 16
        %s557 = scalar_lea.vmem [#allocation3], %s556
        %p558 = pneg %p70
        %p559 = pneg %p67
        %s560 = sand.u32 %s35, 1
        %s561 = scalar_lea.sflag [#allocation7], %s560
        %s562 = sand.u32 %s83, 1
        %s563 = smul.addr %s562, 32
        %s564 = scalar_lea.vmem [#allocation6], %s563
        %p565 = pneg %p96
        %p566 = pneg %p93
        %p567 = pneg %p122
        %p568 = pneg %p119
        %p569 = pneg %p143
        %p570 = pneg %p140
        %p571 = pneg %p164
        %p572 = pneg %p161
        %p573 = pneg %p185
        %p574 = pneg %p182
        %p575 = pneg %p206
        %p576 = pneg %p203
        %p577 = pneg %p227
        %p578 = pneg %p224
        %p579 = pneg %p248
        %p580 = pneg %p245
        %p581 = pneg %p269
        %p582 = pneg %p266
        %p583 = pneg %p290
        %p584 = pneg %p287
        %p585 = pneg %p318
        %p586 = pneg %p315
        %s587 = sand.u32 %s305, 1
        %s588 = scalar_lea.sflag [#allocation5], %s587
        %s589 = sand.u32 %s305, 1
        %s590 = smul.addr %s589, 16
        %s591 = scalar_lea.vmem [#allocation21], %s590
        %s592 = smul.u32 2, %s40
        %s593 = smul.u32 2, %s40
        %s594 = smul.u32 2, %s40
        %p596 = scmp.eq.s32.totalorder %s40, 0
        // Predicated region
        $region109: #{decoder_layer_c_forward.5} parent=63 // pred_check
          %p597 = pneg %p596
        $region110: #{decoder_layer_c_forward.5} parent=63 // pred_check_branch
          %599 = sbr.rel (%p597) target = $region112
        $region111: #{decoder_layer_c_forward.5} parent=63 // pred_region
          %v600 = vld [vmem:[%s512] sm:$0xff]
          %v601 = vld [vmem:[%s512 + $0x8] sm:$0xff]
          %v602 = vld [vmem:[%s512 + $0x10] sm:$0xff]
          %v603 = vld [vmem:[%s512 + $0x18] sm:$0xff]
          %v604 = vpack.c.bf16 %v602, %v600
          %v605 = vpack.c.bf16 %v603, %v601
          %v606 = vld [vmem:[#allocation12] sm:$0xff]
          %v607 = vld [vmem:[#allocation12 + $0x8] sm:$0xff]
          %v608 = vld [vmem:[#allocation12 + $0x10] sm:$0xff]
          %v609 = vld [vmem:[#allocation12 + $0x18] sm:$0xff]
          %v610 = vld [vmem:[#allocation12 + $0x20] sm:$0xff]
          %v611 = vld [vmem:[#allocation12 + $0x28] sm:$0xff]
          %v612 = vld [vmem:[#allocation12 + $0x30] sm:$0xff]
          %v613 = vld [vmem:[#allocation12 + $0x38] sm:$0xff]
          %v614 = vld [vmem:[#allocation12 + $0x40] sm:$0xff]
          %v615 = vld [vmem:[#allocation12 + $0x48] sm:$0xff]
          %v616 = vld [vmem:[#allocation12 + $0x50] sm:$0xff]
          %v617 = vld [vmem:[#allocation12 + $0x58] sm:$0xff]
          %v618 = vld [vmem:[#allocation12 + $0x60] sm:$0xff]
          %v619 = vld [vmem:[#allocation12 + $0x68] sm:$0xff]
          %v620 = vld [vmem:[#allocation12 + $0x70] sm:$0xff]
          %v621 = vld [vmem:[#allocation12 + $0x78] sm:$0xff]
          %v622 = vld [vmem:[#allocation12 + $0x80] sm:$0xff]
          %v623 = vld [vmem:[#allocation12 + $0x88] sm:$0xff]
          %v624 = vld [vmem:[#allocation12 + $0x90] sm:$0xff]
          %v625 = vld [vmem:[#allocation12 + $0x98] sm:$0xff]
          %v626 = vld [vmem:[#allocation12 + $0xa0] sm:$0xff]
          %v627 = vld [vmem:[#allocation12 + $0xa8] sm:$0xff]
          %v628 = vld [vmem:[#allocation12 + $0xb0] sm:$0xff]
          %v629 = vld [vmem:[#allocation12 + $0xb8] sm:$0xff]
          %v630 = vld [vmem:[#allocation12 + $0xc0] sm:$0xff]
          %v631 = vld [vmem:[#allocation12 + $0xc8] sm:$0xff]
          %v632 = vld [vmem:[#allocation12 + $0xd0] sm:$0xff]
          %v633 = vld [vmem:[#allocation12 + $0xd8] sm:$0xff]
          %v634 = vld [vmem:[#allocation12 + $0xe0] sm:$0xff]
          %v635 = vld [vmem:[#allocation12 + $0xe8] sm:$0xff]
          %v636 = vld [vmem:[#allocation12 + $0xf0] sm:$0xff]
          %v637 = vld [vmem:[#allocation12 + $0xf8] sm:$0xff]
          %v638 = vld [vmem:[#allocation12 + $0x100] sm:$0xff]
          %v639 = vld [vmem:[#allocation12 + $0x108] sm:$0xff]
          %v640 = vld [vmem:[#allocation12 + $0x110] sm:$0xff]
          %v641 = vld [vmem:[#allocation12 + $0x118] sm:$0xff]
          %v642 = vld [vmem:[#allocation12 + $0x120] sm:$0xff]
          %v643 = vld [vmem:[#allocation12 + $0x128] sm:$0xff]
          %v644 = vld [vmem:[#allocation12 + $0x130] sm:$0xff]
          %v645 = vld [vmem:[#allocation12 + $0x138] sm:$0xff]
          %v646 = vld [vmem:[#allocation12 + $0x140] sm:$0xff]
          %v647 = vld [vmem:[#allocation12 + $0x148] sm:$0xff]
          %v648 = vld [vmem:[#allocation12 + $0x150] sm:$0xff]
          %v649 = vld [vmem:[#allocation12 + $0x158] sm:$0xff]
          %v650 = vld [vmem:[#allocation12 + $0x160] sm:$0xff]
          %v651 = vld [vmem:[#allocation12 + $0x168] sm:$0xff]
          %v652 = vld [vmem:[#allocation12 + $0x170] sm:$0xff]
          %v653 = vld [vmem:[#allocation12 + $0x178] sm:$0xff]
          %v654 = vld [vmem:[#allocation12 + $0x180] sm:$0xff]
          %v655 = vld [vmem:[#allocation12 + $0x188] sm:$0xff]
          %v656 = vld [vmem:[#allocation12 + $0x190] sm:$0xff]
          %v657 = vld [vmem:[#allocation12 + $0x198] sm:$0xff]
          %v658 = vld [vmem:[#allocation12 + $0x1a0] sm:$0xff]
          %v659 = vld [vmem:[#allocation12 + $0x1a8] sm:$0xff]
          %v660 = vld [vmem:[#allocation12 + $0x1b0] sm:$0xff]
          %v661 = vld [vmem:[#allocation12 + $0x1b8] sm:$0xff]
          %v662 = vld [vmem:[#allocation12 + $0x1c0] sm:$0xff]
          %v663 = vld [vmem:[#allocation12 + $0x1c8] sm:$0xff]
          %v664 = vld [vmem:[#allocation12 + $0x1d0] sm:$0xff]
          %v665 = vld [vmem:[#allocation12 + $0x1d8] sm:$0xff]
          %v666 = vld [vmem:[#allocation12 + $0x1e0] sm:$0xff]
          %v667 = vld [vmem:[#allocation12 + $0x1e8] sm:$0xff]
          %v668 = vld [vmem:[#allocation12 + $0x1f0] sm:$0xff]
          %v669 = vld [vmem:[#allocation12 + $0x1f8] sm:$0xff]
          %v670 = vld [vmem:[#allocation14] sm:$0xf]
          %v672 = vlaneseq
          %v673 = vshrl.u32 %v672, 7
          %v674 = vsub.s32 0, %v673
          %v675 = vrot.slane %v670, %v674
          %v676 = vlaneseq
          %v677 = vshrl.u32 %v676, 7
          %v678 = vsub.s32 1, %v677
          %v679 = vrot.slane %v670, %v678
          %v680 = vlaneseq
          %v681 = vshrl.u32 %v680, 7
          %v682 = vsub.s32 2, %v681
          %v683 = vrot.slane %v670, %v682
          %v684 = vlaneseq
          %v685 = vshrl.u32 %v684, 7
          %v686 = vsub.s32 3, %v685
          %v687 = vrot.slane %v670, %v686
          %v756 = vunpack.c.l.b16 %v606
          %v757 = vunpack.c.h.b16 %v606
          %v758 = vunpack.c.l.b16 %v607
          %v759 = vunpack.c.h.b16 %v607
          %v760 = vunpack.c.l.b16 %v608
          %v761 = vunpack.c.h.b16 %v608
          %v762 = vunpack.c.l.b16 %v609
          %v763 = vunpack.c.h.b16 %v609
          %v764 = vunpack.c.l.b16 %v610
          %v765 = vunpack.c.h.b16 %v610
          %v766 = vunpack.c.l.b16 %v611
          %v767 = vunpack.c.h.b16 %v611
          %v768 = vunpack.c.l.b16 %v612
          %v769 = vunpack.c.h.b16 %v612
          %v770 = vunpack.c.l.b16 %v613
          %v771 = vunpack.c.h.b16 %v613
          %v772 = vunpack.c.l.b16 %v614
          %v773 = vunpack.c.h.b16 %v614
          %v774 = vunpack.c.l.b16 %v615
          %v775 = vunpack.c.h.b16 %v615
          %v776 = vunpack.c.l.b16 %v616
          %v777 = vunpack.c.h.b16 %v616
          %v778 = vunpack.c.l.b16 %v617
          %v779 = vunpack.c.h.b16 %v617
          %v780 = vunpack.c.l.b16 %v618
          %v781 = vunpack.c.h.b16 %v618
          %v782 = vunpack.c.l.b16 %v619
          %v783 = vunpack.c.h.b16 %v619
          %v784 = vunpack.c.l.b16 %v620
          %v785 = vunpack.c.h.b16 %v620
          %v786 = vunpack.c.l.b16 %v621
          %v787 = vunpack.c.h.b16 %v621
          %v788 = vunpack.c.l.b16 %v622
          %v789 = vunpack.c.h.b16 %v622
          %v790 = vunpack.c.l.b16 %v623
          %v791 = vunpack.c.h.b16 %v623
          %v792 = vunpack.c.l.b16 %v624
          %v793 = vunpack.c.h.b16 %v624
          %v794 = vunpack.c.l.b16 %v625
          %v795 = vunpack.c.h.b16 %v625
          %v796 = vunpack.c.l.b16 %v626
          %v797 = vunpack.c.h.b16 %v626
          %v798 = vunpack.c.l.b16 %v627
          %v799 = vunpack.c.h.b16 %v627
          %v800 = vunpack.c.l.b16 %v628
          %v801 = vunpack.c.h.b16 %v628
          %v802 = vunpack.c.l.b16 %v629
          %v803 = vunpack.c.h.b16 %v629
          %v804 = vunpack.c.l.b16 %v630
          %v805 = vunpack.c.h.b16 %v630
          %v806 = vunpack.c.l.b16 %v631
          %v807 = vunpack.c.h.b16 %v631
          %v808 = vunpack.c.l.b16 %v632
          %v809 = vunpack.c.h.b16 %v632
          %v810 = vunpack.c.l.b16 %v633
          %v811 = vunpack.c.h.b16 %v633
          %v812 = vunpack.c.l.b16 %v634
          %v813 = vunpack.c.h.b16 %v634
          %v814 = vunpack.c.l.b16 %v635
          %v815 = vunpack.c.h.b16 %v635
          %v816 = vunpack.c.l.b16 %v636
          %v817 = vunpack.c.h.b16 %v636
          %v818 = vunpack.c.l.b16 %v637
          %v819 = vunpack.c.h.b16 %v637
          %v820 = vunpack.c.l.b16 %v638
          %v821 = vunpack.c.h.b16 %v638
          %v822 = vunpack.c.l.b16 %v639
          %v823 = vunpack.c.h.b16 %v639
          %v824 = vunpack.c.l.b16 %v640
          %v825 = vunpack.c.h.b16 %v640
          %v826 = vunpack.c.l.b16 %v641
          %v827 = vunpack.c.h.b16 %v641
          %v828 = vunpack.c.l.b16 %v642
          %v829 = vunpack.c.h.b16 %v642
          %v830 = vunpack.c.l.b16 %v643
          %v831 = vunpack.c.h.b16 %v643
          %v832 = vunpack.c.l.b16 %v644
          %v833 = vunpack.c.h.b16 %v644
          %v834 = vunpack.c.l.b16 %v645
          %v835 = vunpack.c.h.b16 %v645
          %v836 = vunpack.c.l.b16 %v646
          %v837 = vunpack.c.h.b16 %v646
          %v838 = vunpack.c.l.b16 %v647
          %v839 = vunpack.c.h.b16 %v647
          %v840 = vunpack.c.l.b16 %v648
          %v841 = vunpack.c.h.b16 %v648
          %v842 = vunpack.c.l.b16 %v649
          %v843 = vunpack.c.h.b16 %v649
          %v844 = vunpack.c.l.b16 %v650
          %v845 = vunpack.c.h.b16 %v650
          %v846 = vunpack.c.l.b16 %v651
          %v847 = vunpack.c.h.b16 %v651
          %v848 = vunpack.c.l.b16 %v652
          %v849 = vunpack.c.h.b16 %v652
          %v850 = vunpack.c.l.b16 %v653
          %v851 = vunpack.c.h.b16 %v653
          %v852 = vunpack.c.l.b16 %v654
          %v853 = vunpack.c.h.b16 %v654
          %v854 = vunpack.c.l.b16 %v655
          %v855 = vunpack.c.h.b16 %v655
          %v856 = vunpack.c.l.b16 %v656
          %v857 = vunpack.c.h.b16 %v656
          %v858 = vunpack.c.l.b16 %v657
          %v859 = vunpack.c.h.b16 %v657
          %v860 = vunpack.c.l.b16 %v658
          %v861 = vunpack.c.h.b16 %v658
          %v862 = vunpack.c.l.b16 %v659
          %v863 = vunpack.c.h.b16 %v659
          %v864 = vunpack.c.l.b16 %v660
          %v865 = vunpack.c.h.b16 %v660
          %v866 = vunpack.c.l.b16 %v661
          %v867 = vunpack.c.h.b16 %v661
          %v868 = vunpack.c.l.b16 %v662
          %v869 = vunpack.c.h.b16 %v662
          %v870 = vunpack.c.l.b16 %v663
          %v871 = vunpack.c.h.b16 %v663
          %v872 = vunpack.c.l.b16 %v664
          %v873 = vunpack.c.h.b16 %v664
          %v874 = vunpack.c.l.b16 %v665
          %v875 = vunpack.c.h.b16 %v665
          %v876 = vunpack.c.l.b16 %v666
          %v877 = vunpack.c.h.b16 %v666
          %v878 = vunpack.c.l.b16 %v667
          %v879 = vunpack.c.h.b16 %v667
          %v880 = vunpack.c.l.b16 %v668
          %v881 = vunpack.c.h.b16 %v668
          %v882 = vunpack.c.l.b16 %v669
          %v883 = vunpack.c.h.b16 %v669
          %v884 = vpack.c.b16 %v760, %v756
          %v885 = vpack.c.b16 %v761, %v757
          %v886 = vpack.c.b16 %v762, %v758
          %v887 = vpack.c.b16 %v763, %v759
          %v888 = vpack.c.b16 %v768, %v764
          %v889 = vpack.c.b16 %v769, %v765
          %v890 = vpack.c.b16 %v770, %v766
          %v891 = vpack.c.b16 %v771, %v767
          %v892 = vpack.c.b16 %v776, %v772
          %v893 = vpack.c.b16 %v777, %v773
          %v894 = vpack.c.b16 %v778, %v774
          %v895 = vpack.c.b16 %v779, %v775
          %v896 = vpack.c.b16 %v784, %v780
          %v897 = vpack.c.b16 %v785, %v781
          %v898 = vpack.c.b16 %v786, %v782
          %v899 = vpack.c.b16 %v787, %v783
          %v900 = vpack.c.b16 %v792, %v788
          %v901 = vpack.c.b16 %v793, %v789
          %v902 = vpack.c.b16 %v794, %v790
          %v903 = vpack.c.b16 %v795, %v791
          %v904 = vpack.c.b16 %v800, %v796
          %v905 = vpack.c.b16 %v801, %v797
          %v906 = vpack.c.b16 %v802, %v798
          %v907 = vpack.c.b16 %v803, %v799
          %v908 = vpack.c.b16 %v808, %v804
          %v909 = vpack.c.b16 %v809, %v805
          %v910 = vpack.c.b16 %v810, %v806
          %v911 = vpack.c.b16 %v811, %v807
          %v912 = vpack.c.b16 %v816, %v812
          %v913 = vpack.c.b16 %v817, %v813
          %v914 = vpack.c.b16 %v818, %v814
          %v915 = vpack.c.b16 %v819, %v815
          %v916 = vpack.c.b16 %v824, %v820
          %v917 = vpack.c.b16 %v825, %v821
          %v918 = vpack.c.b16 %v826, %v822
          %v919 = vpack.c.b16 %v827, %v823
          %v920 = vpack.c.b16 %v832, %v828
          %v921 = vpack.c.b16 %v833, %v829
          %v922 = vpack.c.b16 %v834, %v830
          %v923 = vpack.c.b16 %v835, %v831
          %v924 = vpack.c.b16 %v840, %v836
          %v925 = vpack.c.b16 %v841, %v837
          %v926 = vpack.c.b16 %v842, %v838
          %v927 = vpack.c.b16 %v843, %v839
          %v928 = vpack.c.b16 %v848, %v844
          %v929 = vpack.c.b16 %v849, %v845
          %v930 = vpack.c.b16 %v850, %v846
          %v931 = vpack.c.b16 %v851, %v847
          %v932 = vpack.c.b16 %v856, %v852
          %v933 = vpack.c.b16 %v857, %v853
          %v934 = vpack.c.b16 %v858, %v854
          %v935 = vpack.c.b16 %v859, %v855
          %v936 = vpack.c.b16 %v864, %v860
          %v937 = vpack.c.b16 %v865, %v861
          %v938 = vpack.c.b16 %v866, %v862
          %v939 = vpack.c.b16 %v867, %v863
          %v940 = vpack.c.b16 %v872, %v868
          %v941 = vpack.c.b16 %v873, %v869
          %v942 = vpack.c.b16 %v874, %v870
          %v943 = vpack.c.b16 %v875, %v871
          %v944 = vpack.c.b16 %v880, %v876
          %v945 = vpack.c.b16 %v881, %v877
          %v946 = vpack.c.b16 %v882, %v878
          %v947 = vpack.c.b16 %v883, %v879
          %1012 = vmatprep.subr.bf16.mxu0 %v885
          %1013 = vmatpush1.bf16.msra.mxu0 %v884
          %1014 = vmatprep.subr.bf16.mxu0 %v889
          %1015 = vmatpush1.bf16.msra.mxu0 %v888
          %1016 = vmatprep.subr.bf16.mxu0 %v893
          %1017 = vmatpush1.bf16.msra.mxu0 %v892
          %1018 = vmatprep.subr.bf16.mxu0 %v897
          %1019 = vmatpush1.bf16.msra.mxu0 %v896
          %1020 = vmatprep.subr.bf16.mxu0 %v901
          %1021 = vmatpush1.bf16.msra.mxu0 %v900
          %1022 = vmatprep.subr.bf16.mxu0 %v905
          %1023 = vmatpush1.bf16.msra.mxu0 %v904
          %1024 = vmatprep.subr.bf16.mxu0 %v909
          %1025 = vmatpush1.bf16.msra.mxu0 %v908
          %1026 = vmatprep.subr.bf16.mxu0 %v913
          %1027 = vmatpush1.bf16.msra.mxu0 %v912
          %1028 = vmatprep.subr.bf16.mxu0 %v917
          %1029 = vmatpush1.bf16.msra.mxu0 %v916
          %1030 = vmatprep.subr.bf16.mxu0 %v921
          %1031 = vmatpush1.bf16.msra.mxu0 %v920
          %1032 = vmatprep.subr.bf16.mxu0 %v925
          %1033 = vmatpush1.bf16.msra.mxu0 %v924
          %1034 = vmatprep.subr.bf16.mxu0 %v929
          %1035 = vmatpush1.bf16.msra.mxu0 %v928
          %1036 = vmatprep.subr.bf16.mxu0 %v933
          %1037 = vmatpush1.bf16.msra.mxu0 %v932
          %1038 = vmatprep.subr.bf16.mxu0 %v937
          %1039 = vmatpush1.bf16.msra.mxu0 %v936
          %1040 = vmatprep.subr.bf16.mxu0 %v941
          %1041 = vmatpush1.bf16.msra.mxu0 %v940
          %1042 = vmatprep.subr.bf16.mxu0 %v945
          %1043 = vmatpush1.bf16.msra.mxu0 %v944
          %1044 = vmatprep.mubr.bf16.mxu0 %v605
          %1045 = vmatmul.mubr.bf16.gmra.mrb[0].mxu0 %v604
          %v1046 = vpop.f32.mrb[0].mxu0
          %v1047 = vadd.f32 %v675, %v1046
          %v1048 = vpop.f32.mrb[0].mxu0
          %v1049 = vadd.f32 %v679, %v1048
          %v1050 = vpop.f32.mrb[0].mxu0
          %v1051 = vadd.f32 %v675, %v1050
          %v1052 = vpop.f32.mrb[0].mxu0
          %v1053 = vadd.f32 %v679, %v1052
          %1054 = vdwg.mxu0
          %1055 = vmatprep.subr.bf16.mxu0 %v887
          %1056 = vmatpush1.bf16.msra.mxu0 %v886
          %1057 = vmatprep.subr.bf16.mxu0 %v891
          %1058 = vmatpush1.bf16.msra.mxu0 %v890
          %1059 = vmatprep.subr.bf16.mxu0 %v895
          %1060 = vmatpush1.bf16.msra.mxu0 %v894
          %1061 = vmatprep.subr.bf16.mxu0 %v899
          %1062 = vmatpush1.bf16.msra.mxu0 %v898
          %1063 = vmatprep.subr.bf16.mxu0 %v903
          %1064 = vmatpush1.bf16.msra.mxu0 %v902
          %1065 = vmatprep.subr.bf16.mxu0 %v907
          %1066 = vmatpush1.bf16.msra.mxu0 %v906
          %1067 = vmatprep.subr.bf16.mxu0 %v911
          %1068 = vmatpush1.bf16.msra.mxu0 %v910
          %1069 = vmatprep.subr.bf16.mxu0 %v915
          %1070 = vmatpush1.bf16.msra.mxu0 %v914
          %1071 = vmatprep.subr.bf16.mxu0 %v919
          %1072 = vmatpush1.bf16.msra.mxu0 %v918
          %1073 = vmatprep.subr.bf16.mxu0 %v923
          %1074 = vmatpush1.bf16.msra.mxu0 %v922
          %1075 = vmatprep.subr.bf16.mxu0 %v927
          %1076 = vmatpush1.bf16.msra.mxu0 %v926
          %1077 = vmatprep.subr.bf16.mxu0 %v931
          %1078 = vmatpush1.bf16.msra.mxu0 %v930
          %1079 = vmatprep.subr.bf16.mxu0 %v935
          %1080 = vmatpush1.bf16.msra.mxu0 %v934
          %1081 = vmatprep.subr.bf16.mxu0 %v939
          %1082 = vmatpush1.bf16.msra.mxu0 %v938
          %1083 = vmatprep.subr.bf16.mxu0 %v943
          %1084 = vmatpush1.bf16.msra.mxu0 %v942
          %1085 = vmatprep.subr.bf16.mxu0 %v947
          %1086 = vmatpush1.bf16.msra.mxu0 %v946
          %1087 = vmatprep.mubr.bf16.mxu0 %v605
          %1088 = vmatmul.mubr.bf16.gmra.mrb[0].mxu0 %v604
          %v1089 = vpop.f32.mrb[0].mxu0
          %v1090 = vadd.f32 %v683, %v1089
          %v1091 = vpop.f32.mrb[0].mxu0
          %v1092 = vadd.f32 %v687, %v1091
          %v1093 = vpop.f32.mrb[0].mxu0
          %v1094 = vadd.f32 %v683, %v1093
          %v1095 = vpop.f32.mrb[0].mxu0
          %v1096 = vadd.f32 %v687, %v1095
          %1097 = vdwg.mxu0
          %v1098 = vpack.c.bf16 %v1051, %v1047
          %v1099 = vpack.c.bf16 %v1053, %v1049
          %v1100 = vpack.c.bf16 %v1094, %v1090
          %v1101 = vpack.c.bf16 %v1096, %v1092
          %1102 = vst [vmem:[#allocation2] sm:$0xff] %v1098
          %1103 = vst [vmem:[#allocation2 + $0x8] sm:$0xff] %v1099
          %1104 = vst [vmem:[#allocation2 + $0x10] sm:$0xff] %v1100
          %1105 = vst [vmem:[#allocation2 + $0x18] sm:$0xff] %v1101
        $region112: #{decoder_layer_c_forward.5} parent=63 // pred_fallthru
          _
        %v1106 = vld [vmem:[%s503] sm:$0xff]
        %v1107 = vld [vmem:[%s503 + $0x8] sm:$0xff]
        %v1108 = vunpack.c.l.bf16 %v1106
        %v1109 = vunpack.c.h.bf16 %v1106
        %v1110 = vunpack.c.l.bf16 %v1107
        %v1111 = vunpack.c.h.bf16 %v1107
        %v1112 = vld [vmem:[#allocation9] sm:$0xff]
        %v1113 = vld [vmem:[#allocation9 + $0x8] sm:$0xff]
        %v1114 = vld [vmem:[#allocation9 + $0x10] sm:$0xff]
        %v1115 = vld [vmem:[#allocation9 + $0x18] sm:$0xff]
        %v1116 = vld [vmem:[#allocation9 + $0x20] sm:$0xff]
        %v1117 = vld [vmem:[#allocation9 + $0x28] sm:$0xff]
        %v1118 = vld [vmem:[#allocation9 + $0x30] sm:$0xff]
        %v1119 = vld [vmem:[#allocation9 + $0x38] sm:$0xff]
        %v1120 = vld [vmem:[#allocation9 + $0x40] sm:$0xff]
        %v1121 = vld [vmem:[#allocation9 + $0x48] sm:$0xff]
        %v1122 = vld [vmem:[#allocation9 + $0x50] sm:$0xff]
        %v1123 = vld [vmem:[#allocation9 + $0x58] sm:$0xff]
        %v1124 = vld [vmem:[#allocation9 + $0x60] sm:$0xff]
        %v1125 = vld [vmem:[#allocation9 + $0x68] sm:$0xff]
        %v1126 = vld [vmem:[#allocation9 + $0x70] sm:$0xff]
        %v1127 = vld [vmem:[#allocation9 + $0x78] sm:$0xff]
        %v1128 = vld [vmem:[#allocation9 + $0x80] sm:$0xff]
        %v1129 = vld [vmem:[#allocation9 + $0x88] sm:$0xff]
        %v1130 = vld [vmem:[#allocation9 + $0x90] sm:$0xff]
        %v1131 = vld [vmem:[#allocation9 + $0x98] sm:$0xff]
        %v1132 = vld [vmem:[#allocation9 + $0xa0] sm:$0xff]
        %v1133 = vld [vmem:[#allocation9 + $0xa8] sm:$0xff]
        %v1134 = vld [vmem:[#allocation9 + $0xb0] sm:$0xff]
        %v1135 = vld [vmem:[#allocation9 + $0xb8] sm:$0xff]
        %v1136 = vld [vmem:[#allocation9 + $0xc0] sm:$0xff]
        %v1137 = vld [vmem:[#allocation9 + $0xc8] sm:$0xff]
        %v1138 = vld [vmem:[#allocation9 + $0xd0] sm:$0xff]
        %v1139 = vld [vmem:[#allocation9 + $0xd8] sm:$0xff]
        %v1140 = vld [vmem:[#allocation9 + $0xe0] sm:$0xff]
        %v1141 = vld [vmem:[#allocation9 + $0xe8] sm:$0xff]
        %v1142 = vld [vmem:[#allocation9 + $0xf0] sm:$0xff]
        %v1143 = vld [vmem:[#allocation9 + $0xf8] sm:$0xff]
        %v1144 = vld [vmem:[#allocation11] sm:$0x3]
        %v1146 = vlaneseq
        %v1147 = vshrl.u32 %v1146, 7
        %v1148 = vsub.s32 0, %v1147
        %v1149 = vrot.slane %v1144, %v1148
        %v1150 = vlaneseq
        %v1151 = vshrl.u32 %v1150, 7
        %v1152 = vsub.s32 1, %v1151
        %v1153 = vrot.slane %v1144, %v1152
        %v1158 = vunpack.c.l.b16 %v1106
        %v1159 = vunpack.c.h.b16 %v1106
        %v1160 = vunpack.c.l.b16 %v1107
        %v1161 = vunpack.c.h.b16 %v1107
        %v1162 = vpack.c.b16 %v1160, %v1158
        %v1163 = vpack.c.b16 %v1161, %v1159
        %v1198 = vunpack.c.l.b16 %v1112
        %v1199 = vunpack.c.h.b16 %v1112
        %v1200 = vunpack.c.l.b16 %v1113
        %v1201 = vunpack.c.h.b16 %v1113
        %v1202 = vunpack.c.l.b16 %v1114
        %v1203 = vunpack.c.h.b16 %v1114
        %v1204 = vunpack.c.l.b16 %v1115
        %v1205 = vunpack.c.h.b16 %v1115
        %v1206 = vunpack.c.l.b16 %v1116
        %v1207 = vunpack.c.h.b16 %v1116
        %v1208 = vunpack.c.l.b16 %v1117
        %v1209 = vunpack.c.h.b16 %v1117
        %v1210 = vunpack.c.l.b16 %v1118
        %v1211 = vunpack.c.h.b16 %v1118
        %v1212 = vunpack.c.l.b16 %v1119
        %v1213 = vunpack.c.h.b16 %v1119
        %v1214 = vunpack.c.l.b16 %v1120
        %v1215 = vunpack.c.h.b16 %v1120
        %v1216 = vunpack.c.l.b16 %v1121
        %v1217 = vunpack.c.h.b16 %v1121
        %v1218 = vunpack.c.l.b16 %v1122
        %v1219 = vunpack.c.h.b16 %v1122
        %v1220 = vunpack.c.l.b16 %v1123
        %v1221 = vunpack.c.h.b16 %v1123
        %v1222 = vunpack.c.l.b16 %v1124
        %v1223 = vunpack.c.h.b16 %v1124
        %v1224 = vunpack.c.l.b16 %v1125
        %v1225 = vunpack.c.h.b16 %v1125
        %v1226 = vunpack.c.l.b16 %v1126
        %v1227 = vunpack.c.h.b16 %v1126
        %v1228 = vunpack.c.l.b16 %v1127
        %v1229 = vunpack.c.h.b16 %v1127
        %v1230 = vunpack.c.l.b16 %v1128
        %v1231 = vunpack.c.h.b16 %v1128
        %v1232 = vunpack.c.l.b16 %v1129
        %v1233 = vunpack.c.h.b16 %v1129
        %v1234 = vunpack.c.l.b16 %v1130
        %v1235 = vunpack.c.h.b16 %v1130
        %v1236 = vunpack.c.l.b16 %v1131
        %v1237 = vunpack.c.h.b16 %v1131
        %v1238 = vunpack.c.l.b16 %v1132
        %v1239 = vunpack.c.h.b16 %v1132
        %v1240 = vunpack.c.l.b16 %v1133
        %v1241 = vunpack.c.h.b16 %v1133
        %v1242 = vunpack.c.l.b16 %v1134
        %v1243 = vunpack.c.h.b16 %v1134
        %v1244 = vunpack.c.l.b16 %v1135
        %v1245 = vunpack.c.h.b16 %v1135
        %v1246 = vunpack.c.l.b16 %v1136
        %v1247 = vunpack.c.h.b16 %v1136
        %v1248 = vunpack.c.l.b16 %v1137
        %v1249 = vunpack.c.h.b16 %v1137
        %v1250 = vunpack.c.l.b16 %v1138
        %v1251 = vunpack.c.h.b16 %v1138
        %v1252 = vunpack.c.l.b16 %v1139
        %v1253 = vunpack.c.h.b16 %v1139
        %v1254 = vunpack.c.l.b16 %v1140
        %v1255 = vunpack.c.h.b16 %v1140
        %v1256 = vunpack.c.l.b16 %v1141
        %v1257 = vunpack.c.h.b16 %v1141
        %v1258 = vunpack.c.l.b16 %v1142
        %v1259 = vunpack.c.h.b16 %v1142
        %v1260 = vunpack.c.l.b16 %v1143
        %v1261 = vunpack.c.h.b16 %v1143
        %v1262 = vpack.c.b16 %v1200, %v1198
        %v1263 = vpack.c.b16 %v1201, %v1199
        %v1264 = vpack.c.b16 %v1204, %v1202
        %v1265 = vpack.c.b16 %v1205, %v1203
        %v1266 = vpack.c.b16 %v1208, %v1206
        %v1267 = vpack.c.b16 %v1209, %v1207
        %v1268 = vpack.c.b16 %v1212, %v1210
        %v1269 = vpack.c.b16 %v1213, %v1211
        %v1270 = vpack.c.b16 %v1216, %v1214
        %v1271 = vpack.c.b16 %v1217, %v1215
        %v1272 = vpack.c.b16 %v1220, %v1218
        %v1273 = vpack.c.b16 %v1221, %v1219
        %v1274 = vpack.c.b16 %v1224, %v1222
        %v1275 = vpack.c.b16 %v1225, %v1223
        %v1276 = vpack.c.b16 %v1228, %v1226
        %v1277 = vpack.c.b16 %v1229, %v1227
        %v1278 = vpack.c.b16 %v1232, %v1230
        %v1279 = vpack.c.b16 %v1233, %v1231
        %v1280 = vpack.c.b16 %v1236, %v1234
        %v1281 = vpack.c.b16 %v1237, %v1235
        %v1282 = vpack.c.b16 %v1240, %v1238
        %v1283 = vpack.c.b16 %v1241, %v1239
        %v1284 = vpack.c.b16 %v1244, %v1242
        %v1285 = vpack.c.b16 %v1245, %v1243
        %v1286 = vpack.c.b16 %v1248, %v1246
        %v1287 = vpack.c.b16 %v1249, %v1247
        %v1288 = vpack.c.b16 %v1252, %v1250
        %v1289 = vpack.c.b16 %v1253, %v1251
        %v1290 = vpack.c.b16 %v1256, %v1254
        %v1291 = vpack.c.b16 %v1257, %v1255
        %v1292 = vpack.c.b16 %v1260, %v1258
        %v1293 = vpack.c.b16 %v1261, %v1259
        %1326 = vmatprep.subr.bf16.mxu0 %v1263
        %1327 = vmatpush1.bf16.msra.mxu0 %v1262
        %1328 = vmatprep.subr.bf16.mxu0 %v1265
        %1329 = vmatpush1.bf16.msra.mxu0 %v1264
        %1330 = vmatprep.subr.bf16.mxu0 %v1267
        %1331 = vmatpush1.bf16.msra.mxu0 %v1266
        %1332 = vmatprep.subr.bf16.mxu0 %v1269
        %1333 = vmatpush1.bf16.msra.mxu0 %v1268
        %1334 = vmatprep.subr.bf16.mxu0 %v1271
        %1335 = vmatpush1.bf16.msra.mxu0 %v1270
        %1336 = vmatprep.subr.bf16.mxu0 %v1273
        %1337 = vmatpush1.bf16.msra.mxu0 %v1272
        %1338 = vmatprep.subr.bf16.mxu0 %v1275
        %1339 = vmatpush1.bf16.msra.mxu0 %v1274
        %1340 = vmatprep.subr.bf16.mxu0 %v1277
        %1341 = vmatpush1.bf16.msra.mxu0 %v1276
        %1342 = vmatprep.subr.bf16.mxu0 %v1279
        %1343 = vmatpush1.bf16.msra.mxu0 %v1278
        %1344 = vmatprep.subr.bf16.mxu0 %v1281
        %1345 = vmatpush1.bf16.msra.mxu0 %v1280
        %1346 = vmatprep.subr.bf16.mxu0 %v1283
        %1347 = vmatpush1.bf16.msra.mxu0 %v1282
        %1348 = vmatprep.subr.bf16.mxu0 %v1285
        %1349 = vmatpush1.bf16.msra.mxu0 %v1284
        %1350 = vmatprep.subr.bf16.mxu0 %v1287
        %1351 = vmatpush1.bf16.msra.mxu0 %v1286
        %1352 = vmatprep.subr.bf16.mxu0 %v1289
        %1353 = vmatpush1.bf16.msra.mxu0 %v1288
        %1354 = vmatprep.subr.bf16.mxu0 %v1291
        %1355 = vmatpush1.bf16.msra.mxu0 %v1290
        %1356 = vmatprep.subr.bf16.mxu0 %v1293
        %1357 = vmatpush1.bf16.msra.mxu0 %v1292
        %1358 = vmatprep.mubr.bf16.mxu0 %v1163
        %1359 = vmatmul.mubr.bf16.gmra.mrb[0].mxu0 %v1162
        %v1360 = vpop.f32.mrb[0].mxu0
        %v1361 = vadd.f32 %v1149, %v1360
        %v1362 = vpop.f32.mrb[0].mxu0
        %v1363 = vadd.f32 %v1153, %v1362
        %v1364 = vpop.f32.mrb[0].mxu0
        %v1365 = vadd.f32 %v1149, %v1364
        %v1366 = vpop.f32.mrb[0].mxu0
        %v1367 = vadd.f32 %v1153, %v1366
        %1368 = vdwg.mxu0
        %v1369 = vmul.f32 %v1361, 0.088388346
        %v1370 = vmul.f32 %v1363, 0.088388346
        %v1371 = vmul.f32 %v1365, 0.088388346
        %v1372 = vmul.f32 %v1367, 0.088388346
        %v1373 = vld [vmem:[#allocation8] sm:$0xf]
        %v1374 = vld [vmem:[#allocation8 + $0x4] sm:$0xf]
        %v1375 = vunpack.c.l.bf16 %v1373
        %v1376 = vunpack.c.l.bf16 %v1374
        %v1377 = vpack.c.bf16 %v1371, %v1369
        %v1378 = vld [vmem:[#allocation2] sm:$0xff]
        %v1379 = vld [vmem:[#allocation2 + $0x10] sm:$0xff]
        %1380 = vmatprep.subr.bf16.mxu0 0
        %1381 = vmatpush1.bf16.xpose.msra.mxu0 %v1378
        %1382 = vmatprep.subr.bf16.mxu0 0
        %1383 = vmatpush1.bf16.xpose.msra.mxu0 0
        %1384 = vmatprep.subr.bf16.mxu0 0
        %1385 = vmatpush1.bf16.xpose.msra.mxu0 0
        %1386 = vmatprep.subr.bf16.mxu0 0
        %1387 = vmatpush1.bf16.xpose.msra.mxu0 0
        %1388 = vmatprep.subr.bf16.mxu0 0
        %1389 = vmatpush1.bf16.xpose.msra.mxu0 0
        %1390 = vmatprep.subr.bf16.mxu0 0
        %1391 = vmatpush1.bf16.xpose.msra.mxu0 0
        %1392 = vmatprep.subr.bf16.mxu0 0
        %1393 = vmatpush1.bf16.xpose.msra.mxu0 0
        %1394 = vmatprep.subr.bf16.mxu0 0
        %1395 = vmatpush1.bf16.xpose.msra.mxu0 0
        %1396 = vmatprep.subr.bf16.mxu0 0
        %1397 = vmatpush1.bf16.xpose.msra.mxu0 0
        %1398 = vmatprep.subr.bf16.mxu0 0
        %1399 = vmatpush1.bf16.xpose.msra.mxu0 0
        %1400 = vmatprep.subr.bf16.mxu0 0
        %1401 = vmatpush1.bf16.xpose.msra.mxu0 0
        %1402 = vmatprep.subr.bf16.mxu0 0
        %1403 = vmatpush1.bf16.xpose.msra.mxu0 0
        %1404 = vmatprep.subr.bf16.mxu0 0
        %1405 = vmatpush1.bf16.xpose.msra.mxu0 0
        %1406 = vmatprep.subr.bf16.mxu0 0
        %1407 = vmatpush1.bf16.xpose.msra.mxu0 0
        %1408 = vmatprep.subr.bf16.mxu0 0
        %1409 = vmatpush1.bf16.xpose.msra.mxu0 0
        %1410 = vmatprep.subr.bf16.mxu0 0
        %1411 = vmatpush1.bf16.xpose.msra.mxu0 0
        %1412 = vmatprep.mubr.bf16.mxu0 0
        %1413 = vmatmul.mubr.bf16.gmra.mrb[0].mxu0 %v1377
        %v1414 = vpop.f32.mrb[0].mxu0
        %v1415 = vadd.f32 %v1375, %v1414
        %v1416 = vpop.f32.mrb[0].mxu0
        %v1417 = vpop.f32.mrb[0].mxu0
        %v1418 = vadd.f32 %v1376, %v1417
        %v1419 = vpop.f32.mrb[0].mxu0
        %1420 = vdwg.mxu0
        %vm1421 = vcmask 130048
        %v1422 = vsel %vm1421, %v1415, -inf
        %1423 = vmax.xlane.f32.xlu0 %v1422
        %v1424 = vpop.xlane.xlu0 %1423
        %v1425 = vsel %vm1421, %v1418, -inf
        %1426 = vmax.xlane.f32.xlu0 %v1425
        %v1427 = vpop.xlane.xlu0 %1426
        %v1428 = vsub.f32 %v1415, %v1424
        %v1429 = vsub.f32 %v1418, %v1427
        %v1430 = vmul.f32 %v1428, 1.442695
        %v1431 = vpow.pop %v1430
        %v1432 = vmul.f32 %v1429, 1.442695
        %v1433 = vpow.pop %v1432
        %v1434 = vsel %vm1421, %v1431, 0.0
        %1435 = vadd.xlane.f32.xlu0 %v1434
        %v1436 = vpop.xlane.xlu0 %1435
        %v1437 = vsel %vm1421, %v1433, 0.0
        %1438 = vadd.xlane.f32.xlu0 %v1437
        %v1439 = vpop.xlane.xlu0 %1438
        %v1440 = vrcp.pop %v1436
        %v1441 = vrcp.pop %v1439
        %v1442 = vmul.f32 %v1431, %v1440
        %v1443 = vmul.f32 %v1433, %v1441
        %v1444 = vpack.c.bf16 %v1443, %v1442
        %v1446 = vsel %vm1421, %v1444, 0
        %1448 = vmatprep.subr.bf16.mxu0 0
        %1449 = vmatpush1.bf16.msra.mxu0 %v1379
        %1450 = vmatprep.subr.bf16.mxu0 0
        %1451 = vmatpush1.bf16.msra.mxu0 0
        %1452 = vmatprep.subr.bf16.mxu0 0
        %1453 = vmatpush1.bf16.msra.mxu0 0
        %1454 = vmatprep.subr.bf16.mxu0 0
        %1455 = vmatpush1.bf16.msra.mxu0 0
        %1456 = vmatprep.subr.bf16.mxu0 0
        %1457 = vmatpush1.bf16.msra.mxu0 0
        %1458 = vmatprep.subr.bf16.mxu0 0
        %1459 = vmatpush1.bf16.msra.mxu0 0
        %1460 = vmatprep.subr.bf16.mxu0 0
        %1461 = vmatpush1.bf16.msra.mxu0 0
        %1462 = vmatprep.subr.bf16.mxu0 0
        %1463 = vmatpush1.bf16.msra.mxu0 0
        %1464 = vmatprep.subr.bf16.mxu0 0
        %1465 = vmatpush1.bf16.msra.mxu0 0
        %1466 = vmatprep.subr.bf16.mxu0 0
        %1467 = vmatpush1.bf16.msra.mxu0 0
        %1468 = vmatprep.subr.bf16.mxu0 0
        %1469 = vmatpush1.bf16.msra.mxu0 0
        %1470 = vmatprep.subr.bf16.mxu0 0
        %1471 = vmatpush1.bf16.msra.mxu0 0
        %1472 = vmatprep.subr.bf16.mxu0 0
        %1473 = vmatpush1.bf16.msra.mxu0 0
        %1474 = vmatprep.subr.bf16.mxu0 0
        %1475 = vmatpush1.bf16.msra.mxu0 0
        %1476 = vmatprep.subr.bf16.mxu0 0
        %1477 = vmatpush1.bf16.msra.mxu0 0
        %1478 = vmatprep.subr.bf16.mxu0 0
        %1479 = vmatpush1.bf16.msra.mxu0 0
        %1480 = vmatprep.mubr.bf16.mxu0 0
        %1481 = vmatmul.mubr.bf16.gmra.mrb[0].mxu0 %v1446
        %v1482 = vpop.f32.mrb[0].mxu0
        %v1483 = vadd.f32 0.0, %v1482
        %v1484 = vpop.f32.mrb[0].mxu0
        %v1485 = vpop.f32.mrb[0].mxu0
        %v1486 = vadd.f32 0.0, %v1485
        %v1487 = vpop.f32.mrb[0].mxu0
        %1488 = vdwg.mxu0
        %v1489 = vpack.c.bf16 %v1372, %v1370
        %v1490 = vld [vmem:[#allocation2 + $0x8] sm:$0xff]
        %v1491 = vld [vmem:[#allocation2 + $0x18] sm:$0xff]
        %1492 = vmatprep.subr.bf16.mxu0 0
        %1493 = vmatpush1.bf16.xpose.msra.mxu0 %v1490
        %1494 = vmatprep.subr.bf16.mxu0 0
        %1495 = vmatpush1.bf16.xpose.msra.mxu0 0
        %1496 = vmatprep.subr.bf16.mxu0 0
        %1497 = vmatpush1.bf16.xpose.msra.mxu0 0
        %1498 = vmatprep.subr.bf16.mxu0 0
        %1499 = vmatpush1.bf16.xpose.msra.mxu0 0
        %1500 = vmatprep.subr.bf16.mxu0 0
        %1501 = vmatpush1.bf16.xpose.msra.mxu0 0
        %1502 = vmatprep.subr.bf16.mxu0 0
        %1503 = vmatpush1.bf16.xpose.msra.mxu0 0
        %1504 = vmatprep.subr.bf16.mxu0 0
        %1505 = vmatpush1.bf16.xpose.msra.mxu0 0
        %1506 = vmatprep.subr.bf16.mxu0 0
        %1507 = vmatpush1.bf16.xpose.msra.mxu0 0
        %1508 = vmatprep.subr.bf16.mxu0 0
        %1509 = vmatpush1.bf16.xpose.msra.mxu0 0
        %1510 = vmatprep.subr.bf16.mxu0 0
        %1511 = vmatpush1.bf16.xpose.msra.mxu0 0
        %1512 = vmatprep.subr.bf16.mxu0 0
        %1513 = vmatpush1.bf16.xpose.msra.mxu0 0
        %1514 = vmatprep.subr.bf16.mxu0 0
        %1515 = vmatpush1.bf16.xpose.msra.mxu0 0
        %1516 = vmatprep.subr.bf16.mxu0 0
        %1517 = vmatpush1.bf16.xpose.msra.mxu0 0
        %1518 = vmatprep.subr.bf16.mxu0 0
        %1519 = vmatpush1.bf16.xpose.msra.mxu0 0
        %1520 = vmatprep.subr.bf16.mxu0 0
        %1521 = vmatpush1.bf16.xpose.msra.mxu0 0
        %1522 = vmatprep.subr.bf16.mxu0 0
        %1523 = vmatpush1.bf16.xpose.msra.mxu0 0
        %1524 = vmatprep.mubr.bf16.mxu0 0
        %1525 = vmatmul.mubr.bf16.gmra.mrb[0].mxu0 %v1489
        %v1526 = vpop.f32.mrb[0].mxu0
        %v1527 = vadd.f32 %v1375, %v1526
        %v1528 = vpop.f32.mrb[0].mxu0
        %v1529 = vpop.f32.mrb[0].mxu0
        %v1530 = vadd.f32 %v1376, %v1529
        %v1531 = vpop.f32.mrb[0].mxu0
        %1532 = vdwg.mxu0
        %v1533 = vsel %vm1421, %v1527, -inf
        %1534 = vmax.xlane.f32.xlu0 %v1533
        %v1535 = vpop.xlane.xlu0 %1534
        %v1536 = vsel %vm1421, %v1530, -inf
        %1537 = vmax.xlane.f32.xlu0 %v1536
        %v1538 = vpop.xlane.xlu0 %1537
        %v1539 = vsub.f32 %v1527, %v1535
        %v1540 = vsub.f32 %v1530, %v1538
        %v1541 = vmul.f32 %v1539, 1.442695
        %v1542 = vpow.pop %v1541
        %v1543 = vmul.f32 %v1540, 1.442695
        %v1544 = vpow.pop %v1543
        %v1545 = vsel %vm1421, %v1542, 0.0
        %1546 = vadd.xlane.f32.xlu0 %v1545
        %v1547 = vpop.xlane.xlu0 %1546
        %v1548 = vsel %vm1421, %v1544, 0.0
        %1549 = vadd.xlane.f32.xlu0 %v1548
        %v1550 = vpop.xlane.xlu0 %1549
        %v1551 = vrcp.pop %v1547
        %v1552 = vrcp.pop %v1550
        %v1553 = vmul.f32 %v1542, %v1551
        %v1554 = vmul.f32 %v1544, %v1552
        %v1555 = vpack.c.bf16 %v1554, %v1553
        %v1557 = vsel %vm1421, %v1555, 0
        %1559 = vmatprep.subr.bf16.mxu0 0
        %1560 = vmatpush1.bf16.msra.mxu0 %v1491
        %1561 = vmatprep.subr.bf16.mxu0 0
        %1562 = vmatpush1.bf16.msra.mxu0 0
        %1563 = vmatprep.subr.bf16.mxu0 0
        %1564 = vmatpush1.bf16.msra.mxu0 0
        %1565 = vmatprep.subr.bf16.mxu0 0
        %1566 = vmatpush1.bf16.msra.mxu0 0
        %1567 = vmatprep.subr.bf16.mxu0 0
        %1568 = vmatpush1.bf16.msra.mxu0 0
        %1569 = vmatprep.subr.bf16.mxu0 0
        %1570 = vmatpush1.bf16.msra.mxu0 0
        %1571 = vmatprep.subr.bf16.mxu0 0
        %1572 = vmatpush1.bf16.msra.mxu0 0
        %1573 = vmatprep.subr.bf16.mxu0 0
        %1574 = vmatpush1.bf16.msra.mxu0 0
        %1575 = vmatprep.subr.bf16.mxu0 0
        %1576 = vmatpush1.bf16.msra.mxu0 0
        %1577 = vmatprep.subr.bf16.mxu0 0
        %1578 = vmatpush1.bf16.msra.mxu0 0
        %1579 = vmatprep.subr.bf16.mxu0 0
        %1580 = vmatpush1.bf16.msra.mxu0 0
        %1581 = vmatprep.subr.bf16.mxu0 0
        %1582 = vmatpush1.bf16.msra.mxu0 0
        %1583 = vmatprep.subr.bf16.mxu0 0
        %1584 = vmatpush1.bf16.msra.mxu0 0
        %1585 = vmatprep.subr.bf16.mxu0 0
        %1586 = vmatpush1.bf16.msra.mxu0 0
        %1587 = vmatprep.subr.bf16.mxu0 0
        %1588 = vmatpush1.bf16.msra.mxu0 0
        %1589 = vmatprep.subr.bf16.mxu0 0
        %1590 = vmatpush1.bf16.msra.mxu0 0
        %1591 = vmatprep.mubr.bf16.mxu0 0
        %1592 = vmatmul.mubr.bf16.gmra.mrb[0].mxu0 %v1557
        %v1593 = vpop.f32.mrb[0].mxu0
        %v1594 = vadd.f32 0.0, %v1593
        %v1595 = vpop.f32.mrb[0].mxu0
        %v1596 = vpop.f32.mrb[0].mxu0
        %v1597 = vadd.f32 0.0, %v1596
        %v1598 = vpop.f32.mrb[0].mxu0
        %1599 = vdwg.mxu0
        %v1600 = vpack.c.bf16 %v1486, %v1483
        %v1601 = vpack.c.bf16 %v1597, %v1594
        %v1602 = vld [vmem:[#allocation15] sm:$0xff]
        %v1603 = vld [vmem:[#allocation15 + $0x8] sm:$0xff]
        %v1604 = vld [vmem:[#allocation15 + $0x10] sm:$0xff]
        %v1605 = vld [vmem:[#allocation15 + $0x18] sm:$0xff]
        %v1606 = vld [vmem:[#allocation15 + $0x20] sm:$0xff]
        %v1607 = vld [vmem:[#allocation15 + $0x28] sm:$0xff]
        %v1608 = vld [vmem:[#allocation15 + $0x30] sm:$0xff]
        %v1609 = vld [vmem:[#allocation15 + $0x38] sm:$0xff]
        %v1610 = vld [vmem:[#allocation15 + $0x40] sm:$0xff]
        %v1611 = vld [vmem:[#allocation15 + $0x48] sm:$0xff]
        %v1612 = vld [vmem:[#allocation15 + $0x50] sm:$0xff]
        %v1613 = vld [vmem:[#allocation15 + $0x58] sm:$0xff]
        %v1614 = vld [vmem:[#allocation15 + $0x60] sm:$0xff]
        %v1615 = vld [vmem:[#allocation15 + $0x68] sm:$0xff]
        %v1616 = vld [vmem:[#allocation15 + $0x70] sm:$0xff]
        %v1617 = vld [vmem:[#allocation15 + $0x78] sm:$0xff]
        %v1618 = vld [vmem:[#allocation15 + $0x80] sm:$0xff]
        %v1619 = vld [vmem:[#allocation15 + $0x88] sm:$0xff]
        %v1620 = vld [vmem:[#allocation15 + $0x90] sm:$0xff]
        %v1621 = vld [vmem:[#allocation15 + $0x98] sm:$0xff]
        %v1622 = vld [vmem:[#allocation15 + $0xa0] sm:$0xff]
        %v1623 = vld [vmem:[#allocation15 + $0xa8] sm:$0xff]
        %v1624 = vld [vmem:[#allocation15 + $0xb0] sm:$0xff]
        %v1625 = vld [vmem:[#allocation15 + $0xb8] sm:$0xff]
        %v1626 = vld [vmem:[#allocation15 + $0xc0] sm:$0xff]
        %v1627 = vld [vmem:[#allocation15 + $0xc8] sm:$0xff]
        %v1628 = vld [vmem:[#allocation15 + $0xd0] sm:$0xff]
        %v1629 = vld [vmem:[#allocation15 + $0xd8] sm:$0xff]
        %v1630 = vld [vmem:[#allocation15 + $0xe0] sm:$0xff]
        %v1631 = vld [vmem:[#allocation15 + $0xe8] sm:$0xff]
        %v1632 = vld [vmem:[#allocation15 + $0xf0] sm:$0xff]
        %v1633 = vld [vmem:[#allocation15 + $0xf8] sm:$0xff]
        %v1634 = vld [vmem:[#allocation17] sm:$0x3]
        %v1636 = vlaneseq
        %v1637 = vshrl.u32 %v1636, 7
        %v1638 = vsub.s32 0, %v1637
        %v1639 = vrot.slane %v1634, %v1638
        %v1640 = vlaneseq
        %v1641 = vshrl.u32 %v1640, 7
        %v1642 = vsub.s32 1, %v1641
        %v1643 = vrot.slane %v1634, %v1642
        %v1678 = vunpack.c.l.b16 %v1602
        %v1679 = vunpack.c.h.b16 %v1602
        %v1680 = vunpack.c.l.b16 %v1603
        %v1681 = vunpack.c.h.b16 %v1603
        %v1682 = vunpack.c.l.b16 %v1604
        %v1683 = vunpack.c.h.b16 %v1604
        %v1684 = vunpack.c.l.b16 %v1605
        %v1685 = vunpack.c.h.b16 %v1605
        %v1686 = vunpack.c.l.b16 %v1606
        %v1687 = vunpack.c.h.b16 %v1606
        %v1688 = vunpack.c.l.b16 %v1607
        %v1689 = vunpack.c.h.b16 %v1607
        %v1690 = vunpack.c.l.b16 %v1608
        %v1691 = vunpack.c.h.b16 %v1608
        %v1692 = vunpack.c.l.b16 %v1609
        %v1693 = vunpack.c.h.b16 %v1609
        %v1694 = vunpack.c.l.b16 %v1610
        %v1695 = vunpack.c.h.b16 %v1610
        %v1696 = vunpack.c.l.b16 %v1611
        %v1697 = vunpack.c.h.b16 %v1611
        %v1698 = vunpack.c.l.b16 %v1612
        %v1699 = vunpack.c.h.b16 %v1612
        %v1700 = vunpack.c.l.b16 %v1613
        %v1701 = vunpack.c.h.b16 %v1613
        %v1702 = vunpack.c.l.b16 %v1614
        %v1703 = vunpack.c.h.b16 %v1614
        %v1704 = vunpack.c.l.b16 %v1615
        %v1705 = vunpack.c.h.b16 %v1615
        %v1706 = vunpack.c.l.b16 %v1616
        %v1707 = vunpack.c.h.b16 %v1616
        %v1708 = vunpack.c.l.b16 %v1617
        %v1709 = vunpack.c.h.b16 %v1617
        %v1710 = vunpack.c.l.b16 %v1618
        %v1711 = vunpack.c.h.b16 %v1618
        %v1712 = vunpack.c.l.b16 %v1619
        %v1713 = vunpack.c.h.b16 %v1619
        %v1714 = vunpack.c.l.b16 %v1620
        %v1715 = vunpack.c.h.b16 %v1620
        %v1716 = vunpack.c.l.b16 %v1621
        %v1717 = vunpack.c.h.b16 %v1621
        %v1718 = vunpack.c.l.b16 %v1622
        %v1719 = vunpack.c.h.b16 %v1622
        %v1720 = vunpack.c.l.b16 %v1623
        %v1721 = vunpack.c.h.b16 %v1623
        %v1722 = vunpack.c.l.b16 %v1624
        %v1723 = vunpack.c.h.b16 %v1624
        %v1724 = vunpack.c.l.b16 %v1625
        %v1725 = vunpack.c.h.b16 %v1625
        %v1726 = vunpack.c.l.b16 %v1626
        %v1727 = vunpack.c.h.b16 %v1626
        %v1728 = vunpack.c.l.b16 %v1627
        %v1729 = vunpack.c.h.b16 %v1627
        %v1730 = vunpack.c.l.b16 %v1628
        %v1731 = vunpack.c.h.b16 %v1628
        %v1732 = vunpack.c.l.b16 %v1629
        %v1733 = vunpack.c.h.b16 %v1629
        %v1734 = vunpack.c.l.b16 %v1630
        %v1735 = vunpack.c.h.b16 %v1630
        %v1736 = vunpack.c.l.b16 %v1631
        %v1737 = vunpack.c.h.b16 %v1631
        %v1738 = vunpack.c.l.b16 %v1632
        %v1739 = vunpack.c.h.b16 %v1632
        %v1740 = vunpack.c.l.b16 %v1633
        %v1741 = vunpack.c.h.b16 %v1633
        %v1742 = vpack.c.b16 %v1680, %v1678
        %v1743 = vpack.c.b16 %v1681, %v1679
        %v1744 = vpack.c.b16 %v1684, %v1682
        %v1745 = vpack.c.b16 %v1685, %v1683
        %v1746 = vpack.c.b16 %v1688, %v1686
        %v1747 = vpack.c.b16 %v1689, %v1687
        %v1748 = vpack.c.b16 %v1692, %v1690
        %v1749 = vpack.c.b16 %v1693, %v1691
        %v1750 = vpack.c.b16 %v1696, %v1694
        %v1751 = vpack.c.b16 %v1697, %v1695
        %v1752 = vpack.c.b16 %v1700, %v1698
        %v1753 = vpack.c.b16 %v1701, %v1699
        %v1754 = vpack.c.b16 %v1704, %v1702
        %v1755 = vpack.c.b16 %v1705, %v1703
        %v1756 = vpack.c.b16 %v1708, %v1706
        %v1757 = vpack.c.b16 %v1709, %v1707
        %v1758 = vpack.c.b16 %v1712, %v1710
        %v1759 = vpack.c.b16 %v1713, %v1711
        %v1760 = vpack.c.b16 %v1716, %v1714
        %v1761 = vpack.c.b16 %v1717, %v1715
        %v1762 = vpack.c.b16 %v1720, %v1718
        %v1763 = vpack.c.b16 %v1721, %v1719
        %v1764 = vpack.c.b16 %v1724, %v1722
        %v1765 = vpack.c.b16 %v1725, %v1723
        %v1766 = vpack.c.b16 %v1728, %v1726
        %v1767 = vpack.c.b16 %v1729, %v1727
        %v1768 = vpack.c.b16 %v1732, %v1730
        %v1769 = vpack.c.b16 %v1733, %v1731
        %v1770 = vpack.c.b16 %v1736, %v1734
        %v1771 = vpack.c.b16 %v1737, %v1735
        %v1772 = vpack.c.b16 %v1740, %v1738
        %v1773 = vpack.c.b16 %v1741, %v1739
        %1806 = vmatprep.subr.bf16.mxu0 %v1743
        %1807 = vmatpush1.bf16.msra.mxu0 %v1742
        %1808 = vmatprep.subr.bf16.mxu0 %v1745
        %1809 = vmatpush1.bf16.msra.mxu0 %v1744
        %1810 = vmatprep.subr.bf16.mxu0 %v1747
        %1811 = vmatpush1.bf16.msra.mxu0 %v1746
        %1812 = vmatprep.subr.bf16.mxu0 %v1749
        %1813 = vmatpush1.bf16.msra.mxu0 %v1748
        %1814 = vmatprep.subr.bf16.mxu0 %v1751
        %1815 = vmatpush1.bf16.msra.mxu0 %v1750
        %1816 = vmatprep.subr.bf16.mxu0 %v1753
        %1817 = vmatpush1.bf16.msra.mxu0 %v1752
        %1818 = vmatprep.subr.bf16.mxu0 %v1755
        %1819 = vmatpush1.bf16.msra.mxu0 %v1754
        %1820 = vmatprep.subr.bf16.mxu0 %v1757
        %1821 = vmatpush1.bf16.msra.mxu0 %v1756
        %1822 = vmatprep.subr.bf16.mxu0 %v1759
        %1823 = vmatpush1.bf16.msra.mxu0 %v1758
        %1824 = vmatprep.subr.bf16.mxu0 %v1761
        %1825 = vmatpush1.bf16.msra.mxu0 %v1760
        %1826 = vmatprep.subr.bf16.mxu0 %v1763
        %1827 = vmatpush1.bf16.msra.mxu0 %v1762
        %1828 = vmatprep.subr.bf16.mxu0 %v1765
        %1829 = vmatpush1.bf16.msra.mxu0 %v1764
        %1830 = vmatprep.subr.bf16.mxu0 %v1767
        %1831 = vmatpush1.bf16.msra.mxu0 %v1766
        %1832 = vmatprep.subr.bf16.mxu0 %v1769
        %1833 = vmatpush1.bf16.msra.mxu0 %v1768
        %1834 = vmatprep.subr.bf16.mxu0 %v1771
        %1835 = vmatpush1.bf16.msra.mxu0 %v1770
        %1836 = vmatprep.subr.bf16.mxu0 %v1773
        %1837 = vmatpush1.bf16.msra.mxu0 %v1772
        %1838 = vmatprep.mubr.bf16.mxu0 %v1601
        %1839 = vmatmul.mubr.bf16.gmra.mrb[0].mxu0 %v1600
        %v1840 = vpop.f32.mrb[0].mxu0
        %v1841 = vadd.f32 %v1639, %v1840
        %v1842 = vpop.f32.mrb[0].mxu0
        %v1843 = vadd.f32 %v1643, %v1842
        %v1844 = vpop.f32.mrb[0].mxu0
        %v1845 = vadd.f32 %v1639, %v1844
        %v1846 = vpop.f32.mrb[0].mxu0
        %v1847 = vadd.f32 %v1643, %v1846
        %1848 = vdwg.mxu0
        %v1849 = vadd.f32 %v1841, %v1108
        %v1850 = vadd.f32 %v1843, %v1109
        %v1851 = vadd.f32 %v1845, %v1110
        %v1852 = vadd.f32 %v1847, %v1111
        %v1853 = vadd.f32 %v1849, %v1850
        %1854 = vadd.xlane.f32.xlu0 %v1853
        %v1855 = vpop.xlane.xlu0 %1854
        %v1856 = vadd.f32 %v1851, %v1852
        %1857 = vadd.xlane.f32.xlu0 %v1856
        %v1858 = vpop.xlane.xlu0 %1857
        %v1859 = vrcp.pop 256.0
        %v1860 = vmul.f32 %v1855, %v1859
        %v1861 = vmul.f32 %v1858, %v1859
        %v1862 = vsub.f32 %v1849, %v1860
        %v1863 = vsub.f32 %v1850, %v1860
        %v1864 = vsub.f32 %v1851, %v1861
        %v1865 = vsub.f32 %v1852, %v1861
        %v1866 = vmul.f32 %v1862, %v1862
        %v1867 = vmul.f32 %v1863, %v1863
        %v1868 = vmul.f32 %v1864, %v1864
        %v1869 = vmul.f32 %v1865, %v1865
        %v1870 = vadd.f32 %v1866, %v1867
        %1871 = vadd.xlane.f32.xlu0 %v1870
        %v1872 = vpop.xlane.xlu0 %1871
        %v1873 = vadd.f32 %v1868, %v1869
        %1874 = vadd.xlane.f32.xlu0 %v1873
        %v1875 = vpop.xlane.xlu0 %1874
        %v1876 = vmul.f32 %v1872, %v1859
        %v1877 = vmul.f32 %v1875, %v1859
        %v1878 = vadd.f32 %v1876, 1e-05
        %v1879 = vadd.f32 %v1877, 1e-05
        %v1880 = vrsqrt.pop %v1878
        %v1881 = vrsqrt.pop %v1879
        %v1882 = vmul.f32 %v1862, %v1880
        %v1883 = vmul.f32 %v1863, %v1880
        %v1884 = vmul.f32 %v1864, %v1881
        %v1885 = vmul.f32 %v1865, %v1881
        %v1886 = vld [vmem:[#allocation18] sm:$0x3]
        %v1888 = vlaneseq
        %v1889 = vshrl.u32 %v1888, 7
        %v1890 = vsub.s32 0, %v1889
        %v1891 = vrot.slane %v1886, %v1890
        %v1892 = vlaneseq
        %v1893 = vshrl.u32 %v1892, 7
        %v1894 = vsub.s32 1, %v1893
        %v1895 = vrot.slane %v1886, %v1894
        %v1898 = vmul.f32 %v1882, %v1891
        %v1899 = vmul.f32 %v1883, %v1895
        %v1900 = vmul.f32 %v1884, %v1891
        %v1901 = vmul.f32 %v1885, %v1895
        %v1902 = vld [vmem:[#allocation20] sm:$0x3]
        %v1904 = vlaneseq
        %v1905 = vshrl.u32 %v1904, 7
        %v1906 = vsub.s32 0, %v1905
        %v1907 = vrot.slane %v1902, %v1906
        %v1908 = vlaneseq
        %v1909 = vshrl.u32 %v1908, 7
        %v1910 = vsub.s32 1, %v1909
        %v1911 = vrot.slane %v1902, %v1910
        %v1914 = vadd.f32 %v1898, %v1907
        %v1915 = vadd.f32 %v1899, %v1911
        %v1916 = vadd.f32 %v1900, %v1907
        %v1917 = vadd.f32 %v1901, %v1911
        %v1918 = vpack.c.bf16 %v1916, %v1914
        %v1919 = vpack.c.bf16 %v1917, %v1915
        %v1922 = vunpack.c.l.b16 %v1918
        %v1923 = vunpack.c.l.b16 %v1919
        %v1924 = vunpack.c.h.b16 %v1918
        %v1925 = vunpack.c.h.b16 %v1919
        %v1926 = vpack.c.b16 %v1923, %v1922
        %v1927 = vpack.c.b16 %v1925, %v1924
        %1930 = vst [vmem:[%s591] sm:$0xff] %v1926
        %1931 = vst [vmem:[%s591 + $0x8] sm:$0xff] %v1927
        %s1932 = sand.u32 %s305, 1
        %s1933 = scalar_lea.sflag [#allocation5], %s1932
        %s1934 = sand.u32 %s305, 1
        %s1935 = smul.addr %s1934, 16
        %s1936 = scalar_lea.vmem [#allocation21], %s1935
        // Predicated region
        $region113: #{decoder_layer_c_forward.5} parent=63 // pred_check
          %p1937 = pneg %p315
        $region114: #{decoder_layer_c_forward.5} parent=63 // pred_check_branch
          %1939 = sbr.rel (%p1937) target = $region116
        $region115: #{decoder_layer_c_forward.5} parent=63 // pred_region
          %s1940 = smul.u32 2, %s40
          %s1942 = ssub.s32 256, 256
          %1943 = vsyncadd %s1933, %s1942
          %s1944 = smul.addr %s1940, 2
          %s1945 = smul.addr %s39, 4
          %s1946 = sadd.s32 %s1944, %s1945
          %s1947 = smul.addr %s1946, 64
          %s1948 = scalar_lea.hbm %s11, %s1947
          %s1949 = sshll.u32 %s1936, 4
          %s1950 = int_to_ptr.vmem [resolvable:$true] %s1949
          %1955 = dma.vmem_to_hbm [thread:$0]  %s1950, 256, %s1948, %s1933, 128, 128, 8
        $region116: #{decoder_layer_c_forward.5} parent=63 // pred_fallthru
          _
      $region64: #{decoder_layer_c_forward.5} parent=5 // pred_fallthru
        _
      %p1956 = scmp.le.s32.totalorder 2, %s30
      // Predicated region
      $region117: #{decoder_layer_c_forward.5} parent=5 // pred_check
        %p1957 = pneg %p1956
      $region118: #{decoder_layer_c_forward.5} parent=5 // pred_check_branch
        %1959 = sbr.rel (%p1957) target = $region120
      $region119: #{decoder_layer_c_forward.5} parent=5 // pred_region
        %s1960 = ssub.s32 %s30, 2
        // Predicated region
        $region121: #{decoder_layer_c_forward.5} parent=119 // pred_check
          %p1961 = pneg %p321
        $region122: #{decoder_layer_c_forward.5} parent=119 // pred_check_branch
          %1963 = sbr.rel (%p1961) target = $region124
        $region123: #{decoder_layer_c_forward.5} parent=119 // pred_region
          %s1964 = sand.u32 %s306, 1
          %s1965 = scalar_lea.sflag [#allocation5], %s1964
          %s1966 = sand.u32 %s306, 1
          %s1967 = smul.addr %s1966, 16
          %s1968 = scalar_lea.vmem [#allocation21], %s1967
          %1969 = dma.done %s1965, 256
        $region124: #{decoder_layer_c_forward.5} parent=119 // pred_fallthru
          _
      $region120: #{decoder_layer_c_forward.5} parent=5 // pred_fallthru
        _
    $region6: #{decoder_layer_c_forward.5} parent=1 // loop_footer
      %s34 = sadd.s32 1, %s30
    $region7: #{decoder_layer_c_forward.5} parent=1 // loop_footer_branch
      %29 = sbr.rel target = $region3
    $region8: #{decoder_layer_c_forward.5} parent=1 // loop_exit
      _
    %1970 = vsyncpa [#allocation4], 1
    %s1971 = scalar_lea.sflag [#allocation4], 1
    %1972 = vsyncpa %s1971, 1
    %1973 = vsyncpa [#allocation7], 1
    %s1974 = scalar_lea.sflag [#allocation7], 1
    %1975 = vsyncpa %s1974, 1
    %1976 = vsyncpa [#allocation10], 1
    %1977 = vsyncpa [#allocation13], 1
    %1978 = vsyncpa [#allocation16], 1
    %1979 = vsyncpa [#allocation19], 1
    %1980 = vsyncpa [#allocation5], 1
    %s1981 = scalar_lea.sflag [#allocation5], 1
    %1982 = vsyncpa %s1981, 1

// kernel: decoder_layer_c_forward.4
$region0: #{decoder_layer_c_forward.4}
  #allocation0 [shape = 'u32[]', space=smem, size = 0x4, offset = 0x4, fixed_abs, tag = 'smem constant byte address 0x4 - core index']
  #allocation1 [shape = 'u32[144,128]{1,0:T(1,128)}', space=vmem, size = 0x12000, scoped, tag = 'internal scratch']
  #allocation2 [shape = 'bf16[16,512]{1,0:T(16,128)(2,1)}', space=vmem, size = 0x4000, scoped, tag = 'scratch operand']
  %s0 = inlined_call_operand.hbm [shape: f32[2,16,256], index: 0, kind: input, shape index: {}, may-alias: {0,1}]
  %s1 = inlined_call_operand.hbm [shape: f32[2,16,256], index: 1, kind: input, shape index: {}, may-alias: {0,1}]
  %s2 = inlined_call_operand.hbm [shape: bf16[16,16], index: 2, kind: input, shape index: {}]
  %s3 = inlined_call_operand.hbm [shape: bf16[256,256], index: 3, kind: input, shape index: {}]
  %s4 = inlined_call_operand.hbm [shape: f32[1,256], index: 4, kind: input, shape index: {}]
  %s5 = inlined_call_operand.hbm [shape: bf16[256,512], index: 5, kind: input, shape index: {}]
  %s6 = inlined_call_operand.hbm [shape: f32[1,512], index: 6, kind: input, shape index: {}]
  %s7 = inlined_call_operand.hbm [shape: bf16[256,256], index: 7, kind: input, shape index: {}]
  %s8 = inlined_call_operand.hbm [shape: f32[1,256], index: 8, kind: input, shape index: {}]
  %s9 = inlined_call_operand.hbm [shape: f32[1,256], index: 9, kind: input, shape index: {}]
  %s10 = inlined_call_operand.hbm [shape: f32[1,256], index: 10, kind: input, shape index: {}]
  %s11 = inlined_call_operand.hbm [shape: bf16[2,16,256], index: 11, kind: output, shape index: {}]
  %s12 = sld [smem:[#allocation0]]
  $region125: #{decoder_layer_c_forward.4} parent=0
    _
  %s14 = ssub.s32 1, %s12
  %s15 = scalar_select 0, %s14, %s12
  $region1: #{decoder_layer_c_forward.4} parent=0
    #allocation3 [shape = 'u8[32768]{0}', space=vmem, size = 0x8000, scoped, tag = 'input window, operand 0']
    #allocation4 [shape = 's32[2]{0}', space=sflag, size = 0x8, scoped, tag = 'scoped memory for decoder_layer_c_forward.4']
    #allocation5 [shape = 's32[2]{0}', space=sflag, size = 0x8, scoped, tag = 'scoped memory for decoder_layer_c_forward.4']
    #allocation6 [shape = 'u8[32768]{0}', space=vmem, size = 0x8000, scoped, tag = 'input window, operand 1']
    #allocation7 [shape = 's32[2]{0}', space=sflag, size = 0x8, scoped, tag = 'scoped memory for decoder_layer_c_forward.4']
    #allocation8 [shape = 'u8[4096]{0}', space=vmem, size = 0x1000, scoped, tag = 'input window, operand 2, single buffered']
    #allocation9 [shape = 'u8[131072]{0}', space=vmem, size = 0x20000, scoped, tag = 'input window, operand 3, single buffered']
    #allocation10 [shape = 's32[1]{0}', space=sflag, size = 0x4, scoped, tag = 'scoped memory for decoder_layer_c_forward.4']
    #allocation11 [shape = 'u8[1024]{0}', space=vmem, size = 0x400, scoped, tag = 'input window, operand 4, single buffered']
    #allocation12 [shape = 'u8[262144]{0}', space=vmem, size = 0x40000, scoped, tag = 'input window, operand 5, single buffered']
    #allocation13 [shape = 's32[1]{0}', space=sflag, size = 0x4, scoped, tag = 'scoped memory for decoder_layer_c_forward.4']
    #allocation14 [shape = 'u8[2048]{0}', space=vmem, size = 0x800, scoped, tag = 'input window, operand 6, single buffered']
    #allocation15 [shape = 'u8[131072]{0}', space=vmem, size = 0x20000, scoped, tag = 'input window, operand 7, single buffered']
    #allocation16 [shape = 's32[1]{0}', space=sflag, size = 0x4, scoped, tag = 'scoped memory for decoder_layer_c_forward.4']
    #allocation17 [shape = 'u8[1024]{0}', space=vmem, size = 0x400, scoped, tag = 'input window, operand 8, single buffered']
    #allocation18 [shape = 'u8[1024]{0}', space=vmem, size = 0x400, scoped, tag = 'input window, operand 9, single buffered']
    #allocation19 [shape = 's32[1]{0}', space=sflag, size = 0x4, scoped, tag = 'scoped memory for decoder_layer_c_forward.4']
    #allocation20 [shape = 'u8[1024]{0}', space=vmem, size = 0x400, scoped, tag = 'input window, operand 10, single buffered']
    #allocation21 [shape = 'u8[16384]{0}', space=vmem, size = 0x4000, scoped, tag = 'output window, operand 0']
    %16 = vsyncpa [#allocation4], 0
    %s17 = scalar_lea.sflag [#allocation4], 1
    %18 = vsyncpa %s17, 0
    %19 = vsyncpa [#allocation7], 0
    %s20 = scalar_lea.sflag [#allocation7], 1
    %21 = vsyncpa %s20, 0
    %22 = vsyncpa [#allocation10], 0
    %23 = vsyncpa [#allocation13], 0
    %24 = vsyncpa [#allocation16], 0
    %25 = vsyncpa [#allocation19], 0
    %26 = vsyncpa [#allocation5], 0
    %s27 = scalar_lea.sflag [#allocation5], 1
    %28 = vsyncpa %s27, 0
    loop: start=0, step=1, limit=4
    $region2: #{decoder_layer_c_forward.4} parent=1 // loop_pre_header
      _
    $region3: #{decoder_layer_c_forward.4} parent=1 // loop_header
      %s30 = sphi 0, %s34
      %p31 = scmp.ge.s32.totalorder %s30, 4
      %s37 = sphi 0, %s49
      %s38 = sphi 0, %s45
      %s39 = sphi 0, %s37
      %s40 = sphi 0, %s38
      %s41 = sphi 0, %s39
      %s42 = sphi 0, %s40
      %s54 = sphi 0, %s56
      %s57 = sphi 0, %s54
      %s58 = sphi 0, %s57
      %s74 = sphi 0, %s58
      %s80 = sphi 0, %s82
      %s83 = sphi 0, %s80
      %s84 = sphi 0, %s83
      %s100 = sphi 0, %s84
      %s106 = sphi 0, %s108
      %s109 = sphi 0, %s106
      %s110 = sphi 0, %s109
      %s126 = sphi 0, %s110
      %s130 = sphi 0, %s130
      %s132 = sphi 0, %s130
      %s133 = sphi 0, %s132
      %s147 = sphi 0, %s133
      %s151 = sphi 0, %s151
      %s153 = sphi 0, %s151
      %s154 = sphi 0, %s153
      %s168 = sphi 0, %s154
      %s172 = sphi 0, %s172
      %s174 = sphi 0, %s172
      %s175 = sphi 0, %s174
      %s189 = sphi 0, %s175
      %s193 = sphi 0, %s193
      %s195 = sphi 0, %s193
      %s196 = sphi 0, %s195
      %s210 = sphi 0, %s196
      %s214 = sphi 0, %s214
      %s216 = sphi 0, %s214
      %s217 = sphi 0, %s216
      %s231 = sphi 0, %s217
      %s235 = sphi 0, %s235
      %s237 = sphi 0, %s235
      %s238 = sphi 0, %s237
      %s252 = sphi 0, %s238
      %s256 = sphi 0, %s256
      %s258 = sphi 0, %s256
      %s259 = sphi 0, %s258
      %s273 = sphi 0, %s259
      %s277 = sphi 0, %s277
      %s279 = sphi 0, %s277
      %s280 = sphi 0, %s279
      %s294 = sphi 0, %s280
      %s302 = sphi 0, %s304
      %s305 = sphi 0, %s302
      %s306 = sphi 0, %s305
      %s322 = sphi 0, %s306
    $region4: #{decoder_layer_c_forward.4} parent=1 // loop_header_branch
      %33 = sbr.rel (%p31) target = $region8
    $region5: #{decoder_layer_c_forward.4} parent=1 // loop_body
      %s35 = ssub.s32 %s30, 1
      %s36 = ssub.s32 %s30, 2
      %s43 = sadd.s32 1, %s38
      %p44 = scmp.ge.s32.totalorder %s43, 1
      %s45 = scalar_select %p44, 0, %s43
      %s46 = sadd.s32 1, %s37
      %s47 = scalar_select %p44, %s46, %s37
      %p48 = scmp.ge.s32.totalorder %s47, 2
      %s49 = scalar_select %p48, 0, %s47
      %s50 = ssub.s32 %s37, %s49
      %s51 = ssub.s32 %s38, %s45
      %s52 = sor.u32 %s50, %s51
      %p53 = scmp.eq.s32.totalorder %s52, 0
      %s55 = sadd.s32 %s54, 1
      %s56 = scalar_select %p53, %s54, %s55
      %p59 = pneg %p53
      %p60 = scmp.eq.s32.totalorder %s30, 1
      %p61 = por %p59, %p60
      %p62 = scmp.ne.s32.totalorder %s54, %s57
      %p63 = scmp.eq.s32.totalorder %s30, 0
      %p64 = por %p62, %p63
      %p65 = scmp.ne.s32.totalorder %s54, %s57
      %p66 = scmp.eq.s32.totalorder %s35, 1
      %p67 = por %p65, %p66
      %p68 = scmp.ne.s32.totalorder %s57, %s58
      %p69 = scmp.eq.s32.totalorder %s35, 0
      %p70 = por %p68, %p69
      %p71 = scmp.ne.s32.totalorder %s57, %s58
      %p72 = scmp.eq.s32.totalorder %s36, 1
      %p73 = por %p71, %p72
      %p75 = scmp.ne.s32.totalorder %s58, %s74
      %p76 = scmp.eq.s32.totalorder %s36, 0
      %p77 = por %p75, %p76
      %s78 = ssub.s32 %s37, %s49
      %p79 = scmp.eq.s32.totalorder %s78, 0
      %s81 = sadd.s32 %s80, 1
      %s82 = scalar_select %p79, %s80, %s81
      %p85 = pneg %p79
      %p86 = scmp.eq.s32.totalorder %s30, 1
      %p87 = por %p85, %p86
      %p88 = scmp.ne.s32.totalorder %s80, %s83
      %p89 = scmp.eq.s32.totalorder %s30, 0
      %p90 = por %p88, %p89
      %p91 = scmp.ne.s32.totalorder %s80, %s83
      %p92 = scmp.eq.s32.totalorder %s35, 1
      %p93 = por %p91, %p92
      %p94 = scmp.ne.s32.totalorder %s83, %s84
      %p95 = scmp.eq.s32.totalorder %s35, 0
      %p96 = por %p94, %p95
      %p97 = scmp.ne.s32.totalorder %s83, %s84
      %p98 = scmp.eq.s32.totalorder %s36, 1
      %p99 = por %p97, %p98
      %p101 = scmp.ne.s32.totalorder %s84, %s100
      %p102 = scmp.eq.s32.totalorder %s36, 0
      %p103 = por %p101, %p102
      %s104 = ssub.s32 %s38, %s45
      %p105 = scmp.eq.s32.totalorder %s104, 0
      %s107 = sadd.s32 %s106, 1
      %s108 = scalar_select %p105, %s106, %s107
      %p111 = pneg %p105
      %p112 = scmp.eq.s32.totalorder %s30, 1
      %p113 = por %p111, %p112
      %p114 = scmp.ne.s32.totalorder %s106, %s109
      %p115 = scmp.eq.s32.totalorder %s30, 0
      %p116 = por %p114, %p115
      %p117 = scmp.ne.s32.totalorder %s106, %s109
      %p118 = scmp.eq.s32.totalorder %s35, 1
      %p119 = por %p117, %p118
      %p120 = scmp.ne.s32.totalorder %s109, %s110
      %p121 = scmp.eq.s32.totalorder %s35, 0
      %p122 = por %p120, %p121
      %p123 = scmp.ne.s32.totalorder %s109, %s110
      %p124 = scmp.eq.s32.totalorder %s36, 1
      %p125 = por %p123, %p124
      %p127 = scmp.ne.s32.totalorder %s110, %s126
      %p128 = scmp.eq.s32.totalorder %s36, 0
      %p129 = por %p127, %p128
      %s131 = sadd.s32 %s130, 1
      %p134 = scmp.eq.s32.totalorder %s30, 1
      %p135 = scmp.ne.s32.totalorder %s130, %s132
      %p136 = scmp.eq.s32.totalorder %s30, 0
      %p137 = por %p135, %p136
      %p138 = scmp.ne.s32.totalorder %s130, %s132
      %p139 = scmp.eq.s32.totalorder %s35, 1
      %p140 = por %p138, %p139
      %p141 = scmp.ne.s32.totalorder %s132, %s133
      %p142 = scmp.eq.s32.totalorder %s35, 0
      %p143 = por %p141, %p142
      %p144 = scmp.ne.s32.totalorder %s132, %s133
      %p145 = scmp.eq.s32.totalorder %s36, 1
      %p146 = por %p144, %p145
      %p148 = scmp.ne.s32.totalorder %s133, %s147
      %p149 = scmp.eq.s32.totalorder %s36, 0
      %p150 = por %p148, %p149
      %s152 = sadd.s32 %s151, 1
      %p155 = scmp.eq.s32.totalorder %s30, 1
      %p156 = scmp.ne.s32.totalorder %s151, %s153
      %p157 = scmp.eq.s32.totalorder %s30, 0
      %p158 = por %p156, %p157
      %p159 = scmp.ne.s32.totalorder %s151, %s153
      %p160 = scmp.eq.s32.totalorder %s35, 1
      %p161 = por %p159, %p160
      %p162 = scmp.ne.s32.totalorder %s153, %s154
      %p163 = scmp.eq.s32.totalorder %s35, 0
      %p164 = por %p162, %p163
      %p165 = scmp.ne.s32.totalorder %s153, %s154
      %p166 = scmp.eq.s32.totalorder %s36, 1
      %p167 = por %p165, %p166
      %p169 = scmp.ne.s32.totalorder %s154, %s168
      %p170 = scmp.eq.s32.totalorder %s36, 0
      %p171 = por %p169, %p170
      %s173 = sadd.s32 %s172, 1
      %p176 = scmp.eq.s32.totalorder %s30, 1
      %p177 = scmp.ne.s32.totalorder %s172, %s174
      %p178 = scmp.eq.s32.totalorder %s30, 0
      %p179 = por %p177, %p178
      %p180 = scmp.ne.s32.totalorder %s172, %s174
      %p181 = scmp.eq.s32.totalorder %s35, 1
      %p182 = por %p180, %p181
      %p183 = scmp.ne.s32.totalorder %s174, %s175
      %p184 = scmp.eq.s32.totalorder %s35, 0
      %p185 = por %p183, %p184
      %p186 = scmp.ne.s32.totalorder %s174, %s175
      %p187 = scmp.eq.s32.totalorder %s36, 1
      %p188 = por %p186, %p187
      %p190 = scmp.ne.s32.totalorder %s175, %s189
      %p191 = scmp.eq.s32.totalorder %s36, 0
      %p192 = por %p190, %p191
      %s194 = sadd.s32 %s193, 1
      %p197 = scmp.eq.s32.totalorder %s30, 1
      %p198 = scmp.ne.s32.totalorder %s193, %s195
      %p199 = scmp.eq.s32.totalorder %s30, 0
      %p200 = por %p198, %p199
      %p201 = scmp.ne.s32.totalorder %s193, %s195
      %p202 = scmp.eq.s32.totalorder %s35, 1
      %p203 = por %p201, %p202
      %p204 = scmp.ne.s32.totalorder %s195, %s196
      %p205 = scmp.eq.s32.totalorder %s35, 0
      %p206 = por %p204, %p205
      %p207 = scmp.ne.s32.totalorder %s195, %s196
      %p208 = scmp.eq.s32.totalorder %s36, 1
      %p209 = por %p207, %p208
      %p211 = scmp.ne.s32.totalorder %s196, %s210
      %p212 = scmp.eq.s32.totalorder %s36, 0
      %p213 = por %p211, %p212
      %s215 = sadd.s32 %s214, 1
      %p218 = scmp.eq.s32.totalorder %s30, 1
      %p219 = scmp.ne.s32.totalorder %s214, %s216
      %p220 = scmp.eq.s32.totalorder %s30, 0
      %p221 = por %p219, %p220
      %p222 = scmp.ne.s32.totalorder %s214, %s216
      %p223 = scmp.eq.s32.totalorder %s35, 1
      %p224 = por %p222, %p223
      %p225 = scmp.ne.s32.totalorder %s216, %s217
      %p226 = scmp.eq.s32.totalorder %s35, 0
      %p227 = por %p225, %p226
      %p228 = scmp.ne.s32.totalorder %s216, %s217
      %p229 = scmp.eq.s32.totalorder %s36, 1
      %p230 = por %p228, %p229
      %p232 = scmp.ne.s32.totalorder %s217, %s231
      %p233 = scmp.eq.s32.totalorder %s36, 0
      %p234 = por %p232, %p233
      %s236 = sadd.s32 %s235, 1
      %p239 = scmp.eq.s32.totalorder %s30, 1
      %p240 = scmp.ne.s32.totalorder %s235, %s237
      %p241 = scmp.eq.s32.totalorder %s30, 0
      %p242 = por %p240, %p241
      %p243 = scmp.ne.s32.totalorder %s235, %s237
      %p244 = scmp.eq.s32.totalorder %s35, 1
      %p245 = por %p243, %p244
      %p246 = scmp.ne.s32.totalorder %s237, %s238
      %p247 = scmp.eq.s32.totalorder %s35, 0
      %p248 = por %p246, %p247
      %p249 = scmp.ne.s32.totalorder %s237, %s238
      %p250 = scmp.eq.s32.totalorder %s36, 1
      %p251 = por %p249, %p250
      %p253 = scmp.ne.s32.totalorder %s238, %s252
      %p254 = scmp.eq.s32.totalorder %s36, 0
      %p255 = por %p253, %p254
      %s257 = sadd.s32 %s256, 1
      %p260 = scmp.eq.s32.totalorder %s30, 1
      %p261 = scmp.ne.s32.totalorder %s256, %s258
      %p262 = scmp.eq.s32.totalorder %s30, 0
      %p263 = por %p261, %p262
      %p264 = scmp.ne.s32.totalorder %s256, %s258
      %p265 = scmp.eq.s32.totalorder %s35, 1
      %p266 = por %p264, %p265
      %p267 = scmp.ne.s32.totalorder %s258, %s259
      %p268 = scmp.eq.s32.totalorder %s35, 0
      %p269 = por %p267, %p268
      %p270 = scmp.ne.s32.totalorder %s258, %s259
      %p271 = scmp.eq.s32.totalorder %s36, 1
      %p272 = por %p270, %p271
      %p274 = scmp.ne.s32.totalorder %s259, %s273
      %p275 = scmp.eq.s32.totalorder %s36, 0
      %p276 = por %p274, %p275
      %s278 = sadd.s32 %s277, 1
      %p281 = scmp.eq.s32.totalorder %s30, 1
      %p282 = scmp.ne.s32.totalorder %s277, %s279
      %p283 = scmp.eq.s32.totalorder %s30, 0
      %p284 = por %p282, %p283
      %p285 = scmp.ne.s32.totalorder %s277, %s279
      %p286 = scmp.eq.s32.totalorder %s35, 1
      %p287 = por %p285, %p286
      %p288 = scmp.ne.s32.totalorder %s279, %s280
      %p289 = scmp.eq.s32.totalorder %s35, 0
      %p290 = por %p288, %p289
      %p291 = scmp.ne.s32.totalorder %s279, %s280
      %p292 = scmp.eq.s32.totalorder %s36, 1
      %p293 = por %p291, %p292
      %p295 = scmp.ne.s32.totalorder %s280, %s294
      %p296 = scmp.eq.s32.totalorder %s36, 0
      %p297 = por %p295, %p296
      %s298 = ssub.s32 %s37, %s49
      %s299 = ssub.s32 %s38, %s45
      %s300 = sor.u32 %s298, %s299
      %p301 = scmp.eq.s32.totalorder %s300, 0
      %s303 = sadd.s32 %s302, 1
      %s304 = scalar_select %p301, %s302, %s303
      %p307 = pneg %p301
      %p308 = scmp.eq.s32.totalorder %s30, 1
      %p309 = por %p307, %p308
      %p310 = scmp.ne.s32.totalorder %s302, %s305
      %p311 = scmp.eq.s32.totalorder %s30, 0
      %p312 = por %p310, %p311
      %p313 = scmp.ne.s32.totalorder %s302, %s305
      %p314 = scmp.eq.s32.totalorder %s35, 1
      %p315 = por %p313, %p314
      %p316 = scmp.ne.s32.totalorder %s305, %s306
      %p317 = scmp.eq.s32.totalorder %s35, 0
      %p318 = por %p316, %p317
      %p319 = scmp.ne.s32.totalorder %s305, %s306
      %p320 = scmp.eq.s32.totalorder %s36, 1
      %p321 = por %p319, %p320
      %p323 = scmp.ne.s32.totalorder %s306, %s322
      %p324 = scmp.eq.s32.totalorder %s36, 0
      %p325 = por %p323, %p324
      %p326 = scmp.le.s32.totalorder 1, %s30
      %p327 = scmp.lt.s32.totalorder %s30, 3
      %p328 = pnand %p326, %p327
      %p329 = pneg %p328
      // Predicated region
      $region9: #{decoder_layer_c_forward.4} parent=5 // pred_check
        _
      $region10: #{decoder_layer_c_forward.4} parent=5 // pred_check_branch
        %331 = sbr.rel (%p328) target = $region12
      $region11: #{decoder_layer_c_forward.4} parent=5 // pred_region
        %s332 = ssub.s32 %s30, 1
        // Predicated region
        $region13: #{decoder_layer_c_forward.4} parent=11 // pred_check
          %p333 = pneg %p122
        $region14: #{decoder_layer_c_forward.4} parent=11 // pred_check_branch
          %335 = sbr.rel (%p333) target = $region16
        $region15: #{decoder_layer_c_forward.4} parent=11 // pred_region
          %s336 = smul.u32 2, %s40
          %s338 = ssub.s32 128, 128
          %339 = vsyncadd [#allocation7], %s338
          %s340 = smul.addr %s336, 64
          %s341 = scalar_lea.hbm %s2, %s340
          %s342 = sshll.u32 [#allocation8], 4
          %s343 = int_to_ptr.vmem [resolvable:$true] %s342
          %348 = dma.hbm_to_vmem [thread:$0]  %s341, 128, %s343, [#allocation7], 64, 64, 4
        $region16: #{decoder_layer_c_forward.4} parent=11 // pred_fallthru
          _
        // Predicated region
        $region17: #{decoder_layer_c_forward.4} parent=11 // pred_check
          %p349 = pneg %p143
        $region18: #{decoder_layer_c_forward.4} parent=11 // pred_check_branch
          %351 = sbr.rel (%p349) target = $region20
        $region19: #{decoder_layer_c_forward.4} parent=11 // pred_region
          %s353 = ssub.s32 4096, 4096
          %354 = vsyncadd [#allocation10], %s353
          %s355 = sshll.u32 [#allocation9], 4
          %s356 = int_to_ptr.vmem [resolvable:$true] %s355
          %361 = dma.hbm_to_vmem [thread:$0]  %s3, 4096, %s356, [#allocation10], 128, 128, 8
        $region20: #{decoder_layer_c_forward.4} parent=11 // pred_fallthru
          _
        // Predicated region
        $region21: #{decoder_layer_c_forward.4} parent=11 // pred_check
          %p362 = pneg %p164
        $region22: #{decoder_layer_c_forward.4} parent=11 // pred_check_branch
          %364 = sbr.rel (%p362) target = $region24
        $region23: #{decoder_layer_c_forward.4} parent=11 // pred_region
          %s366 = ssub.s32 32, 32
          %367 = vsyncadd [#allocation10], %s366
          %s369 = sshll.u32 [#allocation11], 4
          %s370 = int_to_ptr.vmem [resolvable:$true] %s369
          %372 = dma.hbm_to_vmem [thread:$0]  %s4, 32, %s370, [#allocation10]
        $region24: #{decoder_layer_c_forward.4} parent=11 // pred_fallthru
          _
        // Predicated region
        $region25: #{decoder_layer_c_forward.4} parent=11 // pred_check
          %p373 = pneg %p185
        $region26: #{decoder_layer_c_forward.4} parent=11 // pred_check_branch
          %375 = sbr.rel (%p373) target = $region28
        $region27: #{decoder_layer_c_forward.4} parent=11 // pred_region
          %s377 = ssub.s32 8192, 8192
          %378 = vsyncadd [#allocation13], %s377
          %s379 = sshll.u32 [#allocation12], 4
          %s380 = int_to_ptr.vmem [resolvable:$true] %s379
          %385 = dma.hbm_to_vmem [thread:$0]  %s5, 8192, %s380, [#allocation13], 256, 256, 16
        $region28: #{decoder_layer_c_forward.4} parent=11 // pred_fallthru
          _
        // Predicated region
        $region29: #{decoder_layer_c_forward.4} parent=11 // pred_check
          %p386 = pneg %p206
        $region30: #{decoder_layer_c_forward.4} parent=11 // pred_check_branch
          %388 = sbr.rel (%p386) target = $region32
        $region31: #{decoder_layer_c_forward.4} parent=11 // pred_region
          %s390 = ssub.s32 64, 64
          %391 = vsyncadd [#allocation13], %s390
          %s393 = sshll.u32 [#allocation14], 4
          %s394 = int_to_ptr.vmem [resolvable:$true] %s393
          %396 = dma.hbm_to_vmem [thread:$0]  %s6, 64, %s394, [#allocation13]
        $region32: #{decoder_layer_c_forward.4} parent=11 // pred_fallthru
          _
        // Predicated region
        $region33: #{decoder_layer_c_forward.4} parent=11 // pred_check
          %p397 = pneg %p227
        $region34: #{decoder_layer_c_forward.4} parent=11 // pred_check_branch
          %399 = sbr.rel (%p397) target = $region36
        $region35: #{decoder_layer_c_forward.4} parent=11 // pred_region
          %s401 = ssub.s32 4096, 4096
          %402 = vsyncadd [#allocation16], %s401
          %s403 = sshll.u32 [#allocation15], 4
          %s404 = int_to_ptr.vmem [resolvable:$true] %s403
          %409 = dma.hbm_to_vmem [thread:$0]  %s7, 4096, %s404, [#allocation16], 128, 128, 8
        $region36: #{decoder_layer_c_forward.4} parent=11 // pred_fallthru
          _
        // Predicated region
        $region37: #{decoder_layer_c_forward.4} parent=11 // pred_check
          %p410 = pneg %p248
        $region38: #{decoder_layer_c_forward.4} parent=11 // pred_check_branch
          %412 = sbr.rel (%p410) target = $region40
        $region39: #{decoder_layer_c_forward.4} parent=11 // pred_region
          %s414 = ssub.s32 32, 32
          %415 = vsyncadd [#allocation16], %s414
          %s417 = sshll.u32 [#allocation17], 4
          %s418 = int_to_ptr.vmem [resolvable:$true] %s417
          %420 = dma.hbm_to_vmem [thread:$0]  %s8, 32, %s418, [#allocation16]
        $region40: #{decoder_layer_c_forward.4} parent=11 // pred_fallthru
          _
        // Predicated region
        $region41: #{decoder_layer_c_forward.4} parent=11 // pred_check
          %p421 = pneg %p269
        $region42: #{decoder_layer_c_forward.4} parent=11 // pred_check_branch
          %423 = sbr.rel (%p421) target = $region44
        $region43: #{decoder_layer_c_forward.4} parent=11 // pred_region
          %s425 = ssub.s32 32, 32
          %426 = vsyncadd [#allocation19], %s425
          %s428 = sshll.u32 [#allocation18], 4
          %s429 = int_to_ptr.vmem [resolvable:$true] %s428
          %431 = dma.hbm_to_vmem [thread:$0]  %s9, 32, %s429, [#allocation19]
        $region44: #{decoder_layer_c_forward.4} parent=11 // pred_fallthru
          _
        // Predicated region
        $region45: #{decoder_layer_c_forward.4} parent=11 // pred_check
          %p432 = pneg %p290
        $region46: #{decoder_layer_c_forward.4} parent=11 // pred_check_branch
          %434 = sbr.rel (%p432) target = $region48
        $region47: #{decoder_layer_c_forward.4} parent=11 // pred_region
          %s436 = ssub.s32 32, 32
          %437 = vsyncadd [#allocation19], %s436
          %s439 = sshll.u32 [#allocation20], 4
          %s440 = int_to_ptr.vmem [resolvable:$true] %s439
          %442 = dma.hbm_to_vmem [thread:$0]  %s10, 32, %s440, [#allocation19]
        $region48: #{decoder_layer_c_forward.4} parent=11 // pred_fallthru
          _
      $region12: #{decoder_layer_c_forward.4} parent=5 // pred_fallthru
        _
      %p443 = scmp.lt.s32.totalorder %s30, 2
      // Predicated region
      $region49: #{decoder_layer_c_forward.4} parent=5 // pred_check
        %p444 = pneg %p443
      $region50: #{decoder_layer_c_forward.4} parent=5 // pred_check_branch
        %446 = sbr.rel (%p444) target = $region52
      $region51: #{decoder_layer_c_forward.4} parent=5 // pred_region
        // Predicated region
        $region53: #{decoder_layer_c_forward.4} parent=51 // pred_check
          %p447 = pneg %p64
        $region54: #{decoder_layer_c_forward.4} parent=51 // pred_check_branch
          %449 = sbr.rel (%p447) target = $region56
        $region55: #{decoder_layer_c_forward.4} parent=51 // pred_region
          %s450 = sand.u32 %s54, 1
          %s451 = scalar_lea.sflag [#allocation4], %s450
          %s452 = sand.u32 %s54, 1
          %s453 = smul.addr %s452, 32
          %s454 = scalar_lea.vmem [#allocation3], %s453
          %s455 = smul.u32 2, %s38
          %s457 = ssub.s32 512, 512
          %458 = vsyncadd %s451, %s457
          %s459 = smul.addr %s455, 2
          %s460 = smul.addr %s37, 4
          %s461 = sadd.s32 %s459, %s460
          %s462 = smul.addr %s461, 128
          %s463 = scalar_lea.hbm %s0, %s462
          %s464 = sshll.u32 %s454, 4
          %s465 = int_to_ptr.vmem [resolvable:$true] %s464
          %470 = dma.hbm_to_vmem [thread:$0]  %s463, 512, %s465, %s451, 256, 256, 16
        $region56: #{decoder_layer_c_forward.4} parent=51 // pred_fallthru
          _
        // Predicated region
        $region57: #{decoder_layer_c_forward.4} parent=51 // pred_check
          %p471 = pneg %p90
        $region58: #{decoder_layer_c_forward.4} parent=51 // pred_check_branch
          %473 = sbr.rel (%p471) target = $region60
        $region59: #{decoder_layer_c_forward.4} parent=51 // pred_region
          %s474 = sand.u32 %s30, 1
          %s475 = scalar_lea.sflag [#allocation7], %s474
          %s476 = sand.u32 %s80, 1
          %s477 = smul.addr %s476, 32
          %s478 = scalar_lea.vmem [#allocation6], %s477
          %s480 = ssub.s32 512, 512
          %481 = vsyncadd %s475, %s480
          %s482 = smul.addr %s37, 4
          %s483 = smul.addr %s482, 128
          %s484 = scalar_lea.hbm %s1, %s483
          %s485 = sshll.u32 %s478, 4
          %s486 = int_to_ptr.vmem [resolvable:$true] %s485
          %491 = dma.hbm_to_vmem [thread:$0]  %s484, 512, %s486, %s475, 256, 256, 16
        $region60: #{decoder_layer_c_forward.4} parent=51 // pred_fallthru
          _
      $region52: #{decoder_layer_c_forward.4} parent=5 // pred_fallthru
        _
      %p492 = scmp.le.s32.totalorder 1, %s30
      %p493 = scmp.lt.s32.totalorder %s30, 3
      %p494 = pnand %p492, %p493
      %p495 = pneg %p494
      // Predicated region
      $region61: #{decoder_layer_c_forward.4} parent=5 // pred_check
        _
      $region62: #{decoder_layer_c_forward.4} parent=5 // pred_check_branch
        %497 = sbr.rel (%p494) target = $region64
      $region63: #{decoder_layer_c_forward.4} parent=5 // pred_region
        %s498 = ssub.s32 %s30, 1
        %s499 = sand.u32 %s57, 1
        %s500 = scalar_lea.sflag [#allocation4], %s499
        %s501 = sand.u32 %s57, 1
        %s502 = smul.addr %s501, 32
        %s503 = scalar_lea.vmem [#allocation3], %s502
        // Predicated region
        $region65: #{decoder_layer_c_forward.4} parent=63 // pred_check
          %p504 = pneg %p70
        $region66: #{decoder_layer_c_forward.4} parent=63 // pred_check_branch
          %506 = sbr.rel (%p504) target = $region68
        $region67: #{decoder_layer_c_forward.4} parent=63 // pred_region
          %507 = dma.done %s500, 512
        $region68: #{decoder_layer_c_forward.4} parent=63 // pred_fallthru
          _
        %s508 = sand.u32 %s35, 1
        %s509 = scalar_lea.sflag [#allocation7], %s508
        %s510 = sand.u32 %s83, 1
        %s511 = smul.addr %s510, 32
        %s512 = scalar_lea.vmem [#allocation6], %s511
        // Predicated region
        $region69: #{decoder_layer_c_forward.4} parent=63 // pred_check
          %p513 = pneg %p96
        $region70: #{decoder_layer_c_forward.4} parent=63 // pred_check_branch
          %515 = sbr.rel (%p513) target = $region72
        $region71: #{decoder_layer_c_forward.4} parent=63 // pred_region
          %516 = dma.done %s509, 512
        $region72: #{decoder_layer_c_forward.4} parent=63 // pred_fallthru
          _
        // Predicated region
        $region73: #{decoder_layer_c_forward.4} parent=63 // pred_check
          %p517 = pneg %p122
        $region74: #{decoder_layer_c_forward.4} parent=63 // pred_check_branch
          %519 = sbr.rel (%p517) target = $region76
        $region75: #{decoder_layer_c_forward.4} parent=63 // pred_region
          %520 = dma.done [#allocation7], 128
        $region76: #{decoder_layer_c_forward.4} parent=63 // pred_fallthru
          _
        // Predicated region
        $region77: #{decoder_layer_c_forward.4} parent=63 // pred_check
          %p521 = pneg %p143
        $region78: #{decoder_layer_c_forward.4} parent=63 // pred_check_branch
          %523 = sbr.rel (%p521) target = $region80
        $region79: #{decoder_layer_c_forward.4} parent=63 // pred_region
          %524 = dma.done [#allocation10], 4096
        $region80: #{decoder_layer_c_forward.4} parent=63 // pred_fallthru
          _
        // Predicated region
        $region81: #{decoder_layer_c_forward.4} parent=63 // pred_check
          %p525 = pneg %p164
        $region82: #{decoder_layer_c_forward.4} parent=63 // pred_check_branch
          %527 = sbr.rel (%p525) target = $region84
        $region83: #{decoder_layer_c_forward.4} parent=63 // pred_region
          %528 = dma.done [#allocation10], 32
        $region84: #{decoder_layer_c_forward.4} parent=63 // pred_fallthru
          _
        // Predicated region
        $region85: #{decoder_layer_c_forward.4} parent=63 // pred_check
          %p529 = pneg %p185
        $region86: #{decoder_layer_c_forward.4} parent=63 // pred_check_branch
          %531 = sbr.rel (%p529) target = $region88
        $region87: #{decoder_layer_c_forward.4} parent=63 // pred_region
          %532 = dma.done [#allocation13], 8192
        $region88: #{decoder_layer_c_forward.4} parent=63 // pred_fallthru
          _
        // Predicated region
        $region89: #{decoder_layer_c_forward.4} parent=63 // pred_check
          %p533 = pneg %p206
        $region90: #{decoder_layer_c_forward.4} parent=63 // pred_check_branch
          %535 = sbr.rel (%p533) target = $region92
        $region91: #{decoder_layer_c_forward.4} parent=63 // pred_region
          %536 = dma.done [#allocation13], 64
        $region92: #{decoder_layer_c_forward.4} parent=63 // pred_fallthru
          _
        // Predicated region
        $region93: #{decoder_layer_c_forward.4} parent=63 // pred_check
          %p537 = pneg %p227
        $region94: #{decoder_layer_c_forward.4} parent=63 // pred_check_branch
          %539 = sbr.rel (%p537) target = $region96
        $region95: #{decoder_layer_c_forward.4} parent=63 // pred_region
          %540 = dma.done [#allocation16], 4096
        $region96: #{decoder_layer_c_forward.4} parent=63 // pred_fallthru
          _
        // Predicated region
        $region97: #{decoder_layer_c_forward.4} parent=63 // pred_check
          %p541 = pneg %p248
        $region98: #{decoder_layer_c_forward.4} parent=63 // pred_check_branch
          %543 = sbr.rel (%p541) target = $region100
        $region99: #{decoder_layer_c_forward.4} parent=63 // pred_region
          %544 = dma.done [#allocation16], 32
        $region100: #{decoder_layer_c_forward.4} parent=63 // pred_fallthru
          _
        // Predicated region
        $region101: #{decoder_layer_c_forward.4} parent=63 // pred_check
          %p545 = pneg %p269
        $region102: #{decoder_layer_c_forward.4} parent=63 // pred_check_branch
          %547 = sbr.rel (%p545) target = $region104
        $region103: #{decoder_layer_c_forward.4} parent=63 // pred_region
          %548 = dma.done [#allocation19], 32
        $region104: #{decoder_layer_c_forward.4} parent=63 // pred_fallthru
          _
        // Predicated region
        $region105: #{decoder_layer_c_forward.4} parent=63 // pred_check
          %p549 = pneg %p290
        $region106: #{decoder_layer_c_forward.4} parent=63 // pred_check_branch
          %551 = sbr.rel (%p549) target = $region108
        $region107: #{decoder_layer_c_forward.4} parent=63 // pred_region
          %552 = dma.done [#allocation19], 32
        $region108: #{decoder_layer_c_forward.4} parent=63 // pred_fallthru
          _
        %s553 = sand.u32 %s57, 1
        %s554 = scalar_lea.sflag [#allocation4], %s553
        %s555 = sand.u32 %s57, 1
        %s556 = smul.addr %s555, 32
        %s557 = scalar_lea.vmem [#allocation3], %s556
        %p558 = pneg %p70
        %p559 = pneg %p67
        %s560 = sand.u32 %s35, 1
        %s561 = scalar_lea.sflag [#allocation7], %s560
        %s562 = sand.u32 %s83, 1
        %s563 = smul.addr %s562, 32
        %s564 = scalar_lea.vmem [#allocation6], %s563
        %p565 = pneg %p96
        %p566 = pneg %p93
        %p567 = pneg %p122
        %p568 = pneg %p119
        %p569 = pneg %p143
        %p570 = pneg %p140
        %p571 = pneg %p164
        %p572 = pneg %p161
        %p573 = pneg %p185
        %p574 = pneg %p182
        %p575 = pneg %p206
        %p576 = pneg %p203
        %p577 = pneg %p227
        %p578 = pneg %p224
        %p579 = pneg %p248
        %p580 = pneg %p245
        %p581 = pneg %p269
        %p582 = pneg %p266
        %p583 = pneg %p290
        %p584 = pneg %p287
        %p585 = pneg %p318
        %p586 = pneg %p315
        %s587 = sand.u32 %s305, 1
        %s588 = scalar_lea.sflag [#allocation5], %s587
        %s589 = sand.u32 %s305, 1
        %s590 = smul.addr %s589, 16
        %s591 = scalar_lea.vmem [#allocation21], %s590
        %s592 = smul.u32 2, %s40
        %s593 = smul.u32 2, %s40
        %s594 = smul.u32 2, %s40
        %p596 = scmp.eq.s32.totalorder %s40, 0
        // Predicated region
        $region109: #{decoder_layer_c_forward.4} parent=63 // pred_check
          %p597 = pneg %p596
        $region110: #{decoder_layer_c_forward.4} parent=63 // pred_check_branch
          %599 = sbr.rel (%p597) target = $region112
        $region111: #{decoder_layer_c_forward.4} parent=63 // pred_region
          %v600 = vld [vmem:[%s512] sm:$0xff]
          %v601 = vld [vmem:[%s512 + $0x8] sm:$0xff]
          %v602 = vld [vmem:[%s512 + $0x10] sm:$0xff]
          %v603 = vld [vmem:[%s512 + $0x18] sm:$0xff]
          %v604 = vpack.c.bf16 %v602, %v600
          %v605 = vpack.c.bf16 %v603, %v601
          %v606 = vld [vmem:[#allocation12] sm:$0xff]
          %v607 = vld [vmem:[#allocation12 + $0x8] sm:$0xff]
          %v608 = vld [vmem:[#allocation12 + $0x10] sm:$0xff]
          %v609 = vld [vmem:[#allocation12 + $0x18] sm:$0xff]
          %v610 = vld [vmem:[#allocation12 + $0x20] sm:$0xff]
          %v611 = vld [vmem:[#allocation12 + $0x28] sm:$0xff]
          %v612 = vld [vmem:[#allocation12 + $0x30] sm:$0xff]
          %v613 = vld [vmem:[#allocation12 + $0x38] sm:$0xff]
          %v614 = vld [vmem:[#allocation12 + $0x40] sm:$0xff]
          %v615 = vld [vmem:[#allocation12 + $0x48] sm:$0xff]
          %v616 = vld [vmem:[#allocation12 + $0x50] sm:$0xff]
          %v617 = vld [vmem:[#allocation12 + $0x58] sm:$0xff]
          %v618 = vld [vmem:[#allocation12 + $0x60] sm:$0xff]
          %v619 = vld [vmem:[#allocation12 + $0x68] sm:$0xff]
          %v620 = vld [vmem:[#allocation12 + $0x70] sm:$0xff]
          %v621 = vld [vmem:[#allocation12 + $0x78] sm:$0xff]
          %v622 = vld [vmem:[#allocation12 + $0x80] sm:$0xff]
          %v623 = vld [vmem:[#allocation12 + $0x88] sm:$0xff]
          %v624 = vld [vmem:[#allocation12 + $0x90] sm:$0xff]
          %v625 = vld [vmem:[#allocation12 + $0x98] sm:$0xff]
          %v626 = vld [vmem:[#allocation12 + $0xa0] sm:$0xff]
          %v627 = vld [vmem:[#allocation12 + $0xa8] sm:$0xff]
          %v628 = vld [vmem:[#allocation12 + $0xb0] sm:$0xff]
          %v629 = vld [vmem:[#allocation12 + $0xb8] sm:$0xff]
          %v630 = vld [vmem:[#allocation12 + $0xc0] sm:$0xff]
          %v631 = vld [vmem:[#allocation12 + $0xc8] sm:$0xff]
          %v632 = vld [vmem:[#allocation12 + $0xd0] sm:$0xff]
          %v633 = vld [vmem:[#allocation12 + $0xd8] sm:$0xff]
          %v634 = vld [vmem:[#allocation12 + $0xe0] sm:$0xff]
          %v635 = vld [vmem:[#allocation12 + $0xe8] sm:$0xff]
          %v636 = vld [vmem:[#allocation12 + $0xf0] sm:$0xff]
          %v637 = vld [vmem:[#allocation12 + $0xf8] sm:$0xff]
          %v638 = vld [vmem:[#allocation12 + $0x100] sm:$0xff]
          %v639 = vld [vmem:[#allocation12 + $0x108] sm:$0xff]
          %v640 = vld [vmem:[#allocation12 + $0x110] sm:$0xff]
          %v641 = vld [vmem:[#allocation12 + $0x118] sm:$0xff]
          %v642 = vld [vmem:[#allocation12 + $0x120] sm:$0xff]
          %v643 = vld [vmem:[#allocation12 + $0x128] sm:$0xff]
          %v644 = vld [vmem:[#allocation12 + $0x130] sm:$0xff]
          %v645 = vld [vmem:[#allocation12 + $0x138] sm:$0xff]
          %v646 = vld [vmem:[#allocation12 + $0x140] sm:$0xff]
          %v647 = vld [vmem:[#allocation12 + $0x148] sm:$0xff]
          %v648 = vld [vmem:[#allocation12 + $0x150] sm:$0xff]
          %v649 = vld [vmem:[#allocation12 + $0x158] sm:$0xff]
          %v650 = vld [vmem:[#allocation12 + $0x160] sm:$0xff]
          %v651 = vld [vmem:[#allocation12 + $0x168] sm:$0xff]
          %v652 = vld [vmem:[#allocation12 + $0x170] sm:$0xff]
          %v653 = vld [vmem:[#allocation12 + $0x178] sm:$0xff]
          %v654 = vld [vmem:[#allocation12 + $0x180] sm:$0xff]
          %v655 = vld [vmem:[#allocation12 + $0x188] sm:$0xff]
          %v656 = vld [vmem:[#allocation12 + $0x190] sm:$0xff]
          %v657 = vld [vmem:[#allocation12 + $0x198] sm:$0xff]
          %v658 = vld [vmem:[#allocation12 + $0x1a0] sm:$0xff]
          %v659 = vld [vmem:[#allocation12 + $0x1a8] sm:$0xff]
          %v660 = vld [vmem:[#allocation12 + $0x1b0] sm:$0xff]
          %v661 = vld [vmem:[#allocation12 + $0x1b8] sm:$0xff]
          %v662 = vld [vmem:[#allocation12 + $0x1c0] sm:$0xff]
          %v663 = vld [vmem:[#allocation12 + $0x1c8] sm:$0xff]
          %v664 = vld [vmem:[#allocation12 + $0x1d0] sm:$0xff]
          %v665 = vld [vmem:[#allocation12 + $0x1d8] sm:$0xff]
          %v666 = vld [vmem:[#allocation12 + $0x1e0] sm:$0xff]
          %v667 = vld [vmem:[#allocation12 + $0x1e8] sm:$0xff]
          %v668 = vld [vmem:[#allocation12 + $0x1f0] sm:$0xff]
          %v669 = vld [vmem:[#allocation12 + $0x1f8] sm:$0xff]
          %v670 = vld [vmem:[#allocation14] sm:$0xf]
          %v672 = vlaneseq
          %v673 = vshrl.u32 %v672, 7
          %v674 = vsub.s32 0, %v673
          %v675 = vrot.slane %v670, %v674
          %v676 = vlaneseq
          %v677 = vshrl.u32 %v676, 7
          %v678 = vsub.s32 1, %v677
          %v679 = vrot.slane %v670, %v678
          %v680 = vlaneseq
          %v681 = vshrl.u32 %v680, 7
          %v682 = vsub.s32 2, %v681
          %v683 = vrot.slane %v670, %v682
          %v684 = vlaneseq
          %v685 = vshrl.u32 %v684, 7
          %v686 = vsub.s32 3, %v685
          %v687 = vrot.slane %v670, %v686
          %v756 = vunpack.c.l.b16 %v606
          %v757 = vunpack.c.h.b16 %v606
          %v758 = vunpack.c.l.b16 %v607
          %v759 = vunpack.c.h.b16 %v607
          %v760 = vunpack.c.l.b16 %v608
          %v761 = vunpack.c.h.b16 %v608
          %v762 = vunpack.c.l.b16 %v609
          %v763 = vunpack.c.h.b16 %v609
          %v764 = vunpack.c.l.b16 %v610
          %v765 = vunpack.c.h.b16 %v610
          %v766 = vunpack.c.l.b16 %v611
          %v767 = vunpack.c.h.b16 %v611
          %v768 = vunpack.c.l.b16 %v612
          %v769 = vunpack.c.h.b16 %v612
          %v770 = vunpack.c.l.b16 %v613
          %v771 = vunpack.c.h.b16 %v613
          %v772 = vunpack.c.l.b16 %v614
          %v773 = vunpack.c.h.b16 %v614
          %v774 = vunpack.c.l.b16 %v615
          %v775 = vunpack.c.h.b16 %v615
          %v776 = vunpack.c.l.b16 %v616
          %v777 = vunpack.c.h.b16 %v616
          %v778 = vunpack.c.l.b16 %v617
          %v779 = vunpack.c.h.b16 %v617
          %v780 = vunpack.c.l.b16 %v618
          %v781 = vunpack.c.h.b16 %v618
          %v782 = vunpack.c.l.b16 %v619
          %v783 = vunpack.c.h.b16 %v619
          %v784 = vunpack.c.l.b16 %v620
          %v785 = vunpack.c.h.b16 %v620
          %v786 = vunpack.c.l.b16 %v621
          %v787 = vunpack.c.h.b16 %v621
          %v788 = vunpack.c.l.b16 %v622
          %v789 = vunpack.c.h.b16 %v622
          %v790 = vunpack.c.l.b16 %v623
          %v791 = vunpack.c.h.b16 %v623
          %v792 = vunpack.c.l.b16 %v624
          %v793 = vunpack.c.h.b16 %v624
          %v794 = vunpack.c.l.b16 %v625
          %v795 = vunpack.c.h.b16 %v625
          %v796 = vunpack.c.l.b16 %v626
          %v797 = vunpack.c.h.b16 %v626
          %v798 = vunpack.c.l.b16 %v627
          %v799 = vunpack.c.h.b16 %v627
          %v800 = vunpack.c.l.b16 %v628
          %v801 = vunpack.c.h.b16 %v628
          %v802 = vunpack.c.l.b16 %v629
          %v803 = vunpack.c.h.b16 %v629
          %v804 = vunpack.c.l.b16 %v630
          %v805 = vunpack.c.h.b16 %v630
          %v806 = vunpack.c.l.b16 %v631
          %v807 = vunpack.c.h.b16 %v631
          %v808 = vunpack.c.l.b16 %v632
          %v809 = vunpack.c.h.b16 %v632
          %v810 = vunpack.c.l.b16 %v633
          %v811 = vunpack.c.h.b16 %v633
          %v812 = vunpack.c.l.b16 %v634
          %v813 = vunpack.c.h.b16 %v634
          %v814 = vunpack.c.l.b16 %v635
          %v815 = vunpack.c.h.b16 %v635
          %v816 = vunpack.c.l.b16 %v636
          %v817 = vunpack.c.h.b16 %v636
          %v818 = vunpack.c.l.b16 %v637
          %v819 = vunpack.c.h.b16 %v637
          %v820 = vunpack.c.l.b16 %v638
          %v821 = vunpack.c.h.b16 %v638
          %v822 = vunpack.c.l.b16 %v639
          %v823 = vunpack.c.h.b16 %v639
          %v824 = vunpack.c.l.b16 %v640
          %v825 = vunpack.c.h.b16 %v640
          %v826 = vunpack.c.l.b16 %v641
          %v827 = vunpack.c.h.b16 %v641
          %v828 = vunpack.c.l.b16 %v642
          %v829 = vunpack.c.h.b16 %v642
          %v830 = vunpack.c.l.b16 %v643
          %v831 = vunpack.c.h.b16 %v643
          %v832 = vunpack.c.l.b16 %v644
          %v833 = vunpack.c.h.b16 %v644
          %v834 = vunpack.c.l.b16 %v645
          %v835 = vunpack.c.h.b16 %v645
          %v836 = vunpack.c.l.b16 %v646
          %v837 = vunpack.c.h.b16 %v646
          %v838 = vunpack.c.l.b16 %v647
          %v839 = vunpack.c.h.b16 %v647
          %v840 = vunpack.c.l.b16 %v648
          %v841 = vunpack.c.h.b16 %v648
          %v842 = vunpack.c.l.b16 %v649
          %v843 = vunpack.c.h.b16 %v649
          %v844 = vunpack.c.l.b16 %v650
          %v845 = vunpack.c.h.b16 %v650
          %v846 = vunpack.c.l.b16 %v651
          %v847 = vunpack.c.h.b16 %v651
          %v848 = vunpack.c.l.b16 %v652
          %v849 = vunpack.c.h.b16 %v652
          %v850 = vunpack.c.l.b16 %v653
          %v851 = vunpack.c.h.b16 %v653
          %v852 = vunpack.c.l.b16 %v654
          %v853 = vunpack.c.h.b16 %v654
          %v854 = vunpack.c.l.b16 %v655
          %v855 = vunpack.c.h.b16 %v655
          %v856 = vunpack.c.l.b16 %v656
          %v857 = vunpack.c.h.b16 %v656
          %v858 = vunpack.c.l.b16 %v657
          %v859 = vunpack.c.h.b16 %v657
          %v860 = vunpack.c.l.b16 %v658
          %v861 = vunpack.c.h.b16 %v658
          %v862 = vunpack.c.l.b16 %v659
          %v863 = vunpack.c.h.b16 %v659
          %v864 = vunpack.c.l.b16 %v660
          %v865 = vunpack.c.h.b16 %v660
          %v866 = vunpack.c.l.b16 %v661
          %v867 = vunpack.c.h.b16 %v661
          %v868 = vunpack.c.l.b16 %v662
          %v869 = vunpack.c.h.b16 %v662
          %v870 = vunpack.c.l.b16 %v663
          %v871 = vunpack.c.h.b16 %v663
          %v872 = vunpack.c.l.b16 %v664
          %v873 = vunpack.c.h.b16 %v664
          %v874 = vunpack.c.l.b16 %v665
          %v875 = vunpack.c.h.b16 %v665
          %v876 = vunpack.c.l.b16 %v666
          %v877 = vunpack.c.h.b16 %v666
          %v878 = vunpack.c.l.b16 %v667
          %v879 = vunpack.c.h.b16 %v667
          %v880 = vunpack.c.l.b16 %v668
          %v881 = vunpack.c.h.b16 %v668
          %v882 = vunpack.c.l.b16 %v669
          %v883 = vunpack.c.h.b16 %v669
          %v884 = vpack.c.b16 %v760, %v756
          %v885 = vpack.c.b16 %v761, %v757
          %v886 = vpack.c.b16 %v762, %v758
          %v887 = vpack.c.b16 %v763, %v759
          %v888 = vpack.c.b16 %v768, %v764
          %v889 = vpack.c.b16 %v769, %v765
          %v890 = vpack.c.b16 %v770, %v766
          %v891 = vpack.c.b16 %v771, %v767
          %v892 = vpack.c.b16 %v776, %v772
          %v893 = vpack.c.b16 %v777, %v773
          %v894 = vpack.c.b16 %v778, %v774
          %v895 = vpack.c.b16 %v779, %v775
          %v896 = vpack.c.b16 %v784, %v780
          %v897 = vpack.c.b16 %v785, %v781
          %v898 = vpack.c.b16 %v786, %v782
          %v899 = vpack.c.b16 %v787, %v783
          %v900 = vpack.c.b16 %v792, %v788
          %v901 = vpack.c.b16 %v793, %v789
          %v902 = vpack.c.b16 %v794, %v790
          %v903 = vpack.c.b16 %v795, %v791
          %v904 = vpack.c.b16 %v800, %v796
          %v905 = vpack.c.b16 %v801, %v797
          %v906 = vpack.c.b16 %v802, %v798
          %v907 = vpack.c.b16 %v803, %v799
          %v908 = vpack.c.b16 %v808, %v804
          %v909 = vpack.c.b16 %v809, %v805
          %v910 = vpack.c.b16 %v810, %v806
          %v911 = vpack.c.b16 %v811, %v807
          %v912 = vpack.c.b16 %v816, %v812
          %v913 = vpack.c.b16 %v817, %v813
          %v914 = vpack.c.b16 %v818, %v814
          %v915 = vpack.c.b16 %v819, %v815
          %v916 = vpack.c.b16 %v824, %v820
          %v917 = vpack.c.b16 %v825, %v821
          %v918 = vpack.c.b16 %v826, %v822
          %v919 = vpack.c.b16 %v827, %v823
          %v920 = vpack.c.b16 %v832, %v828
          %v921 = vpack.c.b16 %v833, %v829
          %v922 = vpack.c.b16 %v834, %v830
          %v923 = vpack.c.b16 %v835, %v831
          %v924 = vpack.c.b16 %v840, %v836
          %v925 = vpack.c.b16 %v841, %v837
          %v926 = vpack.c.b16 %v842, %v838
          %v927 = vpack.c.b16 %v843, %v839
          %v928 = vpack.c.b16 %v848, %v844
          %v929 = vpack.c.b16 %v849, %v845
          %v930 = vpack.c.b16 %v850, %v846
          %v931 = vpack.c.b16 %v851, %v847
          %v932 = vpack.c.b16 %v856, %v852
          %v933 = vpack.c.b16 %v857, %v853
          %v934 = vpack.c.b16 %v858, %v854
          %v935 = vpack.c.b16 %v859, %v855
          %v936 = vpack.c.b16 %v864, %v860
          %v937 = vpack.c.b16 %v865, %v861
          %v938 = vpack.c.b16 %v866, %v862
          %v939 = vpack.c.b16 %v867, %v863
          %v940 = vpack.c.b16 %v872, %v868
          %v941 = vpack.c.b16 %v873, %v869
          %v942 = vpack.c.b16 %v874, %v870
          %v943 = vpack.c.b16 %v875, %v871
          %v944 = vpack.c.b16 %v880, %v876
          %v945 = vpack.c.b16 %v881, %v877
          %v946 = vpack.c.b16 %v882, %v878
          %v947 = vpack.c.b16 %v883, %v879
          %1012 = vmatprep.subr.bf16.mxu0 %v885
          %1013 = vmatpush1.bf16.msra.mxu0 %v884
          %1014 = vmatprep.subr.bf16.mxu0 %v889
          %1015 = vmatpush1.bf16.msra.mxu0 %v888
          %1016 = vmatprep.subr.bf16.mxu0 %v893
          %1017 = vmatpush1.bf16.msra.mxu0 %v892
          %1018 = vmatprep.subr.bf16.mxu0 %v897
          %1019 = vmatpush1.bf16.msra.mxu0 %v896
          %1020 = vmatprep.subr.bf16.mxu0 %v901
          %1021 = vmatpush1.bf16.msra.mxu0 %v900
          %1022 = vmatprep.subr.bf16.mxu0 %v905
          %1023 = vmatpush1.bf16.msra.mxu0 %v904
          %1024 = vmatprep.subr.bf16.mxu0 %v909
          %1025 = vmatpush1.bf16.msra.mxu0 %v908
          %1026 = vmatprep.subr.bf16.mxu0 %v913
          %1027 = vmatpush1.bf16.msra.mxu0 %v912
          %1028 = vmatprep.subr.bf16.mxu0 %v917
          %1029 = vmatpush1.bf16.msra.mxu0 %v916
          %1030 = vmatprep.subr.bf16.mxu0 %v921
          %1031 = vmatpush1.bf16.msra.mxu0 %v920
          %1032 = vmatprep.subr.bf16.mxu0 %v925
          %1033 = vmatpush1.bf16.msra.mxu0 %v924
          %1034 = vmatprep.subr.bf16.mxu0 %v929
          %1035 = vmatpush1.bf16.msra.mxu0 %v928
          %1036 = vmatprep.subr.bf16.mxu0 %v933
          %1037 = vmatpush1.bf16.msra.mxu0 %v932
          %1038 = vmatprep.subr.bf16.mxu0 %v937
          %1039 = vmatpush1.bf16.msra.mxu0 %v936
          %1040 = vmatprep.subr.bf16.mxu0 %v941
          %1041 = vmatpush1.bf16.msra.mxu0 %v940
          %1042 = vmatprep.subr.bf16.mxu0 %v945
          %1043 = vmatpush1.bf16.msra.mxu0 %v944
          %1044 = vmatprep.mubr.bf16.mxu0 %v605
          %1045 = vmatmul.mubr.bf16.gmra.mrb[0].mxu0 %v604
          %v1046 = vpop.f32.mrb[0].mxu0
          %v1047 = vadd.f32 %v675, %v1046
          %v1048 = vpop.f32.mrb[0].mxu0
          %v1049 = vadd.f32 %v679, %v1048
          %v1050 = vpop.f32.mrb[0].mxu0
          %v1051 = vadd.f32 %v675, %v1050
          %v1052 = vpop.f32.mrb[0].mxu0
          %v1053 = vadd.f32 %v679, %v1052
          %1054 = vdwg.mxu0
          %1055 = vmatprep.subr.bf16.mxu0 %v887
          %1056 = vmatpush1.bf16.msra.mxu0 %v886
          %1057 = vmatprep.subr.bf16.mxu0 %v891
          %1058 = vmatpush1.bf16.msra.mxu0 %v890
          %1059 = vmatprep.subr.bf16.mxu0 %v895
          %1060 = vmatpush1.bf16.msra.mxu0 %v894
          %1061 = vmatprep.subr.bf16.mxu0 %v899
          %1062 = vmatpush1.bf16.msra.mxu0 %v898
          %1063 = vmatprep.subr.bf16.mxu0 %v903
          %1064 = vmatpush1.bf16.msra.mxu0 %v902
          %1065 = vmatprep.subr.bf16.mxu0 %v907
          %1066 = vmatpush1.bf16.msra.mxu0 %v906
          %1067 = vmatprep.subr.bf16.mxu0 %v911
          %1068 = vmatpush1.bf16.msra.mxu0 %v910
          %1069 = vmatprep.subr.bf16.mxu0 %v915
          %1070 = vmatpush1.bf16.msra.mxu0 %v914
          %1071 = vmatprep.subr.bf16.mxu0 %v919
          %1072 = vmatpush1.bf16.msra.mxu0 %v918
          %1073 = vmatprep.subr.bf16.mxu0 %v923
          %1074 = vmatpush1.bf16.msra.mxu0 %v922
          %1075 = vmatprep.subr.bf16.mxu0 %v927
          %1076 = vmatpush1.bf16.msra.mxu0 %v926
          %1077 = vmatprep.subr.bf16.mxu0 %v931
          %1078 = vmatpush1.bf16.msra.mxu0 %v930
          %1079 = vmatprep.subr.bf16.mxu0 %v935
          %1080 = vmatpush1.bf16.msra.mxu0 %v934
          %1081 = vmatprep.subr.bf16.mxu0 %v939
          %1082 = vmatpush1.bf16.msra.mxu0 %v938
          %1083 = vmatprep.subr.bf16.mxu0 %v943
          %1084 = vmatpush1.bf16.msra.mxu0 %v942
          %1085 = vmatprep.subr.bf16.mxu0 %v947
          %1086 = vmatpush1.bf16.msra.mxu0 %v946
          %1087 = vmatprep.mubr.bf16.mxu0 %v605
          %1088 = vmatmul.mubr.bf16.gmra.mrb[0].mxu0 %v604
          %v1089 = vpop.f32.mrb[0].mxu0
          %v1090 = vadd.f32 %v683, %v1089
          %v1091 = vpop.f32.mrb[0].mxu0
          %v1092 = vadd.f32 %v687, %v1091
          %v1093 = vpop.f32.mrb[0].mxu0
          %v1094 = vadd.f32 %v683, %v1093
          %v1095 = vpop.f32.mrb[0].mxu0
          %v1096 = vadd.f32 %v687, %v1095
          %1097 = vdwg.mxu0
          %v1098 = vpack.c.bf16 %v1051, %v1047
          %v1099 = vpack.c.bf16 %v1053, %v1049
          %v1100 = vpack.c.bf16 %v1094, %v1090
          %v1101 = vpack.c.bf16 %v1096, %v1092
          %1102 = vst [vmem:[#allocation2] sm:$0xff] %v1098
          %1103 = vst [vmem:[#allocation2 + $0x8] sm:$0xff] %v1099
          %1104 = vst [vmem:[#allocation2 + $0x10] sm:$0xff] %v1100
          %1105 = vst [vmem:[#allocation2 + $0x18] sm:$0xff] %v1101
        $region112: #{decoder_layer_c_forward.4} parent=63 // pred_fallthru
          _
        %v1106 = vld [vmem:[%s503] sm:$0xff]
        %v1107 = vld [vmem:[%s503 + $0x8] sm:$0xff]
        %v1108 = vld [vmem:[%s503 + $0x10] sm:$0xff]
        %v1109 = vld [vmem:[%s503 + $0x18] sm:$0xff]
        %v1110 = vpack.c.bf16 %v1108, %v1106
        %v1111 = vpack.c.bf16 %v1109, %v1107
        %v1112 = vld [vmem:[#allocation9] sm:$0xff]
        %v1113 = vld [vmem:[#allocation9 + $0x8] sm:$0xff]
        %v1114 = vld [vmem:[#allocation9 + $0x10] sm:$0xff]
        %v1115 = vld [vmem:[#allocation9 + $0x18] sm:$0xff]
        %v1116 = vld [vmem:[#allocation9 + $0x20] sm:$0xff]
        %v1117 = vld [vmem:[#allocation9 + $0x28] sm:$0xff]
        %v1118 = vld [vmem:[#allocation9 + $0x30] sm:$0xff]
        %v1119 = vld [vmem:[#allocation9 + $0x38] sm:$0xff]
        %v1120 = vld [vmem:[#allocation9 + $0x40] sm:$0xff]
        %v1121 = vld [vmem:[#allocation9 + $0x48] sm:$0xff]
        %v1122 = vld [vmem:[#allocation9 + $0x50] sm:$0xff]
        %v1123 = vld [vmem:[#allocation9 + $0x58] sm:$0xff]
        %v1124 = vld [vmem:[#allocation9 + $0x60] sm:$0xff]
        %v1125 = vld [vmem:[#allocation9 + $0x68] sm:$0xff]
        %v1126 = vld [vmem:[#allocation9 + $0x70] sm:$0xff]
        %v1127 = vld [vmem:[#allocation9 + $0x78] sm:$0xff]
        %v1128 = vld [vmem:[#allocation9 + $0x80] sm:$0xff]
        %v1129 = vld [vmem:[#allocation9 + $0x88] sm:$0xff]
        %v1130 = vld [vmem:[#allocation9 + $0x90] sm:$0xff]
        %v1131 = vld [vmem:[#allocation9 + $0x98] sm:$0xff]
        %v1132 = vld [vmem:[#allocation9 + $0xa0] sm:$0xff]
        %v1133 = vld [vmem:[#allocation9 + $0xa8] sm:$0xff]
        %v1134 = vld [vmem:[#allocation9 + $0xb0] sm:$0xff]
        %v1135 = vld [vmem:[#allocation9 + $0xb8] sm:$0xff]
        %v1136 = vld [vmem:[#allocation9 + $0xc0] sm:$0xff]
        %v1137 = vld [vmem:[#allocation9 + $0xc8] sm:$0xff]
        %v1138 = vld [vmem:[#allocation9 + $0xd0] sm:$0xff]
        %v1139 = vld [vmem:[#allocation9 + $0xd8] sm:$0xff]
        %v1140 = vld [vmem:[#allocation9 + $0xe0] sm:$0xff]
        %v1141 = vld [vmem:[#allocation9 + $0xe8] sm:$0xff]
        %v1142 = vld [vmem:[#allocation9 + $0xf0] sm:$0xff]
        %v1143 = vld [vmem:[#allocation9 + $0xf8] sm:$0xff]
        %v1144 = vld [vmem:[#allocation11] sm:$0x3]
        %v1146 = vlaneseq
        %v1147 = vshrl.u32 %v1146, 7
        %v1148 = vsub.s32 0, %v1147
        %v1149 = vrot.slane %v1144, %v1148
        %v1150 = vlaneseq
        %v1151 = vshrl.u32 %v1150, 7
        %v1152 = vsub.s32 1, %v1151
        %v1153 = vrot.slane %v1144, %v1152
        %v1188 = vunpack.c.l.b16 %v1112
        %v1189 = vunpack.c.h.b16 %v1112
        %v1190 = vunpack.c.l.b16 %v1113
        %v1191 = vunpack.c.h.b16 %v1113
        %v1192 = vunpack.c.l.b16 %v1114
        %v1193 = vunpack.c.h.b16 %v1114
        %v1194 = vunpack.c.l.b16 %v1115
        %v1195 = vunpack.c.h.b16 %v1115
        %v1196 = vunpack.c.l.b16 %v1116
        %v1197 = vunpack.c.h.b16 %v1116
        %v1198 = vunpack.c.l.b16 %v1117
        %v1199 = vunpack.c.h.b16 %v1117
        %v1200 = vunpack.c.l.b16 %v1118
        %v1201 = vunpack.c.h.b16 %v1118
        %v1202 = vunpack.c.l.b16 %v1119
        %v1203 = vunpack.c.h.b16 %v1119
        %v1204 = vunpack.c.l.b16 %v1120
        %v1205 = vunpack.c.h.b16 %v1120
        %v1206 = vunpack.c.l.b16 %v1121
        %v1207 = vunpack.c.h.b16 %v1121
        %v1208 = vunpack.c.l.b16 %v1122
        %v1209 = vunpack.c.h.b16 %v1122
        %v1210 = vunpack.c.l.b16 %v1123
        %v1211 = vunpack.c.h.b16 %v1123
        %v1212 = vunpack.c.l.b16 %v1124
        %v1213 = vunpack.c.h.b16 %v1124
        %v1214 = vunpack.c.l.b16 %v1125
        %v1215 = vunpack.c.h.b16 %v1125
        %v1216 = vunpack.c.l.b16 %v1126
        %v1217 = vunpack.c.h.b16 %v1126
        %v1218 = vunpack.c.l.b16 %v1127
        %v1219 = vunpack.c.h.b16 %v1127
        %v1220 = vunpack.c.l.b16 %v1128
        %v1221 = vunpack.c.h.b16 %v1128
        %v1222 = vunpack.c.l.b16 %v1129
        %v1223 = vunpack.c.h.b16 %v1129
        %v1224 = vunpack.c.l.b16 %v1130
        %v1225 = vunpack.c.h.b16 %v1130
        %v1226 = vunpack.c.l.b16 %v1131
        %v1227 = vunpack.c.h.b16 %v1131
        %v1228 = vunpack.c.l.b16 %v1132
        %v1229 = vunpack.c.h.b16 %v1132
        %v1230 = vunpack.c.l.b16 %v1133
        %v1231 = vunpack.c.h.b16 %v1133
        %v1232 = vunpack.c.l.b16 %v1134
        %v1233 = vunpack.c.h.b16 %v1134
        %v1234 = vunpack.c.l.b16 %v1135
        %v1235 = vunpack.c.h.b16 %v1135
        %v1236 = vunpack.c.l.b16 %v1136
        %v1237 = vunpack.c.h.b16 %v1136
        %v1238 = vunpack.c.l.b16 %v1137
        %v1239 = vunpack.c.h.b16 %v1137
        %v1240 = vunpack.c.l.b16 %v1138
        %v1241 = vunpack.c.h.b16 %v1138
        %v1242 = vunpack.c.l.b16 %v1139
        %v1243 = vunpack.c.h.b16 %v1139
        %v1244 = vunpack.c.l.b16 %v1140
        %v1245 = vunpack.c.h.b16 %v1140
        %v1246 = vunpack.c.l.b16 %v1141
        %v1247 = vunpack.c.h.b16 %v1141
        %v1248 = vunpack.c.l.b16 %v1142
        %v1249 = vunpack.c.h.b16 %v1142
        %v1250 = vunpack.c.l.b16 %v1143
        %v1251 = vunpack.c.h.b16 %v1143
        %v1252 = vpack.c.b16 %v1190, %v1188
        %v1253 = vpack.c.b16 %v1191, %v1189
        %v1254 = vpack.c.b16 %v1194, %v1192
        %v1255 = vpack.c.b16 %v1195, %v1193
        %v1256 = vpack.c.b16 %v1198, %v1196
        %v1257 = vpack.c.b16 %v1199, %v1197
        %v1258 = vpack.c.b16 %v1202, %v1200
        %v1259 = vpack.c.b16 %v1203, %v1201
        %v1260 = vpack.c.b16 %v1206, %v1204
        %v1261 = vpack.c.b16 %v1207, %v1205
        %v1262 = vpack.c.b16 %v1210, %v1208
        %v1263 = vpack.c.b16 %v1211, %v1209
        %v1264 = vpack.c.b16 %v1214, %v1212
        %v1265 = vpack.c.b16 %v1215, %v1213
        %v1266 = vpack.c.b16 %v1218, %v1216
        %v1267 = vpack.c.b16 %v1219, %v1217
        %v1268 = vpack.c.b16 %v1222, %v1220
        %v1269 = vpack.c.b16 %v1223, %v1221
        %v1270 = vpack.c.b16 %v1226, %v1224
        %v1271 = vpack.c.b16 %v1227, %v1225
        %v1272 = vpack.c.b16 %v1230, %v1228
        %v1273 = vpack.c.b16 %v1231, %v1229
        %v1274 = vpack.c.b16 %v1234, %v1232
        %v1275 = vpack.c.b16 %v1235, %v1233
        %v1276 = vpack.c.b16 %v1238, %v1236
        %v1277 = vpack.c.b16 %v1239, %v1237
        %v1278 = vpack.c.b16 %v1242, %v1240
        %v1279 = vpack.c.b16 %v1243, %v1241
        %v1280 = vpack.c.b16 %v1246, %v1244
        %v1281 = vpack.c.b16 %v1247, %v1245
        %v1282 = vpack.c.b16 %v1250, %v1248
        %v1283 = vpack.c.b16 %v1251, %v1249
        %1316 = vmatprep.subr.bf16.mxu0 %v1253
        %1317 = vmatpush1.bf16.msra.mxu0 %v1252
        %1318 = vmatprep.subr.bf16.mxu0 %v1255
        %1319 = vmatpush1.bf16.msra.mxu0 %v1254
        %1320 = vmatprep.subr.bf16.mxu0 %v1257
        %1321 = vmatpush1.bf16.msra.mxu0 %v1256
        %1322 = vmatprep.subr.bf16.mxu0 %v1259
        %1323 = vmatpush1.bf16.msra.mxu0 %v1258
        %1324 = vmatprep.subr.bf16.mxu0 %v1261
        %1325 = vmatpush1.bf16.msra.mxu0 %v1260
        %1326 = vmatprep.subr.bf16.mxu0 %v1263
        %1327 = vmatpush1.bf16.msra.mxu0 %v1262
        %1328 = vmatprep.subr.bf16.mxu0 %v1265
        %1329 = vmatpush1.bf16.msra.mxu0 %v1264
        %1330 = vmatprep.subr.bf16.mxu0 %v1267
        %1331 = vmatpush1.bf16.msra.mxu0 %v1266
        %1332 = vmatprep.subr.bf16.mxu0 %v1269
        %1333 = vmatpush1.bf16.msra.mxu0 %v1268
        %1334 = vmatprep.subr.bf16.mxu0 %v1271
        %1335 = vmatpush1.bf16.msra.mxu0 %v1270
        %1336 = vmatprep.subr.bf16.mxu0 %v1273
        %1337 = vmatpush1.bf16.msra.mxu0 %v1272
        %1338 = vmatprep.subr.bf16.mxu0 %v1275
        %1339 = vmatpush1.bf16.msra.mxu0 %v1274
        %1340 = vmatprep.subr.bf16.mxu0 %v1277
        %1341 = vmatpush1.bf16.msra.mxu0 %v1276
        %1342 = vmatprep.subr.bf16.mxu0 %v1279
        %1343 = vmatpush1.bf16.msra.mxu0 %v1278
        %1344 = vmatprep.subr.bf16.mxu0 %v1281
        %1345 = vmatpush1.bf16.msra.mxu0 %v1280
        %1346 = vmatprep.subr.bf16.mxu0 %v1283
        %1347 = vmatpush1.bf16.msra.mxu0 %v1282
        %1348 = vmatprep.mubr.bf16.mxu0 %v1111
        %1349 = vmatmul.mubr.bf16.gmra.mrb[0].mxu0 %v1110
        %v1350 = vpop.f32.mrb[0].mxu0
        %v1351 = vadd.f32 %v1149, %v1350
        %v1352 = vpop.f32.mrb[0].mxu0
        %v1353 = vadd.f32 %v1153, %v1352
        %v1354 = vpop.f32.mrb[0].mxu0
        %v1355 = vadd.f32 %v1149, %v1354
        %v1356 = vpop.f32.mrb[0].mxu0
        %v1357 = vadd.f32 %v1153, %v1356
        %1358 = vdwg.mxu0
        %v1359 = vmul.f32 %v1351, 0.088388346
        %v1360 = vmul.f32 %v1353, 0.088388346
        %v1361 = vmul.f32 %v1355, 0.088388346
        %v1362 = vmul.f32 %v1357, 0.088388346
        %v1363 = vld [vmem:[#allocation8] sm:$0xf]
        %v1364 = vld [vmem:[#allocation8 + $0x4] sm:$0xf]
        %v1365 = vunpack.c.l.bf16 %v1363
        %v1366 = vunpack.c.l.bf16 %v1364
        %s1367 = smul.u32 %s40, 16
        %v1368 = vlaneseq
        %v1369 = vshrl.u32 %v1368, 7
        %v1370 = vadd.s32 %v1369, 8
        %v1371 = vstv %s1367
        %v1372 = vadd.s32 %v1371, %v1369
        %v1373 = vadd.s32 %v1371, %v1370
        %v1374 = vlaneseq
        %v1375 = vand.u32 %v1374, 127
        %vm1376 = vcmp.gt.s32.totalorder %v1375, %v1372
        %vm1377 = vcmp.gt.s32.totalorder %v1375, %v1373
        %v1378 = vsel %vm1376, -1e+09, 0.0
        %v1379 = vsel %vm1377, -1e+09, 0.0
        %v1380 = vadd.f32 %v1365, %v1378
        %v1381 = vadd.f32 %v1366, %v1379
        %v1382 = vpack.c.bf16 %v1361, %v1359
        %v1383 = vld [vmem:[#allocation2] sm:$0xff]
        %v1384 = vld [vmem:[#allocation2 + $0x10] sm:$0xff]
        %1385 = vmatprep.subr.bf16.mxu0 0
        %1386 = vmatpush1.bf16.xpose.msra.mxu0 %v1383
        %1387 = vmatprep.subr.bf16.mxu0 0
        %1388 = vmatpush1.bf16.xpose.msra.mxu0 0
        %1389 = vmatprep.subr.bf16.mxu0 0
        %1390 = vmatpush1.bf16.xpose.msra.mxu0 0
        %1391 = vmatprep.subr.bf16.mxu0 0
        %1392 = vmatpush1.bf16.xpose.msra.mxu0 0
        %1393 = vmatprep.subr.bf16.mxu0 0
        %1394 = vmatpush1.bf16.xpose.msra.mxu0 0
        %1395 = vmatprep.subr.bf16.mxu0 0
        %1396 = vmatpush1.bf16.xpose.msra.mxu0 0
        %1397 = vmatprep.subr.bf16.mxu0 0
        %1398 = vmatpush1.bf16.xpose.msra.mxu0 0
        %1399 = vmatprep.subr.bf16.mxu0 0
        %1400 = vmatpush1.bf16.xpose.msra.mxu0 0
        %1401 = vmatprep.subr.bf16.mxu0 0
        %1402 = vmatpush1.bf16.xpose.msra.mxu0 0
        %1403 = vmatprep.subr.bf16.mxu0 0
        %1404 = vmatpush1.bf16.xpose.msra.mxu0 0
        %1405 = vmatprep.subr.bf16.mxu0 0
        %1406 = vmatpush1.bf16.xpose.msra.mxu0 0
        %1407 = vmatprep.subr.bf16.mxu0 0
        %1408 = vmatpush1.bf16.xpose.msra.mxu0 0
        %1409 = vmatprep.subr.bf16.mxu0 0
        %1410 = vmatpush1.bf16.xpose.msra.mxu0 0
        %1411 = vmatprep.subr.bf16.mxu0 0
        %1412 = vmatpush1.bf16.xpose.msra.mxu0 0
        %1413 = vmatprep.subr.bf16.mxu0 0
        %1414 = vmatpush1.bf16.xpose.msra.mxu0 0
        %1415 = vmatprep.subr.bf16.mxu0 0
        %1416 = vmatpush1.bf16.xpose.msra.mxu0 0
        %1417 = vmatprep.mubr.bf16.mxu0 0
        %1418 = vmatmul.mubr.bf16.gmra.mrb[0].mxu0 %v1382
        %v1419 = vpop.f32.mrb[0].mxu0
        %v1420 = vadd.f32 %v1380, %v1419
        %v1421 = vpop.f32.mrb[0].mxu0
        %v1422 = vpop.f32.mrb[0].mxu0
        %v1423 = vadd.f32 %v1381, %v1422
        %v1424 = vpop.f32.mrb[0].mxu0
        %1425 = vdwg.mxu0
        %vm1426 = vcmask 130048
        %v1427 = vsel %vm1426, %v1420, -inf
        %1428 = vmax.xlane.f32.xlu0 %v1427
        %v1429 = vpop.xlane.xlu0 %1428
        %v1430 = vsel %vm1426, %v1423, -inf
        %1431 = vmax.xlane.f32.xlu0 %v1430
        %v1432 = vpop.xlane.xlu0 %1431
        %v1433 = vsub.f32 %v1420, %v1429
        %v1434 = vsub.f32 %v1423, %v1432
        %v1435 = vmul.f32 %v1433, 1.442695
        %v1436 = vpow.pop %v1435
        %v1437 = vmul.f32 %v1434, 1.442695
        %v1438 = vpow.pop %v1437
        %v1439 = vsel %vm1426, %v1436, 0.0
        %1440 = vadd.xlane.f32.xlu0 %v1439
        %v1441 = vpop.xlane.xlu0 %1440
        %v1442 = vsel %vm1426, %v1438, 0.0
        %1443 = vadd.xlane.f32.xlu0 %v1442
        %v1444 = vpop.xlane.xlu0 %1443
        %v1445 = vrcp.pop %v1441
        %v1446 = vrcp.pop %v1444
        %v1447 = vmul.f32 %v1436, %v1445
        %v1448 = vmul.f32 %v1438, %v1446
        %v1449 = vpack.c.bf16 %v1448, %v1447
        %v1451 = vsel %vm1426, %v1449, 0
        %1453 = vmatprep.subr.bf16.mxu0 0
        %1454 = vmatpush1.bf16.msra.mxu0 %v1384
        %1455 = vmatprep.subr.bf16.mxu0 0
        %1456 = vmatpush1.bf16.msra.mxu0 0
        %1457 = vmatprep.subr.bf16.mxu0 0
        %1458 = vmatpush1.bf16.msra.mxu0 0
        %1459 = vmatprep.subr.bf16.mxu0 0
        %1460 = vmatpush1.bf16.msra.mxu0 0
        %1461 = vmatprep.subr.bf16.mxu0 0
        %1462 = vmatpush1.bf16.msra.mxu0 0
        %1463 = vmatprep.subr.bf16.mxu0 0
        %1464 = vmatpush1.bf16.msra.mxu0 0
        %1465 = vmatprep.subr.bf16.mxu0 0
        %1466 = vmatpush1.bf16.msra.mxu0 0
        %1467 = vmatprep.subr.bf16.mxu0 0
        %1468 = vmatpush1.bf16.msra.mxu0 0
        %1469 = vmatprep.subr.bf16.mxu0 0
        %1470 = vmatpush1.bf16.msra.mxu0 0
        %1471 = vmatprep.subr.bf16.mxu0 0
        %1472 = vmatpush1.bf16.msra.mxu0 0
        %1473 = vmatprep.subr.bf16.mxu0 0
        %1474 = vmatpush1.bf16.msra.mxu0 0
        %1475 = vmatprep.subr.bf16.mxu0 0
        %1476 = vmatpush1.bf16.msra.mxu0 0
        %1477 = vmatprep.subr.bf16.mxu0 0
        %1478 = vmatpush1.bf16.msra.mxu0 0
        %1479 = vmatprep.subr.bf16.mxu0 0
        %1480 = vmatpush1.bf16.msra.mxu0 0
        %1481 = vmatprep.subr.bf16.mxu0 0
        %1482 = vmatpush1.bf16.msra.mxu0 0
        %1483 = vmatprep.subr.bf16.mxu0 0
        %1484 = vmatpush1.bf16.msra.mxu0 0
        %1485 = vmatprep.mubr.bf16.mxu0 0
        %1486 = vmatmul.mubr.bf16.gmra.mrb[0].mxu0 %v1451
        %v1487 = vpop.f32.mrb[0].mxu0
        %v1488 = vadd.f32 0.0, %v1487
        %v1489 = vpop.f32.mrb[0].mxu0
        %v1490 = vpop.f32.mrb[0].mxu0
        %v1491 = vadd.f32 0.0, %v1490
        %v1492 = vpop.f32.mrb[0].mxu0
        %1493 = vdwg.mxu0
        %v1494 = vpack.c.bf16 %v1362, %v1360
        %v1495 = vld [vmem:[#allocation2 + $0x8] sm:$0xff]
        %v1496 = vld [vmem:[#allocation2 + $0x18] sm:$0xff]
        %1497 = vmatprep.subr.bf16.mxu0 0
        %1498 = vmatpush1.bf16.xpose.msra.mxu0 %v1495
        %1499 = vmatprep.subr.bf16.mxu0 0
        %1500 = vmatpush1.bf16.xpose.msra.mxu0 0
        %1501 = vmatprep.subr.bf16.mxu0 0
        %1502 = vmatpush1.bf16.xpose.msra.mxu0 0
        %1503 = vmatprep.subr.bf16.mxu0 0
        %1504 = vmatpush1.bf16.xpose.msra.mxu0 0
        %1505 = vmatprep.subr.bf16.mxu0 0
        %1506 = vmatpush1.bf16.xpose.msra.mxu0 0
        %1507 = vmatprep.subr.bf16.mxu0 0
        %1508 = vmatpush1.bf16.xpose.msra.mxu0 0
        %1509 = vmatprep.subr.bf16.mxu0 0
        %1510 = vmatpush1.bf16.xpose.msra.mxu0 0
        %1511 = vmatprep.subr.bf16.mxu0 0
        %1512 = vmatpush1.bf16.xpose.msra.mxu0 0
        %1513 = vmatprep.subr.bf16.mxu0 0
        %1514 = vmatpush1.bf16.xpose.msra.mxu0 0
        %1515 = vmatprep.subr.bf16.mxu0 0
        %1516 = vmatpush1.bf16.xpose.msra.mxu0 0
        %1517 = vmatprep.subr.bf16.mxu0 0
        %1518 = vmatpush1.bf16.xpose.msra.mxu0 0
        %1519 = vmatprep.subr.bf16.mxu0 0
        %1520 = vmatpush1.bf16.xpose.msra.mxu0 0
        %1521 = vmatprep.subr.bf16.mxu0 0
        %1522 = vmatpush1.bf16.xpose.msra.mxu0 0
        %1523 = vmatprep.subr.bf16.mxu0 0
        %1524 = vmatpush1.bf16.xpose.msra.mxu0 0
        %1525 = vmatprep.subr.bf16.mxu0 0
        %1526 = vmatpush1.bf16.xpose.msra.mxu0 0
        %1527 = vmatprep.subr.bf16.mxu0 0
        %1528 = vmatpush1.bf16.xpose.msra.mxu0 0
        %1529 = vmatprep.mubr.bf16.mxu0 0
        %1530 = vmatmul.mubr.bf16.gmra.mrb[0].mxu0 %v1494
        %v1531 = vpop.f32.mrb[0].mxu0
        %v1532 = vadd.f32 %v1380, %v1531
        %v1533 = vpop.f32.mrb[0].mxu0
        %v1534 = vpop.f32.mrb[0].mxu0
        %v1535 = vadd.f32 %v1381, %v1534
        %v1536 = vpop.f32.mrb[0].mxu0
        %1537 = vdwg.mxu0
        %v1538 = vsel %vm1426, %v1532, -inf
        %1539 = vmax.xlane.f32.xlu0 %v1538
        %v1540 = vpop.xlane.xlu0 %1539
        %v1541 = vsel %vm1426, %v1535, -inf
        %1542 = vmax.xlane.f32.xlu0 %v1541
        %v1543 = vpop.xlane.xlu0 %1542
        %v1544 = vsub.f32 %v1532, %v1540
        %v1545 = vsub.f32 %v1535, %v1543
        %v1546 = vmul.f32 %v1544, 1.442695
        %v1547 = vpow.pop %v1546
        %v1548 = vmul.f32 %v1545, 1.442695
        %v1549 = vpow.pop %v1548
        %v1550 = vsel %vm1426, %v1547, 0.0
        %1551 = vadd.xlane.f32.xlu0 %v1550
        %v1552 = vpop.xlane.xlu0 %1551
        %v1553 = vsel %vm1426, %v1549, 0.0
        %1554 = vadd.xlane.f32.xlu0 %v1553
        %v1555 = vpop.xlane.xlu0 %1554
        %v1556 = vrcp.pop %v1552
        %v1557 = vrcp.pop %v1555
        %v1558 = vmul.f32 %v1547, %v1556
        %v1559 = vmul.f32 %v1549, %v1557
        %v1560 = vpack.c.bf16 %v1559, %v1558
        %v1562 = vsel %vm1426, %v1560, 0
        %1564 = vmatprep.subr.bf16.mxu0 0
        %1565 = vmatpush1.bf16.msra.mxu0 %v1496
        %1566 = vmatprep.subr.bf16.mxu0 0
        %1567 = vmatpush1.bf16.msra.mxu0 0
        %1568 = vmatprep.subr.bf16.mxu0 0
        %1569 = vmatpush1.bf16.msra.mxu0 0
        %1570 = vmatprep.subr.bf16.mxu0 0
        %1571 = vmatpush1.bf16.msra.mxu0 0
        %1572 = vmatprep.subr.bf16.mxu0 0
        %1573 = vmatpush1.bf16.msra.mxu0 0
        %1574 = vmatprep.subr.bf16.mxu0 0
        %1575 = vmatpush1.bf16.msra.mxu0 0
        %1576 = vmatprep.subr.bf16.mxu0 0
        %1577 = vmatpush1.bf16.msra.mxu0 0
        %1578 = vmatprep.subr.bf16.mxu0 0
        %1579 = vmatpush1.bf16.msra.mxu0 0
        %1580 = vmatprep.subr.bf16.mxu0 0
        %1581 = vmatpush1.bf16.msra.mxu0 0
        %1582 = vmatprep.subr.bf16.mxu0 0
        %1583 = vmatpush1.bf16.msra.mxu0 0
        %1584 = vmatprep.subr.bf16.mxu0 0
        %1585 = vmatpush1.bf16.msra.mxu0 0
        %1586 = vmatprep.subr.bf16.mxu0 0
        %1587 = vmatpush1.bf16.msra.mxu0 0
        %1588 = vmatprep.subr.bf16.mxu0 0
        %1589 = vmatpush1.bf16.msra.mxu0 0
        %1590 = vmatprep.subr.bf16.mxu0 0
        %1591 = vmatpush1.bf16.msra.mxu0 0
        %1592 = vmatprep.subr.bf16.mxu0 0
        %1593 = vmatpush1.bf16.msra.mxu0 0
        %1594 = vmatprep.subr.bf16.mxu0 0
        %1595 = vmatpush1.bf16.msra.mxu0 0
        %1596 = vmatprep.mubr.bf16.mxu0 0
        %1597 = vmatmul.mubr.bf16.gmra.mrb[0].mxu0 %v1562
        %v1598 = vpop.f32.mrb[0].mxu0
        %v1599 = vadd.f32 0.0, %v1598
        %v1600 = vpop.f32.mrb[0].mxu0
        %v1601 = vpop.f32.mrb[0].mxu0
        %v1602 = vadd.f32 0.0, %v1601
        %v1603 = vpop.f32.mrb[0].mxu0
        %1604 = vdwg.mxu0
        %v1605 = vpack.c.bf16 %v1491, %v1488
        %v1606 = vpack.c.bf16 %v1602, %v1599
        %v1607 = vld [vmem:[#allocation15] sm:$0xff]
        %v1608 = vld [vmem:[#allocation15 + $0x8] sm:$0xff]
        %v1609 = vld [vmem:[#allocation15 + $0x10] sm:$0xff]
        %v1610 = vld [vmem:[#allocation15 + $0x18] sm:$0xff]
        %v1611 = vld [vmem:[#allocation15 + $0x20] sm:$0xff]
        %v1612 = vld [vmem:[#allocation15 + $0x28] sm:$0xff]
        %v1613 = vld [vmem:[#allocation15 + $0x30] sm:$0xff]
        %v1614 = vld [vmem:[#allocation15 + $0x38] sm:$0xff]
        %v1615 = vld [vmem:[#allocation15 + $0x40] sm:$0xff]
        %v1616 = vld [vmem:[#allocation15 + $0x48] sm:$0xff]
        %v1617 = vld [vmem:[#allocation15 + $0x50] sm:$0xff]
        %v1618 = vld [vmem:[#allocation15 + $0x58] sm:$0xff]
        %v1619 = vld [vmem:[#allocation15 + $0x60] sm:$0xff]
        %v1620 = vld [vmem:[#allocation15 + $0x68] sm:$0xff]
        %v1621 = vld [vmem:[#allocation15 + $0x70] sm:$0xff]
        %v1622 = vld [vmem:[#allocation15 + $0x78] sm:$0xff]
        %v1623 = vld [vmem:[#allocation15 + $0x80] sm:$0xff]
        %v1624 = vld [vmem:[#allocation15 + $0x88] sm:$0xff]
        %v1625 = vld [vmem:[#allocation15 + $0x90] sm:$0xff]
        %v1626 = vld [vmem:[#allocation15 + $0x98] sm:$0xff]
        %v1627 = vld [vmem:[#allocation15 + $0xa0] sm:$0xff]
        %v1628 = vld [vmem:[#allocation15 + $0xa8] sm:$0xff]
        %v1629 = vld [vmem:[#allocation15 + $0xb0] sm:$0xff]
        %v1630 = vld [vmem:[#allocation15 + $0xb8] sm:$0xff]
        %v1631 = vld [vmem:[#allocation15 + $0xc0] sm:$0xff]
        %v1632 = vld [vmem:[#allocation15 + $0xc8] sm:$0xff]
        %v1633 = vld [vmem:[#allocation15 + $0xd0] sm:$0xff]
        %v1634 = vld [vmem:[#allocation15 + $0xd8] sm:$0xff]
        %v1635 = vld [vmem:[#allocation15 + $0xe0] sm:$0xff]
        %v1636 = vld [vmem:[#allocation15 + $0xe8] sm:$0xff]
        %v1637 = vld [vmem:[#allocation15 + $0xf0] sm:$0xff]
        %v1638 = vld [vmem:[#allocation15 + $0xf8] sm:$0xff]
        %v1639 = vld [vmem:[#allocation17] sm:$0x3]
        %v1641 = vlaneseq
        %v1642 = vshrl.u32 %v1641, 7
        %v1643 = vsub.s32 0, %v1642
        %v1644 = vrot.slane %v1639, %v1643
        %v1645 = vlaneseq
        %v1646 = vshrl.u32 %v1645, 7
        %v1647 = vsub.s32 1, %v1646
        %v1648 = vrot.slane %v1639, %v1647
        %v1683 = vunpack.c.l.b16 %v1607
        %v1684 = vunpack.c.h.b16 %v1607
        %v1685 = vunpack.c.l.b16 %v1608
        %v1686 = vunpack.c.h.b16 %v1608
        %v1687 = vunpack.c.l.b16 %v1609
        %v1688 = vunpack.c.h.b16 %v1609
        %v1689 = vunpack.c.l.b16 %v1610
        %v1690 = vunpack.c.h.b16 %v1610
        %v1691 = vunpack.c.l.b16 %v1611
        %v1692 = vunpack.c.h.b16 %v1611
        %v1693 = vunpack.c.l.b16 %v1612
        %v1694 = vunpack.c.h.b16 %v1612
        %v1695 = vunpack.c.l.b16 %v1613
        %v1696 = vunpack.c.h.b16 %v1613
        %v1697 = vunpack.c.l.b16 %v1614
        %v1698 = vunpack.c.h.b16 %v1614
        %v1699 = vunpack.c.l.b16 %v1615
        %v1700 = vunpack.c.h.b16 %v1615
        %v1701 = vunpack.c.l.b16 %v1616
        %v1702 = vunpack.c.h.b16 %v1616
        %v1703 = vunpack.c.l.b16 %v1617
        %v1704 = vunpack.c.h.b16 %v1617
        %v1705 = vunpack.c.l.b16 %v1618
        %v1706 = vunpack.c.h.b16 %v1618
        %v1707 = vunpack.c.l.b16 %v1619
        %v1708 = vunpack.c.h.b16 %v1619
        %v1709 = vunpack.c.l.b16 %v1620
        %v1710 = vunpack.c.h.b16 %v1620
        %v1711 = vunpack.c.l.b16 %v1621
        %v1712 = vunpack.c.h.b16 %v1621
        %v1713 = vunpack.c.l.b16 %v1622
        %v1714 = vunpack.c.h.b16 %v1622
        %v1715 = vunpack.c.l.b16 %v1623
        %v1716 = vunpack.c.h.b16 %v1623
        %v1717 = vunpack.c.l.b16 %v1624
        %v1718 = vunpack.c.h.b16 %v1624
        %v1719 = vunpack.c.l.b16 %v1625
        %v1720 = vunpack.c.h.b16 %v1625
        %v1721 = vunpack.c.l.b16 %v1626
        %v1722 = vunpack.c.h.b16 %v1626
        %v1723 = vunpack.c.l.b16 %v1627
        %v1724 = vunpack.c.h.b16 %v1627
        %v1725 = vunpack.c.l.b16 %v1628
        %v1726 = vunpack.c.h.b16 %v1628
        %v1727 = vunpack.c.l.b16 %v1629
        %v1728 = vunpack.c.h.b16 %v1629
        %v1729 = vunpack.c.l.b16 %v1630
        %v1730 = vunpack.c.h.b16 %v1630
        %v1731 = vunpack.c.l.b16 %v1631
        %v1732 = vunpack.c.h.b16 %v1631
        %v1733 = vunpack.c.l.b16 %v1632
        %v1734 = vunpack.c.h.b16 %v1632
        %v1735 = vunpack.c.l.b16 %v1633
        %v1736 = vunpack.c.h.b16 %v1633
        %v1737 = vunpack.c.l.b16 %v1634
        %v1738 = vunpack.c.h.b16 %v1634
        %v1739 = vunpack.c.l.b16 %v1635
        %v1740 = vunpack.c.h.b16 %v1635
        %v1741 = vunpack.c.l.b16 %v1636
        %v1742 = vunpack.c.h.b16 %v1636
        %v1743 = vunpack.c.l.b16 %v1637
        %v1744 = vunpack.c.h.b16 %v1637
        %v1745 = vunpack.c.l.b16 %v1638
        %v1746 = vunpack.c.h.b16 %v1638
        %v1747 = vpack.c.b16 %v1685, %v1683
        %v1748 = vpack.c.b16 %v1686, %v1684
        %v1749 = vpack.c.b16 %v1689, %v1687
        %v1750 = vpack.c.b16 %v1690, %v1688
        %v1751 = vpack.c.b16 %v1693, %v1691
        %v1752 = vpack.c.b16 %v1694, %v1692
        %v1753 = vpack.c.b16 %v1697, %v1695
        %v1754 = vpack.c.b16 %v1698, %v1696
        %v1755 = vpack.c.b16 %v1701, %v1699
        %v1756 = vpack.c.b16 %v1702, %v1700
        %v1757 = vpack.c.b16 %v1705, %v1703
        %v1758 = vpack.c.b16 %v1706, %v1704
        %v1759 = vpack.c.b16 %v1709, %v1707
        %v1760 = vpack.c.b16 %v1710, %v1708
        %v1761 = vpack.c.b16 %v1713, %v1711
        %v1762 = vpack.c.b16 %v1714, %v1712
        %v1763 = vpack.c.b16 %v1717, %v1715
        %v1764 = vpack.c.b16 %v1718, %v1716
        %v1765 = vpack.c.b16 %v1721, %v1719
        %v1766 = vpack.c.b16 %v1722, %v1720
        %v1767 = vpack.c.b16 %v1725, %v1723
        %v1768 = vpack.c.b16 %v1726, %v1724
        %v1769 = vpack.c.b16 %v1729, %v1727
        %v1770 = vpack.c.b16 %v1730, %v1728
        %v1771 = vpack.c.b16 %v1733, %v1731
        %v1772 = vpack.c.b16 %v1734, %v1732
        %v1773 = vpack.c.b16 %v1737, %v1735
        %v1774 = vpack.c.b16 %v1738, %v1736
        %v1775 = vpack.c.b16 %v1741, %v1739
        %v1776 = vpack.c.b16 %v1742, %v1740
        %v1777 = vpack.c.b16 %v1745, %v1743
        %v1778 = vpack.c.b16 %v1746, %v1744
        %1811 = vmatprep.subr.bf16.mxu0 %v1748
        %1812 = vmatpush1.bf16.msra.mxu0 %v1747
        %1813 = vmatprep.subr.bf16.mxu0 %v1750
        %1814 = vmatpush1.bf16.msra.mxu0 %v1749
        %1815 = vmatprep.subr.bf16.mxu0 %v1752
        %1816 = vmatpush1.bf16.msra.mxu0 %v1751
        %1817 = vmatprep.subr.bf16.mxu0 %v1754
        %1818 = vmatpush1.bf16.msra.mxu0 %v1753
        %1819 = vmatprep.subr.bf16.mxu0 %v1756
        %1820 = vmatpush1.bf16.msra.mxu0 %v1755
        %1821 = vmatprep.subr.bf16.mxu0 %v1758
        %1822 = vmatpush1.bf16.msra.mxu0 %v1757
        %1823 = vmatprep.subr.bf16.mxu0 %v1760
        %1824 = vmatpush1.bf16.msra.mxu0 %v1759
        %1825 = vmatprep.subr.bf16.mxu0 %v1762
        %1826 = vmatpush1.bf16.msra.mxu0 %v1761
        %1827 = vmatprep.subr.bf16.mxu0 %v1764
        %1828 = vmatpush1.bf16.msra.mxu0 %v1763
        %1829 = vmatprep.subr.bf16.mxu0 %v1766
        %1830 = vmatpush1.bf16.msra.mxu0 %v1765
        %1831 = vmatprep.subr.bf16.mxu0 %v1768
        %1832 = vmatpush1.bf16.msra.mxu0 %v1767
        %1833 = vmatprep.subr.bf16.mxu0 %v1770
        %1834 = vmatpush1.bf16.msra.mxu0 %v1769
        %1835 = vmatprep.subr.bf16.mxu0 %v1772
        %1836 = vmatpush1.bf16.msra.mxu0 %v1771
        %1837 = vmatprep.subr.bf16.mxu0 %v1774
        %1838 = vmatpush1.bf16.msra.mxu0 %v1773
        %1839 = vmatprep.subr.bf16.mxu0 %v1776
        %1840 = vmatpush1.bf16.msra.mxu0 %v1775
        %1841 = vmatprep.subr.bf16.mxu0 %v1778
        %1842 = vmatpush1.bf16.msra.mxu0 %v1777
        %1843 = vmatprep.mubr.bf16.mxu0 %v1606
        %1844 = vmatmul.mubr.bf16.gmra.mrb[0].mxu0 %v1605
        %v1845 = vpop.f32.mrb[0].mxu0
        %v1846 = vadd.f32 %v1644, %v1845
        %v1847 = vpop.f32.mrb[0].mxu0
        %v1848 = vadd.f32 %v1648, %v1847
        %v1849 = vpop.f32.mrb[0].mxu0
        %v1850 = vadd.f32 %v1644, %v1849
        %v1851 = vpop.f32.mrb[0].mxu0
        %v1852 = vadd.f32 %v1648, %v1851
        %1853 = vdwg.mxu0
        %v1854 = vadd.f32 %v1846, %v1106
        %v1855 = vadd.f32 %v1848, %v1107
        %v1856 = vadd.f32 %v1850, %v1108
        %v1857 = vadd.f32 %v1852, %v1109
        %v1858 = vadd.f32 %v1854, %v1855
        %1859 = vadd.xlane.f32.xlu0 %v1858
        %v1860 = vpop.xlane.xlu0 %1859
        %v1861 = vadd.f32 %v1856, %v1857
        %1862 = vadd.xlane.f32.xlu0 %v1861
        %v1863 = vpop.xlane.xlu0 %1862
        %v1864 = vrcp.pop 256.0
        %v1865 = vmul.f32 %v1860, %v1864
        %v1866 = vmul.f32 %v1863, %v1864
        %v1867 = vsub.f32 %v1854, %v1865
        %v1868 = vsub.f32 %v1855, %v1865
        %v1869 = vsub.f32 %v1856, %v1866
        %v1870 = vsub.f32 %v1857, %v1866
        %v1871 = vmul.f32 %v1867, %v1867
        %v1872 = vmul.f32 %v1868, %v1868
        %v1873 = vmul.f32 %v1869, %v1869
        %v1874 = vmul.f32 %v1870, %v1870
        %v1875 = vadd.f32 %v1871, %v1872
        %1876 = vadd.xlane.f32.xlu0 %v1875
        %v1877 = vpop.xlane.xlu0 %1876
        %v1878 = vadd.f32 %v1873, %v1874
        %1879 = vadd.xlane.f32.xlu0 %v1878
        %v1880 = vpop.xlane.xlu0 %1879
        %v1881 = vmul.f32 %v1877, %v1864
        %v1882 = vmul.f32 %v1880, %v1864
        %v1883 = vadd.f32 %v1881, 1e-05
        %v1884 = vadd.f32 %v1882, 1e-05
        %v1885 = vrsqrt.pop %v1883
        %v1886 = vrsqrt.pop %v1884
        %v1887 = vmul.f32 %v1867, %v1885
        %v1888 = vmul.f32 %v1868, %v1885
        %v1889 = vmul.f32 %v1869, %v1886
        %v1890 = vmul.f32 %v1870, %v1886
        %v1891 = vld [vmem:[#allocation18] sm:$0x3]
        %v1893 = vlaneseq
        %v1894 = vshrl.u32 %v1893, 7
        %v1895 = vsub.s32 0, %v1894
        %v1896 = vrot.slane %v1891, %v1895
        %v1897 = vlaneseq
        %v1898 = vshrl.u32 %v1897, 7
        %v1899 = vsub.s32 1, %v1898
        %v1900 = vrot.slane %v1891, %v1899
        %v1903 = vmul.f32 %v1887, %v1896
        %v1904 = vmul.f32 %v1888, %v1900
        %v1905 = vmul.f32 %v1889, %v1896
        %v1906 = vmul.f32 %v1890, %v1900
        %v1907 = vld [vmem:[#allocation20] sm:$0x3]
        %v1909 = vlaneseq
        %v1910 = vshrl.u32 %v1909, 7
        %v1911 = vsub.s32 0, %v1910
        %v1912 = vrot.slane %v1907, %v1911
        %v1913 = vlaneseq
        %v1914 = vshrl.u32 %v1913, 7
        %v1915 = vsub.s32 1, %v1914
        %v1916 = vrot.slane %v1907, %v1915
        %v1919 = vadd.f32 %v1903, %v1912
        %v1920 = vadd.f32 %v1904, %v1916
        %v1921 = vadd.f32 %v1905, %v1912
        %v1922 = vadd.f32 %v1906, %v1916
        %v1923 = vpack.c.bf16 %v1921, %v1919
        %v1924 = vpack.c.bf16 %v1922, %v1920
        %v1927 = vunpack.c.l.b16 %v1923
        %v1928 = vunpack.c.l.b16 %v1924
        %v1929 = vunpack.c.h.b16 %v1923
        %v1930 = vunpack.c.h.b16 %v1924
        %v1931 = vpack.c.b16 %v1928, %v1927
        %v1932 = vpack.c.b16 %v1930, %v1929
        %1935 = vst [vmem:[%s591] sm:$0xff] %v1931
        %1936 = vst [vmem:[%s591 + $0x8] sm:$0xff] %v1932
        %s1937 = sand.u32 %s305, 1
        %s1938 = scalar_lea.sflag [#allocation5], %s1937
        %s1939 = sand.u32 %s305, 1
        %s1940 = smul.addr %s1939, 16
        %s1941 = scalar_lea.vmem [#allocation21], %s1940
        // Predicated region
        $region113: #{decoder_layer_c_forward.4} parent=63 // pred_check
          %p1942 = pneg %p315
        $region114: #{decoder_layer_c_forward.4} parent=63 // pred_check_branch
          %1944 = sbr.rel (%p1942) target = $region116
        $region115: #{decoder_layer_c_forward.4} parent=63 // pred_region
          %s1945 = smul.u32 2, %s40
          %s1947 = ssub.s32 256, 256
          %1948 = vsyncadd %s1938, %s1947
          %s1949 = smul.addr %s1945, 2
          %s1950 = smul.addr %s39, 4
          %s1951 = sadd.s32 %s1949, %s1950
          %s1952 = smul.addr %s1951, 64
          %s1953 = scalar_lea.hbm %s11, %s1952
          %s1954 = sshll.u32 %s1941, 4
          %s1955 = int_to_ptr.vmem [resolvable:$true] %s1954
          %1960 = dma.vmem_to_hbm [thread:$0]  %s1955, 256, %s1953, %s1938, 128, 128, 8
        $region116: #{decoder_layer_c_forward.4} parent=63 // pred_fallthru
          _
      $region64: #{decoder_layer_c_forward.4} parent=5 // pred_fallthru
        _
      %p1961 = scmp.le.s32.totalorder 2, %s30
      // Predicated region
      $region117: #{decoder_layer_c_forward.4} parent=5 // pred_check
        %p1962 = pneg %p1961
      $region118: #{decoder_layer_c_forward.4} parent=5 // pred_check_branch
        %1964 = sbr.rel (%p1962) target = $region120
      $region119: #{decoder_layer_c_forward.4} parent=5 // pred_region
        %s1965 = ssub.s32 %s30, 2
        // Predicated region
        $region121: #{decoder_layer_c_forward.4} parent=119 // pred_check
          %p1966 = pneg %p321
        $region122: #{decoder_layer_c_forward.4} parent=119 // pred_check_branch
          %1968 = sbr.rel (%p1966) target = $region124
        $region123: #{decoder_layer_c_forward.4} parent=119 // pred_region
          %s1969 = sand.u32 %s306, 1
          %s1970 = scalar_lea.sflag [#allocation5], %s1969
          %s1971 = sand.u32 %s306, 1
          %s1972 = smul.addr %s1971, 16
          %s1973 = scalar_lea.vmem [#allocation21], %s1972
          %1974 = dma.done %s1970, 256
        $region124: #{decoder_layer_c_forward.4} parent=119 // pred_fallthru
          _
      $region120: #{decoder_layer_c_forward.4} parent=5 // pred_fallthru
        _
    $region6: #{decoder_layer_c_forward.4} parent=1 // loop_footer
      %s34 = sadd.s32 1, %s30
    $region7: #{decoder_layer_c_forward.4} parent=1 // loop_footer_branch
      %29 = sbr.rel target = $region3
    $region8: #{decoder_layer_c_forward.4} parent=1 // loop_exit
      _
    %1975 = vsyncpa [#allocation4], 1
    %s1976 = scalar_lea.sflag [#allocation4], 1
    %1977 = vsyncpa %s1976, 1
    %1978 = vsyncpa [#allocation7], 1
    %s1979 = scalar_lea.sflag [#allocation7], 1
    %1980 = vsyncpa %s1979, 1
    %1981 = vsyncpa [#allocation10], 1
    %1982 = vsyncpa [#allocation13], 1
    %1983 = vsyncpa [#allocation16], 1
    %1984 = vsyncpa [#allocation19], 1
    %1985 = vsyncpa [#allocation5], 1
    %s1986 = scalar_lea.sflag [#allocation5], 1
    %1987 = vsyncpa %s1986, 1

// kernel: decoder_layer_c_forward.6
$region0: #{decoder_layer_c_forward.6}
  #allocation0 [shape = 'u32[]', space=smem, size = 0x4, offset = 0x4, fixed_abs, tag = 'smem constant byte address 0x4 - core index']
  #allocation1 [shape = 'u32[144,128]{1,0:T(1,128)}', space=vmem, size = 0x12000, scoped, tag = 'internal scratch']
  #allocation2 [shape = 'bf16[16,512]{1,0:T(16,128)(2,1)}', space=vmem, size = 0x4000, scoped, tag = 'scratch operand']
  %s0 = inlined_call_operand.hbm [shape: f32[2,16,256], index: 0, kind: input, shape index: {}, may-alias: {0,1}]
  %s1 = inlined_call_operand.hbm [shape: f32[2,16,256], index: 1, kind: input, shape index: {}, may-alias: {0,1}]
  %s2 = inlined_call_operand.hbm [shape: bf16[16,16], index: 2, kind: input, shape index: {}]
  %s3 = inlined_call_operand.hbm [shape: f32[16,256], index: 3, kind: input, shape index: {}]
  %s4 = inlined_call_operand.hbm [shape: bf16[256,256], index: 4, kind: input, shape index: {}]
  %s5 = inlined_call_operand.hbm [shape: f32[1,256], index: 5, kind: input, shape index: {}]
  %s6 = inlined_call_operand.hbm [shape: bf16[256,512], index: 6, kind: input, shape index: {}]
  %s7 = inlined_call_operand.hbm [shape: f32[1,512], index: 7, kind: input, shape index: {}]
  %s8 = inlined_call_operand.hbm [shape: bf16[256,256], index: 8, kind: input, shape index: {}]
  %s9 = inlined_call_operand.hbm [shape: f32[1,256], index: 9, kind: input, shape index: {}]
  %s10 = inlined_call_operand.hbm [shape: f32[1,256], index: 10, kind: input, shape index: {}]
  %s11 = inlined_call_operand.hbm [shape: f32[1,256], index: 11, kind: input, shape index: {}]
  %s12 = inlined_call_operand.hbm [shape: bf16[2,16,256], index: 12, kind: output, shape index: {}]
  %s13 = sld [smem:[#allocation0]]
  $region133: #{decoder_layer_c_forward.6} parent=0
    _
  %s15 = ssub.s32 1, %s13
  %s16 = scalar_select 0, %s15, %s13
  $region1: #{decoder_layer_c_forward.6} parent=0
    #allocation3 [shape = 'u8[32768]{0}', space=vmem, size = 0x8000, scoped, tag = 'input window, operand 0']
    #allocation4 [shape = 's32[2]{0}', space=sflag, size = 0x8, scoped, tag = 'scoped memory for decoder_layer_c_forward.6']
    #allocation5 [shape = 's32[2]{0}', space=sflag, size = 0x8, scoped, tag = 'scoped memory for decoder_layer_c_forward.6']
    #allocation6 [shape = 'u8[32768]{0}', space=vmem, size = 0x8000, scoped, tag = 'input window, operand 1']
    #allocation7 [shape = 's32[2]{0}', space=sflag, size = 0x8, scoped, tag = 'scoped memory for decoder_layer_c_forward.6']
    #allocation8 [shape = 'u8[4096]{0}', space=vmem, size = 0x1000, scoped, tag = 'input window, operand 2, single buffered']
    #allocation9 [shape = 'u8[16384]{0}', space=vmem, size = 0x4000, scoped, tag = 'input window, operand 3, single buffered']
    #allocation10 [shape = 's32[1]{0}', space=sflag, size = 0x4, scoped, tag = 'scoped memory for decoder_layer_c_forward.6']
    #allocation11 [shape = 'u8[131072]{0}', space=vmem, size = 0x20000, scoped, tag = 'input window, operand 4, single buffered']
    #allocation12 [shape = 'u8[1024]{0}', space=vmem, size = 0x400, scoped, tag = 'input window, operand 5, single buffered']
    #allocation13 [shape = 's32[1]{0}', space=sflag, size = 0x4, scoped, tag = 'scoped memory for decoder_layer_c_forward.6']
    #allocation14 [shape = 'u8[262144]{0}', space=vmem, size = 0x40000, scoped, tag = 'input window, operand 6, single buffered']
    #allocation15 [shape = 'u8[2048]{0}', space=vmem, size = 0x800, scoped, tag = 'input window, operand 7, single buffered']
    #allocation16 [shape = 's32[1]{0}', space=sflag, size = 0x4, scoped, tag = 'scoped memory for decoder_layer_c_forward.6']
    #allocation17 [shape = 'u8[131072]{0}', space=vmem, size = 0x20000, scoped, tag = 'input window, operand 8, single buffered']
    #allocation18 [shape = 'u8[1024]{0}', space=vmem, size = 0x400, scoped, tag = 'input window, operand 9, single buffered']
    #allocation19 [shape = 's32[1]{0}', space=sflag, size = 0x4, scoped, tag = 'scoped memory for decoder_layer_c_forward.6']
    #allocation20 [shape = 'u8[1024]{0}', space=vmem, size = 0x400, scoped, tag = 'input window, operand 10, single buffered']
    #allocation21 [shape = 'u8[1024]{0}', space=vmem, size = 0x400, scoped, tag = 'input window, operand 11, single buffered']
    #allocation22 [shape = 's32[1]{0}', space=sflag, size = 0x4, scoped, tag = 'scoped memory for decoder_layer_c_forward.6']
    #allocation23 [shape = 'u8[16384]{0}', space=vmem, size = 0x4000, scoped, tag = 'output window, operand 0']
    %17 = vsyncpa [#allocation4], 0
    %s18 = scalar_lea.sflag [#allocation4], 1
    %19 = vsyncpa %s18, 0
    %20 = vsyncpa [#allocation7], 0
    %s21 = scalar_lea.sflag [#allocation7], 1
    %22 = vsyncpa %s21, 0
    %23 = vsyncpa [#allocation10], 0
    %24 = vsyncpa [#allocation13], 0
    %25 = vsyncpa [#allocation16], 0
    %26 = vsyncpa [#allocation19], 0
    %27 = vsyncpa [#allocation22], 0
    %28 = vsyncpa [#allocation5], 0
    %s29 = scalar_lea.sflag [#allocation5], 1
    %30 = vsyncpa %s29, 0
    loop: start=0, step=1, limit=4
    $region2: #{decoder_layer_c_forward.6} parent=1 // loop_pre_header
      _
    $region3: #{decoder_layer_c_forward.6} parent=1 // loop_header
      %s32 = sphi 0, %s36
      %p33 = scmp.ge.s32.totalorder %s32, 4
      %s39 = sphi 0, %s51
      %s40 = sphi 0, %s47
      %s41 = sphi 0, %s39
      %s42 = sphi 0, %s40
      %s43 = sphi 0, %s41
      %s44 = sphi 0, %s42
      %s56 = sphi 0, %s58
      %s59 = sphi 0, %s56
      %s60 = sphi 0, %s59
      %s76 = sphi 0, %s60
      %s82 = sphi 0, %s84
      %s85 = sphi 0, %s82
      %s86 = sphi 0, %s85
      %s102 = sphi 0, %s86
      %s108 = sphi 0, %s110
      %s111 = sphi 0, %s108
      %s112 = sphi 0, %s111
      %s128 = sphi 0, %s112
      %s134 = sphi 0, %s136
      %s137 = sphi 0, %s134
      %s138 = sphi 0, %s137
      %s154 = sphi 0, %s138
      %s158 = sphi 0, %s158
      %s160 = sphi 0, %s158
      %s161 = sphi 0, %s160
      %s175 = sphi 0, %s161
      %s179 = sphi 0, %s179
      %s181 = sphi 0, %s179
      %s182 = sphi 0, %s181
      %s196 = sphi 0, %s182
      %s200 = sphi 0, %s200
      %s202 = sphi 0, %s200
      %s203 = sphi 0, %s202
      %s217 = sphi 0, %s203
      %s221 = sphi 0, %s221
      %s223 = sphi 0, %s221
      %s224 = sphi 0, %s223
      %s238 = sphi 0, %s224
      %s242 = sphi 0, %s242
      %s244 = sphi 0, %s242
      %s245 = sphi 0, %s244
      %s259 = sphi 0, %s245
      %s263 = sphi 0, %s263
      %s265 = sphi 0, %s263
      %s266 = sphi 0, %s265
      %s280 = sphi 0, %s266
      %s284 = sphi 0, %s284
      %s286 = sphi 0, %s284
      %s287 = sphi 0, %s286
      %s301 = sphi 0, %s287
      %s305 = sphi 0, %s305
      %s307 = sphi 0, %s305
      %s308 = sphi 0, %s307
      %s322 = sphi 0, %s308
      %s330 = sphi 0, %s332
      %s333 = sphi 0, %s330
      %s334 = sphi 0, %s333
      %s350 = sphi 0, %s334
    $region4: #{decoder_layer_c_forward.6} parent=1 // loop_header_branch
      %35 = sbr.rel (%p33) target = $region8
    $region5: #{decoder_layer_c_forward.6} parent=1 // loop_body
      %s37 = ssub.s32 %s32, 1
      %s38 = ssub.s32 %s32, 2
      %s45 = sadd.s32 1, %s40
      %p46 = scmp.ge.s32.totalorder %s45, 1
      %s47 = scalar_select %p46, 0, %s45
      %s48 = sadd.s32 1, %s39
      %s49 = scalar_select %p46, %s48, %s39
      %p50 = scmp.ge.s32.totalorder %s49, 2
      %s51 = scalar_select %p50, 0, %s49
      %s52 = ssub.s32 %s39, %s51
      %s53 = ssub.s32 %s40, %s47
      %s54 = sor.u32 %s52, %s53
      %p55 = scmp.eq.s32.totalorder %s54, 0
      %s57 = sadd.s32 %s56, 1
      %s58 = scalar_select %p55, %s56, %s57
      %p61 = pneg %p55
      %p62 = scmp.eq.s32.totalorder %s32, 1
      %p63 = por %p61, %p62
      %p64 = scmp.ne.s32.totalorder %s56, %s59
      %p65 = scmp.eq.s32.totalorder %s32, 0
      %p66 = por %p64, %p65
      %p67 = scmp.ne.s32.totalorder %s56, %s59
      %p68 = scmp.eq.s32.totalorder %s37, 1
      %p69 = por %p67, %p68
      %p70 = scmp.ne.s32.totalorder %s59, %s60
      %p71 = scmp.eq.s32.totalorder %s37, 0
      %p72 = por %p70, %p71
      %p73 = scmp.ne.s32.totalorder %s59, %s60
      %p74 = scmp.eq.s32.totalorder %s38, 1
      %p75 = por %p73, %p74
      %p77 = scmp.ne.s32.totalorder %s60, %s76
      %p78 = scmp.eq.s32.totalorder %s38, 0
      %p79 = por %p77, %p78
      %s80 = ssub.s32 %s39, %s51
      %p81 = scmp.eq.s32.totalorder %s80, 0
      %s83 = sadd.s32 %s82, 1
      %s84 = scalar_select %p81, %s82, %s83
      %p87 = pneg %p81
      %p88 = scmp.eq.s32.totalorder %s32, 1
      %p89 = por %p87, %p88
      %p90 = scmp.ne.s32.totalorder %s82, %s85
      %p91 = scmp.eq.s32.totalorder %s32, 0
      %p92 = por %p90, %p91
      %p93 = scmp.ne.s32.totalorder %s82, %s85
      %p94 = scmp.eq.s32.totalorder %s37, 1
      %p95 = por %p93, %p94
      %p96 = scmp.ne.s32.totalorder %s85, %s86
      %p97 = scmp.eq.s32.totalorder %s37, 0
      %p98 = por %p96, %p97
      %p99 = scmp.ne.s32.totalorder %s85, %s86
      %p100 = scmp.eq.s32.totalorder %s38, 1
      %p101 = por %p99, %p100
      %p103 = scmp.ne.s32.totalorder %s86, %s102
      %p104 = scmp.eq.s32.totalorder %s38, 0
      %p105 = por %p103, %p104
      %s106 = ssub.s32 %s40, %s47
      %p107 = scmp.eq.s32.totalorder %s106, 0
      %s109 = sadd.s32 %s108, 1
      %s110 = scalar_select %p107, %s108, %s109
      %p113 = pneg %p107
      %p114 = scmp.eq.s32.totalorder %s32, 1
      %p115 = por %p113, %p114
      %p116 = scmp.ne.s32.totalorder %s108, %s111
      %p117 = scmp.eq.s32.totalorder %s32, 0
      %p118 = por %p116, %p117
      %p119 = scmp.ne.s32.totalorder %s108, %s111
      %p120 = scmp.eq.s32.totalorder %s37, 1
      %p121 = por %p119, %p120
      %p122 = scmp.ne.s32.totalorder %s111, %s112
      %p123 = scmp.eq.s32.totalorder %s37, 0
      %p124 = por %p122, %p123
      %p125 = scmp.ne.s32.totalorder %s111, %s112
      %p126 = scmp.eq.s32.totalorder %s38, 1
      %p127 = por %p125, %p126
      %p129 = scmp.ne.s32.totalorder %s112, %s128
      %p130 = scmp.eq.s32.totalorder %s38, 0
      %p131 = por %p129, %p130
      %s132 = ssub.s32 %s40, %s47
      %p133 = scmp.eq.s32.totalorder %s132, 0
      %s135 = sadd.s32 %s134, 1
      %s136 = scalar_select %p133, %s134, %s135
      %p139 = pneg %p133
      %p140 = scmp.eq.s32.totalorder %s32, 1
      %p141 = por %p139, %p140
      %p142 = scmp.ne.s32.totalorder %s134, %s137
      %p143 = scmp.eq.s32.totalorder %s32, 0
      %p144 = por %p142, %p143
      %p145 = scmp.ne.s32.totalorder %s134, %s137
      %p146 = scmp.eq.s32.totalorder %s37, 1
      %p147 = por %p145, %p146
      %p148 = scmp.ne.s32.totalorder %s137, %s138
      %p149 = scmp.eq.s32.totalorder %s37, 0
      %p150 = por %p148, %p149
      %p151 = scmp.ne.s32.totalorder %s137, %s138
      %p152 = scmp.eq.s32.totalorder %s38, 1
      %p153 = por %p151, %p152
      %p155 = scmp.ne.s32.totalorder %s138, %s154
      %p156 = scmp.eq.s32.totalorder %s38, 0
      %p157 = por %p155, %p156
      %s159 = sadd.s32 %s158, 1
      %p162 = scmp.eq.s32.totalorder %s32, 1
      %p163 = scmp.ne.s32.totalorder %s158, %s160
      %p164 = scmp.eq.s32.totalorder %s32, 0
      %p165 = por %p163, %p164
      %p166 = scmp.ne.s32.totalorder %s158, %s160
      %p167 = scmp.eq.s32.totalorder %s37, 1
      %p168 = por %p166, %p167
      %p169 = scmp.ne.s32.totalorder %s160, %s161
      %p170 = scmp.eq.s32.totalorder %s37, 0
      %p171 = por %p169, %p170
      %p172 = scmp.ne.s32.totalorder %s160, %s161
      %p173 = scmp.eq.s32.totalorder %s38, 1
      %p174 = por %p172, %p173
      %p176 = scmp.ne.s32.totalorder %s161, %s175
      %p177 = scmp.eq.s32.totalorder %s38, 0
      %p178 = por %p176, %p177
      %s180 = sadd.s32 %s179, 1
      %p183 = scmp.eq.s32.totalorder %s32, 1
      %p184 = scmp.ne.s32.totalorder %s179, %s181
      %p185 = scmp.eq.s32.totalorder %s32, 0
      %p186 = por %p184, %p185
      %p187 = scmp.ne.s32.totalorder %s179, %s181
      %p188 = scmp.eq.s32.totalorder %s37, 1
      %p189 = por %p187, %p188
      %p190 = scmp.ne.s32.totalorder %s181, %s182
      %p191 = scmp.eq.s32.totalorder %s37, 0
      %p192 = por %p190, %p191
      %p193 = scmp.ne.s32.totalorder %s181, %s182
      %p194 = scmp.eq.s32.totalorder %s38, 1
      %p195 = por %p193, %p194
      %p197 = scmp.ne.s32.totalorder %s182, %s196
      %p198 = scmp.eq.s32.totalorder %s38, 0
      %p199 = por %p197, %p198
      %s201 = sadd.s32 %s200, 1
      %p204 = scmp.eq.s32.totalorder %s32, 1
      %p205 = scmp.ne.s32.totalorder %s200, %s202
      %p206 = scmp.eq.s32.totalorder %s32, 0
      %p207 = por %p205, %p206
      %p208 = scmp.ne.s32.totalorder %s200, %s202
      %p209 = scmp.eq.s32.totalorder %s37, 1
      %p210 = por %p208, %p209
      %p211 = scmp.ne.s32.totalorder %s202, %s203
      %p212 = scmp.eq.s32.totalorder %s37, 0
      %p213 = por %p211, %p212
      %p214 = scmp.ne.s32.totalorder %s202, %s203
      %p215 = scmp.eq.s32.totalorder %s38, 1
      %p216 = por %p214, %p215
      %p218 = scmp.ne.s32.totalorder %s203, %s217
      %p219 = scmp.eq.s32.totalorder %s38, 0
      %p220 = por %p218, %p219
      %s222 = sadd.s32 %s221, 1
      %p225 = scmp.eq.s32.totalorder %s32, 1
      %p226 = scmp.ne.s32.totalorder %s221, %s223
      %p227 = scmp.eq.s32.totalorder %s32, 0
      %p228 = por %p226, %p227
      %p229 = scmp.ne.s32.totalorder %s221, %s223
      %p230 = scmp.eq.s32.totalorder %s37, 1
      %p231 = por %p229, %p230
      %p232 = scmp.ne.s32.totalorder %s223, %s224
      %p233 = scmp.eq.s32.totalorder %s37, 0
      %p234 = por %p232, %p233
      %p235 = scmp.ne.s32.totalorder %s223, %s224
      %p236 = scmp.eq.s32.totalorder %s38, 1
      %p237 = por %p235, %p236
      %p239 = scmp.ne.s32.totalorder %s224, %s238
      %p240 = scmp.eq.s32.totalorder %s38, 0
      %p241 = por %p239, %p240
      %s243 = sadd.s32 %s242, 1
      %p246 = scmp.eq.s32.totalorder %s32, 1
      %p247 = scmp.ne.s32.totalorder %s242, %s244
      %p248 = scmp.eq.s32.totalorder %s32, 0
      %p249 = por %p247, %p248
      %p250 = scmp.ne.s32.totalorder %s242, %s244
      %p251 = scmp.eq.s32.totalorder %s37, 1
      %p252 = por %p250, %p251
      %p253 = scmp.ne.s32.totalorder %s244, %s245
      %p254 = scmp.eq.s32.totalorder %s37, 0
      %p255 = por %p253, %p254
      %p256 = scmp.ne.s32.totalorder %s244, %s245
      %p257 = scmp.eq.s32.totalorder %s38, 1
      %p258 = por %p256, %p257
      %p260 = scmp.ne.s32.totalorder %s245, %s259
      %p261 = scmp.eq.s32.totalorder %s38, 0
      %p262 = por %p260, %p261
      %s264 = sadd.s32 %s263, 1
      %p267 = scmp.eq.s32.totalorder %s32, 1
      %p268 = scmp.ne.s32.totalorder %s263, %s265
      %p269 = scmp.eq.s32.totalorder %s32, 0
      %p270 = por %p268, %p269
      %p271 = scmp.ne.s32.totalorder %s263, %s265
      %p272 = scmp.eq.s32.totalorder %s37, 1
      %p273 = por %p271, %p272
      %p274 = scmp.ne.s32.totalorder %s265, %s266
      %p275 = scmp.eq.s32.totalorder %s37, 0
      %p276 = por %p274, %p275
      %p277 = scmp.ne.s32.totalorder %s265, %s266
      %p278 = scmp.eq.s32.totalorder %s38, 1
      %p279 = por %p277, %p278
      %p281 = scmp.ne.s32.totalorder %s266, %s280
      %p282 = scmp.eq.s32.totalorder %s38, 0
      %p283 = por %p281, %p282
      %s285 = sadd.s32 %s284, 1
      %p288 = scmp.eq.s32.totalorder %s32, 1
      %p289 = scmp.ne.s32.totalorder %s284, %s286
      %p290 = scmp.eq.s32.totalorder %s32, 0
      %p291 = por %p289, %p290
      %p292 = scmp.ne.s32.totalorder %s284, %s286
      %p293 = scmp.eq.s32.totalorder %s37, 1
      %p294 = por %p292, %p293
      %p295 = scmp.ne.s32.totalorder %s286, %s287
      %p296 = scmp.eq.s32.totalorder %s37, 0
      %p297 = por %p295, %p296
      %p298 = scmp.ne.s32.totalorder %s286, %s287
      %p299 = scmp.eq.s32.totalorder %s38, 1
      %p300 = por %p298, %p299
      %p302 = scmp.ne.s32.totalorder %s287, %s301
      %p303 = scmp.eq.s32.totalorder %s38, 0
      %p304 = por %p302, %p303
      %s306 = sadd.s32 %s305, 1
      %p309 = scmp.eq.s32.totalorder %s32, 1
      %p310 = scmp.ne.s32.totalorder %s305, %s307
      %p311 = scmp.eq.s32.totalorder %s32, 0
      %p312 = por %p310, %p311
      %p313 = scmp.ne.s32.totalorder %s305, %s307
      %p314 = scmp.eq.s32.totalorder %s37, 1
      %p315 = por %p313, %p314
      %p316 = scmp.ne.s32.totalorder %s307, %s308
      %p317 = scmp.eq.s32.totalorder %s37, 0
      %p318 = por %p316, %p317
      %p319 = scmp.ne.s32.totalorder %s307, %s308
      %p320 = scmp.eq.s32.totalorder %s38, 1
      %p321 = por %p319, %p320
      %p323 = scmp.ne.s32.totalorder %s308, %s322
      %p324 = scmp.eq.s32.totalorder %s38, 0
      %p325 = por %p323, %p324
      %s326 = ssub.s32 %s39, %s51
      %s327 = ssub.s32 %s40, %s47
      %s328 = sor.u32 %s326, %s327
      %p329 = scmp.eq.s32.totalorder %s328, 0
      %s331 = sadd.s32 %s330, 1
      %s332 = scalar_select %p329, %s330, %s331
      %p335 = pneg %p329
      %p336 = scmp.eq.s32.totalorder %s32, 1
      %p337 = por %p335, %p336
      %p338 = scmp.ne.s32.totalorder %s330, %s333
      %p339 = scmp.eq.s32.totalorder %s32, 0
      %p340 = por %p338, %p339
      %p341 = scmp.ne.s32.totalorder %s330, %s333
      %p342 = scmp.eq.s32.totalorder %s37, 1
      %p343 = por %p341, %p342
      %p344 = scmp.ne.s32.totalorder %s333, %s334
      %p345 = scmp.eq.s32.totalorder %s37, 0
      %p346 = por %p344, %p345
      %p347 = scmp.ne.s32.totalorder %s333, %s334
      %p348 = scmp.eq.s32.totalorder %s38, 1
      %p349 = por %p347, %p348
      %p351 = scmp.ne.s32.totalorder %s334, %s350
      %p352 = scmp.eq.s32.totalorder %s38, 0
      %p353 = por %p351, %p352
      %p354 = scmp.le.s32.totalorder 1, %s32
      %p355 = scmp.lt.s32.totalorder %s32, 3
      %p356 = pnand %p354, %p355
      %p357 = pneg %p356
      // Predicated region
      $region9: #{decoder_layer_c_forward.6} parent=5 // pred_check
        _
      $region10: #{decoder_layer_c_forward.6} parent=5 // pred_check_branch
        %359 = sbr.rel (%p356) target = $region12
      $region11: #{decoder_layer_c_forward.6} parent=5 // pred_region
        %s360 = ssub.s32 %s32, 1
        // Predicated region
        $region13: #{decoder_layer_c_forward.6} parent=11 // pred_check
          %p361 = pneg %p124
        $region14: #{decoder_layer_c_forward.6} parent=11 // pred_check_branch
          %363 = sbr.rel (%p361) target = $region16
        $region15: #{decoder_layer_c_forward.6} parent=11 // pred_region
          %s364 = smul.u32 2, %s42
          %s366 = ssub.s32 128, 128
          %367 = vsyncadd [#allocation7], %s366
          %s368 = smul.addr %s364, 64
          %s369 = scalar_lea.hbm %s2, %s368
          %s370 = sshll.u32 [#allocation8], 4
          %s371 = int_to_ptr.vmem [resolvable:$true] %s370
          %376 = dma.hbm_to_vmem [thread:$0]  %s369, 128, %s371, [#allocation7], 64, 64, 4
        $region16: #{decoder_layer_c_forward.6} parent=11 // pred_fallthru
          _
        // Predicated region
        $region17: #{decoder_layer_c_forward.6} parent=11 // pred_check
          %p377 = pneg %p150
        $region18: #{decoder_layer_c_forward.6} parent=11 // pred_check_branch
          %379 = sbr.rel (%p377) target = $region20
        $region19: #{decoder_layer_c_forward.6} parent=11 // pred_region
          %s380 = smul.u32 2, %s42
          %s382 = ssub.s32 512, 512
          %383 = vsyncadd [#allocation10], %s382
          %s384 = smul.addr %s380, 2
          %s385 = smul.addr %s384, 128
          %s386 = scalar_lea.hbm %s3, %s385
          %s387 = sshll.u32 [#allocation9], 4
          %s388 = int_to_ptr.vmem [resolvable:$true] %s387
          %393 = dma.hbm_to_vmem [thread:$0]  %s386, 512, %s388, [#allocation10], 256, 256, 16
        $region20: #{decoder_layer_c_forward.6} parent=11 // pred_fallthru
          _
        // Predicated region
        $region21: #{decoder_layer_c_forward.6} parent=11 // pred_check
          %p394 = pneg %p171
        $region22: #{decoder_layer_c_forward.6} parent=11 // pred_check_branch
          %396 = sbr.rel (%p394) target = $region24
        $region23: #{decoder_layer_c_forward.6} parent=11 // pred_region
          %s398 = ssub.s32 4096, 4096
          %399 = vsyncadd [#allocation10], %s398
          %s400 = sshll.u32 [#allocation11], 4
          %s401 = int_to_ptr.vmem [resolvable:$true] %s400
          %406 = dma.hbm_to_vmem [thread:$0]  %s4, 4096, %s401, [#allocation10], 128, 128, 8
        $region24: #{decoder_layer_c_forward.6} parent=11 // pred_fallthru
          _
        // Predicated region
        $region25: #{decoder_layer_c_forward.6} parent=11 // pred_check
          %p407 = pneg %p192
        $region26: #{decoder_layer_c_forward.6} parent=11 // pred_check_branch
          %409 = sbr.rel (%p407) target = $region28
        $region27: #{decoder_layer_c_forward.6} parent=11 // pred_region
          %s411 = ssub.s32 32, 32
          %412 = vsyncadd [#allocation13], %s411
          %s414 = sshll.u32 [#allocation12], 4
          %s415 = int_to_ptr.vmem [resolvable:$true] %s414
          %417 = dma.hbm_to_vmem [thread:$0]  %s5, 32, %s415, [#allocation13]
        $region28: #{decoder_layer_c_forward.6} parent=11 // pred_fallthru
          _
        // Predicated region
        $region29: #{decoder_layer_c_forward.6} parent=11 // pred_check
          %p418 = pneg %p213
        $region30: #{decoder_layer_c_forward.6} parent=11 // pred_check_branch
          %420 = sbr.rel (%p418) target = $region32
        $region31: #{decoder_layer_c_forward.6} parent=11 // pred_region
          %s422 = ssub.s32 8192, 8192
          %423 = vsyncadd [#allocation13], %s422
          %s424 = sshll.u32 [#allocation14], 4
          %s425 = int_to_ptr.vmem [resolvable:$true] %s424
          %430 = dma.hbm_to_vmem [thread:$0]  %s6, 8192, %s425, [#allocation13], 256, 256, 16
        $region32: #{decoder_layer_c_forward.6} parent=11 // pred_fallthru
          _
        // Predicated region
        $region33: #{decoder_layer_c_forward.6} parent=11 // pred_check
          %p431 = pneg %p234
        $region34: #{decoder_layer_c_forward.6} parent=11 // pred_check_branch
          %433 = sbr.rel (%p431) target = $region36
        $region35: #{decoder_layer_c_forward.6} parent=11 // pred_region
          %s435 = ssub.s32 64, 64
          %436 = vsyncadd [#allocation16], %s435
          %s438 = sshll.u32 [#allocation15], 4
          %s439 = int_to_ptr.vmem [resolvable:$true] %s438
          %441 = dma.hbm_to_vmem [thread:$0]  %s7, 64, %s439, [#allocation16]
        $region36: #{decoder_layer_c_forward.6} parent=11 // pred_fallthru
          _
        // Predicated region
        $region37: #{decoder_layer_c_forward.6} parent=11 // pred_check
          %p442 = pneg %p255
        $region38: #{decoder_layer_c_forward.6} parent=11 // pred_check_branch
          %444 = sbr.rel (%p442) target = $region40
        $region39: #{decoder_layer_c_forward.6} parent=11 // pred_region
          %s446 = ssub.s32 4096, 4096
          %447 = vsyncadd [#allocation16], %s446
          %s448 = sshll.u32 [#allocation17], 4
          %s449 = int_to_ptr.vmem [resolvable:$true] %s448
          %454 = dma.hbm_to_vmem [thread:$0]  %s8, 4096, %s449, [#allocation16], 128, 128, 8
        $region40: #{decoder_layer_c_forward.6} parent=11 // pred_fallthru
          _
        // Predicated region
        $region41: #{decoder_layer_c_forward.6} parent=11 // pred_check
          %p455 = pneg %p276
        $region42: #{decoder_layer_c_forward.6} parent=11 // pred_check_branch
          %457 = sbr.rel (%p455) target = $region44
        $region43: #{decoder_layer_c_forward.6} parent=11 // pred_region
          %s459 = ssub.s32 32, 32
          %460 = vsyncadd [#allocation19], %s459
          %s462 = sshll.u32 [#allocation18], 4
          %s463 = int_to_ptr.vmem [resolvable:$true] %s462
          %465 = dma.hbm_to_vmem [thread:$0]  %s9, 32, %s463, [#allocation19]
        $region44: #{decoder_layer_c_forward.6} parent=11 // pred_fallthru
          _
        // Predicated region
        $region45: #{decoder_layer_c_forward.6} parent=11 // pred_check
          %p466 = pneg %p297
        $region46: #{decoder_layer_c_forward.6} parent=11 // pred_check_branch
          %468 = sbr.rel (%p466) target = $region48
        $region47: #{decoder_layer_c_forward.6} parent=11 // pred_region
          %s470 = ssub.s32 32, 32
          %471 = vsyncadd [#allocation19], %s470
          %s473 = sshll.u32 [#allocation20], 4
          %s474 = int_to_ptr.vmem [resolvable:$true] %s473
          %476 = dma.hbm_to_vmem [thread:$0]  %s10, 32, %s474, [#allocation19]
        $region48: #{decoder_layer_c_forward.6} parent=11 // pred_fallthru
          _
        // Predicated region
        $region49: #{decoder_layer_c_forward.6} parent=11 // pred_check
          %p477 = pneg %p318
        $region50: #{decoder_layer_c_forward.6} parent=11 // pred_check_branch
          %479 = sbr.rel (%p477) target = $region52
        $region51: #{decoder_layer_c_forward.6} parent=11 // pred_region
          %s481 = ssub.s32 32, 32
          %482 = vsyncadd [#allocation22], %s481
          %s484 = sshll.u32 [#allocation21], 4
          %s485 = int_to_ptr.vmem [resolvable:$true] %s484
          %487 = dma.hbm_to_vmem [thread:$0]  %s11, 32, %s485, [#allocation22]
        $region52: #{decoder_layer_c_forward.6} parent=11 // pred_fallthru
          _
      $region12: #{decoder_layer_c_forward.6} parent=5 // pred_fallthru
        _
      %p488 = scmp.lt.s32.totalorder %s32, 2
      // Predicated region
      $region53: #{decoder_layer_c_forward.6} parent=5 // pred_check
        %p489 = pneg %p488
      $region54: #{decoder_layer_c_forward.6} parent=5 // pred_check_branch
        %491 = sbr.rel (%p489) target = $region56
      $region55: #{decoder_layer_c_forward.6} parent=5 // pred_region
        // Predicated region
        $region57: #{decoder_layer_c_forward.6} parent=55 // pred_check
          %p492 = pneg %p66
        $region58: #{decoder_layer_c_forward.6} parent=55 // pred_check_branch
          %494 = sbr.rel (%p492) target = $region60
        $region59: #{decoder_layer_c_forward.6} parent=55 // pred_region
          %s495 = sand.u32 %s56, 1
          %s496 = scalar_lea.sflag [#allocation4], %s495
          %s497 = sand.u32 %s56, 1
          %s498 = smul.addr %s497, 32
          %s499 = scalar_lea.vmem [#allocation3], %s498
          %s500 = smul.u32 2, %s40
          %s502 = ssub.s32 512, 512
          %503 = vsyncadd %s496, %s502
          %s504 = smul.addr %s500, 2
          %s505 = smul.addr %s39, 4
          %s506 = sadd.s32 %s504, %s505
          %s507 = smul.addr %s506, 128
          %s508 = scalar_lea.hbm %s0, %s507
          %s509 = sshll.u32 %s499, 4
          %s510 = int_to_ptr.vmem [resolvable:$true] %s509
          %515 = dma.hbm_to_vmem [thread:$0]  %s508, 512, %s510, %s496, 256, 256, 16
        $region60: #{decoder_layer_c_forward.6} parent=55 // pred_fallthru
          _
        // Predicated region
        $region61: #{decoder_layer_c_forward.6} parent=55 // pred_check
          %p516 = pneg %p92
        $region62: #{decoder_layer_c_forward.6} parent=55 // pred_check_branch
          %518 = sbr.rel (%p516) target = $region64
        $region63: #{decoder_layer_c_forward.6} parent=55 // pred_region
          %s519 = sand.u32 %s32, 1
          %s520 = scalar_lea.sflag [#allocation7], %s519
          %s521 = sand.u32 %s82, 1
          %s522 = smul.addr %s521, 32
          %s523 = scalar_lea.vmem [#allocation6], %s522
          %s525 = ssub.s32 512, 512
          %526 = vsyncadd %s520, %s525
          %s527 = smul.addr %s39, 4
          %s528 = smul.addr %s527, 128
          %s529 = scalar_lea.hbm %s1, %s528
          %s530 = sshll.u32 %s523, 4
          %s531 = int_to_ptr.vmem [resolvable:$true] %s530
          %536 = dma.hbm_to_vmem [thread:$0]  %s529, 512, %s531, %s520, 256, 256, 16
        $region64: #{decoder_layer_c_forward.6} parent=55 // pred_fallthru
          _
      $region56: #{decoder_layer_c_forward.6} parent=5 // pred_fallthru
        _
      %p537 = scmp.le.s32.totalorder 1, %s32
      %p538 = scmp.lt.s32.totalorder %s32, 3
      %p539 = pnand %p537, %p538
      %p540 = pneg %p539
      // Predicated region
      $region65: #{decoder_layer_c_forward.6} parent=5 // pred_check
        _
      $region66: #{decoder_layer_c_forward.6} parent=5 // pred_check_branch
        %542 = sbr.rel (%p539) target = $region68
      $region67: #{decoder_layer_c_forward.6} parent=5 // pred_region
        %s543 = ssub.s32 %s32, 1
        %s544 = sand.u32 %s59, 1
        %s545 = scalar_lea.sflag [#allocation4], %s544
        %s546 = sand.u32 %s59, 1
        %s547 = smul.addr %s546, 32
        %s548 = scalar_lea.vmem [#allocation3], %s547
        // Predicated region
        $region69: #{decoder_layer_c_forward.6} parent=67 // pred_check
          %p549 = pneg %p72
        $region70: #{decoder_layer_c_forward.6} parent=67 // pred_check_branch
          %551 = sbr.rel (%p549) target = $region72
        $region71: #{decoder_layer_c_forward.6} parent=67 // pred_region
          %552 = dma.done %s545, 512
        $region72: #{decoder_layer_c_forward.6} parent=67 // pred_fallthru
          _
        %s553 = sand.u32 %s37, 1
        %s554 = scalar_lea.sflag [#allocation7], %s553
        %s555 = sand.u32 %s85, 1
        %s556 = smul.addr %s555, 32
        %s557 = scalar_lea.vmem [#allocation6], %s556
        // Predicated region
        $region73: #{decoder_layer_c_forward.6} parent=67 // pred_check
          %p558 = pneg %p98
        $region74: #{decoder_layer_c_forward.6} parent=67 // pred_check_branch
          %560 = sbr.rel (%p558) target = $region76
        $region75: #{decoder_layer_c_forward.6} parent=67 // pred_region
          %561 = dma.done %s554, 512
        $region76: #{decoder_layer_c_forward.6} parent=67 // pred_fallthru
          _
        // Predicated region
        $region77: #{decoder_layer_c_forward.6} parent=67 // pred_check
          %p562 = pneg %p124
        $region78: #{decoder_layer_c_forward.6} parent=67 // pred_check_branch
          %564 = sbr.rel (%p562) target = $region80
        $region79: #{decoder_layer_c_forward.6} parent=67 // pred_region
          %565 = dma.done [#allocation7], 128
        $region80: #{decoder_layer_c_forward.6} parent=67 // pred_fallthru
          _
        // Predicated region
        $region81: #{decoder_layer_c_forward.6} parent=67 // pred_check
          %p566 = pneg %p150
        $region82: #{decoder_layer_c_forward.6} parent=67 // pred_check_branch
          %568 = sbr.rel (%p566) target = $region84
        $region83: #{decoder_layer_c_forward.6} parent=67 // pred_region
          %569 = dma.done [#allocation10], 512
        $region84: #{decoder_layer_c_forward.6} parent=67 // pred_fallthru
          _
        // Predicated region
        $region85: #{decoder_layer_c_forward.6} parent=67 // pred_check
          %p570 = pneg %p171
        $region86: #{decoder_layer_c_forward.6} parent=67 // pred_check_branch
          %572 = sbr.rel (%p570) target = $region88
        $region87: #{decoder_layer_c_forward.6} parent=67 // pred_region
          %573 = dma.done [#allocation10], 4096
        $region88: #{decoder_layer_c_forward.6} parent=67 // pred_fallthru
          _
        // Predicated region
        $region89: #{decoder_layer_c_forward.6} parent=67 // pred_check
          %p574 = pneg %p192
        $region90: #{decoder_layer_c_forward.6} parent=67 // pred_check_branch
          %576 = sbr.rel (%p574) target = $region92
        $region91: #{decoder_layer_c_forward.6} parent=67 // pred_region
          %577 = dma.done [#allocation13], 32
        $region92: #{decoder_layer_c_forward.6} parent=67 // pred_fallthru
          _
        // Predicated region
        $region93: #{decoder_layer_c_forward.6} parent=67 // pred_check
          %p578 = pneg %p213
        $region94: #{decoder_layer_c_forward.6} parent=67 // pred_check_branch
          %580 = sbr.rel (%p578) target = $region96
        $region95: #{decoder_layer_c_forward.6} parent=67 // pred_region
          %581 = dma.done [#allocation13], 8192
        $region96: #{decoder_layer_c_forward.6} parent=67 // pred_fallthru
          _
        // Predicated region
        $region97: #{decoder_layer_c_forward.6} parent=67 // pred_check
          %p582 = pneg %p234
        $region98: #{decoder_layer_c_forward.6} parent=67 // pred_check_branch
          %584 = sbr.rel (%p582) target = $region100
        $region99: #{decoder_layer_c_forward.6} parent=67 // pred_region
          %585 = dma.done [#allocation16], 64
        $region100: #{decoder_layer_c_forward.6} parent=67 // pred_fallthru
          _
        // Predicated region
        $region101: #{decoder_layer_c_forward.6} parent=67 // pred_check
          %p586 = pneg %p255
        $region102: #{decoder_layer_c_forward.6} parent=67 // pred_check_branch
          %588 = sbr.rel (%p586) target = $region104
        $region103: #{decoder_layer_c_forward.6} parent=67 // pred_region
          %589 = dma.done [#allocation16], 4096
        $region104: #{decoder_layer_c_forward.6} parent=67 // pred_fallthru
          _
        // Predicated region
        $region105: #{decoder_layer_c_forward.6} parent=67 // pred_check
          %p590 = pneg %p276
        $region106: #{decoder_layer_c_forward.6} parent=67 // pred_check_branch
          %592 = sbr.rel (%p590) target = $region108
        $region107: #{decoder_layer_c_forward.6} parent=67 // pred_region
          %593 = dma.done [#allocation19], 32
        $region108: #{decoder_layer_c_forward.6} parent=67 // pred_fallthru
          _
        // Predicated region
        $region109: #{decoder_layer_c_forward.6} parent=67 // pred_check
          %p594 = pneg %p297
        $region110: #{decoder_layer_c_forward.6} parent=67 // pred_check_branch
          %596 = sbr.rel (%p594) target = $region112
        $region111: #{decoder_layer_c_forward.6} parent=67 // pred_region
          %597 = dma.done [#allocation19], 32
        $region112: #{decoder_layer_c_forward.6} parent=67 // pred_fallthru
          _
        // Predicated region
        $region113: #{decoder_layer_c_forward.6} parent=67 // pred_check
          %p598 = pneg %p318
        $region114: #{decoder_layer_c_forward.6} parent=67 // pred_check_branch
          %600 = sbr.rel (%p598) target = $region116
        $region115: #{decoder_layer_c_forward.6} parent=67 // pred_region
          %601 = dma.done [#allocation22], 32
        $region116: #{decoder_layer_c_forward.6} parent=67 // pred_fallthru
          _
        %s602 = sand.u32 %s59, 1
        %s603 = scalar_lea.sflag [#allocation4], %s602
        %s604 = sand.u32 %s59, 1
        %s605 = smul.addr %s604, 32
        %s606 = scalar_lea.vmem [#allocation3], %s605
        %p607 = pneg %p72
        %p608 = pneg %p69
        %s609 = sand.u32 %s37, 1
        %s610 = scalar_lea.sflag [#allocation7], %s609
        %s611 = sand.u32 %s85, 1
        %s612 = smul.addr %s611, 32
        %s613 = scalar_lea.vmem [#allocation6], %s612
        %p614 = pneg %p98
        %p615 = pneg %p95
        %p616 = pneg %p124
        %p617 = pneg %p121
        %p618 = pneg %p150
        %p619 = pneg %p147
        %p620 = pneg %p171
        %p621 = pneg %p168
        %p622 = pneg %p192
        %p623 = pneg %p189
        %p624 = pneg %p213
        %p625 = pneg %p210
        %p626 = pneg %p234
        %p627 = pneg %p231
        %p628 = pneg %p255
        %p629 = pneg %p252
        %p630 = pneg %p276
        %p631 = pneg %p273
        %p632 = pneg %p297
        %p633 = pneg %p294
        %p634 = pneg %p318
        %p635 = pneg %p315
        %p636 = pneg %p346
        %p637 = pneg %p343
        %s638 = sand.u32 %s333, 1
        %s639 = scalar_lea.sflag [#allocation5], %s638
        %s640 = sand.u32 %s333, 1
        %s641 = smul.addr %s640, 16
        %s642 = scalar_lea.vmem [#allocation23], %s641
        %s643 = smul.u32 2, %s42
        %s644 = smul.u32 2, %s42
        %s645 = smul.u32 2, %s42
        %s646 = smul.u32 2, %s42
        %p648 = scmp.eq.s32.totalorder %s42, 0
        // Predicated region
        $region117: #{decoder_layer_c_forward.6} parent=67 // pred_check
          %p649 = pneg %p648
        $region118: #{decoder_layer_c_forward.6} parent=67 // pred_check_branch
          %651 = sbr.rel (%p649) target = $region120
        $region119: #{decoder_layer_c_forward.6} parent=67 // pred_region
          %v652 = vld [vmem:[%s557] sm:$0xff]
          %v653 = vld [vmem:[%s557 + $0x8] sm:$0xff]
          %v654 = vld [vmem:[%s557 + $0x10] sm:$0xff]
          %v655 = vld [vmem:[%s557 + $0x18] sm:$0xff]
          %v656 = vpack.c.bf16 %v654, %v652
          %v657 = vpack.c.bf16 %v655, %v653
          %v658 = vld [vmem:[#allocation14] sm:$0xff]
          %v659 = vld [vmem:[#allocation14 + $0x8] sm:$0xff]
          %v660 = vld [vmem:[#allocation14 + $0x10] sm:$0xff]
          %v661 = vld [vmem:[#allocation14 + $0x18] sm:$0xff]
          %v662 = vld [vmem:[#allocation14 + $0x20] sm:$0xff]
          %v663 = vld [vmem:[#allocation14 + $0x28] sm:$0xff]
          %v664 = vld [vmem:[#allocation14 + $0x30] sm:$0xff]
          %v665 = vld [vmem:[#allocation14 + $0x38] sm:$0xff]
          %v666 = vld [vmem:[#allocation14 + $0x40] sm:$0xff]
          %v667 = vld [vmem:[#allocation14 + $0x48] sm:$0xff]
          %v668 = vld [vmem:[#allocation14 + $0x50] sm:$0xff]
          %v669 = vld [vmem:[#allocation14 + $0x58] sm:$0xff]
          %v670 = vld [vmem:[#allocation14 + $0x60] sm:$0xff]
          %v671 = vld [vmem:[#allocation14 + $0x68] sm:$0xff]
          %v672 = vld [vmem:[#allocation14 + $0x70] sm:$0xff]
          %v673 = vld [vmem:[#allocation14 + $0x78] sm:$0xff]
          %v674 = vld [vmem:[#allocation14 + $0x80] sm:$0xff]
          %v675 = vld [vmem:[#allocation14 + $0x88] sm:$0xff]
          %v676 = vld [vmem:[#allocation14 + $0x90] sm:$0xff]
          %v677 = vld [vmem:[#allocation14 + $0x98] sm:$0xff]
          %v678 = vld [vmem:[#allocation14 + $0xa0] sm:$0xff]
          %v679 = vld [vmem:[#allocation14 + $0xa8] sm:$0xff]
          %v680 = vld [vmem:[#allocation14 + $0xb0] sm:$0xff]
          %v681 = vld [vmem:[#allocation14 + $0xb8] sm:$0xff]
          %v682 = vld [vmem:[#allocation14 + $0xc0] sm:$0xff]
          %v683 = vld [vmem:[#allocation14 + $0xc8] sm:$0xff]
          %v684 = vld [vmem:[#allocation14 + $0xd0] sm:$0xff]
          %v685 = vld [vmem:[#allocation14 + $0xd8] sm:$0xff]
          %v686 = vld [vmem:[#allocation14 + $0xe0] sm:$0xff]
          %v687 = vld [vmem:[#allocation14 + $0xe8] sm:$0xff]
          %v688 = vld [vmem:[#allocation14 + $0xf0] sm:$0xff]
          %v689 = vld [vmem:[#allocation14 + $0xf8] sm:$0xff]
          %v690 = vld [vmem:[#allocation14 + $0x100] sm:$0xff]
          %v691 = vld [vmem:[#allocation14 + $0x108] sm:$0xff]
          %v692 = vld [vmem:[#allocation14 + $0x110] sm:$0xff]
          %v693 = vld [vmem:[#allocation14 + $0x118] sm:$0xff]
          %v694 = vld [vmem:[#allocation14 + $0x120] sm:$0xff]
          %v695 = vld [vmem:[#allocation14 + $0x128] sm:$0xff]
          %v696 = vld [vmem:[#allocation14 + $0x130] sm:$0xff]
          %v697 = vld [vmem:[#allocation14 + $0x138] sm:$0xff]
          %v698 = vld [vmem:[#allocation14 + $0x140] sm:$0xff]
          %v699 = vld [vmem:[#allocation14 + $0x148] sm:$0xff]
          %v700 = vld [vmem:[#allocation14 + $0x150] sm:$0xff]
          %v701 = vld [vmem:[#allocation14 + $0x158] sm:$0xff]
          %v702 = vld [vmem:[#allocation14 + $0x160] sm:$0xff]
          %v703 = vld [vmem:[#allocation14 + $0x168] sm:$0xff]
          %v704 = vld [vmem:[#allocation14 + $0x170] sm:$0xff]
          %v705 = vld [vmem:[#allocation14 + $0x178] sm:$0xff]
          %v706 = vld [vmem:[#allocation14 + $0x180] sm:$0xff]
          %v707 = vld [vmem:[#allocation14 + $0x188] sm:$0xff]
          %v708 = vld [vmem:[#allocation14 + $0x190] sm:$0xff]
          %v709 = vld [vmem:[#allocation14 + $0x198] sm:$0xff]
          %v710 = vld [vmem:[#allocation14 + $0x1a0] sm:$0xff]
          %v711 = vld [vmem:[#allocation14 + $0x1a8] sm:$0xff]
          %v712 = vld [vmem:[#allocation14 + $0x1b0] sm:$0xff]
          %v713 = vld [vmem:[#allocation14 + $0x1b8] sm:$0xff]
          %v714 = vld [vmem:[#allocation14 + $0x1c0] sm:$0xff]
          %v715 = vld [vmem:[#allocation14 + $0x1c8] sm:$0xff]
          %v716 = vld [vmem:[#allocation14 + $0x1d0] sm:$0xff]
          %v717 = vld [vmem:[#allocation14 + $0x1d8] sm:$0xff]
          %v718 = vld [vmem:[#allocation14 + $0x1e0] sm:$0xff]
          %v719 = vld [vmem:[#allocation14 + $0x1e8] sm:$0xff]
          %v720 = vld [vmem:[#allocation14 + $0x1f0] sm:$0xff]
          %v721 = vld [vmem:[#allocation14 + $0x1f8] sm:$0xff]
          %v722 = vld [vmem:[#allocation15] sm:$0xf]
          %v724 = vlaneseq
          %v725 = vshrl.u32 %v724, 7
          %v726 = vsub.s32 0, %v725
          %v727 = vrot.slane %v722, %v726
          %v728 = vlaneseq
          %v729 = vshrl.u32 %v728, 7
          %v730 = vsub.s32 1, %v729
          %v731 = vrot.slane %v722, %v730
          %v732 = vlaneseq
          %v733 = vshrl.u32 %v732, 7
          %v734 = vsub.s32 2, %v733
          %v735 = vrot.slane %v722, %v734
          %v736 = vlaneseq
          %v737 = vshrl.u32 %v736, 7
          %v738 = vsub.s32 3, %v737
          %v739 = vrot.slane %v722, %v738
          %v808 = vunpack.c.l.b16 %v658
          %v809 = vunpack.c.h.b16 %v658
          %v810 = vunpack.c.l.b16 %v659
          %v811 = vunpack.c.h.b16 %v659
          %v812 = vunpack.c.l.b16 %v660
          %v813 = vunpack.c.h.b16 %v660
          %v814 = vunpack.c.l.b16 %v661
          %v815 = vunpack.c.h.b16 %v661
          %v816 = vunpack.c.l.b16 %v662
          %v817 = vunpack.c.h.b16 %v662
          %v818 = vunpack.c.l.b16 %v663
          %v819 = vunpack.c.h.b16 %v663
          %v820 = vunpack.c.l.b16 %v664
          %v821 = vunpack.c.h.b16 %v664
          %v822 = vunpack.c.l.b16 %v665
          %v823 = vunpack.c.h.b16 %v665
          %v824 = vunpack.c.l.b16 %v666
          %v825 = vunpack.c.h.b16 %v666
          %v826 = vunpack.c.l.b16 %v667
          %v827 = vunpack.c.h.b16 %v667
          %v828 = vunpack.c.l.b16 %v668
          %v829 = vunpack.c.h.b16 %v668
          %v830 = vunpack.c.l.b16 %v669
          %v831 = vunpack.c.h.b16 %v669
          %v832 = vunpack.c.l.b16 %v670
          %v833 = vunpack.c.h.b16 %v670
          %v834 = vunpack.c.l.b16 %v671
          %v835 = vunpack.c.h.b16 %v671
          %v836 = vunpack.c.l.b16 %v672
          %v837 = vunpack.c.h.b16 %v672
          %v838 = vunpack.c.l.b16 %v673
          %v839 = vunpack.c.h.b16 %v673
          %v840 = vunpack.c.l.b16 %v674
          %v841 = vunpack.c.h.b16 %v674
          %v842 = vunpack.c.l.b16 %v675
          %v843 = vunpack.c.h.b16 %v675
          %v844 = vunpack.c.l.b16 %v676
          %v845 = vunpack.c.h.b16 %v676
          %v846 = vunpack.c.l.b16 %v677
          %v847 = vunpack.c.h.b16 %v677
          %v848 = vunpack.c.l.b16 %v678
          %v849 = vunpack.c.h.b16 %v678
          %v850 = vunpack.c.l.b16 %v679
          %v851 = vunpack.c.h.b16 %v679
          %v852 = vunpack.c.l.b16 %v680
          %v853 = vunpack.c.h.b16 %v680
          %v854 = vunpack.c.l.b16 %v681
          %v855 = vunpack.c.h.b16 %v681
          %v856 = vunpack.c.l.b16 %v682
          %v857 = vunpack.c.h.b16 %v682
          %v858 = vunpack.c.l.b16 %v683
          %v859 = vunpack.c.h.b16 %v683
          %v860 = vunpack.c.l.b16 %v684
          %v861 = vunpack.c.h.b16 %v684
          %v862 = vunpack.c.l.b16 %v685
          %v863 = vunpack.c.h.b16 %v685
          %v864 = vunpack.c.l.b16 %v686
          %v865 = vunpack.c.h.b16 %v686
          %v866 = vunpack.c.l.b16 %v687
          %v867 = vunpack.c.h.b16 %v687
          %v868 = vunpack.c.l.b16 %v688
          %v869 = vunpack.c.h.b16 %v688
          %v870 = vunpack.c.l.b16 %v689
          %v871 = vunpack.c.h.b16 %v689
          %v872 = vunpack.c.l.b16 %v690
          %v873 = vunpack.c.h.b16 %v690
          %v874 = vunpack.c.l.b16 %v691
          %v875 = vunpack.c.h.b16 %v691
          %v876 = vunpack.c.l.b16 %v692
          %v877 = vunpack.c.h.b16 %v692
          %v878 = vunpack.c.l.b16 %v693
          %v879 = vunpack.c.h.b16 %v693
          %v880 = vunpack.c.l.b16 %v694
          %v881 = vunpack.c.h.b16 %v694
          %v882 = vunpack.c.l.b16 %v695
          %v883 = vunpack.c.h.b16 %v695
          %v884 = vunpack.c.l.b16 %v696
          %v885 = vunpack.c.h.b16 %v696
          %v886 = vunpack.c.l.b16 %v697
          %v887 = vunpack.c.h.b16 %v697
          %v888 = vunpack.c.l.b16 %v698
          %v889 = vunpack.c.h.b16 %v698
          %v890 = vunpack.c.l.b16 %v699
          %v891 = vunpack.c.h.b16 %v699
          %v892 = vunpack.c.l.b16 %v700
          %v893 = vunpack.c.h.b16 %v700
          %v894 = vunpack.c.l.b16 %v701
          %v895 = vunpack.c.h.b16 %v701
          %v896 = vunpack.c.l.b16 %v702
          %v897 = vunpack.c.h.b16 %v702
          %v898 = vunpack.c.l.b16 %v703
          %v899 = vunpack.c.h.b16 %v703
          %v900 = vunpack.c.l.b16 %v704
          %v901 = vunpack.c.h.b16 %v704
          %v902 = vunpack.c.l.b16 %v705
          %v903 = vunpack.c.h.b16 %v705
          %v904 = vunpack.c.l.b16 %v706
          %v905 = vunpack.c.h.b16 %v706
          %v906 = vunpack.c.l.b16 %v707
          %v907 = vunpack.c.h.b16 %v707
          %v908 = vunpack.c.l.b16 %v708
          %v909 = vunpack.c.h.b16 %v708
          %v910 = vunpack.c.l.b16 %v709
          %v911 = vunpack.c.h.b16 %v709
          %v912 = vunpack.c.l.b16 %v710
          %v913 = vunpack.c.h.b16 %v710
          %v914 = vunpack.c.l.b16 %v711
          %v915 = vunpack.c.h.b16 %v711
          %v916 = vunpack.c.l.b16 %v712
          %v917 = vunpack.c.h.b16 %v712
          %v918 = vunpack.c.l.b16 %v713
          %v919 = vunpack.c.h.b16 %v713
          %v920 = vunpack.c.l.b16 %v714
          %v921 = vunpack.c.h.b16 %v714
          %v922 = vunpack.c.l.b16 %v715
          %v923 = vunpack.c.h.b16 %v715
          %v924 = vunpack.c.l.b16 %v716
          %v925 = vunpack.c.h.b16 %v716
          %v926 = vunpack.c.l.b16 %v717
          %v927 = vunpack.c.h.b16 %v717
          %v928 = vunpack.c.l.b16 %v718
          %v929 = vunpack.c.h.b16 %v718
          %v930 = vunpack.c.l.b16 %v719
          %v931 = vunpack.c.h.b16 %v719
          %v932 = vunpack.c.l.b16 %v720
          %v933 = vunpack.c.h.b16 %v720
          %v934 = vunpack.c.l.b16 %v721
          %v935 = vunpack.c.h.b16 %v721
          %v936 = vpack.c.b16 %v812, %v808
          %v937 = vpack.c.b16 %v813, %v809
          %v938 = vpack.c.b16 %v814, %v810
          %v939 = vpack.c.b16 %v815, %v811
          %v940 = vpack.c.b16 %v820, %v816
          %v941 = vpack.c.b16 %v821, %v817
          %v942 = vpack.c.b16 %v822, %v818
          %v943 = vpack.c.b16 %v823, %v819
          %v944 = vpack.c.b16 %v828, %v824
          %v945 = vpack.c.b16 %v829, %v825
          %v946 = vpack.c.b16 %v830, %v826
          %v947 = vpack.c.b16 %v831, %v827
          %v948 = vpack.c.b16 %v836, %v832
          %v949 = vpack.c.b16 %v837, %v833
          %v950 = vpack.c.b16 %v838, %v834
          %v951 = vpack.c.b16 %v839, %v835
          %v952 = vpack.c.b16 %v844, %v840
          %v953 = vpack.c.b16 %v845, %v841
          %v954 = vpack.c.b16 %v846, %v842
          %v955 = vpack.c.b16 %v847, %v843
          %v956 = vpack.c.b16 %v852, %v848
          %v957 = vpack.c.b16 %v853, %v849
          %v958 = vpack.c.b16 %v854, %v850
          %v959 = vpack.c.b16 %v855, %v851
          %v960 = vpack.c.b16 %v860, %v856
          %v961 = vpack.c.b16 %v861, %v857
          %v962 = vpack.c.b16 %v862, %v858
          %v963 = vpack.c.b16 %v863, %v859
          %v964 = vpack.c.b16 %v868, %v864
          %v965 = vpack.c.b16 %v869, %v865
          %v966 = vpack.c.b16 %v870, %v866
          %v967 = vpack.c.b16 %v871, %v867
          %v968 = vpack.c.b16 %v876, %v872
          %v969 = vpack.c.b16 %v877, %v873
          %v970 = vpack.c.b16 %v878, %v874
          %v971 = vpack.c.b16 %v879, %v875
          %v972 = vpack.c.b16 %v884, %v880
          %v973 = vpack.c.b16 %v885, %v881
          %v974 = vpack.c.b16 %v886, %v882
          %v975 = vpack.c.b16 %v887, %v883
          %v976 = vpack.c.b16 %v892, %v888
          %v977 = vpack.c.b16 %v893, %v889
          %v978 = vpack.c.b16 %v894, %v890
          %v979 = vpack.c.b16 %v895, %v891
          %v980 = vpack.c.b16 %v900, %v896
          %v981 = vpack.c.b16 %v901, %v897
          %v982 = vpack.c.b16 %v902, %v898
          %v983 = vpack.c.b16 %v903, %v899
          %v984 = vpack.c.b16 %v908, %v904
          %v985 = vpack.c.b16 %v909, %v905
          %v986 = vpack.c.b16 %v910, %v906
          %v987 = vpack.c.b16 %v911, %v907
          %v988 = vpack.c.b16 %v916, %v912
          %v989 = vpack.c.b16 %v917, %v913
          %v990 = vpack.c.b16 %v918, %v914
          %v991 = vpack.c.b16 %v919, %v915
          %v992 = vpack.c.b16 %v924, %v920
          %v993 = vpack.c.b16 %v925, %v921
          %v994 = vpack.c.b16 %v926, %v922
          %v995 = vpack.c.b16 %v927, %v923
          %v996 = vpack.c.b16 %v932, %v928
          %v997 = vpack.c.b16 %v933, %v929
          %v998 = vpack.c.b16 %v934, %v930
          %v999 = vpack.c.b16 %v935, %v931
          %1064 = vmatprep.subr.bf16.mxu0 %v937
          %1065 = vmatpush1.bf16.msra.mxu0 %v936
          %1066 = vmatprep.subr.bf16.mxu0 %v941
          %1067 = vmatpush1.bf16.msra.mxu0 %v940
          %1068 = vmatprep.subr.bf16.mxu0 %v945
          %1069 = vmatpush1.bf16.msra.mxu0 %v944
          %1070 = vmatprep.subr.bf16.mxu0 %v949
          %1071 = vmatpush1.bf16.msra.mxu0 %v948
          %1072 = vmatprep.subr.bf16.mxu0 %v953
          %1073 = vmatpush1.bf16.msra.mxu0 %v952
          %1074 = vmatprep.subr.bf16.mxu0 %v957
          %1075 = vmatpush1.bf16.msra.mxu0 %v956
          %1076 = vmatprep.subr.bf16.mxu0 %v961
          %1077 = vmatpush1.bf16.msra.mxu0 %v960
          %1078 = vmatprep.subr.bf16.mxu0 %v965
          %1079 = vmatpush1.bf16.msra.mxu0 %v964
          %1080 = vmatprep.subr.bf16.mxu0 %v969
          %1081 = vmatpush1.bf16.msra.mxu0 %v968
          %1082 = vmatprep.subr.bf16.mxu0 %v973
          %1083 = vmatpush1.bf16.msra.mxu0 %v972
          %1084 = vmatprep.subr.bf16.mxu0 %v977
          %1085 = vmatpush1.bf16.msra.mxu0 %v976
          %1086 = vmatprep.subr.bf16.mxu0 %v981
          %1087 = vmatpush1.bf16.msra.mxu0 %v980
          %1088 = vmatprep.subr.bf16.mxu0 %v985
          %1089 = vmatpush1.bf16.msra.mxu0 %v984
          %1090 = vmatprep.subr.bf16.mxu0 %v989
          %1091 = vmatpush1.bf16.msra.mxu0 %v988
          %1092 = vmatprep.subr.bf16.mxu0 %v993
          %1093 = vmatpush1.bf16.msra.mxu0 %v992
          %1094 = vmatprep.subr.bf16.mxu0 %v997
          %1095 = vmatpush1.bf16.msra.mxu0 %v996
          %1096 = vmatprep.mubr.bf16.mxu0 %v657
          %1097 = vmatmul.mubr.bf16.gmra.mrb[0].mxu0 %v656
          %v1098 = vpop.f32.mrb[0].mxu0
          %v1099 = vadd.f32 %v727, %v1098
          %v1100 = vpop.f32.mrb[0].mxu0
          %v1101 = vadd.f32 %v731, %v1100
          %v1102 = vpop.f32.mrb[0].mxu0
          %v1103 = vadd.f32 %v727, %v1102
          %v1104 = vpop.f32.mrb[0].mxu0
          %v1105 = vadd.f32 %v731, %v1104
          %1106 = vdwg.mxu0
          %1107 = vmatprep.subr.bf16.mxu0 %v939
          %1108 = vmatpush1.bf16.msra.mxu0 %v938
          %1109 = vmatprep.subr.bf16.mxu0 %v943
          %1110 = vmatpush1.bf16.msra.mxu0 %v942
          %1111 = vmatprep.subr.bf16.mxu0 %v947
          %1112 = vmatpush1.bf16.msra.mxu0 %v946
          %1113 = vmatprep.subr.bf16.mxu0 %v951
          %1114 = vmatpush1.bf16.msra.mxu0 %v950
          %1115 = vmatprep.subr.bf16.mxu0 %v955
          %1116 = vmatpush1.bf16.msra.mxu0 %v954
          %1117 = vmatprep.subr.bf16.mxu0 %v959
          %1118 = vmatpush1.bf16.msra.mxu0 %v958
          %1119 = vmatprep.subr.bf16.mxu0 %v963
          %1120 = vmatpush1.bf16.msra.mxu0 %v962
          %1121 = vmatprep.subr.bf16.mxu0 %v967
          %1122 = vmatpush1.bf16.msra.mxu0 %v966
          %1123 = vmatprep.subr.bf16.mxu0 %v971
          %1124 = vmatpush1.bf16.msra.mxu0 %v970
          %1125 = vmatprep.subr.bf16.mxu0 %v975
          %1126 = vmatpush1.bf16.msra.mxu0 %v974
          %1127 = vmatprep.subr.bf16.mxu0 %v979
          %1128 = vmatpush1.bf16.msra.mxu0 %v978
          %1129 = vmatprep.subr.bf16.mxu0 %v983
          %1130 = vmatpush1.bf16.msra.mxu0 %v982
          %1131 = vmatprep.subr.bf16.mxu0 %v987
          %1132 = vmatpush1.bf16.msra.mxu0 %v986
          %1133 = vmatprep.subr.bf16.mxu0 %v991
          %1134 = vmatpush1.bf16.msra.mxu0 %v990
          %1135 = vmatprep.subr.bf16.mxu0 %v995
          %1136 = vmatpush1.bf16.msra.mxu0 %v994
          %1137 = vmatprep.subr.bf16.mxu0 %v999
          %1138 = vmatpush1.bf16.msra.mxu0 %v998
          %1139 = vmatprep.mubr.bf16.mxu0 %v657
          %1140 = vmatmul.mubr.bf16.gmra.mrb[0].mxu0 %v656
          %v1141 = vpop.f32.mrb[0].mxu0
          %v1142 = vadd.f32 %v735, %v1141
          %v1143 = vpop.f32.mrb[0].mxu0
          %v1144 = vadd.f32 %v739, %v1143
          %v1145 = vpop.f32.mrb[0].mxu0
          %v1146 = vadd.f32 %v735, %v1145
          %v1147 = vpop.f32.mrb[0].mxu0
          %v1148 = vadd.f32 %v739, %v1147
          %1149 = vdwg.mxu0
          %v1150 = vpack.c.bf16 %v1103, %v1099
          %v1151 = vpack.c.bf16 %v1105, %v1101
          %v1152 = vpack.c.bf16 %v1146, %v1142
          %v1153 = vpack.c.bf16 %v1148, %v1144
          %1154 = vst [vmem:[#allocation2] sm:$0xff] %v1150
          %1155 = vst [vmem:[#allocation2 + $0x8] sm:$0xff] %v1151
          %1156 = vst [vmem:[#allocation2 + $0x10] sm:$0xff] %v1152
          %1157 = vst [vmem:[#allocation2 + $0x18] sm:$0xff] %v1153
        $region120: #{decoder_layer_c_forward.6} parent=67 // pred_fallthru
          _
        %v1158 = vld [vmem:[%s548] sm:$0xff]
        %v1159 = vld [vmem:[%s548 + $0x8] sm:$0xff]
        %v1160 = vld [vmem:[%s548 + $0x10] sm:$0xff]
        %v1161 = vld [vmem:[%s548 + $0x18] sm:$0xff]
        %v1162 = vld [vmem:[#allocation9] sm:$0xff]
        %v1163 = vld [vmem:[#allocation9 + $0x8] sm:$0xff]
        %v1164 = vld [vmem:[#allocation9 + $0x10] sm:$0xff]
        %v1165 = vld [vmem:[#allocation9 + $0x18] sm:$0xff]
        %v1166 = vadd.f32 %v1158, %v1162
        %v1167 = vadd.f32 %v1159, %v1163
        %v1168 = vadd.f32 %v1160, %v1164
        %v1169 = vadd.f32 %v1161, %v1165
        %v1170 = vpack.c.bf16 %v1168, %v1166
        %v1171 = vpack.c.bf16 %v1169, %v1167
        %v1172 = vld [vmem:[#allocation11] sm:$0xff]
        %v1173 = vld [vmem:[#allocation11 + $0x8] sm:$0xff]
        %v1174 = vld [vmem:[#allocation11 + $0x10] sm:$0xff]
        %v1175 = vld [vmem:[#allocation11 + $0x18] sm:$0xff]
        %v1176 = vld [vmem:[#allocation11 + $0x20] sm:$0xff]
        %v1177 = vld [vmem:[#allocation11 + $0x28] sm:$0xff]
        %v1178 = vld [vmem:[#allocation11 + $0x30] sm:$0xff]
        %v1179 = vld [vmem:[#allocation11 + $0x38] sm:$0xff]
        %v1180 = vld [vmem:[#allocation11 + $0x40] sm:$0xff]
        %v1181 = vld [vmem:[#allocation11 + $0x48] sm:$0xff]
        %v1182 = vld [vmem:[#allocation11 + $0x50] sm:$0xff]
        %v1183 = vld [vmem:[#allocation11 + $0x58] sm:$0xff]
        %v1184 = vld [vmem:[#allocation11 + $0x60] sm:$0xff]
        %v1185 = vld [vmem:[#allocation11 + $0x68] sm:$0xff]
        %v1186 = vld [vmem:[#allocation11 + $0x70] sm:$0xff]
        %v1187 = vld [vmem:[#allocation11 + $0x78] sm:$0xff]
        %v1188 = vld [vmem:[#allocation11 + $0x80] sm:$0xff]
        %v1189 = vld [vmem:[#allocation11 + $0x88] sm:$0xff]
        %v1190 = vld [vmem:[#allocation11 + $0x90] sm:$0xff]
        %v1191 = vld [vmem:[#allocation11 + $0x98] sm:$0xff]
        %v1192 = vld [vmem:[#allocation11 + $0xa0] sm:$0xff]
        %v1193 = vld [vmem:[#allocation11 + $0xa8] sm:$0xff]
        %v1194 = vld [vmem:[#allocation11 + $0xb0] sm:$0xff]
        %v1195 = vld [vmem:[#allocation11 + $0xb8] sm:$0xff]
        %v1196 = vld [vmem:[#allocation11 + $0xc0] sm:$0xff]
        %v1197 = vld [vmem:[#allocation11 + $0xc8] sm:$0xff]
        %v1198 = vld [vmem:[#allocation11 + $0xd0] sm:$0xff]
        %v1199 = vld [vmem:[#allocation11 + $0xd8] sm:$0xff]
        %v1200 = vld [vmem:[#allocation11 + $0xe0] sm:$0xff]
        %v1201 = vld [vmem:[#allocation11 + $0xe8] sm:$0xff]
        %v1202 = vld [vmem:[#allocation11 + $0xf0] sm:$0xff]
        %v1203 = vld [vmem:[#allocation11 + $0xf8] sm:$0xff]
        %v1204 = vld [vmem:[#allocation12] sm:$0x3]
        %v1206 = vlaneseq
        %v1207 = vshrl.u32 %v1206, 7
        %v1208 = vsub.s32 0, %v1207
        %v1209 = vrot.slane %v1204, %v1208
        %v1210 = vlaneseq
        %v1211 = vshrl.u32 %v1210, 7
        %v1212 = vsub.s32 1, %v1211
        %v1213 = vrot.slane %v1204, %v1212
        %v1248 = vunpack.c.l.b16 %v1172
        %v1249 = vunpack.c.h.b16 %v1172
        %v1250 = vunpack.c.l.b16 %v1173
        %v1251 = vunpack.c.h.b16 %v1173
        %v1252 = vunpack.c.l.b16 %v1174
        %v1253 = vunpack.c.h.b16 %v1174
        %v1254 = vunpack.c.l.b16 %v1175
        %v1255 = vunpack.c.h.b16 %v1175
        %v1256 = vunpack.c.l.b16 %v1176
        %v1257 = vunpack.c.h.b16 %v1176
        %v1258 = vunpack.c.l.b16 %v1177
        %v1259 = vunpack.c.h.b16 %v1177
        %v1260 = vunpack.c.l.b16 %v1178
        %v1261 = vunpack.c.h.b16 %v1178
        %v1262 = vunpack.c.l.b16 %v1179
        %v1263 = vunpack.c.h.b16 %v1179
        %v1264 = vunpack.c.l.b16 %v1180
        %v1265 = vunpack.c.h.b16 %v1180
        %v1266 = vunpack.c.l.b16 %v1181
        %v1267 = vunpack.c.h.b16 %v1181
        %v1268 = vunpack.c.l.b16 %v1182
        %v1269 = vunpack.c.h.b16 %v1182
        %v1270 = vunpack.c.l.b16 %v1183
        %v1271 = vunpack.c.h.b16 %v1183
        %v1272 = vunpack.c.l.b16 %v1184
        %v1273 = vunpack.c.h.b16 %v1184
        %v1274 = vunpack.c.l.b16 %v1185
        %v1275 = vunpack.c.h.b16 %v1185
        %v1276 = vunpack.c.l.b16 %v1186
        %v1277 = vunpack.c.h.b16 %v1186
        %v1278 = vunpack.c.l.b16 %v1187
        %v1279 = vunpack.c.h.b16 %v1187
        %v1280 = vunpack.c.l.b16 %v1188
        %v1281 = vunpack.c.h.b16 %v1188
        %v1282 = vunpack.c.l.b16 %v1189
        %v1283 = vunpack.c.h.b16 %v1189
        %v1284 = vunpack.c.l.b16 %v1190
        %v1285 = vunpack.c.h.b16 %v1190
        %v1286 = vunpack.c.l.b16 %v1191
        %v1287 = vunpack.c.h.b16 %v1191
        %v1288 = vunpack.c.l.b16 %v1192
        %v1289 = vunpack.c.h.b16 %v1192
        %v1290 = vunpack.c.l.b16 %v1193
        %v1291 = vunpack.c.h.b16 %v1193
        %v1292 = vunpack.c.l.b16 %v1194
        %v1293 = vunpack.c.h.b16 %v1194
        %v1294 = vunpack.c.l.b16 %v1195
        %v1295 = vunpack.c.h.b16 %v1195
        %v1296 = vunpack.c.l.b16 %v1196
        %v1297 = vunpack.c.h.b16 %v1196
        %v1298 = vunpack.c.l.b16 %v1197
        %v1299 = vunpack.c.h.b16 %v1197
        %v1300 = vunpack.c.l.b16 %v1198
        %v1301 = vunpack.c.h.b16 %v1198
        %v1302 = vunpack.c.l.b16 %v1199
        %v1303 = vunpack.c.h.b16 %v1199
        %v1304 = vunpack.c.l.b16 %v1200
        %v1305 = vunpack.c.h.b16 %v1200
        %v1306 = vunpack.c.l.b16 %v1201
        %v1307 = vunpack.c.h.b16 %v1201
        %v1308 = vunpack.c.l.b16 %v1202
        %v1309 = vunpack.c.h.b16 %v1202
        %v1310 = vunpack.c.l.b16 %v1203
        %v1311 = vunpack.c.h.b16 %v1203
        %v1312 = vpack.c.b16 %v1250, %v1248
        %v1313 = vpack.c.b16 %v1251, %v1249
        %v1314 = vpack.c.b16 %v1254, %v1252
        %v1315 = vpack.c.b16 %v1255, %v1253
        %v1316 = vpack.c.b16 %v1258, %v1256
        %v1317 = vpack.c.b16 %v1259, %v1257
        %v1318 = vpack.c.b16 %v1262, %v1260
        %v1319 = vpack.c.b16 %v1263, %v1261
        %v1320 = vpack.c.b16 %v1266, %v1264
        %v1321 = vpack.c.b16 %v1267, %v1265
        %v1322 = vpack.c.b16 %v1270, %v1268
        %v1323 = vpack.c.b16 %v1271, %v1269
        %v1324 = vpack.c.b16 %v1274, %v1272
        %v1325 = vpack.c.b16 %v1275, %v1273
        %v1326 = vpack.c.b16 %v1278, %v1276
        %v1327 = vpack.c.b16 %v1279, %v1277
        %v1328 = vpack.c.b16 %v1282, %v1280
        %v1329 = vpack.c.b16 %v1283, %v1281
        %v1330 = vpack.c.b16 %v1286, %v1284
        %v1331 = vpack.c.b16 %v1287, %v1285
        %v1332 = vpack.c.b16 %v1290, %v1288
        %v1333 = vpack.c.b16 %v1291, %v1289
        %v1334 = vpack.c.b16 %v1294, %v1292
        %v1335 = vpack.c.b16 %v1295, %v1293
        %v1336 = vpack.c.b16 %v1298, %v1296
        %v1337 = vpack.c.b16 %v1299, %v1297
        %v1338 = vpack.c.b16 %v1302, %v1300
        %v1339 = vpack.c.b16 %v1303, %v1301
        %v1340 = vpack.c.b16 %v1306, %v1304
        %v1341 = vpack.c.b16 %v1307, %v1305
        %v1342 = vpack.c.b16 %v1310, %v1308
        %v1343 = vpack.c.b16 %v1311, %v1309
        %1376 = vmatprep.subr.bf16.mxu0 %v1313
        %1377 = vmatpush1.bf16.msra.mxu0 %v1312
        %1378 = vmatprep.subr.bf16.mxu0 %v1315
        %1379 = vmatpush1.bf16.msra.mxu0 %v1314
        %1380 = vmatprep.subr.bf16.mxu0 %v1317
        %1381 = vmatpush1.bf16.msra.mxu0 %v1316
        %1382 = vmatprep.subr.bf16.mxu0 %v1319
        %1383 = vmatpush1.bf16.msra.mxu0 %v1318
        %1384 = vmatprep.subr.bf16.mxu0 %v1321
        %1385 = vmatpush1.bf16.msra.mxu0 %v1320
        %1386 = vmatprep.subr.bf16.mxu0 %v1323
        %1387 = vmatpush1.bf16.msra.mxu0 %v1322
        %1388 = vmatprep.subr.bf16.mxu0 %v1325
        %1389 = vmatpush1.bf16.msra.mxu0 %v1324
        %1390 = vmatprep.subr.bf16.mxu0 %v1327
        %1391 = vmatpush1.bf16.msra.mxu0 %v1326
        %1392 = vmatprep.subr.bf16.mxu0 %v1329
        %1393 = vmatpush1.bf16.msra.mxu0 %v1328
        %1394 = vmatprep.subr.bf16.mxu0 %v1331
        %1395 = vmatpush1.bf16.msra.mxu0 %v1330
        %1396 = vmatprep.subr.bf16.mxu0 %v1333
        %1397 = vmatpush1.bf16.msra.mxu0 %v1332
        %1398 = vmatprep.subr.bf16.mxu0 %v1335
        %1399 = vmatpush1.bf16.msra.mxu0 %v1334
        %1400 = vmatprep.subr.bf16.mxu0 %v1337
        %1401 = vmatpush1.bf16.msra.mxu0 %v1336
        %1402 = vmatprep.subr.bf16.mxu0 %v1339
        %1403 = vmatpush1.bf16.msra.mxu0 %v1338
        %1404 = vmatprep.subr.bf16.mxu0 %v1341
        %1405 = vmatpush1.bf16.msra.mxu0 %v1340
        %1406 = vmatprep.subr.bf16.mxu0 %v1343
        %1407 = vmatpush1.bf16.msra.mxu0 %v1342
        %1408 = vmatprep.mubr.bf16.mxu0 %v1171
        %1409 = vmatmul.mubr.bf16.gmra.mrb[0].mxu0 %v1170
        %v1410 = vpop.f32.mrb[0].mxu0
        %v1411 = vadd.f32 %v1209, %v1410
        %v1412 = vpop.f32.mrb[0].mxu0
        %v1413 = vadd.f32 %v1213, %v1412
        %v1414 = vpop.f32.mrb[0].mxu0
        %v1415 = vadd.f32 %v1209, %v1414
        %v1416 = vpop.f32.mrb[0].mxu0
        %v1417 = vadd.f32 %v1213, %v1416
        %1418 = vdwg.mxu0
        %v1419 = vmul.f32 %v1411, 0.088388346
        %v1420 = vmul.f32 %v1413, 0.088388346
        %v1421 = vmul.f32 %v1415, 0.088388346
        %v1422 = vmul.f32 %v1417, 0.088388346
        %v1423 = vld [vmem:[#allocation8] sm:$0xf]
        %v1424 = vld [vmem:[#allocation8 + $0x4] sm:$0xf]
        %v1425 = vunpack.c.l.bf16 %v1423
        %v1426 = vunpack.c.l.bf16 %v1424
        %v1427 = vpack.c.bf16 %v1421, %v1419
        %v1428 = vld [vmem:[#allocation2] sm:$0xff]
        %v1429 = vld [vmem:[#allocation2 + $0x10] sm:$0xff]
        %1430 = vmatprep.subr.bf16.mxu0 0
        %1431 = vmatpush1.bf16.xpose.msra.mxu0 %v1428
        %1432 = vmatprep.subr.bf16.mxu0 0
        %1433 = vmatpush1.bf16.xpose.msra.mxu0 0
        %1434 = vmatprep.subr.bf16.mxu0 0
        %1435 = vmatpush1.bf16.xpose.msra.mxu0 0
        %1436 = vmatprep.subr.bf16.mxu0 0
        %1437 = vmatpush1.bf16.xpose.msra.mxu0 0
        %1438 = vmatprep.subr.bf16.mxu0 0
        %1439 = vmatpush1.bf16.xpose.msra.mxu0 0
        %1440 = vmatprep.subr.bf16.mxu0 0
        %1441 = vmatpush1.bf16.xpose.msra.mxu0 0
        %1442 = vmatprep.subr.bf16.mxu0 0
        %1443 = vmatpush1.bf16.xpose.msra.mxu0 0
        %1444 = vmatprep.subr.bf16.mxu0 0
        %1445 = vmatpush1.bf16.xpose.msra.mxu0 0
        %1446 = vmatprep.subr.bf16.mxu0 0
        %1447 = vmatpush1.bf16.xpose.msra.mxu0 0
        %1448 = vmatprep.subr.bf16.mxu0 0
        %1449 = vmatpush1.bf16.xpose.msra.mxu0 0
        %1450 = vmatprep.subr.bf16.mxu0 0
        %1451 = vmatpush1.bf16.xpose.msra.mxu0 0
        %1452 = vmatprep.subr.bf16.mxu0 0
        %1453 = vmatpush1.bf16.xpose.msra.mxu0 0
        %1454 = vmatprep.subr.bf16.mxu0 0
        %1455 = vmatpush1.bf16.xpose.msra.mxu0 0
        %1456 = vmatprep.subr.bf16.mxu0 0
        %1457 = vmatpush1.bf16.xpose.msra.mxu0 0
        %1458 = vmatprep.subr.bf16.mxu0 0
        %1459 = vmatpush1.bf16.xpose.msra.mxu0 0
        %1460 = vmatprep.subr.bf16.mxu0 0
        %1461 = vmatpush1.bf16.xpose.msra.mxu0 0
        %1462 = vmatprep.mubr.bf16.mxu0 0
        %1463 = vmatmul.mubr.bf16.gmra.mrb[0].mxu0 %v1427
        %v1464 = vpop.f32.mrb[0].mxu0
        %v1465 = vadd.f32 %v1425, %v1464
        %v1466 = vpop.f32.mrb[0].mxu0
        %v1467 = vpop.f32.mrb[0].mxu0
        %v1468 = vadd.f32 %v1426, %v1467
        %v1469 = vpop.f32.mrb[0].mxu0
        %1470 = vdwg.mxu0
        %vm1471 = vcmask 130048
        %v1472 = vsel %vm1471, %v1465, -inf
        %1473 = vmax.xlane.f32.xlu0 %v1472
        %v1474 = vpop.xlane.xlu0 %1473
        %v1475 = vsel %vm1471, %v1468, -inf
        %1476 = vmax.xlane.f32.xlu0 %v1475
        %v1477 = vpop.xlane.xlu0 %1476
        %v1478 = vsub.f32 %v1465, %v1474
        %v1479 = vsub.f32 %v1468, %v1477
        %v1480 = vmul.f32 %v1478, 1.442695
        %v1481 = vpow.pop %v1480
        %v1482 = vmul.f32 %v1479, 1.442695
        %v1483 = vpow.pop %v1482
        %v1484 = vsel %vm1471, %v1481, 0.0
        %1485 = vadd.xlane.f32.xlu0 %v1484
        %v1486 = vpop.xlane.xlu0 %1485
        %v1487 = vsel %vm1471, %v1483, 0.0
        %1488 = vadd.xlane.f32.xlu0 %v1487
        %v1489 = vpop.xlane.xlu0 %1488
        %v1490 = vrcp.pop %v1486
        %v1491 = vrcp.pop %v1489
        %v1492 = vmul.f32 %v1481, %v1490
        %v1493 = vmul.f32 %v1483, %v1491
        %v1494 = vpack.c.bf16 %v1493, %v1492
        %v1496 = vsel %vm1471, %v1494, 0
        %1498 = vmatprep.subr.bf16.mxu0 0
        %1499 = vmatpush1.bf16.msra.mxu0 %v1429
        %1500 = vmatprep.subr.bf16.mxu0 0
        %1501 = vmatpush1.bf16.msra.mxu0 0
        %1502 = vmatprep.subr.bf16.mxu0 0
        %1503 = vmatpush1.bf16.msra.mxu0 0
        %1504 = vmatprep.subr.bf16.mxu0 0
        %1505 = vmatpush1.bf16.msra.mxu0 0
        %1506 = vmatprep.subr.bf16.mxu0 0
        %1507 = vmatpush1.bf16.msra.mxu0 0
        %1508 = vmatprep.subr.bf16.mxu0 0
        %1509 = vmatpush1.bf16.msra.mxu0 0
        %1510 = vmatprep.subr.bf16.mxu0 0
        %1511 = vmatpush1.bf16.msra.mxu0 0
        %1512 = vmatprep.subr.bf16.mxu0 0
        %1513 = vmatpush1.bf16.msra.mxu0 0
        %1514 = vmatprep.subr.bf16.mxu0 0
        %1515 = vmatpush1.bf16.msra.mxu0 0
        %1516 = vmatprep.subr.bf16.mxu0 0
        %1517 = vmatpush1.bf16.msra.mxu0 0
        %1518 = vmatprep.subr.bf16.mxu0 0
        %1519 = vmatpush1.bf16.msra.mxu0 0
        %1520 = vmatprep.subr.bf16.mxu0 0
        %1521 = vmatpush1.bf16.msra.mxu0 0
        %1522 = vmatprep.subr.bf16.mxu0 0
        %1523 = vmatpush1.bf16.msra.mxu0 0
        %1524 = vmatprep.subr.bf16.mxu0 0
        %1525 = vmatpush1.bf16.msra.mxu0 0
        %1526 = vmatprep.subr.bf16.mxu0 0
        %1527 = vmatpush1.bf16.msra.mxu0 0
        %1528 = vmatprep.subr.bf16.mxu0 0
        %1529 = vmatpush1.bf16.msra.mxu0 0
        %1530 = vmatprep.mubr.bf16.mxu0 0
        %1531 = vmatmul.mubr.bf16.gmra.mrb[0].mxu0 %v1496
        %v1532 = vpop.f32.mrb[0].mxu0
        %v1533 = vadd.f32 0.0, %v1532
        %v1534 = vpop.f32.mrb[0].mxu0
        %v1535 = vpop.f32.mrb[0].mxu0
        %v1536 = vadd.f32 0.0, %v1535
        %v1537 = vpop.f32.mrb[0].mxu0
        %1538 = vdwg.mxu0
        %v1539 = vpack.c.bf16 %v1422, %v1420
        %v1540 = vld [vmem:[#allocation2 + $0x8] sm:$0xff]
        %v1541 = vld [vmem:[#allocation2 + $0x18] sm:$0xff]
        %1542 = vmatprep.subr.bf16.mxu0 0
        %1543 = vmatpush1.bf16.xpose.msra.mxu0 %v1540
        %1544 = vmatprep.subr.bf16.mxu0 0
        %1545 = vmatpush1.bf16.xpose.msra.mxu0 0
        %1546 = vmatprep.subr.bf16.mxu0 0
        %1547 = vmatpush1.bf16.xpose.msra.mxu0 0
        %1548 = vmatprep.subr.bf16.mxu0 0
        %1549 = vmatpush1.bf16.xpose.msra.mxu0 0
        %1550 = vmatprep.subr.bf16.mxu0 0
        %1551 = vmatpush1.bf16.xpose.msra.mxu0 0
        %1552 = vmatprep.subr.bf16.mxu0 0
        %1553 = vmatpush1.bf16.xpose.msra.mxu0 0
        %1554 = vmatprep.subr.bf16.mxu0 0
        %1555 = vmatpush1.bf16.xpose.msra.mxu0 0
        %1556 = vmatprep.subr.bf16.mxu0 0
        %1557 = vmatpush1.bf16.xpose.msra.mxu0 0
        %1558 = vmatprep.subr.bf16.mxu0 0
        %1559 = vmatpush1.bf16.xpose.msra.mxu0 0
        %1560 = vmatprep.subr.bf16.mxu0 0
        %1561 = vmatpush1.bf16.xpose.msra.mxu0 0
        %1562 = vmatprep.subr.bf16.mxu0 0
        %1563 = vmatpush1.bf16.xpose.msra.mxu0 0
        %1564 = vmatprep.subr.bf16.mxu0 0
        %1565 = vmatpush1.bf16.xpose.msra.mxu0 0
        %1566 = vmatprep.subr.bf16.mxu0 0
        %1567 = vmatpush1.bf16.xpose.msra.mxu0 0
        %1568 = vmatprep.subr.bf16.mxu0 0
        %1569 = vmatpush1.bf16.xpose.msra.mxu0 0
        %1570 = vmatprep.subr.bf16.mxu0 0
        %1571 = vmatpush1.bf16.xpose.msra.mxu0 0
        %1572 = vmatprep.subr.bf16.mxu0 0
        %1573 = vmatpush1.bf16.xpose.msra.mxu0 0
        %1574 = vmatprep.mubr.bf16.mxu0 0
        %1575 = vmatmul.mubr.bf16.gmra.mrb[0].mxu0 %v1539
        %v1576 = vpop.f32.mrb[0].mxu0
        %v1577 = vadd.f32 %v1425, %v1576
        %v1578 = vpop.f32.mrb[0].mxu0
        %v1579 = vpop.f32.mrb[0].mxu0
        %v1580 = vadd.f32 %v1426, %v1579
        %v1581 = vpop.f32.mrb[0].mxu0
        %1582 = vdwg.mxu0
        %v1583 = vsel %vm1471, %v1577, -inf
        %1584 = vmax.xlane.f32.xlu0 %v1583
        %v1585 = vpop.xlane.xlu0 %1584
        %v1586 = vsel %vm1471, %v1580, -inf
        %1587 = vmax.xlane.f32.xlu0 %v1586
        %v1588 = vpop.xlane.xlu0 %1587
        %v1589 = vsub.f32 %v1577, %v1585
        %v1590 = vsub.f32 %v1580, %v1588
        %v1591 = vmul.f32 %v1589, 1.442695
        %v1592 = vpow.pop %v1591
        %v1593 = vmul.f32 %v1590, 1.442695
        %v1594 = vpow.pop %v1593
        %v1595 = vsel %vm1471, %v1592, 0.0
        %1596 = vadd.xlane.f32.xlu0 %v1595
        %v1597 = vpop.xlane.xlu0 %1596
        %v1598 = vsel %vm1471, %v1594, 0.0
        %1599 = vadd.xlane.f32.xlu0 %v1598
        %v1600 = vpop.xlane.xlu0 %1599
        %v1601 = vrcp.pop %v1597
        %v1602 = vrcp.pop %v1600
        %v1603 = vmul.f32 %v1592, %v1601
        %v1604 = vmul.f32 %v1594, %v1602
        %v1605 = vpack.c.bf16 %v1604, %v1603
        %v1607 = vsel %vm1471, %v1605, 0
        %1609 = vmatprep.subr.bf16.mxu0 0
        %1610 = vmatpush1.bf16.msra.mxu0 %v1541
        %1611 = vmatprep.subr.bf16.mxu0 0
        %1612 = vmatpush1.bf16.msra.mxu0 0
        %1613 = vmatprep.subr.bf16.mxu0 0
        %1614 = vmatpush1.bf16.msra.mxu0 0
        %1615 = vmatprep.subr.bf16.mxu0 0
        %1616 = vmatpush1.bf16.msra.mxu0 0
        %1617 = vmatprep.subr.bf16.mxu0 0
        %1618 = vmatpush1.bf16.msra.mxu0 0
        %1619 = vmatprep.subr.bf16.mxu0 0
        %1620 = vmatpush1.bf16.msra.mxu0 0
        %1621 = vmatprep.subr.bf16.mxu0 0
        %1622 = vmatpush1.bf16.msra.mxu0 0
        %1623 = vmatprep.subr.bf16.mxu0 0
        %1624 = vmatpush1.bf16.msra.mxu0 0
        %1625 = vmatprep.subr.bf16.mxu0 0
        %1626 = vmatpush1.bf16.msra.mxu0 0
        %1627 = vmatprep.subr.bf16.mxu0 0
        %1628 = vmatpush1.bf16.msra.mxu0 0
        %1629 = vmatprep.subr.bf16.mxu0 0
        %1630 = vmatpush1.bf16.msra.mxu0 0
        %1631 = vmatprep.subr.bf16.mxu0 0
        %1632 = vmatpush1.bf16.msra.mxu0 0
        %1633 = vmatprep.subr.bf16.mxu0 0
        %1634 = vmatpush1.bf16.msra.mxu0 0
        %1635 = vmatprep.subr.bf16.mxu0 0
        %1636 = vmatpush1.bf16.msra.mxu0 0
        %1637 = vmatprep.subr.bf16.mxu0 0
        %1638 = vmatpush1.bf16.msra.mxu0 0
        %1639 = vmatprep.subr.bf16.mxu0 0
        %1640 = vmatpush1.bf16.msra.mxu0 0
        %1641 = vmatprep.mubr.bf16.mxu0 0
        %1642 = vmatmul.mubr.bf16.gmra.mrb[0].mxu0 %v1607
        %v1643 = vpop.f32.mrb[0].mxu0
        %v1644 = vadd.f32 0.0, %v1643
        %v1645 = vpop.f32.mrb[0].mxu0
        %v1646 = vpop.f32.mrb[0].mxu0
        %v1647 = vadd.f32 0.0, %v1646
        %v1648 = vpop.f32.mrb[0].mxu0
        %1649 = vdwg.mxu0
        %v1650 = vpack.c.bf16 %v1536, %v1533
        %v1651 = vpack.c.bf16 %v1647, %v1644
        %v1652 = vld [vmem:[#allocation17] sm:$0xff]
        %v1653 = vld [vmem:[#allocation17 + $0x8] sm:$0xff]
        %v1654 = vld [vmem:[#allocation17 + $0x10] sm:$0xff]
        %v1655 = vld [vmem:[#allocation17 + $0x18] sm:$0xff]
        %v1656 = vld [vmem:[#allocation17 + $0x20] sm:$0xff]
        %v1657 = vld [vmem:[#allocation17 + $0x28] sm:$0xff]
        %v1658 = vld [vmem:[#allocation17 + $0x30] sm:$0xff]
        %v1659 = vld [vmem:[#allocation17 + $0x38] sm:$0xff]
        %v1660 = vld [vmem:[#allocation17 + $0x40] sm:$0xff]
        %v1661 = vld [vmem:[#allocation17 + $0x48] sm:$0xff]
        %v1662 = vld [vmem:[#allocation17 + $0x50] sm:$0xff]
        %v1663 = vld [vmem:[#allocation17 + $0x58] sm:$0xff]
        %v1664 = vld [vmem:[#allocation17 + $0x60] sm:$0xff]
        %v1665 = vld [vmem:[#allocation17 + $0x68] sm:$0xff]
        %v1666 = vld [vmem:[#allocation17 + $0x70] sm:$0xff]
        %v1667 = vld [vmem:[#allocation17 + $0x78] sm:$0xff]
        %v1668 = vld [vmem:[#allocation17 + $0x80] sm:$0xff]
        %v1669 = vld [vmem:[#allocation17 + $0x88] sm:$0xff]
        %v1670 = vld [vmem:[#allocation17 + $0x90] sm:$0xff]
        %v1671 = vld [vmem:[#allocation17 + $0x98] sm:$0xff]
        %v1672 = vld [vmem:[#allocation17 + $0xa0] sm:$0xff]
        %v1673 = vld [vmem:[#allocation17 + $0xa8] sm:$0xff]
        %v1674 = vld [vmem:[#allocation17 + $0xb0] sm:$0xff]
        %v1675 = vld [vmem:[#allocation17 + $0xb8] sm:$0xff]
        %v1676 = vld [vmem:[#allocation17 + $0xc0] sm:$0xff]
        %v1677 = vld [vmem:[#allocation17 + $0xc8] sm:$0xff]
        %v1678 = vld [vmem:[#allocation17 + $0xd0] sm:$0xff]
        %v1679 = vld [vmem:[#allocation17 + $0xd8] sm:$0xff]
        %v1680 = vld [vmem:[#allocation17 + $0xe0] sm:$0xff]
        %v1681 = vld [vmem:[#allocation17 + $0xe8] sm:$0xff]
        %v1682 = vld [vmem:[#allocation17 + $0xf0] sm:$0xff]
        %v1683 = vld [vmem:[#allocation17 + $0xf8] sm:$0xff]
        %v1684 = vld [vmem:[#allocation18] sm:$0x3]
        %v1686 = vlaneseq
        %v1687 = vshrl.u32 %v1686, 7
        %v1688 = vsub.s32 0, %v1687
        %v1689 = vrot.slane %v1684, %v1688
        %v1690 = vlaneseq
        %v1691 = vshrl.u32 %v1690, 7
        %v1692 = vsub.s32 1, %v1691
        %v1693 = vrot.slane %v1684, %v1692
        %v1728 = vunpack.c.l.b16 %v1652
        %v1729 = vunpack.c.h.b16 %v1652
        %v1730 = vunpack.c.l.b16 %v1653
        %v1731 = vunpack.c.h.b16 %v1653
        %v1732 = vunpack.c.l.b16 %v1654
        %v1733 = vunpack.c.h.b16 %v1654
        %v1734 = vunpack.c.l.b16 %v1655
        %v1735 = vunpack.c.h.b16 %v1655
        %v1736 = vunpack.c.l.b16 %v1656
        %v1737 = vunpack.c.h.b16 %v1656
        %v1738 = vunpack.c.l.b16 %v1657
        %v1739 = vunpack.c.h.b16 %v1657
        %v1740 = vunpack.c.l.b16 %v1658
        %v1741 = vunpack.c.h.b16 %v1658
        %v1742 = vunpack.c.l.b16 %v1659
        %v1743 = vunpack.c.h.b16 %v1659
        %v1744 = vunpack.c.l.b16 %v1660
        %v1745 = vunpack.c.h.b16 %v1660
        %v1746 = vunpack.c.l.b16 %v1661
        %v1747 = vunpack.c.h.b16 %v1661
        %v1748 = vunpack.c.l.b16 %v1662
        %v1749 = vunpack.c.h.b16 %v1662
        %v1750 = vunpack.c.l.b16 %v1663
        %v1751 = vunpack.c.h.b16 %v1663
        %v1752 = vunpack.c.l.b16 %v1664
        %v1753 = vunpack.c.h.b16 %v1664
        %v1754 = vunpack.c.l.b16 %v1665
        %v1755 = vunpack.c.h.b16 %v1665
        %v1756 = vunpack.c.l.b16 %v1666
        %v1757 = vunpack.c.h.b16 %v1666
        %v1758 = vunpack.c.l.b16 %v1667
        %v1759 = vunpack.c.h.b16 %v1667
        %v1760 = vunpack.c.l.b16 %v1668
        %v1761 = vunpack.c.h.b16 %v1668
        %v1762 = vunpack.c.l.b16 %v1669
        %v1763 = vunpack.c.h.b16 %v1669
        %v1764 = vunpack.c.l.b16 %v1670
        %v1765 = vunpack.c.h.b16 %v1670
        %v1766 = vunpack.c.l.b16 %v1671
        %v1767 = vunpack.c.h.b16 %v1671
        %v1768 = vunpack.c.l.b16 %v1672
        %v1769 = vunpack.c.h.b16 %v1672
        %v1770 = vunpack.c.l.b16 %v1673
        %v1771 = vunpack.c.h.b16 %v1673
        %v1772 = vunpack.c.l.b16 %v1674
        %v1773 = vunpack.c.h.b16 %v1674
        %v1774 = vunpack.c.l.b16 %v1675
        %v1775 = vunpack.c.h.b16 %v1675
        %v1776 = vunpack.c.l.b16 %v1676
        %v1777 = vunpack.c.h.b16 %v1676
        %v1778 = vunpack.c.l.b16 %v1677
        %v1779 = vunpack.c.h.b16 %v1677
        %v1780 = vunpack.c.l.b16 %v1678
        %v1781 = vunpack.c.h.b16 %v1678
        %v1782 = vunpack.c.l.b16 %v1679
        %v1783 = vunpack.c.h.b16 %v1679
        %v1784 = vunpack.c.l.b16 %v1680
        %v1785 = vunpack.c.h.b16 %v1680
        %v1786 = vunpack.c.l.b16 %v1681
        %v1787 = vunpack.c.h.b16 %v1681
        %v1788 = vunpack.c.l.b16 %v1682
        %v1789 = vunpack.c.h.b16 %v1682
        %v1790 = vunpack.c.l.b16 %v1683
        %v1791 = vunpack.c.h.b16 %v1683
        %v1792 = vpack.c.b16 %v1730, %v1728
        %v1793 = vpack.c.b16 %v1731, %v1729
        %v1794 = vpack.c.b16 %v1734, %v1732
        %v1795 = vpack.c.b16 %v1735, %v1733
        %v1796 = vpack.c.b16 %v1738, %v1736
        %v1797 = vpack.c.b16 %v1739, %v1737
        %v1798 = vpack.c.b16 %v1742, %v1740
        %v1799 = vpack.c.b16 %v1743, %v1741
        %v1800 = vpack.c.b16 %v1746, %v1744
        %v1801 = vpack.c.b16 %v1747, %v1745
        %v1802 = vpack.c.b16 %v1750, %v1748
        %v1803 = vpack.c.b16 %v1751, %v1749
        %v1804 = vpack.c.b16 %v1754, %v1752
        %v1805 = vpack.c.b16 %v1755, %v1753
        %v1806 = vpack.c.b16 %v1758, %v1756
        %v1807 = vpack.c.b16 %v1759, %v1757
        %v1808 = vpack.c.b16 %v1762, %v1760
        %v1809 = vpack.c.b16 %v1763, %v1761
        %v1810 = vpack.c.b16 %v1766, %v1764
        %v1811 = vpack.c.b16 %v1767, %v1765
        %v1812 = vpack.c.b16 %v1770, %v1768
        %v1813 = vpack.c.b16 %v1771, %v1769
        %v1814 = vpack.c.b16 %v1774, %v1772
        %v1815 = vpack.c.b16 %v1775, %v1773
        %v1816 = vpack.c.b16 %v1778, %v1776
        %v1817 = vpack.c.b16 %v1779, %v1777
        %v1818 = vpack.c.b16 %v1782, %v1780
        %v1819 = vpack.c.b16 %v1783, %v1781
        %v1820 = vpack.c.b16 %v1786, %v1784
        %v1821 = vpack.c.b16 %v1787, %v1785
        %v1822 = vpack.c.b16 %v1790, %v1788
        %v1823 = vpack.c.b16 %v1791, %v1789
        %1856 = vmatprep.subr.bf16.mxu0 %v1793
        %1857 = vmatpush1.bf16.msra.mxu0 %v1792
        %1858 = vmatprep.subr.bf16.mxu0 %v1795
        %1859 = vmatpush1.bf16.msra.mxu0 %v1794
        %1860 = vmatprep.subr.bf16.mxu0 %v1797
        %1861 = vmatpush1.bf16.msra.mxu0 %v1796
        %1862 = vmatprep.subr.bf16.mxu0 %v1799
        %1863 = vmatpush1.bf16.msra.mxu0 %v1798
        %1864 = vmatprep.subr.bf16.mxu0 %v1801
        %1865 = vmatpush1.bf16.msra.mxu0 %v1800
        %1866 = vmatprep.subr.bf16.mxu0 %v1803
        %1867 = vmatpush1.bf16.msra.mxu0 %v1802
        %1868 = vmatprep.subr.bf16.mxu0 %v1805
        %1869 = vmatpush1.bf16.msra.mxu0 %v1804
        %1870 = vmatprep.subr.bf16.mxu0 %v1807
        %1871 = vmatpush1.bf16.msra.mxu0 %v1806
        %1872 = vmatprep.subr.bf16.mxu0 %v1809
        %1873 = vmatpush1.bf16.msra.mxu0 %v1808
        %1874 = vmatprep.subr.bf16.mxu0 %v1811
        %1875 = vmatpush1.bf16.msra.mxu0 %v1810
        %1876 = vmatprep.subr.bf16.mxu0 %v1813
        %1877 = vmatpush1.bf16.msra.mxu0 %v1812
        %1878 = vmatprep.subr.bf16.mxu0 %v1815
        %1879 = vmatpush1.bf16.msra.mxu0 %v1814
        %1880 = vmatprep.subr.bf16.mxu0 %v1817
        %1881 = vmatpush1.bf16.msra.mxu0 %v1816
        %1882 = vmatprep.subr.bf16.mxu0 %v1819
        %1883 = vmatpush1.bf16.msra.mxu0 %v1818
        %1884 = vmatprep.subr.bf16.mxu0 %v1821
        %1885 = vmatpush1.bf16.msra.mxu0 %v1820
        %1886 = vmatprep.subr.bf16.mxu0 %v1823
        %1887 = vmatpush1.bf16.msra.mxu0 %v1822
        %1888 = vmatprep.mubr.bf16.mxu0 %v1651
        %1889 = vmatmul.mubr.bf16.gmra.mrb[0].mxu0 %v1650
        %v1890 = vpop.f32.mrb[0].mxu0
        %v1891 = vadd.f32 %v1689, %v1890
        %v1892 = vpop.f32.mrb[0].mxu0
        %v1893 = vadd.f32 %v1693, %v1892
        %v1894 = vpop.f32.mrb[0].mxu0
        %v1895 = vadd.f32 %v1689, %v1894
        %v1896 = vpop.f32.mrb[0].mxu0
        %v1897 = vadd.f32 %v1693, %v1896
        %1898 = vdwg.mxu0
        %v1899 = vadd.f32 %v1891, %v1166
        %v1900 = vadd.f32 %v1893, %v1167
        %v1901 = vadd.f32 %v1895, %v1168
        %v1902 = vadd.f32 %v1897, %v1169
        %v1903 = vadd.f32 %v1899, %v1900
        %1904 = vadd.xlane.f32.xlu0 %v1903
        %v1905 = vpop.xlane.xlu0 %1904
        %v1906 = vadd.f32 %v1901, %v1902
        %1907 = vadd.xlane.f32.xlu0 %v1906
        %v1908 = vpop.xlane.xlu0 %1907
        %v1909 = vrcp.pop 256.0
        %v1910 = vmul.f32 %v1905, %v1909
        %v1911 = vmul.f32 %v1908, %v1909
        %v1912 = vsub.f32 %v1899, %v1910
        %v1913 = vsub.f32 %v1900, %v1910
        %v1914 = vsub.f32 %v1901, %v1911
        %v1915 = vsub.f32 %v1902, %v1911
        %v1916 = vmul.f32 %v1912, %v1912
        %v1917 = vmul.f32 %v1913, %v1913
        %v1918 = vmul.f32 %v1914, %v1914
        %v1919 = vmul.f32 %v1915, %v1915
        %v1920 = vadd.f32 %v1916, %v1917
        %1921 = vadd.xlane.f32.xlu0 %v1920
        %v1922 = vpop.xlane.xlu0 %1921
        %v1923 = vadd.f32 %v1918, %v1919
        %1924 = vadd.xlane.f32.xlu0 %v1923
        %v1925 = vpop.xlane.xlu0 %1924
        %v1926 = vmul.f32 %v1922, %v1909
        %v1927 = vmul.f32 %v1925, %v1909
        %v1928 = vadd.f32 %v1926, 1e-05
        %v1929 = vadd.f32 %v1927, 1e-05
        %v1930 = vrsqrt.pop %v1928
        %v1931 = vrsqrt.pop %v1929
        %v1932 = vmul.f32 %v1912, %v1930
        %v1933 = vmul.f32 %v1913, %v1930
        %v1934 = vmul.f32 %v1914, %v1931
        %v1935 = vmul.f32 %v1915, %v1931
        %v1936 = vld [vmem:[#allocation20] sm:$0x3]
        %v1938 = vlaneseq
        %v1939 = vshrl.u32 %v1938, 7
        %v1940 = vsub.s32 0, %v1939
        %v1941 = vrot.slane %v1936, %v1940
        %v1942 = vlaneseq
        %v1943 = vshrl.u32 %v1942, 7
        %v1944 = vsub.s32 1, %v1943
        %v1945 = vrot.slane %v1936, %v1944
        %v1948 = vmul.f32 %v1932, %v1941
        %v1949 = vmul.f32 %v1933, %v1945
        %v1950 = vmul.f32 %v1934, %v1941
        %v1951 = vmul.f32 %v1935, %v1945
        %v1952 = vld [vmem:[#allocation21] sm:$0x3]
        %v1954 = vlaneseq
        %v1955 = vshrl.u32 %v1954, 7
        %v1956 = vsub.s32 0, %v1955
        %v1957 = vrot.slane %v1952, %v1956
        %v1958 = vlaneseq
        %v1959 = vshrl.u32 %v1958, 7
        %v1960 = vsub.s32 1, %v1959
        %v1961 = vrot.slane %v1952, %v1960
        %v1964 = vadd.f32 %v1948, %v1957
        %v1965 = vadd.f32 %v1949, %v1961
        %v1966 = vadd.f32 %v1950, %v1957
        %v1967 = vadd.f32 %v1951, %v1961
        %v1968 = vpack.c.bf16 %v1966, %v1964
        %v1969 = vpack.c.bf16 %v1967, %v1965
        %v1972 = vunpack.c.l.b16 %v1968
        %v1973 = vunpack.c.l.b16 %v1969
        %v1974 = vunpack.c.h.b16 %v1968
        %v1975 = vunpack.c.h.b16 %v1969
        %v1976 = vpack.c.b16 %v1973, %v1972
        %v1977 = vpack.c.b16 %v1975, %v1974
        %1980 = vst [vmem:[%s642] sm:$0xff] %v1976
        %1981 = vst [vmem:[%s642 + $0x8] sm:$0xff] %v1977
        %s1982 = sand.u32 %s333, 1
        %s1983 = scalar_lea.sflag [#allocation5], %s1982
        %s1984 = sand.u32 %s333, 1
        %s1985 = smul.addr %s1984, 16
        %s1986 = scalar_lea.vmem [#allocation23], %s1985
        // Predicated region
        $region121: #{decoder_layer_c_forward.6} parent=67 // pred_check
          %p1987 = pneg %p343
        $region122: #{decoder_layer_c_forward.6} parent=67 // pred_check_branch
          %1989 = sbr.rel (%p1987) target = $region124
        $region123: #{decoder_layer_c_forward.6} parent=67 // pred_region
          %s1990 = smul.u32 2, %s42
          %s1992 = ssub.s32 256, 256
          %1993 = vsyncadd %s1983, %s1992
          %s1994 = smul.addr %s1990, 2
          %s1995 = smul.addr %s41, 4
          %s1996 = sadd.s32 %s1994, %s1995
          %s1997 = smul.addr %s1996, 64
          %s1998 = scalar_lea.hbm %s12, %s1997
          %s1999 = sshll.u32 %s1986, 4
          %s2000 = int_to_ptr.vmem [resolvable:$true] %s1999
          %2005 = dma.vmem_to_hbm [thread:$0]  %s2000, 256, %s1998, %s1983, 128, 128, 8
        $region124: #{decoder_layer_c_forward.6} parent=67 // pred_fallthru
          _
      $region68: #{decoder_layer_c_forward.6} parent=5 // pred_fallthru
        _
      %p2006 = scmp.le.s32.totalorder 2, %s32
      // Predicated region
      $region125: #{decoder_layer_c_forward.6} parent=5 // pred_check
        %p2007 = pneg %p2006
      $region126: #{decoder_layer_c_forward.6} parent=5 // pred_check_branch
        %2009 = sbr.rel (%p2007) target = $region128
      $region127: #{decoder_layer_c_forward.6} parent=5 // pred_region
        %s2010 = ssub.s32 %s32, 2
        // Predicated region
        $region129: #{decoder_layer_c_forward.6} parent=127 // pred_check
          %p2011 = pneg %p349
        $region130: #{decoder_layer_c_forward.6} parent=127 // pred_check_branch
          %2013 = sbr.rel (%p2011) target = $region132
        $region131: #{decoder_layer_c_forward.6} parent=127 // pred_region
          %s2014 = sand.u32 %s334, 1
          %s2015 = scalar_lea.sflag [#allocation5], %s2014
          %s2016 = sand.u32 %s334, 1
          %s2017 = smul.addr %s2016, 16
          %s2018 = scalar_lea.vmem [#allocation23], %s2017
          %2019 = dma.done %s2015, 256
        $region132: #{decoder_layer_c_forward.6} parent=127 // pred_fallthru
          _
      $region128: #{decoder_layer_c_forward.6} parent=5 // pred_fallthru
        _
    $region6: #{decoder_layer_c_forward.6} parent=1 // loop_footer
      %s36 = sadd.s32 1, %s32
    $region7: #{decoder_layer_c_forward.6} parent=1 // loop_footer_branch
      %31 = sbr.rel target = $region3
    $region8: #{decoder_layer_c_forward.6} parent=1 // loop_exit
      _
    %2020 = vsyncpa [#allocation4], 1
    %s2021 = scalar_lea.sflag [#allocation4], 1
    %2022 = vsyncpa %s2021, 1
    %2023 = vsyncpa [#allocation7], 1
    %s2024 = scalar_lea.sflag [#allocation7], 1
    %2025 = vsyncpa %s2024, 1
    %2026 = vsyncpa [#allocation10], 1
    %2027 = vsyncpa [#allocation13], 1
    %2028 = vsyncpa [#allocation16], 1
    %2029 = vsyncpa [#allocation19], 1
    %2030 = vsyncpa [#allocation22], 1
    %2031 = vsyncpa [#allocation5], 1
    %s2032 = scalar_lea.sflag [#allocation5], 1
    %2033 = vsyncpa %s2032, 1

// kernel: decoder_layer_c_forward.7
$region0: #{decoder_layer_c_forward.7}
  #allocation0 [shape = 'u32[]', space=smem, size = 0x4, offset = 0x4, fixed_abs, tag = 'smem constant byte address 0x4 - core index']
  #allocation1 [shape = 'u32[144,128]{1,0:T(1,128)}', space=vmem, size = 0x12000, scoped, tag = 'internal scratch']
  #allocation2 [shape = 'bf16[16,512]{1,0:T(16,128)(2,1)}', space=vmem, size = 0x4000, scoped, tag = 'scratch operand']
  %s0 = inlined_call_operand.hbm [shape: bf16[2,16,256], index: 0, kind: input, shape index: {}]
  %s1 = inlined_call_operand.hbm [shape: bf16[2,16,256], index: 1, kind: input, shape index: {}]
  %s2 = inlined_call_operand.hbm [shape: bf16[16,16], index: 2, kind: input, shape index: {}]
  %s3 = inlined_call_operand.hbm [shape: bf16[256,256], index: 3, kind: input, shape index: {}]
  %s4 = inlined_call_operand.hbm [shape: f32[1,256], index: 4, kind: input, shape index: {}]
  %s5 = inlined_call_operand.hbm [shape: bf16[256,512], index: 5, kind: input, shape index: {}]
  %s6 = inlined_call_operand.hbm [shape: f32[1,512], index: 6, kind: input, shape index: {}]
  %s7 = inlined_call_operand.hbm [shape: bf16[256,256], index: 7, kind: input, shape index: {}]
  %s8 = inlined_call_operand.hbm [shape: f32[1,256], index: 8, kind: input, shape index: {}]
  %s9 = inlined_call_operand.hbm [shape: f32[1,256], index: 9, kind: input, shape index: {}]
  %s10 = inlined_call_operand.hbm [shape: f32[1,256], index: 10, kind: input, shape index: {}]
  %s11 = inlined_call_operand.hbm [shape: bf16[256,512], index: 11, kind: input, shape index: {}]
  %s12 = inlined_call_operand.hbm [shape: f32[1,512], index: 12, kind: input, shape index: {}]
  %s13 = inlined_call_operand.hbm [shape: bf16[512,256], index: 13, kind: input, shape index: {}]
  %s14 = inlined_call_operand.hbm [shape: f32[1,256], index: 14, kind: input, shape index: {}]
  %s15 = inlined_call_operand.hbm [shape: f32[2,16,256], index: 15, kind: output, shape index: {}]
  %s16 = sld [smem:[#allocation0]]
  $region157: #{decoder_layer_c_forward.7} parent=0
    _
  %s18 = ssub.s32 1, %s16
  %s19 = scalar_select 0, %s18, %s16
  $region1: #{decoder_layer_c_forward.7} parent=0
    #allocation3 [shape = 'u8[16384]{0}', space=vmem, size = 0x4000, scoped, tag = 'input window, operand 0']
    #allocation4 [shape = 's32[2]{0}', space=sflag, size = 0x8, scoped, tag = 'scoped memory for decoder_layer_c_forward.7']
    #allocation5 [shape = 's32[2]{0}', space=sflag, size = 0x8, scoped, tag = 'scoped memory for decoder_layer_c_forward.7']
    #allocation6 [shape = 'u8[16384]{0}', space=vmem, size = 0x4000, scoped, tag = 'input window, operand 1']
    #allocation7 [shape = 's32[2]{0}', space=sflag, size = 0x8, scoped, tag = 'scoped memory for decoder_layer_c_forward.7']
    #allocation8 [shape = 'u8[4096]{0}', space=vmem, size = 0x1000, scoped, tag = 'input window, operand 2, single buffered']
    #allocation9 [shape = 'u8[131072]{0}', space=vmem, size = 0x20000, scoped, tag = 'input window, operand 3, single buffered']
    #allocation10 [shape = 's32[1]{0}', space=sflag, size = 0x4, scoped, tag = 'scoped memory for decoder_layer_c_forward.7']
    #allocation11 [shape = 'u8[1024]{0}', space=vmem, size = 0x400, scoped, tag = 'input window, operand 4, single buffered']
    #allocation12 [shape = 'u8[262144]{0}', space=vmem, size = 0x40000, scoped, tag = 'input window, operand 5, single buffered']
    #allocation13 [shape = 's32[1]{0}', space=sflag, size = 0x4, scoped, tag = 'scoped memory for decoder_layer_c_forward.7']
    #allocation14 [shape = 'u8[2048]{0}', space=vmem, size = 0x800, scoped, tag = 'input window, operand 6, single buffered']
    #allocation15 [shape = 'u8[131072]{0}', space=vmem, size = 0x20000, scoped, tag = 'input window, operand 7, single buffered']
    #allocation16 [shape = 's32[1]{0}', space=sflag, size = 0x4, scoped, tag = 'scoped memory for decoder_layer_c_forward.7']
    #allocation17 [shape = 'u8[1024]{0}', space=vmem, size = 0x400, scoped, tag = 'input window, operand 8, single buffered']
    #allocation18 [shape = 'u8[1024]{0}', space=vmem, size = 0x400, scoped, tag = 'input window, operand 9, single buffered']
    #allocation19 [shape = 's32[1]{0}', space=sflag, size = 0x4, scoped, tag = 'scoped memory for decoder_layer_c_forward.7']
    #allocation20 [shape = 'u8[1024]{0}', space=vmem, size = 0x400, scoped, tag = 'input window, operand 10, single buffered']
    #allocation21 [shape = 'u8[262144]{0}', space=vmem, size = 0x40000, scoped, tag = 'input window, operand 11, single buffered']
    #allocation22 [shape = 's32[1]{0}', space=sflag, size = 0x4, scoped, tag = 'scoped memory for decoder_layer_c_forward.7']
    #allocation23 [shape = 'u8[2048]{0}', space=vmem, size = 0x800, scoped, tag = 'input window, operand 12, single buffered']
    #allocation24 [shape = 'u8[262144]{0}', space=vmem, size = 0x40000, scoped, tag = 'input window, operand 13, single buffered']
    #allocation25 [shape = 's32[1]{0}', space=sflag, size = 0x4, scoped, tag = 'scoped memory for decoder_layer_c_forward.7']
    #allocation26 [shape = 'u8[1024]{0}', space=vmem, size = 0x400, scoped, tag = 'input window, operand 14, single buffered']
    #allocation27 [shape = 'u8[32768]{0}', space=vmem, size = 0x8000, scoped, tag = 'output window, operand 0']
    %20 = vsyncpa [#allocation4], 0
    %s21 = scalar_lea.sflag [#allocation4], 1
    %22 = vsyncpa %s21, 0
    %23 = vsyncpa [#allocation7], 0
    %s24 = scalar_lea.sflag [#allocation7], 1
    %25 = vsyncpa %s24, 0
    %26 = vsyncpa [#allocation10], 0
    %27 = vsyncpa [#allocation13], 0
    %28 = vsyncpa [#allocation16], 0
    %29 = vsyncpa [#allocation19], 0
    %30 = vsyncpa [#allocation22], 0
    %31 = vsyncpa [#allocation25], 0
    %32 = vsyncpa [#allocation5], 0
    %s33 = scalar_lea.sflag [#allocation5], 1
    %34 = vsyncpa %s33, 0
    loop: start=0, step=1, limit=4
    $region2: #{decoder_layer_c_forward.7} parent=1 // loop_pre_header
      _
    $region3: #{decoder_layer_c_forward.7} parent=1 // loop_header
      %s36 = sphi 0, %s40
      %p37 = scmp.ge.s32.totalorder %s36, 4
      %s43 = sphi 0, %s55
      %s44 = sphi 0, %s51
      %s45 = sphi 0, %s43
      %s46 = sphi 0, %s44
      %s47 = sphi 0, %s45
      %s48 = sphi 0, %s46
      %s60 = sphi 0, %s62
      %s63 = sphi 0, %s60
      %s64 = sphi 0, %s63
      %s80 = sphi 0, %s64
      %s86 = sphi 0, %s88
      %s89 = sphi 0, %s86
      %s90 = sphi 0, %s89
      %s106 = sphi 0, %s90
      %s112 = sphi 0, %s114
      %s115 = sphi 0, %s112
      %s116 = sphi 0, %s115
      %s132 = sphi 0, %s116
      %s136 = sphi 0, %s136
      %s138 = sphi 0, %s136
      %s139 = sphi 0, %s138
      %s153 = sphi 0, %s139
      %s157 = sphi 0, %s157
      %s159 = sphi 0, %s157
      %s160 = sphi 0, %s159
      %s174 = sphi 0, %s160
      %s178 = sphi 0, %s178
      %s180 = sphi 0, %s178
      %s181 = sphi 0, %s180
      %s195 = sphi 0, %s181
      %s199 = sphi 0, %s199
      %s201 = sphi 0, %s199
      %s202 = sphi 0, %s201
      %s216 = sphi 0, %s202
      %s220 = sphi 0, %s220
      %s222 = sphi 0, %s220
      %s223 = sphi 0, %s222
      %s237 = sphi 0, %s223
      %s241 = sphi 0, %s241
      %s243 = sphi 0, %s241
      %s244 = sphi 0, %s243
      %s258 = sphi 0, %s244
      %s262 = sphi 0, %s262
      %s264 = sphi 0, %s262
      %s265 = sphi 0, %s264
      %s279 = sphi 0, %s265
      %s283 = sphi 0, %s283
      %s285 = sphi 0, %s283
      %s286 = sphi 0, %s285
      %s300 = sphi 0, %s286
      %s304 = sphi 0, %s304
      %s306 = sphi 0, %s304
      %s307 = sphi 0, %s306
      %s321 = sphi 0, %s307
      %s325 = sphi 0, %s325
      %s327 = sphi 0, %s325
      %s328 = sphi 0, %s327
      %s342 = sphi 0, %s328
      %s346 = sphi 0, %s346
      %s348 = sphi 0, %s346
      %s349 = sphi 0, %s348
      %s363 = sphi 0, %s349
      %s367 = sphi 0, %s367
      %s369 = sphi 0, %s367
      %s370 = sphi 0, %s369
      %s384 = sphi 0, %s370
      %s392 = sphi 0, %s394
      %s395 = sphi 0, %s392
      %s396 = sphi 0, %s395
      %s412 = sphi 0, %s396
    $region4: #{decoder_layer_c_forward.7} parent=1 // loop_header_branch
      %39 = sbr.rel (%p37) target = $region8
    $region5: #{decoder_layer_c_forward.7} parent=1 // loop_body
      %s41 = ssub.s32 %s36, 1
      %s42 = ssub.s32 %s36, 2
      %s49 = sadd.s32 1, %s44
      %p50 = scmp.ge.s32.totalorder %s49, 1
      %s51 = scalar_select %p50, 0, %s49
      %s52 = sadd.s32 1, %s43
      %s53 = scalar_select %p50, %s52, %s43
      %p54 = scmp.ge.s32.totalorder %s53, 2
      %s55 = scalar_select %p54, 0, %s53
      %s56 = ssub.s32 %s43, %s55
      %s57 = ssub.s32 %s44, %s51
      %s58 = sor.u32 %s56, %s57
      %p59 = scmp.eq.s32.totalorder %s58, 0
      %s61 = sadd.s32 %s60, 1
      %s62 = scalar_select %p59, %s60, %s61
      %p65 = pneg %p59
      %p66 = scmp.eq.s32.totalorder %s36, 1
      %p67 = por %p65, %p66
      %p68 = scmp.ne.s32.totalorder %s60, %s63
      %p69 = scmp.eq.s32.totalorder %s36, 0
      %p70 = por %p68, %p69
      %p71 = scmp.ne.s32.totalorder %s60, %s63
      %p72 = scmp.eq.s32.totalorder %s41, 1
      %p73 = por %p71, %p72
      %p74 = scmp.ne.s32.totalorder %s63, %s64
      %p75 = scmp.eq.s32.totalorder %s41, 0
      %p76 = por %p74, %p75
      %p77 = scmp.ne.s32.totalorder %s63, %s64
      %p78 = scmp.eq.s32.totalorder %s42, 1
      %p79 = por %p77, %p78
      %p81 = scmp.ne.s32.totalorder %s64, %s80
      %p82 = scmp.eq.s32.totalorder %s42, 0
      %p83 = por %p81, %p82
      %s84 = ssub.s32 %s43, %s55
      %p85 = scmp.eq.s32.totalorder %s84, 0
      %s87 = sadd.s32 %s86, 1
      %s88 = scalar_select %p85, %s86, %s87
      %p91 = pneg %p85
      %p92 = scmp.eq.s32.totalorder %s36, 1
      %p93 = por %p91, %p92
      %p94 = scmp.ne.s32.totalorder %s86, %s89
      %p95 = scmp.eq.s32.totalorder %s36, 0
      %p96 = por %p94, %p95
      %p97 = scmp.ne.s32.totalorder %s86, %s89
      %p98 = scmp.eq.s32.totalorder %s41, 1
      %p99 = por %p97, %p98
      %p100 = scmp.ne.s32.totalorder %s89, %s90
      %p101 = scmp.eq.s32.totalorder %s41, 0
      %p102 = por %p100, %p101
      %p103 = scmp.ne.s32.totalorder %s89, %s90
      %p104 = scmp.eq.s32.totalorder %s42, 1
      %p105 = por %p103, %p104
      %p107 = scmp.ne.s32.totalorder %s90, %s106
      %p108 = scmp.eq.s32.totalorder %s42, 0
      %p109 = por %p107, %p108
      %s110 = ssub.s32 %s44, %s51
      %p111 = scmp.eq.s32.totalorder %s110, 0
      %s113 = sadd.s32 %s112, 1
      %s114 = scalar_select %p111, %s112, %s113
      %p117 = pneg %p111
      %p118 = scmp.eq.s32.totalorder %s36, 1
      %p119 = por %p117, %p118
      %p120 = scmp.ne.s32.totalorder %s112, %s115
      %p121 = scmp.eq.s32.totalorder %s36, 0
      %p122 = por %p120, %p121
      %p123 = scmp.ne.s32.totalorder %s112, %s115
      %p124 = scmp.eq.s32.totalorder %s41, 1
      %p125 = por %p123, %p124
      %p126 = scmp.ne.s32.totalorder %s115, %s116
      %p127 = scmp.eq.s32.totalorder %s41, 0
      %p128 = por %p126, %p127
      %p129 = scmp.ne.s32.totalorder %s115, %s116
      %p130 = scmp.eq.s32.totalorder %s42, 1
      %p131 = por %p129, %p130
      %p133 = scmp.ne.s32.totalorder %s116, %s132
      %p134 = scmp.eq.s32.totalorder %s42, 0
      %p135 = por %p133, %p134
      %s137 = sadd.s32 %s136, 1
      %p140 = scmp.eq.s32.totalorder %s36, 1
      %p141 = scmp.ne.s32.totalorder %s136, %s138
      %p142 = scmp.eq.s32.totalorder %s36, 0
      %p143 = por %p141, %p142
      %p144 = scmp.ne.s32.totalorder %s136, %s138
      %p145 = scmp.eq.s32.totalorder %s41, 1
      %p146 = por %p144, %p145
      %p147 = scmp.ne.s32.totalorder %s138, %s139
      %p148 = scmp.eq.s32.totalorder %s41, 0
      %p149 = por %p147, %p148
      %p150 = scmp.ne.s32.totalorder %s138, %s139
      %p151 = scmp.eq.s32.totalorder %s42, 1
      %p152 = por %p150, %p151
      %p154 = scmp.ne.s32.totalorder %s139, %s153
      %p155 = scmp.eq.s32.totalorder %s42, 0
      %p156 = por %p154, %p155
      %s158 = sadd.s32 %s157, 1
      %p161 = scmp.eq.s32.totalorder %s36, 1
      %p162 = scmp.ne.s32.totalorder %s157, %s159
      %p163 = scmp.eq.s32.totalorder %s36, 0
      %p164 = por %p162, %p163
      %p165 = scmp.ne.s32.totalorder %s157, %s159
      %p166 = scmp.eq.s32.totalorder %s41, 1
      %p167 = por %p165, %p166
      %p168 = scmp.ne.s32.totalorder %s159, %s160
      %p169 = scmp.eq.s32.totalorder %s41, 0
      %p170 = por %p168, %p169
      %p171 = scmp.ne.s32.totalorder %s159, %s160
      %p172 = scmp.eq.s32.totalorder %s42, 1
      %p173 = por %p171, %p172
      %p175 = scmp.ne.s32.totalorder %s160, %s174
      %p176 = scmp.eq.s32.totalorder %s42, 0
      %p177 = por %p175, %p176
      %s179 = sadd.s32 %s178, 1
      %p182 = scmp.eq.s32.totalorder %s36, 1
      %p183 = scmp.ne.s32.totalorder %s178, %s180
      %p184 = scmp.eq.s32.totalorder %s36, 0
      %p185 = por %p183, %p184
      %p186 = scmp.ne.s32.totalorder %s178, %s180
      %p187 = scmp.eq.s32.totalorder %s41, 1
      %p188 = por %p186, %p187
      %p189 = scmp.ne.s32.totalorder %s180, %s181
      %p190 = scmp.eq.s32.totalorder %s41, 0
      %p191 = por %p189, %p190
      %p192 = scmp.ne.s32.totalorder %s180, %s181
      %p193 = scmp.eq.s32.totalorder %s42, 1
      %p194 = por %p192, %p193
      %p196 = scmp.ne.s32.totalorder %s181, %s195
      %p197 = scmp.eq.s32.totalorder %s42, 0
      %p198 = por %p196, %p197
      %s200 = sadd.s32 %s199, 1
      %p203 = scmp.eq.s32.totalorder %s36, 1
      %p204 = scmp.ne.s32.totalorder %s199, %s201
      %p205 = scmp.eq.s32.totalorder %s36, 0
      %p206 = por %p204, %p205
      %p207 = scmp.ne.s32.totalorder %s199, %s201
      %p208 = scmp.eq.s32.totalorder %s41, 1
      %p209 = por %p207, %p208
      %p210 = scmp.ne.s32.totalorder %s201, %s202
      %p211 = scmp.eq.s32.totalorder %s41, 0
      %p212 = por %p210, %p211
      %p213 = scmp.ne.s32.totalorder %s201, %s202
      %p214 = scmp.eq.s32.totalorder %s42, 1
      %p215 = por %p213, %p214
      %p217 = scmp.ne.s32.totalorder %s202, %s216
      %p218 = scmp.eq.s32.totalorder %s42, 0
      %p219 = por %p217, %p218
      %s221 = sadd.s32 %s220, 1
      %p224 = scmp.eq.s32.totalorder %s36, 1
      %p225 = scmp.ne.s32.totalorder %s220, %s222
      %p226 = scmp.eq.s32.totalorder %s36, 0
      %p227 = por %p225, %p226
      %p228 = scmp.ne.s32.totalorder %s220, %s222
      %p229 = scmp.eq.s32.totalorder %s41, 1
      %p230 = por %p228, %p229
      %p231 = scmp.ne.s32.totalorder %s222, %s223
      %p232 = scmp.eq.s32.totalorder %s41, 0
      %p233 = por %p231, %p232
      %p234 = scmp.ne.s32.totalorder %s222, %s223
      %p235 = scmp.eq.s32.totalorder %s42, 1
      %p236 = por %p234, %p235
      %p238 = scmp.ne.s32.totalorder %s223, %s237
      %p239 = scmp.eq.s32.totalorder %s42, 0
      %p240 = por %p238, %p239
      %s242 = sadd.s32 %s241, 1
      %p245 = scmp.eq.s32.totalorder %s36, 1
      %p246 = scmp.ne.s32.totalorder %s241, %s243
      %p247 = scmp.eq.s32.totalorder %s36, 0
      %p248 = por %p246, %p247
      %p249 = scmp.ne.s32.totalorder %s241, %s243
      %p250 = scmp.eq.s32.totalorder %s41, 1
      %p251 = por %p249, %p250
      %p252 = scmp.ne.s32.totalorder %s243, %s244
      %p253 = scmp.eq.s32.totalorder %s41, 0
      %p254 = por %p252, %p253
      %p255 = scmp.ne.s32.totalorder %s243, %s244
      %p256 = scmp.eq.s32.totalorder %s42, 1
      %p257 = por %p255, %p256
      %p259 = scmp.ne.s32.totalorder %s244, %s258
      %p260 = scmp.eq.s32.totalorder %s42, 0
      %p261 = por %p259, %p260
      %s263 = sadd.s32 %s262, 1
      %p266 = scmp.eq.s32.totalorder %s36, 1
      %p267 = scmp.ne.s32.totalorder %s262, %s264
      %p268 = scmp.eq.s32.totalorder %s36, 0
      %p269 = por %p267, %p268
      %p270 = scmp.ne.s32.totalorder %s262, %s264
      %p271 = scmp.eq.s32.totalorder %s41, 1
      %p272 = por %p270, %p271
      %p273 = scmp.ne.s32.totalorder %s264, %s265
      %p274 = scmp.eq.s32.totalorder %s41, 0
      %p275 = por %p273, %p274
      %p276 = scmp.ne.s32.totalorder %s264, %s265
      %p277 = scmp.eq.s32.totalorder %s42, 1
      %p278 = por %p276, %p277
      %p280 = scmp.ne.s32.totalorder %s265, %s279
      %p281 = scmp.eq.s32.totalorder %s42, 0
      %p282 = por %p280, %p281
      %s284 = sadd.s32 %s283, 1
      %p287 = scmp.eq.s32.totalorder %s36, 1
      %p288 = scmp.ne.s32.totalorder %s283, %s285
      %p289 = scmp.eq.s32.totalorder %s36, 0
      %p290 = por %p288, %p289
      %p291 = scmp.ne.s32.totalorder %s283, %s285
      %p292 = scmp.eq.s32.totalorder %s41, 1
      %p293 = por %p291, %p292
      %p294 = scmp.ne.s32.totalorder %s285, %s286
      %p295 = scmp.eq.s32.totalorder %s41, 0
      %p296 = por %p294, %p295
      %p297 = scmp.ne.s32.totalorder %s285, %s286
      %p298 = scmp.eq.s32.totalorder %s42, 1
      %p299 = por %p297, %p298
      %p301 = scmp.ne.s32.totalorder %s286, %s300
      %p302 = scmp.eq.s32.totalorder %s42, 0
      %p303 = por %p301, %p302
      %s305 = sadd.s32 %s304, 1
      %p308 = scmp.eq.s32.totalorder %s36, 1
      %p309 = scmp.ne.s32.totalorder %s304, %s306
      %p310 = scmp.eq.s32.totalorder %s36, 0
      %p311 = por %p309, %p310
      %p312 = scmp.ne.s32.totalorder %s304, %s306
      %p313 = scmp.eq.s32.totalorder %s41, 1
      %p314 = por %p312, %p313
      %p315 = scmp.ne.s32.totalorder %s306, %s307
      %p316 = scmp.eq.s32.totalorder %s41, 0
      %p317 = por %p315, %p316
      %p318 = scmp.ne.s32.totalorder %s306, %s307
      %p319 = scmp.eq.s32.totalorder %s42, 1
      %p320 = por %p318, %p319
      %p322 = scmp.ne.s32.totalorder %s307, %s321
      %p323 = scmp.eq.s32.totalorder %s42, 0
      %p324 = por %p322, %p323
      %s326 = sadd.s32 %s325, 1
      %p329 = scmp.eq.s32.totalorder %s36, 1
      %p330 = scmp.ne.s32.totalorder %s325, %s327
      %p331 = scmp.eq.s32.totalorder %s36, 0
      %p332 = por %p330, %p331
      %p333 = scmp.ne.s32.totalorder %s325, %s327
      %p334 = scmp.eq.s32.totalorder %s41, 1
      %p335 = por %p333, %p334
      %p336 = scmp.ne.s32.totalorder %s327, %s328
      %p337 = scmp.eq.s32.totalorder %s41, 0
      %p338 = por %p336, %p337
      %p339 = scmp.ne.s32.totalorder %s327, %s328
      %p340 = scmp.eq.s32.totalorder %s42, 1
      %p341 = por %p339, %p340
      %p343 = scmp.ne.s32.totalorder %s328, %s342
      %p344 = scmp.eq.s32.totalorder %s42, 0
      %p345 = por %p343, %p344
      %s347 = sadd.s32 %s346, 1
      %p350 = scmp.eq.s32.totalorder %s36, 1
      %p351 = scmp.ne.s32.totalorder %s346, %s348
      %p352 = scmp.eq.s32.totalorder %s36, 0
      %p353 = por %p351, %p352
      %p354 = scmp.ne.s32.totalorder %s346, %s348
      %p355 = scmp.eq.s32.totalorder %s41, 1
      %p356 = por %p354, %p355
      %p357 = scmp.ne.s32.totalorder %s348, %s349
      %p358 = scmp.eq.s32.totalorder %s41, 0
      %p359 = por %p357, %p358
      %p360 = scmp.ne.s32.totalorder %s348, %s349
      %p361 = scmp.eq.s32.totalorder %s42, 1
      %p362 = por %p360, %p361
      %p364 = scmp.ne.s32.totalorder %s349, %s363
      %p365 = scmp.eq.s32.totalorder %s42, 0
      %p366 = por %p364, %p365
      %s368 = sadd.s32 %s367, 1
      %p371 = scmp.eq.s32.totalorder %s36, 1
      %p372 = scmp.ne.s32.totalorder %s367, %s369
      %p373 = scmp.eq.s32.totalorder %s36, 0
      %p374 = por %p372, %p373
      %p375 = scmp.ne.s32.totalorder %s367, %s369
      %p376 = scmp.eq.s32.totalorder %s41, 1
      %p377 = por %p375, %p376
      %p378 = scmp.ne.s32.totalorder %s369, %s370
      %p379 = scmp.eq.s32.totalorder %s41, 0
      %p380 = por %p378, %p379
      %p381 = scmp.ne.s32.totalorder %s369, %s370
      %p382 = scmp.eq.s32.totalorder %s42, 1
      %p383 = por %p381, %p382
      %p385 = scmp.ne.s32.totalorder %s370, %s384
      %p386 = scmp.eq.s32.totalorder %s42, 0
      %p387 = por %p385, %p386
      %s388 = ssub.s32 %s43, %s55
      %s389 = ssub.s32 %s44, %s51
      %s390 = sor.u32 %s388, %s389
      %p391 = scmp.eq.s32.totalorder %s390, 0
      %s393 = sadd.s32 %s392, 1
      %s394 = scalar_select %p391, %s392, %s393
      %p397 = pneg %p391
      %p398 = scmp.eq.s32.totalorder %s36, 1
      %p399 = por %p397, %p398
      %p400 = scmp.ne.s32.totalorder %s392, %s395
      %p401 = scmp.eq.s32.totalorder %s36, 0
      %p402 = por %p400, %p401
      %p403 = scmp.ne.s32.totalorder %s392, %s395
      %p404 = scmp.eq.s32.totalorder %s41, 1
      %p405 = por %p403, %p404
      %p406 = scmp.ne.s32.totalorder %s395, %s396
      %p407 = scmp.eq.s32.totalorder %s41, 0
      %p408 = por %p406, %p407
      %p409 = scmp.ne.s32.totalorder %s395, %s396
      %p410 = scmp.eq.s32.totalorder %s42, 1
      %p411 = por %p409, %p410
      %p413 = scmp.ne.s32.totalorder %s396, %s412
      %p414 = scmp.eq.s32.totalorder %s42, 0
      %p415 = por %p413, %p414
      %p416 = scmp.le.s32.totalorder 1, %s36
      %p417 = scmp.lt.s32.totalorder %s36, 3
      %p418 = pnand %p416, %p417
      %p419 = pneg %p418
      // Predicated region
      $region9: #{decoder_layer_c_forward.7} parent=5 // pred_check
        _
      $region10: #{decoder_layer_c_forward.7} parent=5 // pred_check_branch
        %421 = sbr.rel (%p418) target = $region12
      $region11: #{decoder_layer_c_forward.7} parent=5 // pred_region
        %s422 = ssub.s32 %s36, 1
        // Predicated region
        $region13: #{decoder_layer_c_forward.7} parent=11 // pred_check
          %p423 = pneg %p128
        $region14: #{decoder_layer_c_forward.7} parent=11 // pred_check_branch
          %425 = sbr.rel (%p423) target = $region16
        $region15: #{decoder_layer_c_forward.7} parent=11 // pred_region
          %s426 = smul.u32 2, %s46
          %s428 = ssub.s32 128, 128
          %429 = vsyncadd [#allocation7], %s428
          %s430 = smul.addr %s426, 64
          %s431 = scalar_lea.hbm %s2, %s430
          %s432 = sshll.u32 [#allocation8], 4
          %s433 = int_to_ptr.vmem [resolvable:$true] %s432
          %438 = dma.hbm_to_vmem [thread:$0]  %s431, 128, %s433, [#allocation7], 64, 64, 4
        $region16: #{decoder_layer_c_forward.7} parent=11 // pred_fallthru
          _
        // Predicated region
        $region17: #{decoder_layer_c_forward.7} parent=11 // pred_check
          %p439 = pneg %p149
        $region18: #{decoder_layer_c_forward.7} parent=11 // pred_check_branch
          %441 = sbr.rel (%p439) target = $region20
        $region19: #{decoder_layer_c_forward.7} parent=11 // pred_region
          %s443 = ssub.s32 4096, 4096
          %444 = vsyncadd [#allocation10], %s443
          %s445 = sshll.u32 [#allocation9], 4
          %s446 = int_to_ptr.vmem [resolvable:$true] %s445
          %451 = dma.hbm_to_vmem [thread:$0]  %s3, 4096, %s446, [#allocation10], 128, 128, 8
        $region20: #{decoder_layer_c_forward.7} parent=11 // pred_fallthru
          _
        // Predicated region
        $region21: #{decoder_layer_c_forward.7} parent=11 // pred_check
          %p452 = pneg %p170
        $region22: #{decoder_layer_c_forward.7} parent=11 // pred_check_branch
          %454 = sbr.rel (%p452) target = $region24
        $region23: #{decoder_layer_c_forward.7} parent=11 // pred_region
          %s456 = ssub.s32 32, 32
          %457 = vsyncadd [#allocation10], %s456
          %s459 = sshll.u32 [#allocation11], 4
          %s460 = int_to_ptr.vmem [resolvable:$true] %s459
          %462 = dma.hbm_to_vmem [thread:$0]  %s4, 32, %s460, [#allocation10]
        $region24: #{decoder_layer_c_forward.7} parent=11 // pred_fallthru
          _
        // Predicated region
        $region25: #{decoder_layer_c_forward.7} parent=11 // pred_check
          %p463 = pneg %p191
        $region26: #{decoder_layer_c_forward.7} parent=11 // pred_check_branch
          %465 = sbr.rel (%p463) target = $region28
        $region27: #{decoder_layer_c_forward.7} parent=11 // pred_region
          %s467 = ssub.s32 8192, 8192
          %468 = vsyncadd [#allocation13], %s467
          %s469 = sshll.u32 [#allocation12], 4
          %s470 = int_to_ptr.vmem [resolvable:$true] %s469
          %475 = dma.hbm_to_vmem [thread:$0]  %s5, 8192, %s470, [#allocation13], 256, 256, 16
        $region28: #{decoder_layer_c_forward.7} parent=11 // pred_fallthru
          _
        // Predicated region
        $region29: #{decoder_layer_c_forward.7} parent=11 // pred_check
          %p476 = pneg %p212
        $region30: #{decoder_layer_c_forward.7} parent=11 // pred_check_branch
          %478 = sbr.rel (%p476) target = $region32
        $region31: #{decoder_layer_c_forward.7} parent=11 // pred_region
          %s480 = ssub.s32 64, 64
          %481 = vsyncadd [#allocation13], %s480
          %s483 = sshll.u32 [#allocation14], 4
          %s484 = int_to_ptr.vmem [resolvable:$true] %s483
          %486 = dma.hbm_to_vmem [thread:$0]  %s6, 64, %s484, [#allocation13]
        $region32: #{decoder_layer_c_forward.7} parent=11 // pred_fallthru
          _
        // Predicated region
        $region33: #{decoder_layer_c_forward.7} parent=11 // pred_check
          %p487 = pneg %p233
        $region34: #{decoder_layer_c_forward.7} parent=11 // pred_check_branch
          %489 = sbr.rel (%p487) target = $region36
        $region35: #{decoder_layer_c_forward.7} parent=11 // pred_region
          %s491 = ssub.s32 4096, 4096
          %492 = vsyncadd [#allocation16], %s491
          %s493 = sshll.u32 [#allocation15], 4
          %s494 = int_to_ptr.vmem [resolvable:$true] %s493
          %499 = dma.hbm_to_vmem [thread:$0]  %s7, 4096, %s494, [#allocation16], 128, 128, 8
        $region36: #{decoder_layer_c_forward.7} parent=11 // pred_fallthru
          _
        // Predicated region
        $region37: #{decoder_layer_c_forward.7} parent=11 // pred_check
          %p500 = pneg %p254
        $region38: #{decoder_layer_c_forward.7} parent=11 // pred_check_branch
          %502 = sbr.rel (%p500) target = $region40
        $region39: #{decoder_layer_c_forward.7} parent=11 // pred_region
          %s504 = ssub.s32 32, 32
          %505 = vsyncadd [#allocation16], %s504
          %s507 = sshll.u32 [#allocation17], 4
          %s508 = int_to_ptr.vmem [resolvable:$true] %s507
          %510 = dma.hbm_to_vmem [thread:$0]  %s8, 32, %s508, [#allocation16]
        $region40: #{decoder_layer_c_forward.7} parent=11 // pred_fallthru
          _
        // Predicated region
        $region41: #{decoder_layer_c_forward.7} parent=11 // pred_check
          %p511 = pneg %p275
        $region42: #{decoder_layer_c_forward.7} parent=11 // pred_check_branch
          %513 = sbr.rel (%p511) target = $region44
        $region43: #{decoder_layer_c_forward.7} parent=11 // pred_region
          %s515 = ssub.s32 32, 32
          %516 = vsyncadd [#allocation19], %s515
          %s518 = sshll.u32 [#allocation18], 4
          %s519 = int_to_ptr.vmem [resolvable:$true] %s518
          %521 = dma.hbm_to_vmem [thread:$0]  %s9, 32, %s519, [#allocation19]
        $region44: #{decoder_layer_c_forward.7} parent=11 // pred_fallthru
          _
        // Predicated region
        $region45: #{decoder_layer_c_forward.7} parent=11 // pred_check
          %p522 = pneg %p296
        $region46: #{decoder_layer_c_forward.7} parent=11 // pred_check_branch
          %524 = sbr.rel (%p522) target = $region48
        $region47: #{decoder_layer_c_forward.7} parent=11 // pred_region
          %s526 = ssub.s32 32, 32
          %527 = vsyncadd [#allocation19], %s526
          %s529 = sshll.u32 [#allocation20], 4
          %s530 = int_to_ptr.vmem [resolvable:$true] %s529
          %532 = dma.hbm_to_vmem [thread:$0]  %s10, 32, %s530, [#allocation19]
        $region48: #{decoder_layer_c_forward.7} parent=11 // pred_fallthru
          _
        // Predicated region
        $region49: #{decoder_layer_c_forward.7} parent=11 // pred_check
          %p533 = pneg %p317
        $region50: #{decoder_layer_c_forward.7} parent=11 // pred_check_branch
          %535 = sbr.rel (%p533) target = $region52
        $region51: #{decoder_layer_c_forward.7} parent=11 // pred_region
          %s537 = ssub.s32 8192, 8192
          %538 = vsyncadd [#allocation22], %s537
          %s539 = sshll.u32 [#allocation21], 4
          %s540 = int_to_ptr.vmem [resolvable:$true] %s539
          %545 = dma.hbm_to_vmem [thread:$0]  %s11, 8192, %s540, [#allocation22], 256, 256, 16
        $region52: #{decoder_layer_c_forward.7} parent=11 // pred_fallthru
          _
        // Predicated region
        $region53: #{decoder_layer_c_forward.7} parent=11 // pred_check
          %p546 = pneg %p338
        $region54: #{decoder_layer_c_forward.7} parent=11 // pred_check_branch
          %548 = sbr.rel (%p546) target = $region56
        $region55: #{decoder_layer_c_forward.7} parent=11 // pred_region
          %s550 = ssub.s32 64, 64
          %551 = vsyncadd [#allocation22], %s550
          %s553 = sshll.u32 [#allocation23], 4
          %s554 = int_to_ptr.vmem [resolvable:$true] %s553
          %556 = dma.hbm_to_vmem [thread:$0]  %s12, 64, %s554, [#allocation22]
        $region56: #{decoder_layer_c_forward.7} parent=11 // pred_fallthru
          _
        // Predicated region
        $region57: #{decoder_layer_c_forward.7} parent=11 // pred_check
          %p557 = pneg %p359
        $region58: #{decoder_layer_c_forward.7} parent=11 // pred_check_branch
          %559 = sbr.rel (%p557) target = $region60
        $region59: #{decoder_layer_c_forward.7} parent=11 // pred_region
          %s561 = ssub.s32 8192, 8192
          %562 = vsyncadd [#allocation25], %s561
          %s563 = sshll.u32 [#allocation24], 4
          %s564 = int_to_ptr.vmem [resolvable:$true] %s563
          %569 = dma.hbm_to_vmem [thread:$0]  %s13, 8192, %s564, [#allocation25], 128, 128, 8
        $region60: #{decoder_layer_c_forward.7} parent=11 // pred_fallthru
          _
        // Predicated region
        $region61: #{decoder_layer_c_forward.7} parent=11 // pred_check
          %p570 = pneg %p380
        $region62: #{decoder_layer_c_forward.7} parent=11 // pred_check_branch
          %572 = sbr.rel (%p570) target = $region64
        $region63: #{decoder_layer_c_forward.7} parent=11 // pred_region
          %s574 = ssub.s32 32, 32
          %575 = vsyncadd [#allocation25], %s574
          %s577 = sshll.u32 [#allocation26], 4
          %s578 = int_to_ptr.vmem [resolvable:$true] %s577
          %580 = dma.hbm_to_vmem [thread:$0]  %s14, 32, %s578, [#allocation25]
        $region64: #{decoder_layer_c_forward.7} parent=11 // pred_fallthru
          _
      $region12: #{decoder_layer_c_forward.7} parent=5 // pred_fallthru
        _
      %p581 = scmp.lt.s32.totalorder %s36, 2
      // Predicated region
      $region65: #{decoder_layer_c_forward.7} parent=5 // pred_check
        %p582 = pneg %p581
      $region66: #{decoder_layer_c_forward.7} parent=5 // pred_check_branch
        %584 = sbr.rel (%p582) target = $region68
      $region67: #{decoder_layer_c_forward.7} parent=5 // pred_region
        // Predicated region
        $region69: #{decoder_layer_c_forward.7} parent=67 // pred_check
          %p585 = pneg %p70
        $region70: #{decoder_layer_c_forward.7} parent=67 // pred_check_branch
          %587 = sbr.rel (%p585) target = $region72
        $region71: #{decoder_layer_c_forward.7} parent=67 // pred_region
          %s588 = sand.u32 %s60, 1
          %s589 = scalar_lea.sflag [#allocation4], %s588
          %s590 = sand.u32 %s60, 1
          %s591 = smul.addr %s590, 16
          %s592 = scalar_lea.vmem [#allocation3], %s591
          %s593 = smul.u32 2, %s44
          %s595 = ssub.s32 256, 256
          %596 = vsyncadd %s589, %s595
          %s597 = smul.addr %s593, 2
          %s598 = smul.addr %s43, 4
          %s599 = sadd.s32 %s597, %s598
          %s600 = smul.addr %s599, 64
          %s601 = scalar_lea.hbm %s0, %s600
          %s602 = sshll.u32 %s592, 4
          %s603 = int_to_ptr.vmem [resolvable:$true] %s602
          %608 = dma.hbm_to_vmem [thread:$0]  %s601, 256, %s603, %s589, 128, 128, 8
        $region72: #{decoder_layer_c_forward.7} parent=67 // pred_fallthru
          _
        // Predicated region
        $region73: #{decoder_layer_c_forward.7} parent=67 // pred_check
          %p609 = pneg %p96
        $region74: #{decoder_layer_c_forward.7} parent=67 // pred_check_branch
          %611 = sbr.rel (%p609) target = $region76
        $region75: #{decoder_layer_c_forward.7} parent=67 // pred_region
          %s612 = sand.u32 %s36, 1
          %s613 = scalar_lea.sflag [#allocation7], %s612
          %s614 = sand.u32 %s86, 1
          %s615 = smul.addr %s614, 16
          %s616 = scalar_lea.vmem [#allocation6], %s615
          %s618 = ssub.s32 256, 256
          %619 = vsyncadd %s613, %s618
          %s620 = smul.addr %s43, 4
          %s621 = smul.addr %s620, 64
          %s622 = scalar_lea.hbm %s1, %s621
          %s623 = sshll.u32 %s616, 4
          %s624 = int_to_ptr.vmem [resolvable:$true] %s623
          %629 = dma.hbm_to_vmem [thread:$0]  %s622, 256, %s624, %s613, 128, 128, 8
        $region76: #{decoder_layer_c_forward.7} parent=67 // pred_fallthru
          _
      $region68: #{decoder_layer_c_forward.7} parent=5 // pred_fallthru
        _
      %p630 = scmp.le.s32.totalorder 1, %s36
      %p631 = scmp.lt.s32.totalorder %s36, 3
      %p632 = pnand %p630, %p631
      %p633 = pneg %p632
      // Predicated region
      $region77: #{decoder_layer_c_forward.7} parent=5 // pred_check
        _
      $region78: #{decoder_layer_c_forward.7} parent=5 // pred_check_branch
        %635 = sbr.rel (%p632) target = $region80
      $region79: #{decoder_layer_c_forward.7} parent=5 // pred_region
        %s636 = ssub.s32 %s36, 1
        %s637 = sand.u32 %s63, 1
        %s638 = scalar_lea.sflag [#allocation4], %s637
        %s639 = sand.u32 %s63, 1
        %s640 = smul.addr %s639, 16
        %s641 = scalar_lea.vmem [#allocation3], %s640
        // Predicated region
        $region81: #{decoder_layer_c_forward.7} parent=79 // pred_check
          %p642 = pneg %p76
        $region82: #{decoder_layer_c_forward.7} parent=79 // pred_check_branch
          %644 = sbr.rel (%p642) target = $region84
        $region83: #{decoder_layer_c_forward.7} parent=79 // pred_region
          %645 = dma.done %s638, 256
        $region84: #{decoder_layer_c_forward.7} parent=79 // pred_fallthru
          _
        %s646 = sand.u32 %s41, 1
        %s647 = scalar_lea.sflag [#allocation7], %s646
        %s648 = sand.u32 %s89, 1
        %s649 = smul.addr %s648, 16
        %s650 = scalar_lea.vmem [#allocation6], %s649
        // Predicated region
        $region85: #{decoder_layer_c_forward.7} parent=79 // pred_check
          %p651 = pneg %p102
        $region86: #{decoder_layer_c_forward.7} parent=79 // pred_check_branch
          %653 = sbr.rel (%p651) target = $region88
        $region87: #{decoder_layer_c_forward.7} parent=79 // pred_region
          %654 = dma.done %s647, 256
        $region88: #{decoder_layer_c_forward.7} parent=79 // pred_fallthru
          _
        // Predicated region
        $region89: #{decoder_layer_c_forward.7} parent=79 // pred_check
          %p655 = pneg %p128
        $region90: #{decoder_layer_c_forward.7} parent=79 // pred_check_branch
          %657 = sbr.rel (%p655) target = $region92
        $region91: #{decoder_layer_c_forward.7} parent=79 // pred_region
          %658 = dma.done [#allocation7], 128
        $region92: #{decoder_layer_c_forward.7} parent=79 // pred_fallthru
          _
        // Predicated region
        $region93: #{decoder_layer_c_forward.7} parent=79 // pred_check
          %p659 = pneg %p149
        $region94: #{decoder_layer_c_forward.7} parent=79 // pred_check_branch
          %661 = sbr.rel (%p659) target = $region96
        $region95: #{decoder_layer_c_forward.7} parent=79 // pred_region
          %662 = dma.done [#allocation10], 4096
        $region96: #{decoder_layer_c_forward.7} parent=79 // pred_fallthru
          _
        // Predicated region
        $region97: #{decoder_layer_c_forward.7} parent=79 // pred_check
          %p663 = pneg %p170
        $region98: #{decoder_layer_c_forward.7} parent=79 // pred_check_branch
          %665 = sbr.rel (%p663) target = $region100
        $region99: #{decoder_layer_c_forward.7} parent=79 // pred_region
          %666 = dma.done [#allocation10], 32
        $region100: #{decoder_layer_c_forward.7} parent=79 // pred_fallthru
          _
        // Predicated region
        $region101: #{decoder_layer_c_forward.7} parent=79 // pred_check
          %p667 = pneg %p191
        $region102: #{decoder_layer_c_forward.7} parent=79 // pred_check_branch
          %669 = sbr.rel (%p667) target = $region104
        $region103: #{decoder_layer_c_forward.7} parent=79 // pred_region
          %670 = dma.done [#allocation13], 8192
        $region104: #{decoder_layer_c_forward.7} parent=79 // pred_fallthru
          _
        // Predicated region
        $region105: #{decoder_layer_c_forward.7} parent=79 // pred_check
          %p671 = pneg %p212
        $region106: #{decoder_layer_c_forward.7} parent=79 // pred_check_branch
          %673 = sbr.rel (%p671) target = $region108
        $region107: #{decoder_layer_c_forward.7} parent=79 // pred_region
          %674 = dma.done [#allocation13], 64
        $region108: #{decoder_layer_c_forward.7} parent=79 // pred_fallthru
          _
        // Predicated region
        $region109: #{decoder_layer_c_forward.7} parent=79 // pred_check
          %p675 = pneg %p233
        $region110: #{decoder_layer_c_forward.7} parent=79 // pred_check_branch
          %677 = sbr.rel (%p675) target = $region112
        $region111: #{decoder_layer_c_forward.7} parent=79 // pred_region
          %678 = dma.done [#allocation16], 4096
        $region112: #{decoder_layer_c_forward.7} parent=79 // pred_fallthru
          _
        // Predicated region
        $region113: #{decoder_layer_c_forward.7} parent=79 // pred_check
          %p679 = pneg %p254
        $region114: #{decoder_layer_c_forward.7} parent=79 // pred_check_branch
          %681 = sbr.rel (%p679) target = $region116
        $region115: #{decoder_layer_c_forward.7} parent=79 // pred_region
          %682 = dma.done [#allocation16], 32
        $region116: #{decoder_layer_c_forward.7} parent=79 // pred_fallthru
          _
        // Predicated region
        $region117: #{decoder_layer_c_forward.7} parent=79 // pred_check
          %p683 = pneg %p275
        $region118: #{decoder_layer_c_forward.7} parent=79 // pred_check_branch
          %685 = sbr.rel (%p683) target = $region120
        $region119: #{decoder_layer_c_forward.7} parent=79 // pred_region
          %686 = dma.done [#allocation19], 32
        $region120: #{decoder_layer_c_forward.7} parent=79 // pred_fallthru
          _
        // Predicated region
        $region121: #{decoder_layer_c_forward.7} parent=79 // pred_check
          %p687 = pneg %p296
        $region122: #{decoder_layer_c_forward.7} parent=79 // pred_check_branch
          %689 = sbr.rel (%p687) target = $region124
        $region123: #{decoder_layer_c_forward.7} parent=79 // pred_region
          %690 = dma.done [#allocation19], 32
        $region124: #{decoder_layer_c_forward.7} parent=79 // pred_fallthru
          _
        // Predicated region
        $region125: #{decoder_layer_c_forward.7} parent=79 // pred_check
          %p691 = pneg %p317
        $region126: #{decoder_layer_c_forward.7} parent=79 // pred_check_branch
          %693 = sbr.rel (%p691) target = $region128
        $region127: #{decoder_layer_c_forward.7} parent=79 // pred_region
          %694 = dma.done [#allocation22], 8192
        $region128: #{decoder_layer_c_forward.7} parent=79 // pred_fallthru
          _
        // Predicated region
        $region129: #{decoder_layer_c_forward.7} parent=79 // pred_check
          %p695 = pneg %p338
        $region130: #{decoder_layer_c_forward.7} parent=79 // pred_check_branch
          %697 = sbr.rel (%p695) target = $region132
        $region131: #{decoder_layer_c_forward.7} parent=79 // pred_region
          %698 = dma.done [#allocation22], 64
        $region132: #{decoder_layer_c_forward.7} parent=79 // pred_fallthru
          _
        // Predicated region
        $region133: #{decoder_layer_c_forward.7} parent=79 // pred_check
          %p699 = pneg %p359
        $region134: #{decoder_layer_c_forward.7} parent=79 // pred_check_branch
          %701 = sbr.rel (%p699) target = $region136
        $region135: #{decoder_layer_c_forward.7} parent=79 // pred_region
          %702 = dma.done [#allocation25], 8192
        $region136: #{decoder_layer_c_forward.7} parent=79 // pred_fallthru
          _
        // Predicated region
        $region137: #{decoder_layer_c_forward.7} parent=79 // pred_check
          %p703 = pneg %p380
        $region138: #{decoder_layer_c_forward.7} parent=79 // pred_check_branch
          %705 = sbr.rel (%p703) target = $region140
        $region139: #{decoder_layer_c_forward.7} parent=79 // pred_region
          %706 = dma.done [#allocation25], 32
        $region140: #{decoder_layer_c_forward.7} parent=79 // pred_fallthru
          _
        %s707 = sand.u32 %s63, 1
        %s708 = scalar_lea.sflag [#allocation4], %s707
        %s709 = sand.u32 %s63, 1
        %s710 = smul.addr %s709, 16
        %s711 = scalar_lea.vmem [#allocation3], %s710
        %p712 = pneg %p76
        %p713 = pneg %p73
        %s714 = sand.u32 %s41, 1
        %s715 = scalar_lea.sflag [#allocation7], %s714
        %s716 = sand.u32 %s89, 1
        %s717 = smul.addr %s716, 16
        %s718 = scalar_lea.vmem [#allocation6], %s717
        %p719 = pneg %p102
        %p720 = pneg %p99
        %p721 = pneg %p128
        %p722 = pneg %p125
        %p723 = pneg %p149
        %p724 = pneg %p146
        %p725 = pneg %p170
        %p726 = pneg %p167
        %p727 = pneg %p191
        %p728 = pneg %p188
        %p729 = pneg %p212
        %p730 = pneg %p209
        %p731 = pneg %p233
        %p732 = pneg %p230
        %p733 = pneg %p254
        %p734 = pneg %p251
        %p735 = pneg %p275
        %p736 = pneg %p272
        %p737 = pneg %p296
        %p738 = pneg %p293
        %p739 = pneg %p317
        %p740 = pneg %p314
        %p741 = pneg %p338
        %p742 = pneg %p335
        %p743 = pneg %p359
        %p744 = pneg %p356
        %p745 = pneg %p380
        %p746 = pneg %p377
        %p747 = pneg %p408
        %p748 = pneg %p405
        %s749 = sand.u32 %s395, 1
        %s750 = scalar_lea.sflag [#allocation5], %s749
        %s751 = sand.u32 %s395, 1
        %s752 = smul.addr %s751, 32
        %s753 = scalar_lea.vmem [#allocation27], %s752
        %s754 = smul.u32 2, %s46
        %s755 = smul.u32 2, %s46
        %s756 = smul.u32 2, %s46
        %p758 = scmp.eq.s32.totalorder %s46, 0
        // Predicated region
        $region141: #{decoder_layer_c_forward.7} parent=79 // pred_check
          %p759 = pneg %p758
        $region142: #{decoder_layer_c_forward.7} parent=79 // pred_check_branch
          %761 = sbr.rel (%p759) target = $region144
        $region143: #{decoder_layer_c_forward.7} parent=79 // pred_region
          %v762 = vld [vmem:[%s650] sm:$0xff]
          %v763 = vld [vmem:[%s650 + $0x8] sm:$0xff]
          %v764 = vld [vmem:[#allocation12] sm:$0xff]
          %v765 = vld [vmem:[#allocation12 + $0x8] sm:$0xff]
          %v766 = vld [vmem:[#allocation12 + $0x10] sm:$0xff]
          %v767 = vld [vmem:[#allocation12 + $0x18] sm:$0xff]
          %v768 = vld [vmem:[#allocation12 + $0x20] sm:$0xff]
          %v769 = vld [vmem:[#allocation12 + $0x28] sm:$0xff]
          %v770 = vld [vmem:[#allocation12 + $0x30] sm:$0xff]
          %v771 = vld [vmem:[#allocation12 + $0x38] sm:$0xff]
          %v772 = vld [vmem:[#allocation12 + $0x40] sm:$0xff]
          %v773 = vld [vmem:[#allocation12 + $0x48] sm:$0xff]
          %v774 = vld [vmem:[#allocation12 + $0x50] sm:$0xff]
          %v775 = vld [vmem:[#allocation12 + $0x58] sm:$0xff]
          %v776 = vld [vmem:[#allocation12 + $0x60] sm:$0xff]
          %v777 = vld [vmem:[#allocation12 + $0x68] sm:$0xff]
          %v778 = vld [vmem:[#allocation12 + $0x70] sm:$0xff]
          %v779 = vld [vmem:[#allocation12 + $0x78] sm:$0xff]
          %v780 = vld [vmem:[#allocation12 + $0x80] sm:$0xff]
          %v781 = vld [vmem:[#allocation12 + $0x88] sm:$0xff]
          %v782 = vld [vmem:[#allocation12 + $0x90] sm:$0xff]
          %v783 = vld [vmem:[#allocation12 + $0x98] sm:$0xff]
          %v784 = vld [vmem:[#allocation12 + $0xa0] sm:$0xff]
          %v785 = vld [vmem:[#allocation12 + $0xa8] sm:$0xff]
          %v786 = vld [vmem:[#allocation12 + $0xb0] sm:$0xff]
          %v787 = vld [vmem:[#allocation12 + $0xb8] sm:$0xff]
          %v788 = vld [vmem:[#allocation12 + $0xc0] sm:$0xff]
          %v789 = vld [vmem:[#allocation12 + $0xc8] sm:$0xff]
          %v790 = vld [vmem:[#allocation12 + $0xd0] sm:$0xff]
          %v791 = vld [vmem:[#allocation12 + $0xd8] sm:$0xff]
          %v792 = vld [vmem:[#allocation12 + $0xe0] sm:$0xff]
          %v793 = vld [vmem:[#allocation12 + $0xe8] sm:$0xff]
          %v794 = vld [vmem:[#allocation12 + $0xf0] sm:$0xff]
          %v795 = vld [vmem:[#allocation12 + $0xf8] sm:$0xff]
          %v796 = vld [vmem:[#allocation12 + $0x100] sm:$0xff]
          %v797 = vld [vmem:[#allocation12 + $0x108] sm:$0xff]
          %v798 = vld [vmem:[#allocation12 + $0x110] sm:$0xff]
          %v799 = vld [vmem:[#allocation12 + $0x118] sm:$0xff]
          %v800 = vld [vmem:[#allocation12 + $0x120] sm:$0xff]
          %v801 = vld [vmem:[#allocation12 + $0x128] sm:$0xff]
          %v802 = vld [vmem:[#allocation12 + $0x130] sm:$0xff]
          %v803 = vld [vmem:[#allocation12 + $0x138] sm:$0xff]
          %v804 = vld [vmem:[#allocation12 + $0x140] sm:$0xff]
          %v805 = vld [vmem:[#allocation12 + $0x148] sm:$0xff]
          %v806 = vld [vmem:[#allocation12 + $0x150] sm:$0xff]
          %v807 = vld [vmem:[#allocation12 + $0x158] sm:$0xff]
          %v808 = vld [vmem:[#allocation12 + $0x160] sm:$0xff]
          %v809 = vld [vmem:[#allocation12 + $0x168] sm:$0xff]
          %v810 = vld [vmem:[#allocation12 + $0x170] sm:$0xff]
          %v811 = vld [vmem:[#allocation12 + $0x178] sm:$0xff]
          %v812 = vld [vmem:[#allocation12 + $0x180] sm:$0xff]
          %v813 = vld [vmem:[#allocation12 + $0x188] sm:$0xff]
          %v814 = vld [vmem:[#allocation12 + $0x190] sm:$0xff]
          %v815 = vld [vmem:[#allocation12 + $0x198] sm:$0xff]
          %v816 = vld [vmem:[#allocation12 + $0x1a0] sm:$0xff]
          %v817 = vld [vmem:[#allocation12 + $0x1a8] sm:$0xff]
          %v818 = vld [vmem:[#allocation12 + $0x1b0] sm:$0xff]
          %v819 = vld [vmem:[#allocation12 + $0x1b8] sm:$0xff]
          %v820 = vld [vmem:[#allocation12 + $0x1c0] sm:$0xff]
          %v821 = vld [vmem:[#allocation12 + $0x1c8] sm:$0xff]
          %v822 = vld [vmem:[#allocation12 + $0x1d0] sm:$0xff]
          %v823 = vld [vmem:[#allocation12 + $0x1d8] sm:$0xff]
          %v824 = vld [vmem:[#allocation12 + $0x1e0] sm:$0xff]
          %v825 = vld [vmem:[#allocation12 + $0x1e8] sm:$0xff]
          %v826 = vld [vmem:[#allocation12 + $0x1f0] sm:$0xff]
          %v827 = vld [vmem:[#allocation12 + $0x1f8] sm:$0xff]
          %v828 = vld [vmem:[#allocation14] sm:$0xf]
          %v830 = vlaneseq
          %v831 = vshrl.u32 %v830, 7
          %v832 = vsub.s32 0, %v831
          %v833 = vrot.slane %v828, %v832
          %v834 = vlaneseq
          %v835 = vshrl.u32 %v834, 7
          %v836 = vsub.s32 1, %v835
          %v837 = vrot.slane %v828, %v836
          %v838 = vlaneseq
          %v839 = vshrl.u32 %v838, 7
          %v840 = vsub.s32 2, %v839
          %v841 = vrot.slane %v828, %v840
          %v842 = vlaneseq
          %v843 = vshrl.u32 %v842, 7
          %v844 = vsub.s32 3, %v843
          %v845 = vrot.slane %v828, %v844
          %v852 = vunpack.c.l.b16 %v762
          %v853 = vunpack.c.h.b16 %v762
          %v854 = vunpack.c.l.b16 %v763
          %v855 = vunpack.c.h.b16 %v763
          %v856 = vpack.c.b16 %v854, %v852
          %v857 = vpack.c.b16 %v855, %v853
          %v924 = vunpack.c.l.b16 %v764
          %v925 = vunpack.c.h.b16 %v764
          %v926 = vunpack.c.l.b16 %v765
          %v927 = vunpack.c.h.b16 %v765
          %v928 = vunpack.c.l.b16 %v766
          %v929 = vunpack.c.h.b16 %v766
          %v930 = vunpack.c.l.b16 %v767
          %v931 = vunpack.c.h.b16 %v767
          %v932 = vunpack.c.l.b16 %v768
          %v933 = vunpack.c.h.b16 %v768
          %v934 = vunpack.c.l.b16 %v769
          %v935 = vunpack.c.h.b16 %v769
          %v936 = vunpack.c.l.b16 %v770
          %v937 = vunpack.c.h.b16 %v770
          %v938 = vunpack.c.l.b16 %v771
          %v939 = vunpack.c.h.b16 %v771
          %v940 = vunpack.c.l.b16 %v772
          %v941 = vunpack.c.h.b16 %v772
          %v942 = vunpack.c.l.b16 %v773
          %v943 = vunpack.c.h.b16 %v773
          %v944 = vunpack.c.l.b16 %v774
          %v945 = vunpack.c.h.b16 %v774
          %v946 = vunpack.c.l.b16 %v775
          %v947 = vunpack.c.h.b16 %v775
          %v948 = vunpack.c.l.b16 %v776
          %v949 = vunpack.c.h.b16 %v776
          %v950 = vunpack.c.l.b16 %v777
          %v951 = vunpack.c.h.b16 %v777
          %v952 = vunpack.c.l.b16 %v778
          %v953 = vunpack.c.h.b16 %v778
          %v954 = vunpack.c.l.b16 %v779
          %v955 = vunpack.c.h.b16 %v779
          %v956 = vunpack.c.l.b16 %v780
          %v957 = vunpack.c.h.b16 %v780
          %v958 = vunpack.c.l.b16 %v781
          %v959 = vunpack.c.h.b16 %v781
          %v960 = vunpack.c.l.b16 %v782
          %v961 = vunpack.c.h.b16 %v782
          %v962 = vunpack.c.l.b16 %v783
          %v963 = vunpack.c.h.b16 %v783
          %v964 = vunpack.c.l.b16 %v784
          %v965 = vunpack.c.h.b16 %v784
          %v966 = vunpack.c.l.b16 %v785
          %v967 = vunpack.c.h.b16 %v785
          %v968 = vunpack.c.l.b16 %v786
          %v969 = vunpack.c.h.b16 %v786
          %v970 = vunpack.c.l.b16 %v787
          %v971 = vunpack.c.h.b16 %v787
          %v972 = vunpack.c.l.b16 %v788
          %v973 = vunpack.c.h.b16 %v788
          %v974 = vunpack.c.l.b16 %v789
          %v975 = vunpack.c.h.b16 %v789
          %v976 = vunpack.c.l.b16 %v790
          %v977 = vunpack.c.h.b16 %v790
          %v978 = vunpack.c.l.b16 %v791
          %v979 = vunpack.c.h.b16 %v791
          %v980 = vunpack.c.l.b16 %v792
          %v981 = vunpack.c.h.b16 %v792
          %v982 = vunpack.c.l.b16 %v793
          %v983 = vunpack.c.h.b16 %v793
          %v984 = vunpack.c.l.b16 %v794
          %v985 = vunpack.c.h.b16 %v794
          %v986 = vunpack.c.l.b16 %v795
          %v987 = vunpack.c.h.b16 %v795
          %v988 = vunpack.c.l.b16 %v796
          %v989 = vunpack.c.h.b16 %v796
          %v990 = vunpack.c.l.b16 %v797
          %v991 = vunpack.c.h.b16 %v797
          %v992 = vunpack.c.l.b16 %v798
          %v993 = vunpack.c.h.b16 %v798
          %v994 = vunpack.c.l.b16 %v799
          %v995 = vunpack.c.h.b16 %v799
          %v996 = vunpack.c.l.b16 %v800
          %v997 = vunpack.c.h.b16 %v800
          %v998 = vunpack.c.l.b16 %v801
          %v999 = vunpack.c.h.b16 %v801
          %v1000 = vunpack.c.l.b16 %v802
          %v1001 = vunpack.c.h.b16 %v802
          %v1002 = vunpack.c.l.b16 %v803
          %v1003 = vunpack.c.h.b16 %v803
          %v1004 = vunpack.c.l.b16 %v804
          %v1005 = vunpack.c.h.b16 %v804
          %v1006 = vunpack.c.l.b16 %v805
          %v1007 = vunpack.c.h.b16 %v805
          %v1008 = vunpack.c.l.b16 %v806
          %v1009 = vunpack.c.h.b16 %v806
          %v1010 = vunpack.c.l.b16 %v807
          %v1011 = vunpack.c.h.b16 %v807
          %v1012 = vunpack.c.l.b16 %v808
          %v1013 = vunpack.c.h.b16 %v808
          %v1014 = vunpack.c.l.b16 %v809
          %v1015 = vunpack.c.h.b16 %v809
          %v1016 = vunpack.c.l.b16 %v810
          %v1017 = vunpack.c.h.b16 %v810
          %v1018 = vunpack.c.l.b16 %v811
          %v1019 = vunpack.c.h.b16 %v811
          %v1020 = vunpack.c.l.b16 %v812
          %v1021 = vunpack.c.h.b16 %v812
          %v1022 = vunpack.c.l.b16 %v813
          %v1023 = vunpack.c.h.b16 %v813
          %v1024 = vunpack.c.l.b16 %v814
          %v1025 = vunpack.c.h.b16 %v814
          %v1026 = vunpack.c.l.b16 %v815
          %v1027 = vunpack.c.h.b16 %v815
          %v1028 = vunpack.c.l.b16 %v816
          %v1029 = vunpack.c.h.b16 %v816
          %v1030 = vunpack.c.l.b16 %v817
          %v1031 = vunpack.c.h.b16 %v817
          %v1032 = vunpack.c.l.b16 %v818
          %v1033 = vunpack.c.h.b16 %v818
          %v1034 = vunpack.c.l.b16 %v819
          %v1035 = vunpack.c.h.b16 %v819
          %v1036 = vunpack.c.l.b16 %v820
          %v1037 = vunpack.c.h.b16 %v820
          %v1038 = vunpack.c.l.b16 %v821
          %v1039 = vunpack.c.h.b16 %v821
          %v1040 = vunpack.c.l.b16 %v822
          %v1041 = vunpack.c.h.b16 %v822
          %v1042 = vunpack.c.l.b16 %v823
          %v1043 = vunpack.c.h.b16 %v823
          %v1044 = vunpack.c.l.b16 %v824
          %v1045 = vunpack.c.h.b16 %v824
          %v1046 = vunpack.c.l.b16 %v825
          %v1047 = vunpack.c.h.b16 %v825
          %v1048 = vunpack.c.l.b16 %v826
          %v1049 = vunpack.c.h.b16 %v826
          %v1050 = vunpack.c.l.b16 %v827
          %v1051 = vunpack.c.h.b16 %v827
          %v1052 = vpack.c.b16 %v928, %v924
          %v1053 = vpack.c.b16 %v929, %v925
          %v1054 = vpack.c.b16 %v930, %v926
          %v1055 = vpack.c.b16 %v931, %v927
          %v1056 = vpack.c.b16 %v936, %v932
          %v1057 = vpack.c.b16 %v937, %v933
          %v1058 = vpack.c.b16 %v938, %v934
          %v1059 = vpack.c.b16 %v939, %v935
          %v1060 = vpack.c.b16 %v944, %v940
          %v1061 = vpack.c.b16 %v945, %v941
          %v1062 = vpack.c.b16 %v946, %v942
          %v1063 = vpack.c.b16 %v947, %v943
          %v1064 = vpack.c.b16 %v952, %v948
          %v1065 = vpack.c.b16 %v953, %v949
          %v1066 = vpack.c.b16 %v954, %v950
          %v1067 = vpack.c.b16 %v955, %v951
          %v1068 = vpack.c.b16 %v960, %v956
          %v1069 = vpack.c.b16 %v961, %v957
          %v1070 = vpack.c.b16 %v962, %v958
          %v1071 = vpack.c.b16 %v963, %v959
          %v1072 = vpack.c.b16 %v968, %v964
          %v1073 = vpack.c.b16 %v969, %v965
          %v1074 = vpack.c.b16 %v970, %v966
          %v1075 = vpack.c.b16 %v971, %v967
          %v1076 = vpack.c.b16 %v976, %v972
          %v1077 = vpack.c.b16 %v977, %v973
          %v1078 = vpack.c.b16 %v978, %v974
          %v1079 = vpack.c.b16 %v979, %v975
          %v1080 = vpack.c.b16 %v984, %v980
          %v1081 = vpack.c.b16 %v985, %v981
          %v1082 = vpack.c.b16 %v986, %v982
          %v1083 = vpack.c.b16 %v987, %v983
          %v1084 = vpack.c.b16 %v992, %v988
          %v1085 = vpack.c.b16 %v993, %v989
          %v1086 = vpack.c.b16 %v994, %v990
          %v1087 = vpack.c.b16 %v995, %v991
          %v1088 = vpack.c.b16 %v1000, %v996
          %v1089 = vpack.c.b16 %v1001, %v997
          %v1090 = vpack.c.b16 %v1002, %v998
          %v1091 = vpack.c.b16 %v1003, %v999
          %v1092 = vpack.c.b16 %v1008, %v1004
          %v1093 = vpack.c.b16 %v1009, %v1005
          %v1094 = vpack.c.b16 %v1010, %v1006
          %v1095 = vpack.c.b16 %v1011, %v1007
          %v1096 = vpack.c.b16 %v1016, %v1012
          %v1097 = vpack.c.b16 %v1017, %v1013
          %v1098 = vpack.c.b16 %v1018, %v1014
          %v1099 = vpack.c.b16 %v1019, %v1015
          %v1100 = vpack.c.b16 %v1024, %v1020
          %v1101 = vpack.c.b16 %v1025, %v1021
          %v1102 = vpack.c.b16 %v1026, %v1022
          %v1103 = vpack.c.b16 %v1027, %v1023
          %v1104 = vpack.c.b16 %v1032, %v1028
          %v1105 = vpack.c.b16 %v1033, %v1029
          %v1106 = vpack.c.b16 %v1034, %v1030
          %v1107 = vpack.c.b16 %v1035, %v1031
          %v1108 = vpack.c.b16 %v1040, %v1036
          %v1109 = vpack.c.b16 %v1041, %v1037
          %v1110 = vpack.c.b16 %v1042, %v1038
          %v1111 = vpack.c.b16 %v1043, %v1039
          %v1112 = vpack.c.b16 %v1048, %v1044
          %v1113 = vpack.c.b16 %v1049, %v1045
          %v1114 = vpack.c.b16 %v1050, %v1046
          %v1115 = vpack.c.b16 %v1051, %v1047
          %1180 = vmatprep.subr.bf16.mxu0 %v1053
          %1181 = vmatpush1.bf16.msra.mxu0 %v1052
          %1182 = vmatprep.subr.bf16.mxu0 %v1057
          %1183 = vmatpush1.bf16.msra.mxu0 %v1056
          %1184 = vmatprep.subr.bf16.mxu0 %v1061
          %1185 = vmatpush1.bf16.msra.mxu0 %v1060
          %1186 = vmatprep.subr.bf16.mxu0 %v1065
          %1187 = vmatpush1.bf16.msra.mxu0 %v1064
          %1188 = vmatprep.subr.bf16.mxu0 %v1069
          %1189 = vmatpush1.bf16.msra.mxu0 %v1068
          %1190 = vmatprep.subr.bf16.mxu0 %v1073
          %1191 = vmatpush1.bf16.msra.mxu0 %v1072
          %1192 = vmatprep.subr.bf16.mxu0 %v1077
          %1193 = vmatpush1.bf16.msra.mxu0 %v1076
          %1194 = vmatprep.subr.bf16.mxu0 %v1081
          %1195 = vmatpush1.bf16.msra.mxu0 %v1080
          %1196 = vmatprep.subr.bf16.mxu0 %v1085
          %1197 = vmatpush1.bf16.msra.mxu0 %v1084
          %1198 = vmatprep.subr.bf16.mxu0 %v1089
          %1199 = vmatpush1.bf16.msra.mxu0 %v1088
          %1200 = vmatprep.subr.bf16.mxu0 %v1093
          %1201 = vmatpush1.bf16.msra.mxu0 %v1092
          %1202 = vmatprep.subr.bf16.mxu0 %v1097
          %1203 = vmatpush1.bf16.msra.mxu0 %v1096
          %1204 = vmatprep.subr.bf16.mxu0 %v1101
          %1205 = vmatpush1.bf16.msra.mxu0 %v1100
          %1206 = vmatprep.subr.bf16.mxu0 %v1105
          %1207 = vmatpush1.bf16.msra.mxu0 %v1104
          %1208 = vmatprep.subr.bf16.mxu0 %v1109
          %1209 = vmatpush1.bf16.msra.mxu0 %v1108
          %1210 = vmatprep.subr.bf16.mxu0 %v1113
          %1211 = vmatpush1.bf16.msra.mxu0 %v1112
          %1212 = vmatprep.mubr.bf16.mxu0 %v857
          %1213 = vmatmul.mubr.bf16.gmra.mrb[0].mxu0 %v856
          %v1214 = vpop.f32.mrb[0].mxu0
          %v1215 = vadd.f32 %v833, %v1214
          %v1216 = vpop.f32.mrb[0].mxu0
          %v1217 = vadd.f32 %v837, %v1216
          %v1218 = vpop.f32.mrb[0].mxu0
          %v1219 = vadd.f32 %v833, %v1218
          %v1220 = vpop.f32.mrb[0].mxu0
          %v1221 = vadd.f32 %v837, %v1220
          %1222 = vdwg.mxu0
          %1223 = vmatprep.subr.bf16.mxu0 %v1055
          %1224 = vmatpush1.bf16.msra.mxu0 %v1054
          %1225 = vmatprep.subr.bf16.mxu0 %v1059
          %1226 = vmatpush1.bf16.msra.mxu0 %v1058
          %1227 = vmatprep.subr.bf16.mxu0 %v1063
          %1228 = vmatpush1.bf16.msra.mxu0 %v1062
          %1229 = vmatprep.subr.bf16.mxu0 %v1067
          %1230 = vmatpush1.bf16.msra.mxu0 %v1066
          %1231 = vmatprep.subr.bf16.mxu0 %v1071
          %1232 = vmatpush1.bf16.msra.mxu0 %v1070
          %1233 = vmatprep.subr.bf16.mxu0 %v1075
          %1234 = vmatpush1.bf16.msra.mxu0 %v1074
          %1235 = vmatprep.subr.bf16.mxu0 %v1079
          %1236 = vmatpush1.bf16.msra.mxu0 %v1078
          %1237 = vmatprep.subr.bf16.mxu0 %v1083
          %1238 = vmatpush1.bf16.msra.mxu0 %v1082
          %1239 = vmatprep.subr.bf16.mxu0 %v1087
          %1240 = vmatpush1.bf16.msra.mxu0 %v1086
          %1241 = vmatprep.subr.bf16.mxu0 %v1091
          %1242 = vmatpush1.bf16.msra.mxu0 %v1090
          %1243 = vmatprep.subr.bf16.mxu0 %v1095
          %1244 = vmatpush1.bf16.msra.mxu0 %v1094
          %1245 = vmatprep.subr.bf16.mxu0 %v1099
          %1246 = vmatpush1.bf16.msra.mxu0 %v1098
          %1247 = vmatprep.subr.bf16.mxu0 %v1103
          %1248 = vmatpush1.bf16.msra.mxu0 %v1102
          %1249 = vmatprep.subr.bf16.mxu0 %v1107
          %1250 = vmatpush1.bf16.msra.mxu0 %v1106
          %1251 = vmatprep.subr.bf16.mxu0 %v1111
          %1252 = vmatpush1.bf16.msra.mxu0 %v1110
          %1253 = vmatprep.subr.bf16.mxu0 %v1115
          %1254 = vmatpush1.bf16.msra.mxu0 %v1114
          %1255 = vmatprep.mubr.bf16.mxu0 %v857
          %1256 = vmatmul.mubr.bf16.gmra.mrb[0].mxu0 %v856
          %v1257 = vpop.f32.mrb[0].mxu0
          %v1258 = vadd.f32 %v841, %v1257
          %v1259 = vpop.f32.mrb[0].mxu0
          %v1260 = vadd.f32 %v845, %v1259
          %v1261 = vpop.f32.mrb[0].mxu0
          %v1262 = vadd.f32 %v841, %v1261
          %v1263 = vpop.f32.mrb[0].mxu0
          %v1264 = vadd.f32 %v845, %v1263
          %1265 = vdwg.mxu0
          %v1266 = vpack.c.bf16 %v1219, %v1215
          %v1267 = vpack.c.bf16 %v1221, %v1217
          %v1268 = vpack.c.bf16 %v1262, %v1258
          %v1269 = vpack.c.bf16 %v1264, %v1260
          %1270 = vst [vmem:[#allocation2] sm:$0xff] %v1266
          %1271 = vst [vmem:[#allocation2 + $0x8] sm:$0xff] %v1267
          %1272 = vst [vmem:[#allocation2 + $0x10] sm:$0xff] %v1268
          %1273 = vst [vmem:[#allocation2 + $0x18] sm:$0xff] %v1269
        $region144: #{decoder_layer_c_forward.7} parent=79 // pred_fallthru
          _
        %v1274 = vld [vmem:[%s641] sm:$0xff]
        %v1275 = vld [vmem:[%s641 + $0x8] sm:$0xff]
        %v1276 = vunpack.c.l.bf16 %v1274
        %v1277 = vunpack.c.h.bf16 %v1274
        %v1278 = vunpack.c.l.bf16 %v1275
        %v1279 = vunpack.c.h.bf16 %v1275
        %v1280 = vld [vmem:[#allocation9] sm:$0xff]
        %v1281 = vld [vmem:[#allocation9 + $0x8] sm:$0xff]
        %v1282 = vld [vmem:[#allocation9 + $0x10] sm:$0xff]
        %v1283 = vld [vmem:[#allocation9 + $0x18] sm:$0xff]
        %v1284 = vld [vmem:[#allocation9 + $0x20] sm:$0xff]
        %v1285 = vld [vmem:[#allocation9 + $0x28] sm:$0xff]
        %v1286 = vld [vmem:[#allocation9 + $0x30] sm:$0xff]
        %v1287 = vld [vmem:[#allocation9 + $0x38] sm:$0xff]
        %v1288 = vld [vmem:[#allocation9 + $0x40] sm:$0xff]
        %v1289 = vld [vmem:[#allocation9 + $0x48] sm:$0xff]
        %v1290 = vld [vmem:[#allocation9 + $0x50] sm:$0xff]
        %v1291 = vld [vmem:[#allocation9 + $0x58] sm:$0xff]
        %v1292 = vld [vmem:[#allocation9 + $0x60] sm:$0xff]
        %v1293 = vld [vmem:[#allocation9 + $0x68] sm:$0xff]
        %v1294 = vld [vmem:[#allocation9 + $0x70] sm:$0xff]
        %v1295 = vld [vmem:[#allocation9 + $0x78] sm:$0xff]
        %v1296 = vld [vmem:[#allocation9 + $0x80] sm:$0xff]
        %v1297 = vld [vmem:[#allocation9 + $0x88] sm:$0xff]
        %v1298 = vld [vmem:[#allocation9 + $0x90] sm:$0xff]
        %v1299 = vld [vmem:[#allocation9 + $0x98] sm:$0xff]
        %v1300 = vld [vmem:[#allocation9 + $0xa0] sm:$0xff]
        %v1301 = vld [vmem:[#allocation9 + $0xa8] sm:$0xff]
        %v1302 = vld [vmem:[#allocation9 + $0xb0] sm:$0xff]
        %v1303 = vld [vmem:[#allocation9 + $0xb8] sm:$0xff]
        %v1304 = vld [vmem:[#allocation9 + $0xc0] sm:$0xff]
        %v1305 = vld [vmem:[#allocation9 + $0xc8] sm:$0xff]
        %v1306 = vld [vmem:[#allocation9 + $0xd0] sm:$0xff]
        %v1307 = vld [vmem:[#allocation9 + $0xd8] sm:$0xff]
        %v1308 = vld [vmem:[#allocation9 + $0xe0] sm:$0xff]
        %v1309 = vld [vmem:[#allocation9 + $0xe8] sm:$0xff]
        %v1310 = vld [vmem:[#allocation9 + $0xf0] sm:$0xff]
        %v1311 = vld [vmem:[#allocation9 + $0xf8] sm:$0xff]
        %v1312 = vld [vmem:[#allocation11] sm:$0x3]
        %v1314 = vlaneseq
        %v1315 = vshrl.u32 %v1314, 7
        %v1316 = vsub.s32 0, %v1315
        %v1317 = vrot.slane %v1312, %v1316
        %v1318 = vlaneseq
        %v1319 = vshrl.u32 %v1318, 7
        %v1320 = vsub.s32 1, %v1319
        %v1321 = vrot.slane %v1312, %v1320
        %v1326 = vunpack.c.l.b16 %v1274
        %v1327 = vunpack.c.h.b16 %v1274
        %v1328 = vunpack.c.l.b16 %v1275
        %v1329 = vunpack.c.h.b16 %v1275
        %v1330 = vpack.c.b16 %v1328, %v1326
        %v1331 = vpack.c.b16 %v1329, %v1327
        %v1366 = vunpack.c.l.b16 %v1280
        %v1367 = vunpack.c.h.b16 %v1280
        %v1368 = vunpack.c.l.b16 %v1281
        %v1369 = vunpack.c.h.b16 %v1281
        %v1370 = vunpack.c.l.b16 %v1282
        %v1371 = vunpack.c.h.b16 %v1282
        %v1372 = vunpack.c.l.b16 %v1283
        %v1373 = vunpack.c.h.b16 %v1283
        %v1374 = vunpack.c.l.b16 %v1284
        %v1375 = vunpack.c.h.b16 %v1284
        %v1376 = vunpack.c.l.b16 %v1285
        %v1377 = vunpack.c.h.b16 %v1285
        %v1378 = vunpack.c.l.b16 %v1286
        %v1379 = vunpack.c.h.b16 %v1286
        %v1380 = vunpack.c.l.b16 %v1287
        %v1381 = vunpack.c.h.b16 %v1287
        %v1382 = vunpack.c.l.b16 %v1288
        %v1383 = vunpack.c.h.b16 %v1288
        %v1384 = vunpack.c.l.b16 %v1289
        %v1385 = vunpack.c.h.b16 %v1289
        %v1386 = vunpack.c.l.b16 %v1290
        %v1387 = vunpack.c.h.b16 %v1290
        %v1388 = vunpack.c.l.b16 %v1291
        %v1389 = vunpack.c.h.b16 %v1291
        %v1390 = vunpack.c.l.b16 %v1292
        %v1391 = vunpack.c.h.b16 %v1292
        %v1392 = vunpack.c.l.b16 %v1293
        %v1393 = vunpack.c.h.b16 %v1293
        %v1394 = vunpack.c.l.b16 %v1294
        %v1395 = vunpack.c.h.b16 %v1294
        %v1396 = vunpack.c.l.b16 %v1295
        %v1397 = vunpack.c.h.b16 %v1295
        %v1398 = vunpack.c.l.b16 %v1296
        %v1399 = vunpack.c.h.b16 %v1296
        %v1400 = vunpack.c.l.b16 %v1297
        %v1401 = vunpack.c.h.b16 %v1297
        %v1402 = vunpack.c.l.b16 %v1298
        %v1403 = vunpack.c.h.b16 %v1298
        %v1404 = vunpack.c.l.b16 %v1299
        %v1405 = vunpack.c.h.b16 %v1299
        %v1406 = vunpack.c.l.b16 %v1300
        %v1407 = vunpack.c.h.b16 %v1300
        %v1408 = vunpack.c.l.b16 %v1301
        %v1409 = vunpack.c.h.b16 %v1301
        %v1410 = vunpack.c.l.b16 %v1302
        %v1411 = vunpack.c.h.b16 %v1302
        %v1412 = vunpack.c.l.b16 %v1303
        %v1413 = vunpack.c.h.b16 %v1303
        %v1414 = vunpack.c.l.b16 %v1304
        %v1415 = vunpack.c.h.b16 %v1304
        %v1416 = vunpack.c.l.b16 %v1305
        %v1417 = vunpack.c.h.b16 %v1305
        %v1418 = vunpack.c.l.b16 %v1306
        %v1419 = vunpack.c.h.b16 %v1306
        %v1420 = vunpack.c.l.b16 %v1307
        %v1421 = vunpack.c.h.b16 %v1307
        %v1422 = vunpack.c.l.b16 %v1308
        %v1423 = vunpack.c.h.b16 %v1308
        %v1424 = vunpack.c.l.b16 %v1309
        %v1425 = vunpack.c.h.b16 %v1309
        %v1426 = vunpack.c.l.b16 %v1310
        %v1427 = vunpack.c.h.b16 %v1310
        %v1428 = vunpack.c.l.b16 %v1311
        %v1429 = vunpack.c.h.b16 %v1311
        %v1430 = vpack.c.b16 %v1368, %v1366
        %v1431 = vpack.c.b16 %v1369, %v1367
        %v1432 = vpack.c.b16 %v1372, %v1370
        %v1433 = vpack.c.b16 %v1373, %v1371
        %v1434 = vpack.c.b16 %v1376, %v1374
        %v1435 = vpack.c.b16 %v1377, %v1375
        %v1436 = vpack.c.b16 %v1380, %v1378
        %v1437 = vpack.c.b16 %v1381, %v1379
        %v1438 = vpack.c.b16 %v1384, %v1382
        %v1439 = vpack.c.b16 %v1385, %v1383
        %v1440 = vpack.c.b16 %v1388, %v1386
        %v1441 = vpack.c.b16 %v1389, %v1387
        %v1442 = vpack.c.b16 %v1392, %v1390
        %v1443 = vpack.c.b16 %v1393, %v1391
        %v1444 = vpack.c.b16 %v1396, %v1394
        %v1445 = vpack.c.b16 %v1397, %v1395
        %v1446 = vpack.c.b16 %v1400, %v1398
        %v1447 = vpack.c.b16 %v1401, %v1399
        %v1448 = vpack.c.b16 %v1404, %v1402
        %v1449 = vpack.c.b16 %v1405, %v1403
        %v1450 = vpack.c.b16 %v1408, %v1406
        %v1451 = vpack.c.b16 %v1409, %v1407
        %v1452 = vpack.c.b16 %v1412, %v1410
        %v1453 = vpack.c.b16 %v1413, %v1411
        %v1454 = vpack.c.b16 %v1416, %v1414
        %v1455 = vpack.c.b16 %v1417, %v1415
        %v1456 = vpack.c.b16 %v1420, %v1418
        %v1457 = vpack.c.b16 %v1421, %v1419
        %v1458 = vpack.c.b16 %v1424, %v1422
        %v1459 = vpack.c.b16 %v1425, %v1423
        %v1460 = vpack.c.b16 %v1428, %v1426
        %v1461 = vpack.c.b16 %v1429, %v1427
        %1494 = vmatprep.subr.bf16.mxu0 %v1431
        %1495 = vmatpush1.bf16.msra.mxu0 %v1430
        %1496 = vmatprep.subr.bf16.mxu0 %v1433
        %1497 = vmatpush1.bf16.msra.mxu0 %v1432
        %1498 = vmatprep.subr.bf16.mxu0 %v1435
        %1499 = vmatpush1.bf16.msra.mxu0 %v1434
        %1500 = vmatprep.subr.bf16.mxu0 %v1437
        %1501 = vmatpush1.bf16.msra.mxu0 %v1436
        %1502 = vmatprep.subr.bf16.mxu0 %v1439
        %1503 = vmatpush1.bf16.msra.mxu0 %v1438
        %1504 = vmatprep.subr.bf16.mxu0 %v1441
        %1505 = vmatpush1.bf16.msra.mxu0 %v1440
        %1506 = vmatprep.subr.bf16.mxu0 %v1443
        %1507 = vmatpush1.bf16.msra.mxu0 %v1442
        %1508 = vmatprep.subr.bf16.mxu0 %v1445
        %1509 = vmatpush1.bf16.msra.mxu0 %v1444
        %1510 = vmatprep.subr.bf16.mxu0 %v1447
        %1511 = vmatpush1.bf16.msra.mxu0 %v1446
        %1512 = vmatprep.subr.bf16.mxu0 %v1449
        %1513 = vmatpush1.bf16.msra.mxu0 %v1448
        %1514 = vmatprep.subr.bf16.mxu0 %v1451
        %1515 = vmatpush1.bf16.msra.mxu0 %v1450
        %1516 = vmatprep.subr.bf16.mxu0 %v1453
        %1517 = vmatpush1.bf16.msra.mxu0 %v1452
        %1518 = vmatprep.subr.bf16.mxu0 %v1455
        %1519 = vmatpush1.bf16.msra.mxu0 %v1454
        %1520 = vmatprep.subr.bf16.mxu0 %v1457
        %1521 = vmatpush1.bf16.msra.mxu0 %v1456
        %1522 = vmatprep.subr.bf16.mxu0 %v1459
        %1523 = vmatpush1.bf16.msra.mxu0 %v1458
        %1524 = vmatprep.subr.bf16.mxu0 %v1461
        %1525 = vmatpush1.bf16.msra.mxu0 %v1460
        %1526 = vmatprep.mubr.bf16.mxu0 %v1331
        %1527 = vmatmul.mubr.bf16.gmra.mrb[0].mxu0 %v1330
        %v1528 = vpop.f32.mrb[0].mxu0
        %v1529 = vadd.f32 %v1317, %v1528
        %v1530 = vpop.f32.mrb[0].mxu0
        %v1531 = vadd.f32 %v1321, %v1530
        %v1532 = vpop.f32.mrb[0].mxu0
        %v1533 = vadd.f32 %v1317, %v1532
        %v1534 = vpop.f32.mrb[0].mxu0
        %v1535 = vadd.f32 %v1321, %v1534
        %1536 = vdwg.mxu0
        %v1537 = vmul.f32 %v1529, 0.088388346
        %v1538 = vmul.f32 %v1531, 0.088388346
        %v1539 = vmul.f32 %v1533, 0.088388346
        %v1540 = vmul.f32 %v1535, 0.088388346
        %v1541 = vld [vmem:[#allocation8] sm:$0xf]
        %v1542 = vld [vmem:[#allocation8 + $0x4] sm:$0xf]
        %v1543 = vunpack.c.l.bf16 %v1541
        %v1544 = vunpack.c.l.bf16 %v1542
        %v1545 = vpack.c.bf16 %v1539, %v1537
        %v1546 = vld [vmem:[#allocation2] sm:$0xff]
        %v1547 = vld [vmem:[#allocation2 + $0x10] sm:$0xff]
        %1548 = vmatprep.subr.bf16.mxu0 0
        %1549 = vmatpush1.bf16.xpose.msra.mxu0 %v1546
        %1550 = vmatprep.subr.bf16.mxu0 0
        %1551 = vmatpush1.bf16.xpose.msra.mxu0 0
        %1552 = vmatprep.subr.bf16.mxu0 0
        %1553 = vmatpush1.bf16.xpose.msra.mxu0 0
        %1554 = vmatprep.subr.bf16.mxu0 0
        %1555 = vmatpush1.bf16.xpose.msra.mxu0 0
        %1556 = vmatprep.subr.bf16.mxu0 0
        %1557 = vmatpush1.bf16.xpose.msra.mxu0 0
        %1558 = vmatprep.subr.bf16.mxu0 0
        %1559 = vmatpush1.bf16.xpose.msra.mxu0 0
        %1560 = vmatprep.subr.bf16.mxu0 0
        %1561 = vmatpush1.bf16.xpose.msra.mxu0 0
        %1562 = vmatprep.subr.bf16.mxu0 0
        %1563 = vmatpush1.bf16.xpose.msra.mxu0 0
        %1564 = vmatprep.subr.bf16.mxu0 0
        %1565 = vmatpush1.bf16.xpose.msra.mxu0 0
        %1566 = vmatprep.subr.bf16.mxu0 0
        %1567 = vmatpush1.bf16.xpose.msra.mxu0 0
        %1568 = vmatprep.subr.bf16.mxu0 0
        %1569 = vmatpush1.bf16.xpose.msra.mxu0 0
        %1570 = vmatprep.subr.bf16.mxu0 0
        %1571 = vmatpush1.bf16.xpose.msra.mxu0 0
        %1572 = vmatprep.subr.bf16.mxu0 0
        %1573 = vmatpush1.bf16.xpose.msra.mxu0 0
        %1574 = vmatprep.subr.bf16.mxu0 0
        %1575 = vmatpush1.bf16.xpose.msra.mxu0 0
        %1576 = vmatprep.subr.bf16.mxu0 0
        %1577 = vmatpush1.bf16.xpose.msra.mxu0 0
        %1578 = vmatprep.subr.bf16.mxu0 0
        %1579 = vmatpush1.bf16.xpose.msra.mxu0 0
        %1580 = vmatprep.mubr.bf16.mxu0 0
        %1581 = vmatmul.mubr.bf16.gmra.mrb[0].mxu0 %v1545
        %v1582 = vpop.f32.mrb[0].mxu0
        %v1583 = vadd.f32 %v1543, %v1582
        %v1584 = vpop.f32.mrb[0].mxu0
        %v1585 = vpop.f32.mrb[0].mxu0
        %v1586 = vadd.f32 %v1544, %v1585
        %v1587 = vpop.f32.mrb[0].mxu0
        %1588 = vdwg.mxu0
        %vm1589 = vcmask 130048
        %v1590 = vsel %vm1589, %v1583, -inf
        %1591 = vmax.xlane.f32.xlu0 %v1590
        %v1592 = vpop.xlane.xlu0 %1591
        %v1593 = vsel %vm1589, %v1586, -inf
        %1594 = vmax.xlane.f32.xlu0 %v1593
        %v1595 = vpop.xlane.xlu0 %1594
        %v1596 = vsub.f32 %v1583, %v1592
        %v1597 = vsub.f32 %v1586, %v1595
        %v1598 = vmul.f32 %v1596, 1.442695
        %v1599 = vpow.pop %v1598
        %v1600 = vmul.f32 %v1597, 1.442695
        %v1601 = vpow.pop %v1600
        %v1602 = vsel %vm1589, %v1599, 0.0
        %1603 = vadd.xlane.f32.xlu0 %v1602
        %v1604 = vpop.xlane.xlu0 %1603
        %v1605 = vsel %vm1589, %v1601, 0.0
        %1606 = vadd.xlane.f32.xlu0 %v1605
        %v1607 = vpop.xlane.xlu0 %1606
        %v1608 = vrcp.pop %v1604
        %v1609 = vrcp.pop %v1607
        %v1610 = vmul.f32 %v1599, %v1608
        %v1611 = vmul.f32 %v1601, %v1609
        %v1612 = vpack.c.bf16 %v1611, %v1610
        %v1614 = vsel %vm1589, %v1612, 0
        %1616 = vmatprep.subr.bf16.mxu0 0
        %1617 = vmatpush1.bf16.msra.mxu0 %v1547
        %1618 = vmatprep.subr.bf16.mxu0 0
        %1619 = vmatpush1.bf16.msra.mxu0 0
        %1620 = vmatprep.subr.bf16.mxu0 0
        %1621 = vmatpush1.bf16.msra.mxu0 0
        %1622 = vmatprep.subr.bf16.mxu0 0
        %1623 = vmatpush1.bf16.msra.mxu0 0
        %1624 = vmatprep.subr.bf16.mxu0 0
        %1625 = vmatpush1.bf16.msra.mxu0 0
        %1626 = vmatprep.subr.bf16.mxu0 0
        %1627 = vmatpush1.bf16.msra.mxu0 0
        %1628 = vmatprep.subr.bf16.mxu0 0
        %1629 = vmatpush1.bf16.msra.mxu0 0
        %1630 = vmatprep.subr.bf16.mxu0 0
        %1631 = vmatpush1.bf16.msra.mxu0 0
        %1632 = vmatprep.subr.bf16.mxu0 0
        %1633 = vmatpush1.bf16.msra.mxu0 0
        %1634 = vmatprep.subr.bf16.mxu0 0
        %1635 = vmatpush1.bf16.msra.mxu0 0
        %1636 = vmatprep.subr.bf16.mxu0 0
        %1637 = vmatpush1.bf16.msra.mxu0 0
        %1638 = vmatprep.subr.bf16.mxu0 0
        %1639 = vmatpush1.bf16.msra.mxu0 0
        %1640 = vmatprep.subr.bf16.mxu0 0
        %1641 = vmatpush1.bf16.msra.mxu0 0
        %1642 = vmatprep.subr.bf16.mxu0 0
        %1643 = vmatpush1.bf16.msra.mxu0 0
        %1644 = vmatprep.subr.bf16.mxu0 0
        %1645 = vmatpush1.bf16.msra.mxu0 0
        %1646 = vmatprep.subr.bf16.mxu0 0
        %1647 = vmatpush1.bf16.msra.mxu0 0
        %1648 = vmatprep.mubr.bf16.mxu0 0
        %1649 = vmatmul.mubr.bf16.gmra.mrb[0].mxu0 %v1614
        %v1650 = vpop.f32.mrb[0].mxu0
        %v1651 = vadd.f32 0.0, %v1650
        %v1652 = vpop.f32.mrb[0].mxu0
        %v1653 = vpop.f32.mrb[0].mxu0
        %v1654 = vadd.f32 0.0, %v1653
        %v1655 = vpop.f32.mrb[0].mxu0
        %1656 = vdwg.mxu0
        %v1657 = vpack.c.bf16 %v1540, %v1538
        %v1658 = vld [vmem:[#allocation2 + $0x8] sm:$0xff]
        %v1659 = vld [vmem:[#allocation2 + $0x18] sm:$0xff]
        %1660 = vmatprep.subr.bf16.mxu0 0
        %1661 = vmatpush1.bf16.xpose.msra.mxu0 %v1658
        %1662 = vmatprep.subr.bf16.mxu0 0
        %1663 = vmatpush1.bf16.xpose.msra.mxu0 0
        %1664 = vmatprep.subr.bf16.mxu0 0
        %1665 = vmatpush1.bf16.xpose.msra.mxu0 0
        %1666 = vmatprep.subr.bf16.mxu0 0
        %1667 = vmatpush1.bf16.xpose.msra.mxu0 0
        %1668 = vmatprep.subr.bf16.mxu0 0
        %1669 = vmatpush1.bf16.xpose.msra.mxu0 0
        %1670 = vmatprep.subr.bf16.mxu0 0
        %1671 = vmatpush1.bf16.xpose.msra.mxu0 0
        %1672 = vmatprep.subr.bf16.mxu0 0
        %1673 = vmatpush1.bf16.xpose.msra.mxu0 0
        %1674 = vmatprep.subr.bf16.mxu0 0
        %1675 = vmatpush1.bf16.xpose.msra.mxu0 0
        %1676 = vmatprep.subr.bf16.mxu0 0
        %1677 = vmatpush1.bf16.xpose.msra.mxu0 0
        %1678 = vmatprep.subr.bf16.mxu0 0
        %1679 = vmatpush1.bf16.xpose.msra.mxu0 0
        %1680 = vmatprep.subr.bf16.mxu0 0
        %1681 = vmatpush1.bf16.xpose.msra.mxu0 0
        %1682 = vmatprep.subr.bf16.mxu0 0
        %1683 = vmatpush1.bf16.xpose.msra.mxu0 0
        %1684 = vmatprep.subr.bf16.mxu0 0
        %1685 = vmatpush1.bf16.xpose.msra.mxu0 0
        %1686 = vmatprep.subr.bf16.mxu0 0
        %1687 = vmatpush1.bf16.xpose.msra.mxu0 0
        %1688 = vmatprep.subr.bf16.mxu0 0
        %1689 = vmatpush1.bf16.xpose.msra.mxu0 0
        %1690 = vmatprep.subr.bf16.mxu0 0
        %1691 = vmatpush1.bf16.xpose.msra.mxu0 0
        %1692 = vmatprep.mubr.bf16.mxu0 0
        %1693 = vmatmul.mubr.bf16.gmra.mrb[0].mxu0 %v1657
        %v1694 = vpop.f32.mrb[0].mxu0
        %v1695 = vadd.f32 %v1543, %v1694
        %v1696 = vpop.f32.mrb[0].mxu0
        %v1697 = vpop.f32.mrb[0].mxu0
        %v1698 = vadd.f32 %v1544, %v1697
        %v1699 = vpop.f32.mrb[0].mxu0
        %1700 = vdwg.mxu0
        %v1701 = vsel %vm1589, %v1695, -inf
        %1702 = vmax.xlane.f32.xlu0 %v1701
        %v1703 = vpop.xlane.xlu0 %1702
        %v1704 = vsel %vm1589, %v1698, -inf
        %1705 = vmax.xlane.f32.xlu0 %v1704
        %v1706 = vpop.xlane.xlu0 %1705
        %v1707 = vsub.f32 %v1695, %v1703
        %v1708 = vsub.f32 %v1698, %v1706
        %v1709 = vmul.f32 %v1707, 1.442695
        %v1710 = vpow.pop %v1709
        %v1711 = vmul.f32 %v1708, 1.442695
        %v1712 = vpow.pop %v1711
        %v1713 = vsel %vm1589, %v1710, 0.0
        %1714 = vadd.xlane.f32.xlu0 %v1713
        %v1715 = vpop.xlane.xlu0 %1714
        %v1716 = vsel %vm1589, %v1712, 0.0
        %1717 = vadd.xlane.f32.xlu0 %v1716
        %v1718 = vpop.xlane.xlu0 %1717
        %v1719 = vrcp.pop %v1715
        %v1720 = vrcp.pop %v1718
        %v1721 = vmul.f32 %v1710, %v1719
        %v1722 = vmul.f32 %v1712, %v1720
        %v1723 = vpack.c.bf16 %v1722, %v1721
        %v1725 = vsel %vm1589, %v1723, 0
        %1727 = vmatprep.subr.bf16.mxu0 0
        %1728 = vmatpush1.bf16.msra.mxu0 %v1659
        %1729 = vmatprep.subr.bf16.mxu0 0
        %1730 = vmatpush1.bf16.msra.mxu0 0
        %1731 = vmatprep.subr.bf16.mxu0 0
        %1732 = vmatpush1.bf16.msra.mxu0 0
        %1733 = vmatprep.subr.bf16.mxu0 0
        %1734 = vmatpush1.bf16.msra.mxu0 0
        %1735 = vmatprep.subr.bf16.mxu0 0
        %1736 = vmatpush1.bf16.msra.mxu0 0
        %1737 = vmatprep.subr.bf16.mxu0 0
        %1738 = vmatpush1.bf16.msra.mxu0 0
        %1739 = vmatprep.subr.bf16.mxu0 0
        %1740 = vmatpush1.bf16.msra.mxu0 0
        %1741 = vmatprep.subr.bf16.mxu0 0
        %1742 = vmatpush1.bf16.msra.mxu0 0
        %1743 = vmatprep.subr.bf16.mxu0 0
        %1744 = vmatpush1.bf16.msra.mxu0 0
        %1745 = vmatprep.subr.bf16.mxu0 0
        %1746 = vmatpush1.bf16.msra.mxu0 0
        %1747 = vmatprep.subr.bf16.mxu0 0
        %1748 = vmatpush1.bf16.msra.mxu0 0
        %1749 = vmatprep.subr.bf16.mxu0 0
        %1750 = vmatpush1.bf16.msra.mxu0 0
        %1751 = vmatprep.subr.bf16.mxu0 0
        %1752 = vmatpush1.bf16.msra.mxu0 0
        %1753 = vmatprep.subr.bf16.mxu0 0
        %1754 = vmatpush1.bf16.msra.mxu0 0
        %1755 = vmatprep.subr.bf16.mxu0 0
        %1756 = vmatpush1.bf16.msra.mxu0 0
        %1757 = vmatprep.subr.bf16.mxu0 0
        %1758 = vmatpush1.bf16.msra.mxu0 0
        %1759 = vmatprep.mubr.bf16.mxu0 0
        %1760 = vmatmul.mubr.bf16.gmra.mrb[0].mxu0 %v1725
        %v1761 = vpop.f32.mrb[0].mxu0
        %v1762 = vadd.f32 0.0, %v1761
        %v1763 = vpop.f32.mrb[0].mxu0
        %v1764 = vpop.f32.mrb[0].mxu0
        %v1765 = vadd.f32 0.0, %v1764
        %v1766 = vpop.f32.mrb[0].mxu0
        %1767 = vdwg.mxu0
        %v1768 = vpack.c.bf16 %v1654, %v1651
        %v1769 = vpack.c.bf16 %v1765, %v1762
        %v1770 = vld [vmem:[#allocation15] sm:$0xff]
        %v1771 = vld [vmem:[#allocation15 + $0x8] sm:$0xff]
        %v1772 = vld [vmem:[#allocation15 + $0x10] sm:$0xff]
        %v1773 = vld [vmem:[#allocation15 + $0x18] sm:$0xff]
        %v1774 = vld [vmem:[#allocation15 + $0x20] sm:$0xff]
        %v1775 = vld [vmem:[#allocation15 + $0x28] sm:$0xff]
        %v1776 = vld [vmem:[#allocation15 + $0x30] sm:$0xff]
        %v1777 = vld [vmem:[#allocation15 + $0x38] sm:$0xff]
        %v1778 = vld [vmem:[#allocation15 + $0x40] sm:$0xff]
        %v1779 = vld [vmem:[#allocation15 + $0x48] sm:$0xff]
        %v1780 = vld [vmem:[#allocation15 + $0x50] sm:$0xff]
        %v1781 = vld [vmem:[#allocation15 + $0x58] sm:$0xff]
        %v1782 = vld [vmem:[#allocation15 + $0x60] sm:$0xff]
        %v1783 = vld [vmem:[#allocation15 + $0x68] sm:$0xff]
        %v1784 = vld [vmem:[#allocation15 + $0x70] sm:$0xff]
        %v1785 = vld [vmem:[#allocation15 + $0x78] sm:$0xff]
        %v1786 = vld [vmem:[#allocation15 + $0x80] sm:$0xff]
        %v1787 = vld [vmem:[#allocation15 + $0x88] sm:$0xff]
        %v1788 = vld [vmem:[#allocation15 + $0x90] sm:$0xff]
        %v1789 = vld [vmem:[#allocation15 + $0x98] sm:$0xff]
        %v1790 = vld [vmem:[#allocation15 + $0xa0] sm:$0xff]
        %v1791 = vld [vmem:[#allocation15 + $0xa8] sm:$0xff]
        %v1792 = vld [vmem:[#allocation15 + $0xb0] sm:$0xff]
        %v1793 = vld [vmem:[#allocation15 + $0xb8] sm:$0xff]
        %v1794 = vld [vmem:[#allocation15 + $0xc0] sm:$0xff]
        %v1795 = vld [vmem:[#allocation15 + $0xc8] sm:$0xff]
        %v1796 = vld [vmem:[#allocation15 + $0xd0] sm:$0xff]
        %v1797 = vld [vmem:[#allocation15 + $0xd8] sm:$0xff]
        %v1798 = vld [vmem:[#allocation15 + $0xe0] sm:$0xff]
        %v1799 = vld [vmem:[#allocation15 + $0xe8] sm:$0xff]
        %v1800 = vld [vmem:[#allocation15 + $0xf0] sm:$0xff]
        %v1801 = vld [vmem:[#allocation15 + $0xf8] sm:$0xff]
        %v1802 = vld [vmem:[#allocation17] sm:$0x3]
        %v1804 = vlaneseq
        %v1805 = vshrl.u32 %v1804, 7
        %v1806 = vsub.s32 0, %v1805
        %v1807 = vrot.slane %v1802, %v1806
        %v1808 = vlaneseq
        %v1809 = vshrl.u32 %v1808, 7
        %v1810 = vsub.s32 1, %v1809
        %v1811 = vrot.slane %v1802, %v1810
        %v1846 = vunpack.c.l.b16 %v1770
        %v1847 = vunpack.c.h.b16 %v1770
        %v1848 = vunpack.c.l.b16 %v1771
        %v1849 = vunpack.c.h.b16 %v1771
        %v1850 = vunpack.c.l.b16 %v1772
        %v1851 = vunpack.c.h.b16 %v1772
        %v1852 = vunpack.c.l.b16 %v1773
        %v1853 = vunpack.c.h.b16 %v1773
        %v1854 = vunpack.c.l.b16 %v1774
        %v1855 = vunpack.c.h.b16 %v1774
        %v1856 = vunpack.c.l.b16 %v1775
        %v1857 = vunpack.c.h.b16 %v1775
        %v1858 = vunpack.c.l.b16 %v1776
        %v1859 = vunpack.c.h.b16 %v1776
        %v1860 = vunpack.c.l.b16 %v1777
        %v1861 = vunpack.c.h.b16 %v1777
        %v1862 = vunpack.c.l.b16 %v1778
        %v1863 = vunpack.c.h.b16 %v1778
        %v1864 = vunpack.c.l.b16 %v1779
        %v1865 = vunpack.c.h.b16 %v1779
        %v1866 = vunpack.c.l.b16 %v1780
        %v1867 = vunpack.c.h.b16 %v1780
        %v1868 = vunpack.c.l.b16 %v1781
        %v1869 = vunpack.c.h.b16 %v1781
        %v1870 = vunpack.c.l.b16 %v1782
        %v1871 = vunpack.c.h.b16 %v1782
        %v1872 = vunpack.c.l.b16 %v1783
        %v1873 = vunpack.c.h.b16 %v1783
        %v1874 = vunpack.c.l.b16 %v1784
        %v1875 = vunpack.c.h.b16 %v1784
        %v1876 = vunpack.c.l.b16 %v1785
        %v1877 = vunpack.c.h.b16 %v1785
        %v1878 = vunpack.c.l.b16 %v1786
        %v1879 = vunpack.c.h.b16 %v1786
        %v1880 = vunpack.c.l.b16 %v1787
        %v1881 = vunpack.c.h.b16 %v1787
        %v1882 = vunpack.c.l.b16 %v1788
        %v1883 = vunpack.c.h.b16 %v1788
        %v1884 = vunpack.c.l.b16 %v1789
        %v1885 = vunpack.c.h.b16 %v1789
        %v1886 = vunpack.c.l.b16 %v1790
        %v1887 = vunpack.c.h.b16 %v1790
        %v1888 = vunpack.c.l.b16 %v1791
        %v1889 = vunpack.c.h.b16 %v1791
        %v1890 = vunpack.c.l.b16 %v1792
        %v1891 = vunpack.c.h.b16 %v1792
        %v1892 = vunpack.c.l.b16 %v1793
        %v1893 = vunpack.c.h.b16 %v1793
        %v1894 = vunpack.c.l.b16 %v1794
        %v1895 = vunpack.c.h.b16 %v1794
        %v1896 = vunpack.c.l.b16 %v1795
        %v1897 = vunpack.c.h.b16 %v1795
        %v1898 = vunpack.c.l.b16 %v1796
        %v1899 = vunpack.c.h.b16 %v1796
        %v1900 = vunpack.c.l.b16 %v1797
        %v1901 = vunpack.c.h.b16 %v1797
        %v1902 = vunpack.c.l.b16 %v1798
        %v1903 = vunpack.c.h.b16 %v1798
        %v1904 = vunpack.c.l.b16 %v1799
        %v1905 = vunpack.c.h.b16 %v1799
        %v1906 = vunpack.c.l.b16 %v1800
        %v1907 = vunpack.c.h.b16 %v1800
        %v1908 = vunpack.c.l.b16 %v1801
        %v1909 = vunpack.c.h.b16 %v1801
        %v1910 = vpack.c.b16 %v1848, %v1846
        %v1911 = vpack.c.b16 %v1849, %v1847
        %v1912 = vpack.c.b16 %v1852, %v1850
        %v1913 = vpack.c.b16 %v1853, %v1851
        %v1914 = vpack.c.b16 %v1856, %v1854
        %v1915 = vpack.c.b16 %v1857, %v1855
        %v1916 = vpack.c.b16 %v1860, %v1858
        %v1917 = vpack.c.b16 %v1861, %v1859
        %v1918 = vpack.c.b16 %v1864, %v1862
        %v1919 = vpack.c.b16 %v1865, %v1863
        %v1920 = vpack.c.b16 %v1868, %v1866
        %v1921 = vpack.c.b16 %v1869, %v1867
        %v1922 = vpack.c.b16 %v1872, %v1870
        %v1923 = vpack.c.b16 %v1873, %v1871
        %v1924 = vpack.c.b16 %v1876, %v1874
        %v1925 = vpack.c.b16 %v1877, %v1875
        %v1926 = vpack.c.b16 %v1880, %v1878
        %v1927 = vpack.c.b16 %v1881, %v1879
        %v1928 = vpack.c.b16 %v1884, %v1882
        %v1929 = vpack.c.b16 %v1885, %v1883
        %v1930 = vpack.c.b16 %v1888, %v1886
        %v1931 = vpack.c.b16 %v1889, %v1887
        %v1932 = vpack.c.b16 %v1892, %v1890
        %v1933 = vpack.c.b16 %v1893, %v1891
        %v1934 = vpack.c.b16 %v1896, %v1894
        %v1935 = vpack.c.b16 %v1897, %v1895
        %v1936 = vpack.c.b16 %v1900, %v1898
        %v1937 = vpack.c.b16 %v1901, %v1899
        %v1938 = vpack.c.b16 %v1904, %v1902
        %v1939 = vpack.c.b16 %v1905, %v1903
        %v1940 = vpack.c.b16 %v1908, %v1906
        %v1941 = vpack.c.b16 %v1909, %v1907
        %1974 = vmatprep.subr.bf16.mxu0 %v1911
        %1975 = vmatpush1.bf16.msra.mxu0 %v1910
        %1976 = vmatprep.subr.bf16.mxu0 %v1913
        %1977 = vmatpush1.bf16.msra.mxu0 %v1912
        %1978 = vmatprep.subr.bf16.mxu0 %v1915
        %1979 = vmatpush1.bf16.msra.mxu0 %v1914
        %1980 = vmatprep.subr.bf16.mxu0 %v1917
        %1981 = vmatpush1.bf16.msra.mxu0 %v1916
        %1982 = vmatprep.subr.bf16.mxu0 %v1919
        %1983 = vmatpush1.bf16.msra.mxu0 %v1918
        %1984 = vmatprep.subr.bf16.mxu0 %v1921
        %1985 = vmatpush1.bf16.msra.mxu0 %v1920
        %1986 = vmatprep.subr.bf16.mxu0 %v1923
        %1987 = vmatpush1.bf16.msra.mxu0 %v1922
        %1988 = vmatprep.subr.bf16.mxu0 %v1925
        %1989 = vmatpush1.bf16.msra.mxu0 %v1924
        %1990 = vmatprep.subr.bf16.mxu0 %v1927
        %1991 = vmatpush1.bf16.msra.mxu0 %v1926
        %1992 = vmatprep.subr.bf16.mxu0 %v1929
        %1993 = vmatpush1.bf16.msra.mxu0 %v1928
        %1994 = vmatprep.subr.bf16.mxu0 %v1931
        %1995 = vmatpush1.bf16.msra.mxu0 %v1930
        %1996 = vmatprep.subr.bf16.mxu0 %v1933
        %1997 = vmatpush1.bf16.msra.mxu0 %v1932
        %1998 = vmatprep.subr.bf16.mxu0 %v1935
        %1999 = vmatpush1.bf16.msra.mxu0 %v1934
        %2000 = vmatprep.subr.bf16.mxu0 %v1937
        %2001 = vmatpush1.bf16.msra.mxu0 %v1936
        %2002 = vmatprep.subr.bf16.mxu0 %v1939
        %2003 = vmatpush1.bf16.msra.mxu0 %v1938
        %2004 = vmatprep.subr.bf16.mxu0 %v1941
        %2005 = vmatpush1.bf16.msra.mxu0 %v1940
        %2006 = vmatprep.mubr.bf16.mxu0 %v1769
        %2007 = vmatmul.mubr.bf16.gmra.mrb[0].mxu0 %v1768
        %v2008 = vpop.f32.mrb[0].mxu0
        %v2009 = vadd.f32 %v1807, %v2008
        %v2010 = vpop.f32.mrb[0].mxu0
        %v2011 = vadd.f32 %v1811, %v2010
        %v2012 = vpop.f32.mrb[0].mxu0
        %v2013 = vadd.f32 %v1807, %v2012
        %v2014 = vpop.f32.mrb[0].mxu0
        %v2015 = vadd.f32 %v1811, %v2014
        %2016 = vdwg.mxu0
        %v2017 = vadd.f32 %v2009, %v1276
        %v2018 = vadd.f32 %v2011, %v1277
        %v2019 = vadd.f32 %v2013, %v1278
        %v2020 = vadd.f32 %v2015, %v1279
        %v2021 = vadd.f32 %v2017, %v2018
        %2022 = vadd.xlane.f32.xlu0 %v2021
        %v2023 = vpop.xlane.xlu0 %2022
        %v2024 = vadd.f32 %v2019, %v2020
        %2025 = vadd.xlane.f32.xlu0 %v2024
        %v2026 = vpop.xlane.xlu0 %2025
        %v2027 = vrcp.pop 256.0
        %v2028 = vmul.f32 %v2023, %v2027
        %v2029 = vmul.f32 %v2026, %v2027
        %v2030 = vsub.f32 %v2017, %v2028
        %v2031 = vsub.f32 %v2018, %v2028
        %v2032 = vsub.f32 %v2019, %v2029
        %v2033 = vsub.f32 %v2020, %v2029
        %v2034 = vmul.f32 %v2030, %v2030
        %v2035 = vmul.f32 %v2031, %v2031
        %v2036 = vmul.f32 %v2032, %v2032
        %v2037 = vmul.f32 %v2033, %v2033
        %v2038 = vadd.f32 %v2034, %v2035
        %2039 = vadd.xlane.f32.xlu0 %v2038
        %v2040 = vpop.xlane.xlu0 %2039
        %v2041 = vadd.f32 %v2036, %v2037
        %2042 = vadd.xlane.f32.xlu0 %v2041
        %v2043 = vpop.xlane.xlu0 %2042
        %v2044 = vmul.f32 %v2040, %v2027
        %v2045 = vmul.f32 %v2043, %v2027
        %v2046 = vadd.f32 %v2044, 1e-05
        %v2047 = vadd.f32 %v2045, 1e-05
        %v2048 = vrsqrt.pop %v2046
        %v2049 = vrsqrt.pop %v2047
        %v2050 = vmul.f32 %v2030, %v2048
        %v2051 = vmul.f32 %v2031, %v2048
        %v2052 = vmul.f32 %v2032, %v2049
        %v2053 = vmul.f32 %v2033, %v2049
        %v2054 = vld [vmem:[#allocation18] sm:$0x3]
        %v2056 = vlaneseq
        %v2057 = vshrl.u32 %v2056, 7
        %v2058 = vsub.s32 0, %v2057
        %v2059 = vrot.slane %v2054, %v2058
        %v2060 = vlaneseq
        %v2061 = vshrl.u32 %v2060, 7
        %v2062 = vsub.s32 1, %v2061
        %v2063 = vrot.slane %v2054, %v2062
        %v2066 = vmul.f32 %v2050, %v2059
        %v2067 = vmul.f32 %v2051, %v2063
        %v2068 = vmul.f32 %v2052, %v2059
        %v2069 = vmul.f32 %v2053, %v2063
        %v2070 = vld [vmem:[#allocation20] sm:$0x3]
        %v2072 = vlaneseq
        %v2073 = vshrl.u32 %v2072, 7
        %v2074 = vsub.s32 0, %v2073
        %v2075 = vrot.slane %v2070, %v2074
        %v2076 = vlaneseq
        %v2077 = vshrl.u32 %v2076, 7
        %v2078 = vsub.s32 1, %v2077
        %v2079 = vrot.slane %v2070, %v2078
        %v2082 = vadd.f32 %v2066, %v2075
        %v2083 = vadd.f32 %v2067, %v2079
        %v2084 = vadd.f32 %v2068, %v2075
        %v2085 = vadd.f32 %v2069, %v2079
        %v2086 = vpack.c.bf16 %v2084, %v2082
        %v2087 = vpack.c.bf16 %v2085, %v2083
        %v2088 = vld [vmem:[#allocation21] sm:$0xff]
        %v2089 = vld [vmem:[#allocation21 + $0x8] sm:$0xff]
        %v2090 = vld [vmem:[#allocation21 + $0x10] sm:$0xff]
        %v2091 = vld [vmem:[#allocation21 + $0x18] sm:$0xff]
        %v2092 = vld [vmem:[#allocation21 + $0x20] sm:$0xff]
        %v2093 = vld [vmem:[#allocation21 + $0x28] sm:$0xff]
        %v2094 = vld [vmem:[#allocation21 + $0x30] sm:$0xff]
        %v2095 = vld [vmem:[#allocation21 + $0x38] sm:$0xff]
        %v2096 = vld [vmem:[#allocation21 + $0x40] sm:$0xff]
        %v2097 = vld [vmem:[#allocation21 + $0x48] sm:$0xff]
        %v2098 = vld [vmem:[#allocation21 + $0x50] sm:$0xff]
        %v2099 = vld [vmem:[#allocation21 + $0x58] sm:$0xff]
        %v2100 = vld [vmem:[#allocation21 + $0x60] sm:$0xff]
        %v2101 = vld [vmem:[#allocation21 + $0x68] sm:$0xff]
        %v2102 = vld [vmem:[#allocation21 + $0x70] sm:$0xff]
        %v2103 = vld [vmem:[#allocation21 + $0x78] sm:$0xff]
        %v2104 = vld [vmem:[#allocation21 + $0x80] sm:$0xff]
        %v2105 = vld [vmem:[#allocation21 + $0x88] sm:$0xff]
        %v2106 = vld [vmem:[#allocation21 + $0x90] sm:$0xff]
        %v2107 = vld [vmem:[#allocation21 + $0x98] sm:$0xff]
        %v2108 = vld [vmem:[#allocation21 + $0xa0] sm:$0xff]
        %v2109 = vld [vmem:[#allocation21 + $0xa8] sm:$0xff]
        %v2110 = vld [vmem:[#allocation21 + $0xb0] sm:$0xff]
        %v2111 = vld [vmem:[#allocation21 + $0xb8] sm:$0xff]
        %v2112 = vld [vmem:[#allocation21 + $0xc0] sm:$0xff]
        %v2113 = vld [vmem:[#allocation21 + $0xc8] sm:$0xff]
        %v2114 = vld [vmem:[#allocation21 + $0xd0] sm:$0xff]
        %v2115 = vld [vmem:[#allocation21 + $0xd8] sm:$0xff]
        %v2116 = vld [vmem:[#allocation21 + $0xe0] sm:$0xff]
        %v2117 = vld [vmem:[#allocation21 + $0xe8] sm:$0xff]
        %v2118 = vld [vmem:[#allocation21 + $0xf0] sm:$0xff]
        %v2119 = vld [vmem:[#allocation21 + $0xf8] sm:$0xff]
        %v2120 = vld [vmem:[#allocation21 + $0x100] sm:$0xff]
        %v2121 = vld [vmem:[#allocation21 + $0x108] sm:$0xff]
        %v2122 = vld [vmem:[#allocation21 + $0x110] sm:$0xff]
        %v2123 = vld [vmem:[#allocation21 + $0x118] sm:$0xff]
        %v2124 = vld [vmem:[#allocation21 + $0x120] sm:$0xff]
        %v2125 = vld [vmem:[#allocation21 + $0x128] sm:$0xff]
        %v2126 = vld [vmem:[#allocation21 + $0x130] sm:$0xff]
        %v2127 = vld [vmem:[#allocation21 + $0x138] sm:$0xff]
        %v2128 = vld [vmem:[#allocation21 + $0x140] sm:$0xff]
        %v2129 = vld [vmem:[#allocation21 + $0x148] sm:$0xff]
        %v2130 = vld [vmem:[#allocation21 + $0x150] sm:$0xff]
        %v2131 = vld [vmem:[#allocation21 + $0x158] sm:$0xff]
        %v2132 = vld [vmem:[#allocation21 + $0x160] sm:$0xff]
        %v2133 = vld [vmem:[#allocation21 + $0x168] sm:$0xff]
        %v2134 = vld [vmem:[#allocation21 + $0x170] sm:$0xff]
        %v2135 = vld [vmem:[#allocation21 + $0x178] sm:$0xff]
        %v2136 = vld [vmem:[#allocation21 + $0x180] sm:$0xff]
        %v2137 = vld [vmem:[#allocation21 + $0x188] sm:$0xff]
        %v2138 = vld [vmem:[#allocation21 + $0x190] sm:$0xff]
        %v2139 = vld [vmem:[#allocation21 + $0x198] sm:$0xff]
        %v2140 = vld [vmem:[#allocation21 + $0x1a0] sm:$0xff]
        %v2141 = vld [vmem:[#allocation21 + $0x1a8] sm:$0xff]
        %v2142 = vld [vmem:[#allocation21 + $0x1b0] sm:$0xff]
        %v2143 = vld [vmem:[#allocation21 + $0x1b8] sm:$0xff]
        %v2144 = vld [vmem:[#allocation21 + $0x1c0] sm:$0xff]
        %v2145 = vld [vmem:[#allocation21 + $0x1c8] sm:$0xff]
        %v2146 = vld [vmem:[#allocation21 + $0x1d0] sm:$0xff]
        %v2147 = vld [vmem:[#allocation21 + $0x1d8] sm:$0xff]
        %v2148 = vld [vmem:[#allocation21 + $0x1e0] sm:$0xff]
        %v2149 = vld [vmem:[#allocation21 + $0x1e8] sm:$0xff]
        %v2150 = vld [vmem:[#allocation21 + $0x1f0] sm:$0xff]
        %v2151 = vld [vmem:[#allocation21 + $0x1f8] sm:$0xff]
        %v2152 = vld [vmem:[#allocation23] sm:$0xf]
        %v2154 = vlaneseq
        %v2155 = vshrl.u32 %v2154, 7
        %v2156 = vsub.s32 0, %v2155
        %v2157 = vrot.slane %v2152, %v2156
        %v2158 = vlaneseq
        %v2159 = vshrl.u32 %v2158, 7
        %v2160 = vsub.s32 1, %v2159
        %v2161 = vrot.slane %v2152, %v2160
        %v2162 = vlaneseq
        %v2163 = vshrl.u32 %v2162, 7
        %v2164 = vsub.s32 2, %v2163
        %v2165 = vrot.slane %v2152, %v2164
        %v2166 = vlaneseq
        %v2167 = vshrl.u32 %v2166, 7
        %v2168 = vsub.s32 3, %v2167
        %v2169 = vrot.slane %v2152, %v2168
        %v2238 = vunpack.c.l.b16 %v2088
        %v2239 = vunpack.c.h.b16 %v2088
        %v2240 = vunpack.c.l.b16 %v2089
        %v2241 = vunpack.c.h.b16 %v2089
        %v2242 = vunpack.c.l.b16 %v2090
        %v2243 = vunpack.c.h.b16 %v2090
        %v2244 = vunpack.c.l.b16 %v2091
        %v2245 = vunpack.c.h.b16 %v2091
        %v2246 = vunpack.c.l.b16 %v2092
        %v2247 = vunpack.c.h.b16 %v2092
        %v2248 = vunpack.c.l.b16 %v2093
        %v2249 = vunpack.c.h.b16 %v2093
        %v2250 = vunpack.c.l.b16 %v2094
        %v2251 = vunpack.c.h.b16 %v2094
        %v2252 = vunpack.c.l.b16 %v2095
        %v2253 = vunpack.c.h.b16 %v2095
        %v2254 = vunpack.c.l.b16 %v2096
        %v2255 = vunpack.c.h.b16 %v2096
        %v2256 = vunpack.c.l.b16 %v2097
        %v2257 = vunpack.c.h.b16 %v2097
        %v2258 = vunpack.c.l.b16 %v2098
        %v2259 = vunpack.c.h.b16 %v2098
        %v2260 = vunpack.c.l.b16 %v2099
        %v2261 = vunpack.c.h.b16 %v2099
        %v2262 = vunpack.c.l.b16 %v2100
        %v2263 = vunpack.c.h.b16 %v2100
        %v2264 = vunpack.c.l.b16 %v2101
        %v2265 = vunpack.c.h.b16 %v2101
        %v2266 = vunpack.c.l.b16 %v2102
        %v2267 = vunpack.c.h.b16 %v2102
        %v2268 = vunpack.c.l.b16 %v2103
        %v2269 = vunpack.c.h.b16 %v2103
        %v2270 = vunpack.c.l.b16 %v2104
        %v2271 = vunpack.c.h.b16 %v2104
        %v2272 = vunpack.c.l.b16 %v2105
        %v2273 = vunpack.c.h.b16 %v2105
        %v2274 = vunpack.c.l.b16 %v2106
        %v2275 = vunpack.c.h.b16 %v2106
        %v2276 = vunpack.c.l.b16 %v2107
        %v2277 = vunpack.c.h.b16 %v2107
        %v2278 = vunpack.c.l.b16 %v2108
        %v2279 = vunpack.c.h.b16 %v2108
        %v2280 = vunpack.c.l.b16 %v2109
        %v2281 = vunpack.c.h.b16 %v2109
        %v2282 = vunpack.c.l.b16 %v2110
        %v2283 = vunpack.c.h.b16 %v2110
        %v2284 = vunpack.c.l.b16 %v2111
        %v2285 = vunpack.c.h.b16 %v2111
        %v2286 = vunpack.c.l.b16 %v2112
        %v2287 = vunpack.c.h.b16 %v2112
        %v2288 = vunpack.c.l.b16 %v2113
        %v2289 = vunpack.c.h.b16 %v2113
        %v2290 = vunpack.c.l.b16 %v2114
        %v2291 = vunpack.c.h.b16 %v2114
        %v2292 = vunpack.c.l.b16 %v2115
        %v2293 = vunpack.c.h.b16 %v2115
        %v2294 = vunpack.c.l.b16 %v2116
        %v2295 = vunpack.c.h.b16 %v2116
        %v2296 = vunpack.c.l.b16 %v2117
        %v2297 = vunpack.c.h.b16 %v2117
        %v2298 = vunpack.c.l.b16 %v2118
        %v2299 = vunpack.c.h.b16 %v2118
        %v2300 = vunpack.c.l.b16 %v2119
        %v2301 = vunpack.c.h.b16 %v2119
        %v2302 = vunpack.c.l.b16 %v2120
        %v2303 = vunpack.c.h.b16 %v2120
        %v2304 = vunpack.c.l.b16 %v2121
        %v2305 = vunpack.c.h.b16 %v2121
        %v2306 = vunpack.c.l.b16 %v2122
        %v2307 = vunpack.c.h.b16 %v2122
        %v2308 = vunpack.c.l.b16 %v2123
        %v2309 = vunpack.c.h.b16 %v2123
        %v2310 = vunpack.c.l.b16 %v2124
        %v2311 = vunpack.c.h.b16 %v2124
        %v2312 = vunpack.c.l.b16 %v2125
        %v2313 = vunpack.c.h.b16 %v2125
        %v2314 = vunpack.c.l.b16 %v2126
        %v2315 = vunpack.c.h.b16 %v2126
        %v2316 = vunpack.c.l.b16 %v2127
        %v2317 = vunpack.c.h.b16 %v2127
        %v2318 = vunpack.c.l.b16 %v2128
        %v2319 = vunpack.c.h.b16 %v2128
        %v2320 = vunpack.c.l.b16 %v2129
        %v2321 = vunpack.c.h.b16 %v2129
        %v2322 = vunpack.c.l.b16 %v2130
        %v2323 = vunpack.c.h.b16 %v2130
        %v2324 = vunpack.c.l.b16 %v2131
        %v2325 = vunpack.c.h.b16 %v2131
        %v2326 = vunpack.c.l.b16 %v2132
        %v2327 = vunpack.c.h.b16 %v2132
        %v2328 = vunpack.c.l.b16 %v2133
        %v2329 = vunpack.c.h.b16 %v2133
        %v2330 = vunpack.c.l.b16 %v2134
        %v2331 = vunpack.c.h.b16 %v2134
        %v2332 = vunpack.c.l.b16 %v2135
        %v2333 = vunpack.c.h.b16 %v2135
        %v2334 = vunpack.c.l.b16 %v2136
        %v2335 = vunpack.c.h.b16 %v2136
        %v2336 = vunpack.c.l.b16 %v2137
        %v2337 = vunpack.c.h.b16 %v2137
        %v2338 = vunpack.c.l.b16 %v2138
        %v2339 = vunpack.c.h.b16 %v2138
        %v2340 = vunpack.c.l.b16 %v2139
        %v2341 = vunpack.c.h.b16 %v2139
        %v2342 = vunpack.c.l.b16 %v2140
        %v2343 = vunpack.c.h.b16 %v2140
        %v2344 = vunpack.c.l.b16 %v2141
        %v2345 = vunpack.c.h.b16 %v2141
        %v2346 = vunpack.c.l.b16 %v2142
        %v2347 = vunpack.c.h.b16 %v2142
        %v2348 = vunpack.c.l.b16 %v2143
        %v2349 = vunpack.c.h.b16 %v2143
        %v2350 = vunpack.c.l.b16 %v2144
        %v2351 = vunpack.c.h.b16 %v2144
        %v2352 = vunpack.c.l.b16 %v2145
        %v2353 = vunpack.c.h.b16 %v2145
        %v2354 = vunpack.c.l.b16 %v2146
        %v2355 = vunpack.c.h.b16 %v2146
        %v2356 = vunpack.c.l.b16 %v2147
        %v2357 = vunpack.c.h.b16 %v2147
        %v2358 = vunpack.c.l.b16 %v2148
        %v2359 = vunpack.c.h.b16 %v2148
        %v2360 = vunpack.c.l.b16 %v2149
        %v2361 = vunpack.c.h.b16 %v2149
        %v2362 = vunpack.c.l.b16 %v2150
        %v2363 = vunpack.c.h.b16 %v2150
        %v2364 = vunpack.c.l.b16 %v2151
        %v2365 = vunpack.c.h.b16 %v2151
        %v2366 = vpack.c.b16 %v2242, %v2238
        %v2367 = vpack.c.b16 %v2243, %v2239
        %v2368 = vpack.c.b16 %v2244, %v2240
        %v2369 = vpack.c.b16 %v2245, %v2241
        %v2370 = vpack.c.b16 %v2250, %v2246
        %v2371 = vpack.c.b16 %v2251, %v2247
        %v2372 = vpack.c.b16 %v2252, %v2248
        %v2373 = vpack.c.b16 %v2253, %v2249
        %v2374 = vpack.c.b16 %v2258, %v2254
        %v2375 = vpack.c.b16 %v2259, %v2255
        %v2376 = vpack.c.b16 %v2260, %v2256
        %v2377 = vpack.c.b16 %v2261, %v2257
        %v2378 = vpack.c.b16 %v2266, %v2262
        %v2379 = vpack.c.b16 %v2267, %v2263
        %v2380 = vpack.c.b16 %v2268, %v2264
        %v2381 = vpack.c.b16 %v2269, %v2265
        %v2382 = vpack.c.b16 %v2274, %v2270
        %v2383 = vpack.c.b16 %v2275, %v2271
        %v2384 = vpack.c.b16 %v2276, %v2272
        %v2385 = vpack.c.b16 %v2277, %v2273
        %v2386 = vpack.c.b16 %v2282, %v2278
        %v2387 = vpack.c.b16 %v2283, %v2279
        %v2388 = vpack.c.b16 %v2284, %v2280
        %v2389 = vpack.c.b16 %v2285, %v2281
        %v2390 = vpack.c.b16 %v2290, %v2286
        %v2391 = vpack.c.b16 %v2291, %v2287
        %v2392 = vpack.c.b16 %v2292, %v2288
        %v2393 = vpack.c.b16 %v2293, %v2289
        %v2394 = vpack.c.b16 %v2298, %v2294
        %v2395 = vpack.c.b16 %v2299, %v2295
        %v2396 = vpack.c.b16 %v2300, %v2296
        %v2397 = vpack.c.b16 %v2301, %v2297
        %v2398 = vpack.c.b16 %v2306, %v2302
        %v2399 = vpack.c.b16 %v2307, %v2303
        %v2400 = vpack.c.b16 %v2308, %v2304
        %v2401 = vpack.c.b16 %v2309, %v2305
        %v2402 = vpack.c.b16 %v2314, %v2310
        %v2403 = vpack.c.b16 %v2315, %v2311
        %v2404 = vpack.c.b16 %v2316, %v2312
        %v2405 = vpack.c.b16 %v2317, %v2313
        %v2406 = vpack.c.b16 %v2322, %v2318
        %v2407 = vpack.c.b16 %v2323, %v2319
        %v2408 = vpack.c.b16 %v2324, %v2320
        %v2409 = vpack.c.b16 %v2325, %v2321
        %v2410 = vpack.c.b16 %v2330, %v2326
        %v2411 = vpack.c.b16 %v2331, %v2327
        %v2412 = vpack.c.b16 %v2332, %v2328
        %v2413 = vpack.c.b16 %v2333, %v2329
        %v2414 = vpack.c.b16 %v2338, %v2334
        %v2415 = vpack.c.b16 %v2339, %v2335
        %v2416 = vpack.c.b16 %v2340, %v2336
        %v2417 = vpack.c.b16 %v2341, %v2337
        %v2418 = vpack.c.b16 %v2346, %v2342
        %v2419 = vpack.c.b16 %v2347, %v2343
        %v2420 = vpack.c.b16 %v2348, %v2344
        %v2421 = vpack.c.b16 %v2349, %v2345
        %v2422 = vpack.c.b16 %v2354, %v2350
        %v2423 = vpack.c.b16 %v2355, %v2351
        %v2424 = vpack.c.b16 %v2356, %v2352
        %v2425 = vpack.c.b16 %v2357, %v2353
        %v2426 = vpack.c.b16 %v2362, %v2358
        %v2427 = vpack.c.b16 %v2363, %v2359
        %v2428 = vpack.c.b16 %v2364, %v2360
        %v2429 = vpack.c.b16 %v2365, %v2361
        %2494 = vmatprep.subr.bf16.mxu0 %v2367
        %2495 = vmatpush1.bf16.msra.mxu0 %v2366
        %2496 = vmatprep.subr.bf16.mxu0 %v2371
        %2497 = vmatpush1.bf16.msra.mxu0 %v2370
        %2498 = vmatprep.subr.bf16.mxu0 %v2375
        %2499 = vmatpush1.bf16.msra.mxu0 %v2374
        %2500 = vmatprep.subr.bf16.mxu0 %v2379
        %2501 = vmatpush1.bf16.msra.mxu0 %v2378
        %2502 = vmatprep.subr.bf16.mxu0 %v2383
        %2503 = vmatpush1.bf16.msra.mxu0 %v2382
        %2504 = vmatprep.subr.bf16.mxu0 %v2387
        %2505 = vmatpush1.bf16.msra.mxu0 %v2386
        %2506 = vmatprep.subr.bf16.mxu0 %v2391
        %2507 = vmatpush1.bf16.msra.mxu0 %v2390
        %2508 = vmatprep.subr.bf16.mxu0 %v2395
        %2509 = vmatpush1.bf16.msra.mxu0 %v2394
        %2510 = vmatprep.subr.bf16.mxu0 %v2399
        %2511 = vmatpush1.bf16.msra.mxu0 %v2398
        %2512 = vmatprep.subr.bf16.mxu0 %v2403
        %2513 = vmatpush1.bf16.msra.mxu0 %v2402
        %2514 = vmatprep.subr.bf16.mxu0 %v2407
        %2515 = vmatpush1.bf16.msra.mxu0 %v2406
        %2516 = vmatprep.subr.bf16.mxu0 %v2411
        %2517 = vmatpush1.bf16.msra.mxu0 %v2410
        %2518 = vmatprep.subr.bf16.mxu0 %v2415
        %2519 = vmatpush1.bf16.msra.mxu0 %v2414
        %2520 = vmatprep.subr.bf16.mxu0 %v2419
        %2521 = vmatpush1.bf16.msra.mxu0 %v2418
        %2522 = vmatprep.subr.bf16.mxu0 %v2423
        %2523 = vmatpush1.bf16.msra.mxu0 %v2422
        %2524 = vmatprep.subr.bf16.mxu0 %v2427
        %2525 = vmatpush1.bf16.msra.mxu0 %v2426
        %2526 = vmatprep.mubr.bf16.mxu0 %v2087
        %2527 = vmatmul.mubr.bf16.gmra.mrb[0].mxu0 %v2086
        %v2528 = vpop.f32.mrb[0].mxu0
        %v2529 = vadd.f32 %v2157, %v2528
        %v2530 = vpop.f32.mrb[0].mxu0
        %v2531 = vadd.f32 %v2161, %v2530
        %v2532 = vpop.f32.mrb[0].mxu0
        %v2533 = vadd.f32 %v2157, %v2532
        %v2534 = vpop.f32.mrb[0].mxu0
        %v2535 = vadd.f32 %v2161, %v2534
        %2536 = vdwg.mxu0
        %2537 = vmatprep.subr.bf16.mxu0 %v2369
        %2538 = vmatpush1.bf16.msra.mxu0 %v2368
        %2539 = vmatprep.subr.bf16.mxu0 %v2373
        %2540 = vmatpush1.bf16.msra.mxu0 %v2372
        %2541 = vmatprep.subr.bf16.mxu0 %v2377
        %2542 = vmatpush1.bf16.msra.mxu0 %v2376
        %2543 = vmatprep.subr.bf16.mxu0 %v2381
        %2544 = vmatpush1.bf16.msra.mxu0 %v2380
        %2545 = vmatprep.subr.bf16.mxu0 %v2385
        %2546 = vmatpush1.bf16.msra.mxu0 %v2384
        %2547 = vmatprep.subr.bf16.mxu0 %v2389
        %2548 = vmatpush1.bf16.msra.mxu0 %v2388
        %2549 = vmatprep.subr.bf16.mxu0 %v2393
        %2550 = vmatpush1.bf16.msra.mxu0 %v2392
        %2551 = vmatprep.subr.bf16.mxu0 %v2397
        %2552 = vmatpush1.bf16.msra.mxu0 %v2396
        %2553 = vmatprep.subr.bf16.mxu0 %v2401
        %2554 = vmatpush1.bf16.msra.mxu0 %v2400
        %2555 = vmatprep.subr.bf16.mxu0 %v2405
        %2556 = vmatpush1.bf16.msra.mxu0 %v2404
        %2557 = vmatprep.subr.bf16.mxu0 %v2409
        %2558 = vmatpush1.bf16.msra.mxu0 %v2408
        %2559 = vmatprep.subr.bf16.mxu0 %v2413
        %2560 = vmatpush1.bf16.msra.mxu0 %v2412
        %2561 = vmatprep.subr.bf16.mxu0 %v2417
        %2562 = vmatpush1.bf16.msra.mxu0 %v2416
        %2563 = vmatprep.subr.bf16.mxu0 %v2421
        %2564 = vmatpush1.bf16.msra.mxu0 %v2420
        %2565 = vmatprep.subr.bf16.mxu0 %v2425
        %2566 = vmatpush1.bf16.msra.mxu0 %v2424
        %2567 = vmatprep.subr.bf16.mxu0 %v2429
        %2568 = vmatpush1.bf16.msra.mxu0 %v2428
        %2569 = vmatprep.mubr.bf16.mxu0 %v2087
        %2570 = vmatmul.mubr.bf16.gmra.mrb[0].mxu0 %v2086
        %v2571 = vpop.f32.mrb[0].mxu0
        %v2572 = vadd.f32 %v2165, %v2571
        %v2573 = vpop.f32.mrb[0].mxu0
        %v2574 = vadd.f32 %v2169, %v2573
        %v2575 = vpop.f32.mrb[0].mxu0
        %v2576 = vadd.f32 %v2165, %v2575
        %v2577 = vpop.f32.mrb[0].mxu0
        %v2578 = vadd.f32 %v2169, %v2577
        %2579 = vdwg.mxu0
        %v2580 = vmax.f32 %v2529, 0.0
        %v2581 = vmax.f32 %v2531, 0.0
        %v2582 = vmax.f32 %v2572, 0.0
        %v2583 = vmax.f32 %v2574, 0.0
        %v2584 = vmax.f32 %v2533, 0.0
        %v2585 = vmax.f32 %v2535, 0.0
        %v2586 = vmax.f32 %v2576, 0.0
        %v2587 = vmax.f32 %v2578, 0.0
        %v2588 = vpack.c.bf16 %v2584, %v2580
        %v2589 = vpack.c.bf16 %v2585, %v2581
        %v2590 = vpack.c.bf16 %v2586, %v2582
        %v2591 = vpack.c.bf16 %v2587, %v2583
        %v2592 = vld [vmem:[#allocation24] sm:$0xff]
        %v2593 = vld [vmem:[#allocation24 + $0x8] sm:$0xff]
        %v2594 = vld [vmem:[#allocation24 + $0x10] sm:$0xff]
        %v2595 = vld [vmem:[#allocation24 + $0x18] sm:$0xff]
        %v2596 = vld [vmem:[#allocation24 + $0x20] sm:$0xff]
        %v2597 = vld [vmem:[#allocation24 + $0x28] sm:$0xff]
        %v2598 = vld [vmem:[#allocation24 + $0x30] sm:$0xff]
        %v2599 = vld [vmem:[#allocation24 + $0x38] sm:$0xff]
        %v2600 = vld [vmem:[#allocation24 + $0x40] sm:$0xff]
        %v2601 = vld [vmem:[#allocation24 + $0x48] sm:$0xff]
        %v2602 = vld [vmem:[#allocation24 + $0x50] sm:$0xff]
        %v2603 = vld [vmem:[#allocation24 + $0x58] sm:$0xff]
        %v2604 = vld [vmem:[#allocation24 + $0x60] sm:$0xff]
        %v2605 = vld [vmem:[#allocation24 + $0x68] sm:$0xff]
        %v2606 = vld [vmem:[#allocation24 + $0x70] sm:$0xff]
        %v2607 = vld [vmem:[#allocation24 + $0x78] sm:$0xff]
        %v2608 = vld [vmem:[#allocation24 + $0x80] sm:$0xff]
        %v2609 = vld [vmem:[#allocation24 + $0x88] sm:$0xff]
        %v2610 = vld [vmem:[#allocation24 + $0x90] sm:$0xff]
        %v2611 = vld [vmem:[#allocation24 + $0x98] sm:$0xff]
        %v2612 = vld [vmem:[#allocation24 + $0xa0] sm:$0xff]
        %v2613 = vld [vmem:[#allocation24 + $0xa8] sm:$0xff]
        %v2614 = vld [vmem:[#allocation24 + $0xb0] sm:$0xff]
        %v2615 = vld [vmem:[#allocation24 + $0xb8] sm:$0xff]
        %v2616 = vld [vmem:[#allocation24 + $0xc0] sm:$0xff]
        %v2617 = vld [vmem:[#allocation24 + $0xc8] sm:$0xff]
        %v2618 = vld [vmem:[#allocation24 + $0xd0] sm:$0xff]
        %v2619 = vld [vmem:[#allocation24 + $0xd8] sm:$0xff]
        %v2620 = vld [vmem:[#allocation24 + $0xe0] sm:$0xff]
        %v2621 = vld [vmem:[#allocation24 + $0xe8] sm:$0xff]
        %v2622 = vld [vmem:[#allocation24 + $0xf0] sm:$0xff]
        %v2623 = vld [vmem:[#allocation24 + $0xf8] sm:$0xff]
        %v2624 = vld [vmem:[#allocation24 + $0x100] sm:$0xff]
        %v2625 = vld [vmem:[#allocation24 + $0x108] sm:$0xff]
        %v2626 = vld [vmem:[#allocation24 + $0x110] sm:$0xff]
        %v2627 = vld [vmem:[#allocation24 + $0x118] sm:$0xff]
        %v2628 = vld [vmem:[#allocation24 + $0x120] sm:$0xff]
        %v2629 = vld [vmem:[#allocation24 + $0x128] sm:$0xff]
        %v2630 = vld [vmem:[#allocation24 + $0x130] sm:$0xff]
        %v2631 = vld [vmem:[#allocation24 + $0x138] sm:$0xff]
        %v2632 = vld [vmem:[#allocation24 + $0x140] sm:$0xff]
        %v2633 = vld [vmem:[#allocation24 + $0x148] sm:$0xff]
        %v2634 = vld [vmem:[#allocation24 + $0x150] sm:$0xff]
        %v2635 = vld [vmem:[#allocation24 + $0x158] sm:$0xff]
        %v2636 = vld [vmem:[#allocation24 + $0x160] sm:$0xff]
        %v2637 = vld [vmem:[#allocation24 + $0x168] sm:$0xff]
        %v2638 = vld [vmem:[#allocation24 + $0x170] sm:$0xff]
        %v2639 = vld [vmem:[#allocation24 + $0x178] sm:$0xff]
        %v2640 = vld [vmem:[#allocation24 + $0x180] sm:$0xff]
        %v2641 = vld [vmem:[#allocation24 + $0x188] sm:$0xff]
        %v2642 = vld [vmem:[#allocation24 + $0x190] sm:$0xff]
        %v2643 = vld [vmem:[#allocation24 + $0x198] sm:$0xff]
        %v2644 = vld [vmem:[#allocation24 + $0x1a0] sm:$0xff]
        %v2645 = vld [vmem:[#allocation24 + $0x1a8] sm:$0xff]
        %v2646 = vld [vmem:[#allocation24 + $0x1b0] sm:$0xff]
        %v2647 = vld [vmem:[#allocation24 + $0x1b8] sm:$0xff]
        %v2648 = vld [vmem:[#allocation24 + $0x1c0] sm:$0xff]
        %v2649 = vld [vmem:[#allocation24 + $0x1c8] sm:$0xff]
        %v2650 = vld [vmem:[#allocation24 + $0x1d0] sm:$0xff]
        %v2651 = vld [vmem:[#allocation24 + $0x1d8] sm:$0xff]
        %v2652 = vld [vmem:[#allocation24 + $0x1e0] sm:$0xff]
        %v2653 = vld [vmem:[#allocation24 + $0x1e8] sm:$0xff]
        %v2654 = vld [vmem:[#allocation24 + $0x1f0] sm:$0xff]
        %v2655 = vld [vmem:[#allocation24 + $0x1f8] sm:$0xff]
        %v2656 = vld [vmem:[#allocation26] sm:$0x3]
        %v2658 = vlaneseq
        %v2659 = vshrl.u32 %v2658, 7
        %v2660 = vsub.s32 0, %v2659
        %v2661 = vrot.slane %v2656, %v2660
        %v2662 = vlaneseq
        %v2663 = vshrl.u32 %v2662, 7
        %v2664 = vsub.s32 1, %v2663
        %v2665 = vrot.slane %v2656, %v2664
        %v2732 = vunpack.c.l.b16 %v2592
        %v2733 = vunpack.c.h.b16 %v2592
        %v2734 = vunpack.c.l.b16 %v2593
        %v2735 = vunpack.c.h.b16 %v2593
        %v2736 = vunpack.c.l.b16 %v2594
        %v2737 = vunpack.c.h.b16 %v2594
        %v2738 = vunpack.c.l.b16 %v2595
        %v2739 = vunpack.c.h.b16 %v2595
        %v2740 = vunpack.c.l.b16 %v2596
        %v2741 = vunpack.c.h.b16 %v2596
        %v2742 = vunpack.c.l.b16 %v2597
        %v2743 = vunpack.c.h.b16 %v2597
        %v2744 = vunpack.c.l.b16 %v2598
        %v2745 = vunpack.c.h.b16 %v2598
        %v2746 = vunpack.c.l.b16 %v2599
        %v2747 = vunpack.c.h.b16 %v2599
        %v2748 = vunpack.c.l.b16 %v2600
        %v2749 = vunpack.c.h.b16 %v2600
        %v2750 = vunpack.c.l.b16 %v2601
        %v2751 = vunpack.c.h.b16 %v2601
        %v2752 = vunpack.c.l.b16 %v2602
        %v2753 = vunpack.c.h.b16 %v2602
        %v2754 = vunpack.c.l.b16 %v2603
        %v2755 = vunpack.c.h.b16 %v2603
        %v2756 = vunpack.c.l.b16 %v2604
        %v2757 = vunpack.c.h.b16 %v2604
        %v2758 = vunpack.c.l.b16 %v2605
        %v2759 = vunpack.c.h.b16 %v2605
        %v2760 = vunpack.c.l.b16 %v2606
        %v2761 = vunpack.c.h.b16 %v2606
        %v2762 = vunpack.c.l.b16 %v2607
        %v2763 = vunpack.c.h.b16 %v2607
        %v2764 = vunpack.c.l.b16 %v2608
        %v2765 = vunpack.c.h.b16 %v2608
        %v2766 = vunpack.c.l.b16 %v2609
        %v2767 = vunpack.c.h.b16 %v2609
        %v2768 = vunpack.c.l.b16 %v2610
        %v2769 = vunpack.c.h.b16 %v2610
        %v2770 = vunpack.c.l.b16 %v2611
        %v2771 = vunpack.c.h.b16 %v2611
        %v2772 = vunpack.c.l.b16 %v2612
        %v2773 = vunpack.c.h.b16 %v2612
        %v2774 = vunpack.c.l.b16 %v2613
        %v2775 = vunpack.c.h.b16 %v2613
        %v2776 = vunpack.c.l.b16 %v2614
        %v2777 = vunpack.c.h.b16 %v2614
        %v2778 = vunpack.c.l.b16 %v2615
        %v2779 = vunpack.c.h.b16 %v2615
        %v2780 = vunpack.c.l.b16 %v2616
        %v2781 = vunpack.c.h.b16 %v2616
        %v2782 = vunpack.c.l.b16 %v2617
        %v2783 = vunpack.c.h.b16 %v2617
        %v2784 = vunpack.c.l.b16 %v2618
        %v2785 = vunpack.c.h.b16 %v2618
        %v2786 = vunpack.c.l.b16 %v2619
        %v2787 = vunpack.c.h.b16 %v2619
        %v2788 = vunpack.c.l.b16 %v2620
        %v2789 = vunpack.c.h.b16 %v2620
        %v2790 = vunpack.c.l.b16 %v2621
        %v2791 = vunpack.c.h.b16 %v2621
        %v2792 = vunpack.c.l.b16 %v2622
        %v2793 = vunpack.c.h.b16 %v2622
        %v2794 = vunpack.c.l.b16 %v2623
        %v2795 = vunpack.c.h.b16 %v2623
        %v2796 = vunpack.c.l.b16 %v2624
        %v2797 = vunpack.c.h.b16 %v2624
        %v2798 = vunpack.c.l.b16 %v2625
        %v2799 = vunpack.c.h.b16 %v2625
        %v2800 = vunpack.c.l.b16 %v2626
        %v2801 = vunpack.c.h.b16 %v2626
        %v2802 = vunpack.c.l.b16 %v2627
        %v2803 = vunpack.c.h.b16 %v2627
        %v2804 = vunpack.c.l.b16 %v2628
        %v2805 = vunpack.c.h.b16 %v2628
        %v2806 = vunpack.c.l.b16 %v2629
        %v2807 = vunpack.c.h.b16 %v2629
        %v2808 = vunpack.c.l.b16 %v2630
        %v2809 = vunpack.c.h.b16 %v2630
        %v2810 = vunpack.c.l.b16 %v2631
        %v2811 = vunpack.c.h.b16 %v2631
        %v2812 = vunpack.c.l.b16 %v2632
        %v2813 = vunpack.c.h.b16 %v2632
        %v2814 = vunpack.c.l.b16 %v2633
        %v2815 = vunpack.c.h.b16 %v2633
        %v2816 = vunpack.c.l.b16 %v2634
        %v2817 = vunpack.c.h.b16 %v2634
        %v2818 = vunpack.c.l.b16 %v2635
        %v2819 = vunpack.c.h.b16 %v2635
        %v2820 = vunpack.c.l.b16 %v2636
        %v2821 = vunpack.c.h.b16 %v2636
        %v2822 = vunpack.c.l.b16 %v2637
        %v2823 = vunpack.c.h.b16 %v2637
        %v2824 = vunpack.c.l.b16 %v2638
        %v2825 = vunpack.c.h.b16 %v2638
        %v2826 = vunpack.c.l.b16 %v2639
        %v2827 = vunpack.c.h.b16 %v2639
        %v2828 = vunpack.c.l.b16 %v2640
        %v2829 = vunpack.c.h.b16 %v2640
        %v2830 = vunpack.c.l.b16 %v2641
        %v2831 = vunpack.c.h.b16 %v2641
        %v2832 = vunpack.c.l.b16 %v2642
        %v2833 = vunpack.c.h.b16 %v2642
        %v2834 = vunpack.c.l.b16 %v2643
        %v2835 = vunpack.c.h.b16 %v2643
        %v2836 = vunpack.c.l.b16 %v2644
        %v2837 = vunpack.c.h.b16 %v2644
        %v2838 = vunpack.c.l.b16 %v2645
        %v2839 = vunpack.c.h.b16 %v2645
        %v2840 = vunpack.c.l.b16 %v2646
        %v2841 = vunpack.c.h.b16 %v2646
        %v2842 = vunpack.c.l.b16 %v2647
        %v2843 = vunpack.c.h.b16 %v2647
        %v2844 = vunpack.c.l.b16 %v2648
        %v2845 = vunpack.c.h.b16 %v2648
        %v2846 = vunpack.c.l.b16 %v2649
        %v2847 = vunpack.c.h.b16 %v2649
        %v2848 = vunpack.c.l.b16 %v2650
        %v2849 = vunpack.c.h.b16 %v2650
        %v2850 = vunpack.c.l.b16 %v2651
        %v2851 = vunpack.c.h.b16 %v2651
        %v2852 = vunpack.c.l.b16 %v2652
        %v2853 = vunpack.c.h.b16 %v2652
        %v2854 = vunpack.c.l.b16 %v2653
        %v2855 = vunpack.c.h.b16 %v2653
        %v2856 = vunpack.c.l.b16 %v2654
        %v2857 = vunpack.c.h.b16 %v2654
        %v2858 = vunpack.c.l.b16 %v2655
        %v2859 = vunpack.c.h.b16 %v2655
        %v2860 = vpack.c.b16 %v2734, %v2732
        %v2861 = vpack.c.b16 %v2735, %v2733
        %v2862 = vpack.c.b16 %v2738, %v2736
        %v2863 = vpack.c.b16 %v2739, %v2737
        %v2864 = vpack.c.b16 %v2742, %v2740
        %v2865 = vpack.c.b16 %v2743, %v2741
        %v2866 = vpack.c.b16 %v2746, %v2744
        %v2867 = vpack.c.b16 %v2747, %v2745
        %v2868 = vpack.c.b16 %v2750, %v2748
        %v2869 = vpack.c.b16 %v2751, %v2749
        %v2870 = vpack.c.b16 %v2754, %v2752
        %v2871 = vpack.c.b16 %v2755, %v2753
        %v2872 = vpack.c.b16 %v2758, %v2756
        %v2873 = vpack.c.b16 %v2759, %v2757
        %v2874 = vpack.c.b16 %v2762, %v2760
        %v2875 = vpack.c.b16 %v2763, %v2761
        %v2876 = vpack.c.b16 %v2766, %v2764
        %v2877 = vpack.c.b16 %v2767, %v2765
        %v2878 = vpack.c.b16 %v2770, %v2768
        %v2879 = vpack.c.b16 %v2771, %v2769
        %v2880 = vpack.c.b16 %v2774, %v2772
        %v2881 = vpack.c.b16 %v2775, %v2773
        %v2882 = vpack.c.b16 %v2778, %v2776
        %v2883 = vpack.c.b16 %v2779, %v2777
        %v2884 = vpack.c.b16 %v2782, %v2780
        %v2885 = vpack.c.b16 %v2783, %v2781
        %v2886 = vpack.c.b16 %v2786, %v2784
        %v2887 = vpack.c.b16 %v2787, %v2785
        %v2888 = vpack.c.b16 %v2790, %v2788
        %v2889 = vpack.c.b16 %v2791, %v2789
        %v2890 = vpack.c.b16 %v2794, %v2792
        %v2891 = vpack.c.b16 %v2795, %v2793
        %v2892 = vpack.c.b16 %v2798, %v2796
        %v2893 = vpack.c.b16 %v2799, %v2797
        %v2894 = vpack.c.b16 %v2802, %v2800
        %v2895 = vpack.c.b16 %v2803, %v2801
        %v2896 = vpack.c.b16 %v2806, %v2804
        %v2897 = vpack.c.b16 %v2807, %v2805
        %v2898 = vpack.c.b16 %v2810, %v2808
        %v2899 = vpack.c.b16 %v2811, %v2809
        %v2900 = vpack.c.b16 %v2814, %v2812
        %v2901 = vpack.c.b16 %v2815, %v2813
        %v2902 = vpack.c.b16 %v2818, %v2816
        %v2903 = vpack.c.b16 %v2819, %v2817
        %v2904 = vpack.c.b16 %v2822, %v2820
        %v2905 = vpack.c.b16 %v2823, %v2821
        %v2906 = vpack.c.b16 %v2826, %v2824
        %v2907 = vpack.c.b16 %v2827, %v2825
        %v2908 = vpack.c.b16 %v2830, %v2828
        %v2909 = vpack.c.b16 %v2831, %v2829
        %v2910 = vpack.c.b16 %v2834, %v2832
        %v2911 = vpack.c.b16 %v2835, %v2833
        %v2912 = vpack.c.b16 %v2838, %v2836
        %v2913 = vpack.c.b16 %v2839, %v2837
        %v2914 = vpack.c.b16 %v2842, %v2840
        %v2915 = vpack.c.b16 %v2843, %v2841
        %v2916 = vpack.c.b16 %v2846, %v2844
        %v2917 = vpack.c.b16 %v2847, %v2845
        %v2918 = vpack.c.b16 %v2850, %v2848
        %v2919 = vpack.c.b16 %v2851, %v2849
        %v2920 = vpack.c.b16 %v2854, %v2852
        %v2921 = vpack.c.b16 %v2855, %v2853
        %v2922 = vpack.c.b16 %v2858, %v2856
        %v2923 = vpack.c.b16 %v2859, %v2857
        %2988 = vmatprep.subr.bf16.mxu0 %v2861
        %2989 = vmatpush1.bf16.msra.mxu0 %v2860
        %2990 = vmatprep.subr.bf16.mxu0 %v2863
        %2991 = vmatpush1.bf16.msra.mxu0 %v2862
        %2992 = vmatprep.subr.bf16.mxu0 %v2865
        %2993 = vmatpush1.bf16.msra.mxu0 %v2864
        %2994 = vmatprep.subr.bf16.mxu0 %v2867
        %2995 = vmatpush1.bf16.msra.mxu0 %v2866
        %2996 = vmatprep.subr.bf16.mxu0 %v2869
        %2997 = vmatpush1.bf16.msra.mxu0 %v2868
        %2998 = vmatprep.subr.bf16.mxu0 %v2871
        %2999 = vmatpush1.bf16.msra.mxu0 %v2870
        %3000 = vmatprep.subr.bf16.mxu0 %v2873
        %3001 = vmatpush1.bf16.msra.mxu0 %v2872
        %3002 = vmatprep.subr.bf16.mxu0 %v2875
        %3003 = vmatpush1.bf16.msra.mxu0 %v2874
        %3004 = vmatprep.subr.bf16.mxu0 %v2877
        %3005 = vmatpush1.bf16.msra.mxu0 %v2876
        %3006 = vmatprep.subr.bf16.mxu0 %v2879
        %3007 = vmatpush1.bf16.msra.mxu0 %v2878
        %3008 = vmatprep.subr.bf16.mxu0 %v2881
        %3009 = vmatpush1.bf16.msra.mxu0 %v2880
        %3010 = vmatprep.subr.bf16.mxu0 %v2883
        %3011 = vmatpush1.bf16.msra.mxu0 %v2882
        %3012 = vmatprep.subr.bf16.mxu0 %v2885
        %3013 = vmatpush1.bf16.msra.mxu0 %v2884
        %3014 = vmatprep.subr.bf16.mxu0 %v2887
        %3015 = vmatpush1.bf16.msra.mxu0 %v2886
        %3016 = vmatprep.subr.bf16.mxu0 %v2889
        %3017 = vmatpush1.bf16.msra.mxu0 %v2888
        %3018 = vmatprep.subr.bf16.mxu0 %v2891
        %3019 = vmatpush1.bf16.msra.mxu0 %v2890
        %3020 = vmatprep.mubr.bf16.mxu0 %v2589
        %3021 = vmatmul.mubr.bf16.gmra.mrb[0].mxu0 %v2588
        %v3022 = vpop.f32.mrb[0].mxu0
        %v3023 = vadd.f32 %v2661, %v3022
        %v3024 = vpop.f32.mrb[0].mxu0
        %v3025 = vadd.f32 %v2665, %v3024
        %v3026 = vpop.f32.mrb[0].mxu0
        %v3027 = vadd.f32 %v2661, %v3026
        %v3028 = vpop.f32.mrb[0].mxu0
        %v3029 = vadd.f32 %v2665, %v3028
        %3030 = vdwg.mxu0
        %3031 = vmatprep.subr.bf16.mxu0 %v2893
        %3032 = vmatpush1.bf16.msra.mxu0 %v2892
        %3033 = vmatprep.subr.bf16.mxu0 %v2895
        %3034 = vmatpush1.bf16.msra.mxu0 %v2894
        %3035 = vmatprep.subr.bf16.mxu0 %v2897
        %3036 = vmatpush1.bf16.msra.mxu0 %v2896
        %3037 = vmatprep.subr.bf16.mxu0 %v2899
        %3038 = vmatpush1.bf16.msra.mxu0 %v2898
        %3039 = vmatprep.subr.bf16.mxu0 %v2901
        %3040 = vmatpush1.bf16.msra.mxu0 %v2900
        %3041 = vmatprep.subr.bf16.mxu0 %v2903
        %3042 = vmatpush1.bf16.msra.mxu0 %v2902
        %3043 = vmatprep.subr.bf16.mxu0 %v2905
        %3044 = vmatpush1.bf16.msra.mxu0 %v2904
        %3045 = vmatprep.subr.bf16.mxu0 %v2907
        %3046 = vmatpush1.bf16.msra.mxu0 %v2906
        %3047 = vmatprep.subr.bf16.mxu0 %v2909
        %3048 = vmatpush1.bf16.msra.mxu0 %v2908
        %3049 = vmatprep.subr.bf16.mxu0 %v2911
        %3050 = vmatpush1.bf16.msra.mxu0 %v2910
        %3051 = vmatprep.subr.bf16.mxu0 %v2913
        %3052 = vmatpush1.bf16.msra.mxu0 %v2912
        %3053 = vmatprep.subr.bf16.mxu0 %v2915
        %3054 = vmatpush1.bf16.msra.mxu0 %v2914
        %3055 = vmatprep.subr.bf16.mxu0 %v2917
        %3056 = vmatpush1.bf16.msra.mxu0 %v2916
        %3057 = vmatprep.subr.bf16.mxu0 %v2919
        %3058 = vmatpush1.bf16.msra.mxu0 %v2918
        %3059 = vmatprep.subr.bf16.mxu0 %v2921
        %3060 = vmatpush1.bf16.msra.mxu0 %v2920
        %3061 = vmatprep.subr.bf16.mxu0 %v2923
        %3062 = vmatpush1.bf16.msra.mxu0 %v2922
        %3063 = vmatprep.mubr.bf16.mxu0 %v2591
        %3064 = vmatmul.mubr.bf16.gmra.mrb[0].mxu0 %v2590
        %v3065 = vpop.f32.mrb[0].mxu0
        %v3066 = vadd.f32 %v3023, %v3065
        %v3067 = vpop.f32.mrb[0].mxu0
        %v3068 = vadd.f32 %v3025, %v3067
        %v3069 = vpop.f32.mrb[0].mxu0
        %v3070 = vadd.f32 %v3027, %v3069
        %v3071 = vpop.f32.mrb[0].mxu0
        %v3072 = vadd.f32 %v3029, %v3071
        %3073 = vdwg.mxu0
        %3074 = vst [vmem:[%s753] sm:$0xff] %v3066
        %3075 = vst [vmem:[%s753 + $0x8] sm:$0xff] %v3068
        %3076 = vst [vmem:[%s753 + $0x10] sm:$0xff] %v3070
        %3077 = vst [vmem:[%s753 + $0x18] sm:$0xff] %v3072
        %s3078 = sand.u32 %s395, 1
        %s3079 = scalar_lea.sflag [#allocation5], %s3078
        %s3080 = sand.u32 %s395, 1
        %s3081 = smul.addr %s3080, 32
        %s3082 = scalar_lea.vmem [#allocation27], %s3081
        // Predicated region
        $region145: #{decoder_layer_c_forward.7} parent=79 // pred_check
          %p3083 = pneg %p405
        $region146: #{decoder_layer_c_forward.7} parent=79 // pred_check_branch
          %3085 = sbr.rel (%p3083) target = $region148
        $region147: #{decoder_layer_c_forward.7} parent=79 // pred_region
          %s3086 = smul.u32 2, %s46
          %s3088 = ssub.s32 512, 512
          %3089 = vsyncadd %s3079, %s3088
          %s3090 = smul.addr %s3086, 2
          %s3091 = smul.addr %s45, 4
          %s3092 = sadd.s32 %s3090, %s3091
          %s3093 = smul.addr %s3092, 128
          %s3094 = scalar_lea.hbm %s15, %s3093
          %s3095 = sshll.u32 %s3082, 4
          %s3096 = int_to_ptr.vmem [resolvable:$true] %s3095
          %3101 = dma.vmem_to_hbm [thread:$0]  %s3096, 512, %s3094, %s3079, 256, 256, 16
        $region148: #{decoder_layer_c_forward.7} parent=79 // pred_fallthru
          _
      $region80: #{decoder_layer_c_forward.7} parent=5 // pred_fallthru
        _
      %p3102 = scmp.le.s32.totalorder 2, %s36
      // Predicated region
      $region149: #{decoder_layer_c_forward.7} parent=5 // pred_check
        %p3103 = pneg %p3102
      $region150: #{decoder_layer_c_forward.7} parent=5 // pred_check_branch
        %3105 = sbr.rel (%p3103) target = $region152
      $region151: #{decoder_layer_c_forward.7} parent=5 // pred_region
        %s3106 = ssub.s32 %s36, 2
        // Predicated region
        $region153: #{decoder_layer_c_forward.7} parent=151 // pred_check
          %p3107 = pneg %p411
        $region154: #{decoder_layer_c_forward.7} parent=151 // pred_check_branch
          %3109 = sbr.rel (%p3107) target = $region156
        $region155: #{decoder_layer_c_forward.7} parent=151 // pred_region
          %s3110 = sand.u32 %s396, 1
          %s3111 = scalar_lea.sflag [#allocation5], %s3110
          %s3112 = sand.u32 %s396, 1
          %s3113 = smul.addr %s3112, 32
          %s3114 = scalar_lea.vmem [#allocation27], %s3113
          %3115 = dma.done %s3111, 512
        $region156: #{decoder_layer_c_forward.7} parent=151 // pred_fallthru
          _
      $region152: #{decoder_layer_c_forward.7} parent=5 // pred_fallthru
        _
    $region6: #{decoder_layer_c_forward.7} parent=1 // loop_footer
      %s40 = sadd.s32 1, %s36
    $region7: #{decoder_layer_c_forward.7} parent=1 // loop_footer_branch
      %35 = sbr.rel target = $region3
    $region8: #{decoder_layer_c_forward.7} parent=1 // loop_exit
      _
    %3116 = vsyncpa [#allocation4], 1
    %s3117 = scalar_lea.sflag [#allocation4], 1
    %3118 = vsyncpa %s3117, 1
    %3119 = vsyncpa [#allocation7], 1
    %s3120 = scalar_lea.sflag [#allocation7], 1
    %3121 = vsyncpa %s3120, 1
    %3122 = vsyncpa [#allocation10], 1
    %3123 = vsyncpa [#allocation13], 1
    %3124 = vsyncpa [#allocation16], 1
    %3125 = vsyncpa [#allocation19], 1
    %3126 = vsyncpa [#allocation22], 1
    %3127 = vsyncpa [#allocation25], 1
    %3128 = vsyncpa [#allocation5], 1
    %s3129 = scalar_lea.sflag [#allocation5], 1
    %3130 = vsyncpa %s3129, 1

</llo_original>
